<compile_context>
chip_gen: v7x
topology: tpu7x:2x2x1
jax: 0.10.0
libtpu: 0.0.40
codegen_flags: <defaults>
</compile_context>

<pallas_src>
import functools

import jax
import jax.numpy as jnp
from jax.experimental import pallas as pl
from jax.experimental.pallas import tpu as pltpu

LANE = 128  # channel padding / lane width used for all activations


# --------------------------------------------------------------------------
# helpers
# --------------------------------------------------------------------------
def _round_up(x, m):
    return (x + m - 1) // m * m


def _bn_fold(bn, cout):
    """Inference BatchNorm -> per-channel (scale, shift), padded to LANE."""
    scale = bn["gamma"] / jnp.sqrt(bn["var"] + 1e-5)
    shift = bn["beta"] - bn["mean"] * scale
    s = jnp.pad(scale.astype(jnp.float32), (0, LANE - cout)).reshape(1, LANE)
    t = jnp.pad(shift.astype(jnp.float32), (0, LANE - cout)).reshape(1, LANE)
    return s, t


# --------------------------------------------------------------------------
# fused conv (im2col matmul) kernel: matmul + residual + BN affine + ReLU
# --------------------------------------------------------------------------
def _conv_kernel(*refs, relu, residual, dual):
    if residual:
        x_ref, w_ref, sc_ref, sh_ref, res_ref = refs[:5]
        rest = refs[5:]
    else:
        x_ref, w_ref, sc_ref, sh_ref = refs[:4]
        res_ref = None
        rest = refs[4:]
    if dual:
        act_ref, raw_ref, acc_ref = rest
    else:
        act_ref, acc_ref = rest
        raw_ref = None

    k = pl.program_id(1)

    @pl.when(k == 0)
    def _init():
        acc_ref[...] = jnp.zeros_like(acc_ref)

    acc_ref[...] += jnp.dot(x_ref[...], w_ref[...],
                            preferred_element_type=jnp.float32)

    # Epilogue only on the last K step: residual add, optional raw output,
    # folded-BN affine + ReLU, single (guarded) store.
    @pl.when(k == pl.num_programs(1) - 1)
    def _finalize():
        acc = acc_ref[...]
        if residual:
            acc = acc + res_ref[...].astype(jnp.float32)
        if dual:
            raw_ref[...] = acc.astype(raw_ref.dtype)
        y = acc * sc_ref[...] + sh_ref[...]
        if relu:
            y = jnp.maximum(y, 0.0)
        act_ref[...] = y.astype(act_ref.dtype)


def fused_conv_matmul(patches, w_slab, scale, shift, *, residual=None,
                      relu=True, dual=False, act_dtype=jnp.bfloat16):
    """patches: [M, K] bf16, w_slab: [K, LANE] bf16, scale/shift: [1, LANE] f32.

    Returns act [M, LANE] (act_dtype); if dual also returns raw [M, LANE] f32
    (pre-affine accumulator, used as a residual source later)."""
    M, K = patches.shape
    assert w_slab.shape == (K, LANE)

    tm = 256 if M >= 512 else max(8, _round_up(M, 8))
    Mp = _round_up(M, tm)
    tk = K if K <= 1024 else 512
    Kp = _round_up(K, tk)

    if Mp != M or Kp != K:
        patches = jnp.pad(patches, ((0, Mp - M), (0, Kp - K)))
    if Kp != K:
        w_slab = jnp.pad(w_slab, ((0, Kp - K), (0, 0)))

    grid = (Mp // tm, Kp // tk)

    in_specs = [pl.BlockSpec((tm, tk), lambda i, k: (i, k)),
                pl.BlockSpec((tk, LANE), lambda i, k: (k, 0)),
                pl.BlockSpec((1, LANE), lambda i, k: (0, 0)),
                pl.BlockSpec((1, LANE), lambda i, k: (0, 0))]
    args = [patches, w_slab, scale, shift]
    if residual is not None:
        res = residual.astype(jnp.float32)
        if res.shape[0] != Mp:
            res = jnp.pad(res, ((0, Mp - res.shape[0]), (0, 0)))
        in_specs.append(pl.BlockSpec((tm, LANE), lambda i, k: (i, 0)))
        args.append(res)

    out_shapes = [jax.ShapeDtypeStruct((Mp, LANE), act_dtype)]
    out_specs = [pl.BlockSpec((tm, LANE), lambda i, k: (i, 0))]
    if dual:
        out_shapes.append(jax.ShapeDtypeStruct((Mp, LANE), jnp.float32))
        out_specs.append(pl.BlockSpec((tm, LANE), lambda i, k: (i, 0)))

    flops = 2 * Mp * Kp * LANE
    bytes_accessed = (Mp * Kp * 2 + Kp * LANE * 2
                      + Mp * LANE * 4 * (len(out_shapes)
                                         + (1 if residual is not None else 0)))

    kernel = functools.partial(_conv_kernel, relu=relu,
                               residual=residual is not None, dual=dual)
    outs = pl.pallas_call(
        kernel,
        out_shape=out_shapes,
        grid=grid,
        in_specs=in_specs,
        out_specs=out_specs,
        scratch_shapes=[pltpu.VMEM((tm, LANE), jnp.float32)],
        compiler_params=pltpu.CompilerParams(
            dimension_semantics=("parallel", "arbitrary")),
        cost_estimate=pl.CostEstimate(flops=flops, transcendentals=0,
                                      bytes_accessed=bytes_accessed),
    )(*args)

    act = outs[0][:M]
    if dual:
        return act, outs[1][:M]
    return act


# --------------------------------------------------------------------------
# conv wrappers (im2col glue stays in XLA; everything else in the kernel)
# --------------------------------------------------------------------------
def conv3x3_fused(x_act, w, scale, shift, *, stride, relu=True,
                  residual=None, dual=False):
    """x_act: [N, H, W, LANE] bf16 (channels >= Cin, rest zero-padded).
    w: [Cout, Cin, 3, 3] (PyTorch layout), padding=1, no bias."""
    N, H, W_, _ = x_act.shape
    Cout, Cin = w.shape[0], w.shape[1]
    xp = jnp.pad(x_act[..., :Cin], ((0, 0), (1, 1), (1, 1), (0, 0)))
    Ho = (H + 2 - 3) // stride + 1
    Wo = (W_ + 2 - 3) // stride + 1
    cols = []
    for i in range(3):
        for j in range(3):
            cols.append(xp[:, i:i + stride * (Ho - 1) + 1:stride,
                           j:j + stride * (Wo - 1) + 1:stride, :])
    K = 9 * Cin
    Kp = _round_up(K, LANE)
    patches = jnp.concatenate(cols, axis=-1).reshape(N * Ho * Wo, K)
    patches = jnp.pad(patches, ((0, 0), (0, Kp - K))).astype(jnp.bfloat16)
    wm = jnp.transpose(w, (2, 3, 1, 0)).reshape(K, Cout)
    wm = jnp.pad(wm, ((0, Kp - K), (0, LANE - Cout))).astype(jnp.bfloat16)

    out = fused_conv_matmul(patches, wm, scale, shift, residual=residual,
                            relu=relu, dual=dual, act_dtype=jnp.bfloat16)
    if dual:
        act, raw = out
        return act.reshape(N, Ho, Wo, LANE), raw
    return out.reshape(N, Ho, Wo, LANE)


def conv1x1_fused(x_act, w, *, stride):
    """1x1 shortcut conv, raw (no BN/ReLU) output in f32 for the residual."""
    N, H, W_, _ = x_act.shape
    Cout, Cin = w.shape[0], w.shape[1]
    xs = x_act[:, ::stride, ::stride, :]
    Ho, Wo = xs.shape[1], xs.shape[2]
    patches = xs.reshape(N * Ho * Wo, LANE).astype(jnp.bfloat16)
    wm = jnp.transpose(w, (2, 3, 1, 0)).reshape(Cin, Cout)
    wm = jnp.pad(wm, ((0, LANE - Cin), (0, LANE - Cout))).astype(jnp.bfloat16)
    ones = jnp.ones((1, LANE), jnp.float32)
    zeros = jnp.zeros((1, LANE), jnp.float32)
    return fused_conv_matmul(patches, wm, ones, zeros, relu=False,
                             act_dtype=jnp.float32)


# --------------------------------------------------------------------------
# fused head: global average pool + fc + classifier_3 in one kernel
# --------------------------------------------------------------------------
def _head_kernel(x_ref, fcw_ref, fcb_ref, c3w_ref, c3b_ref, o_ref, *, inv_hw):
    feat = jnp.sum(x_ref[...].astype(jnp.float32), axis=1) * inv_hw
    h = jnp.dot(feat, fcw_ref[...],
                preferred_element_type=jnp.float32) + fcb_ref[...]
    o_ref[...] = jnp.dot(h, c3w_ref[...],
                         preferred_element_type=jnp.float32) + c3b_ref[...]


def fused_head(x_act, fc_w, fc_b, cls3_w, cls3_b, *, num_classes):
    N, H, W_, _ = x_act.shape
    HW = H * W_
    HWp = _round_up(HW, 8)
    xr = jnp.pad(x_act.reshape(N, HW, LANE), ((0, 0), (0, HWp - HW), (0, 0)))
    cin = fc_w.shape[1]
    fcw = jnp.pad(fc_w.T, ((0, LANE - cin), (0, LANE - num_classes))
                  ).astype(jnp.float32)
    fcb = jnp.pad(fc_b, (0, LANE - num_classes)).reshape(1, LANE
                                                         ).astype(jnp.float32)
    c3w = jnp.pad(cls3_w.T, ((0, LANE - num_classes), (0, LANE - num_classes))
                  ).astype(jnp.float32)
    c3b = jnp.pad(cls3_b, (0, LANE - num_classes)).reshape(1, LANE
                                                           ).astype(jnp.float32)
    out = pl.pallas_call(
        functools.partial(_head_kernel, inv_hw=1.0 / float(HW)),
        out_shape=jax.ShapeDtypeStruct((N, LANE), jnp.float32),
        grid=(1,),
        in_specs=[pl.BlockSpec((N, HWp, LANE), lambda i: (0, 0, 0)),
                  pl.BlockSpec((LANE, LANE), lambda i: (0, 0)),
                  pl.BlockSpec((1, LANE), lambda i: (0, 0)),
                  pl.BlockSpec((LANE, LANE), lambda i: (0, 0)),
                  pl.BlockSpec((1, LANE), lambda i: (0, 0))],
        out_specs=pl.BlockSpec((N, LANE), lambda i: (0, 0)),
        compiler_params=pltpu.CompilerParams(
            dimension_semantics=("arbitrary",)),
    )(xr, fcw, fcb, c3w, c3b)
    return out[:, :num_classes]


# --------------------------------------------------------------------------
# HAFrameWideResNet forward (pre-activation WRN-10 backbone + linear head)
# --------------------------------------------------------------------------
def haframe_wrn_forward(x_nchw, params):
    p = params
    b1, b2, b3 = p["block1"], p["block2"], p["block3"]

    # fold every BatchNorm once
    s_b1bn1 = _bn_fold(b1["bn1"], 16)
    s_b1bn2 = _bn_fold(b1["bn2"], 16)
    s_b2bn1 = _bn_fold(b2["bn1"], 16)
    s_b2bn2 = _bn_fold(b2["bn2"], 32)
    s_b3bn1 = _bn_fold(b3["bn1"], 32)
    s_b3bn2 = _bn_fold(b3["bn2"], 64)
    s_bnf = _bn_fold(p["bn_final"], 64)

    x_img = jnp.transpose(x_nchw, (0, 2, 3, 1)).astype(jnp.bfloat16)  # NHWC

    # 1) stem conv; epilogue = block1.bn1+ReLU; raw kept for block1 residual
    a1, x0_raw = conv3x3_fused(x_img, p["conv1_w"], *s_b1bn1, stride=1,
                               relu=True, dual=True)
    # 2) block1.conv1 ; epilogue = block1.bn2+ReLU
    h1 = conv3x3_fused(a1, b1["conv1_w"], *s_b1bn2, stride=1, relu=True)
    # 3) block1.conv2 + residual(x0) ; epilogue = block2.bn1+ReLU
    a2 = conv3x3_fused(h1, b1["conv2_w"], *s_b2bn1, stride=1, relu=True,
                       residual=x0_raw)
    # 4) block2 shortcut (1x1, stride 2), raw f32
    sc2 = conv1x1_fused(a2, b2["conv_sc_w"], stride=2)
    # 5) block2.conv1 (stride 2) ; epilogue = block2.bn2+ReLU
    h2 = conv3x3_fused(a2, b2["conv1_w"], *s_b2bn2, stride=2, relu=True)
    # 6) block2.conv2 + residual(sc2) ; epilogue = block3.bn1+ReLU
    a3 = conv3x3_fused(h2, b2["conv2_w"], *s_b3bn1, stride=1, relu=True,
                       residual=sc2)
    # 7) block3 shortcut (1x1, stride 2)
    sc3 = conv1x1_fused(a3, b3["conv_sc_w"], stride=2)
    # 8) block3.conv1 (stride 2) ; epilogue = block3.bn2+ReLU
    h3 = conv3x3_fused(a3, b3["conv1_w"], *s_b3bn2, stride=2, relu=True)
    # 9) block3.conv2 + residual(sc3) ; epilogue = bn_final+ReLU
    xf = conv3x3_fused(h3, b3["conv2_w"], *s_bnf, stride=1, relu=True,
                       residual=sc3)
    # 10) fused head: global-avg-pool -> fc -> classifier_3
    num_classes = p["cls3_b"].shape[0]
    logits = fused_head(xf, p["fc_w"], p["fc_b"], p["cls3_w"], p["cls3_b"],
                        num_classes=num_classes)
    return logits


# --------------------------------------------------------------------------
# pure-JAX f32 reference (for a loose numerical sanity check)
# --------------------------------------------------------------------------
def _bn_ref(x, bn):
    scale = bn["gamma"] / jnp.sqrt(bn["var"] + 1e-5)
    shift = bn["beta"] - bn["mean"] * scale
    return x * scale + shift


def _conv_ref(x, w, stride):
    pad = w.shape[2] // 2
    return jax.lax.conv_general_dilated(
        x, jnp.transpose(w, (2, 3, 1, 0)),
        window_strides=(stride, stride),
        padding=[(pad, pad), (pad, pad)],
        dimension_numbers=("NHWC", "HWIO", "NHWC"))


def reference_forward(x_nchw, p):
    x = jnp.transpose(x_nchw, (0, 2, 3, 1)).astype(jnp.float32)
    x0 = _conv_ref(x, p["conv1_w"], 1)

    def block(x_in, bp, stride, equal):
        a = jax.nn.relu(_bn_ref(x_in, bp["bn1"]))
        out = _conv_ref(a, bp["conv1_w"], stride)
        out = jax.nn.relu(_bn_ref(out, bp["bn2"]))
        out = _conv_ref(out, bp["conv2_w"], 1)
        short = x_in if equal else _conv_ref(a, bp["conv_sc_w"], stride)
        return out + short

    x1 = block(x0, p["block1"], 1, True)
    x2 = block(x1, p["block2"], 2, False)
    x3 = block(x2, p["block3"], 2, False)
    xf = jax.nn.relu(_bn_ref(x3, p["bn_final"]))
    feat = jnp.mean(xf, axis=(1, 2))
    feat = feat @ p["fc_w"].T + p["fc_b"]
    return feat @ p["cls3_w"].T + p["cls3_b"]


# --------------------------------------------------------------------------
# deterministic parameter init (WideResNet-10, widen_factor=1)
# --------------------------------------------------------------------------
def _conv_init(key, cout, cin, k):
    fan = cin * k * k
    return (jax.random.normal(key, (cout, cin, k, k), jnp.float32)
            * jnp.sqrt(2.0 / fan))


def _bn_init(key, c):
    k1, k2, k3 = jax.random.split(key, 3)
    return dict(
        gamma=1.0 + 0.1 * jax.random.normal(k1, (c,), jnp.float32),
        beta=0.1 * jax.random.normal(k2, (c,), jnp.float32),
        mean=0.1 * jax.random.normal(k3, (c,), jnp.float32),
        var=jnp.ones((c,), jnp.float32),
    )


def _block_init(key, cin, cout):
    ks = jax.random.split(key, 5)
    p = dict(
        bn1=_bn_init(ks[0], cin),
        conv1_w=_conv_init(ks[1], cout, cin, 3),
        bn2=_bn_init(ks[2], cout),
        conv2_w=_conv_init(ks[3], cout, cout, 3),
    )
    if cin != cout:
        p["conv_sc_w"] = _conv_init(ks[4], cout, cin, 1)
    return p


def init_params(key, num_classes=8):
    stages = [16, 16, 32, 64]
    ks = jax.random.split(key, 10)
    return dict(
        conv1_w=_conv_init(ks[0], stages[0], 3, 3),
        block1=_block_init(ks[1], stages[0], stages[1]),
        block2=_block_init(ks[2], stages[1], stages[2]),
        block3=_block_init(ks[3], stages[2], stages[3]),
        bn_final=_bn_init(ks[4], stages[3]),
        fc_w=(jax.random.normal(ks[5], (num_classes, stages[3]), jnp.float32)
              * jnp.sqrt(1.0 / stages[3])),
        fc_b=0.01 * jax.random.normal(ks[6], (num_classes,), jnp.float32),
        cls3_w=(jax.random.normal(ks[7], (num_classes, num_classes),
                                  jnp.float32)
                * jnp.sqrt(1.0 / num_classes)),
        cls3_b=0.01 * jax.random.normal(ks[8], (num_classes,), jnp.float32),
    )


# --------------------------------------------------------------------------
if __name__ == "__main__":
    key = jax.random.PRNGKey(0)
    kx, kp = jax.random.split(key)
    num_classes = 8
    x = jax.random.normal(kx, (2, 3, 16, 16), jnp.float32)  # NCHW like PyTorch
    params = init_params(kp, num_classes=num_classes)

    fwd = jax.jit(haframe_wrn_forward)
    logits = fwd(x, params)
    jax.block_until_ready(logits)

    assert logits.shape == (2, num_classes)
    assert bool(jnp.all(jnp.isfinite(logits)))

    # loose sanity check against an f32 XLA reference (kernels use bf16 MXU
    # operands with f32 accumulation, so allow a generous tolerance).
    ref = jax.jit(reference_forward)(x, params)
    err = float(jnp.max(jnp.abs(logits - ref)))
    scale = float(jnp.max(jnp.abs(ref)))
    assert err <= 0.1 * (1.0 + scale), f"mismatch: err={err}, ref_scale={scale}"

    print("KERNEL_OK")
</pallas_src>

<mosaic_0001>
module attributes {stable_mosaic.version = 11 : i64} {
  func.func @_conv_kernel(%arg0: i32, %arg1: i32, %arg2: memref<256x128xbf16, #tpu.memory_space<vmem>>, %arg3: memref<128x128xbf16, #tpu.memory_space<vmem>>, %arg4: memref<1x128xf32, #tpu.memory_space<vmem>>, %arg5: memref<1x128xf32, #tpu.memory_space<vmem>>, %arg6: memref<256x128xbf16, #tpu.memory_space<vmem>>, %arg7: memref<256x128xf32, #tpu.memory_space<vmem>>, %arg8: memref<256x128xf32, #tpu.memory_space<vmem>>) attributes {dimension_semantics = [#tpu.dimension_semantics<parallel>, #tpu.dimension_semantics<arbitrary>], iteration_bounds = array<i64: 2, 1>, scalar_prefetch = 0 : i64, scratch_operands = 1 : i64, tpu.core_type = #tpu.core_type<tc>, window_params = [{transform_indices = @transform_0, window_bounds = array<i64: 256, 128>}, {transform_indices = @transform_1, window_bounds = array<i64: 128, 128>}, {pipeline_mode = #tpu.pipeline_mode<synchronous>, transform_indices = @transform_2, window_bounds = array<i64: 1, 128>}, {pipeline_mode = #tpu.pipeline_mode<synchronous>, transform_indices = @transform_3, window_bounds = array<i64: 1, 128>}, {transform_indices = @transform_4, window_bounds = array<i64: 256, 128>}, {transform_indices = @transform_5, window_bounds = array<i64: 256, 128>}]} {
    %c0_i32 = arith.constant 0 : i32
    %0 = arith.cmpi eq, %arg1, %c0_i32 : i32
    %1 = arith.extui %0 : i1 to i32
    %c0_i32_0 = arith.constant 0 : i32
    %2 = arith.cmpi ne, %1, %c0_i32_0 : i32
    scf.if %2 {
      %cst_10 = arith.constant 0.000000e+00 : f32
      %12 = vector.broadcast %cst_10 : f32 to vector<256x128xf32>
      %c0_11 = arith.constant 0 : index
      %c0_12 = arith.constant 0 : index
      %13 = vector.load %arg8[%c0_11, %c0_12] : memref<256x128xf32, #tpu.memory_space<vmem>>, vector<256x128xf32>
      tpu.vector_store %arg8[%c0_11, %c0_12], %12 {strides = array<i32>} : memref<256x128xf32, #tpu.memory_space<vmem>>, vector<256x128xf32>,
    } else {
    }
    %c0 = arith.constant 0 : index
    %c0_1 = arith.constant 0 : index
    %3 = vector.load %arg8[%c0, %c0_1] : memref<256x128xf32, #tpu.memory_space<vmem>>, vector<256x128xf32>
    %c0_2 = arith.constant 0 : index
    %c0_3 = arith.constant 0 : index
    %4 = vector.load %arg2[%c0_2, %c0_3] : memref<256x128xbf16, #tpu.memory_space<vmem>>, vector<256x128xbf16>
    %c0_4 = arith.constant 0 : index
    %c0_5 = arith.constant 0 : index
    %5 = vector.load %arg3[%c0_4, %c0_5] : memref<128x128xbf16, #tpu.memory_space<vmem>>, vector<128x128xbf16>
    %cst = arith.constant dense<0.000000e+00> : vector<256x128xf32>
    %6 = tpu.matmul %4, %5, %cst {dimension_numbers = #tpu.dot_dimension_numbers<[1], [0], [0], [1], [0, 0, 1, 1], [], []>} : vector<256x128xbf16>, vector<128x128xbf16>, vector<256x128xf32> -> vector<256x128xf32>
    %7 = arith.addf %3, %6 : vector<256x128xf32>
    %c0_6 = arith.constant 0 : index
    %c0_7 = arith.constant 0 : index
    %8 = vector.load %arg8[%c0_6, %c0_7] : memref<256x128xf32, #tpu.memory_space<vmem>>, vector<256x128xf32>
    tpu.vector_store %arg8[%c0_6, %c0_7], %7 {strides = array<i32>} : memref<256x128xf32, #tpu.memory_space<vmem>>, vector<256x128xf32>,
    %c0_i32_8 = arith.constant 0 : i32
    %9 = arith.cmpi eq, %arg1, %c0_i32_8 : i32
    %10 = arith.extui %9 : i1 to i32
    %c0_i32_9 = arith.constant 0 : i32
    %11 = arith.cmpi ne, %10, %c0_i32_9 : i32
    scf.if %11 {
      %c0_10 = arith.constant 0 : index
      %c0_11 = arith.constant 0 : index
      %12 = vector.load %arg8[%c0_10, %c0_11] : memref<256x128xf32, #tpu.memory_space<vmem>>, vector<256x128xf32>
      %c0_12 = arith.constant 0 : index
      %c0_13 = arith.constant 0 : index
      %13 = vector.load %arg7[%c0_12, %c0_13] : memref<256x128xf32, #tpu.memory_space<vmem>>, vector<256x128xf32>
      tpu.vector_store %arg7[%c0_12, %c0_13], %12 {strides = array<i32>} : memref<256x128xf32, #tpu.memory_space<vmem>>, vector<256x128xf32>,
      %c0_14 = arith.constant 0 : index
      %c0_15 = arith.constant 0 : index
      %14 = vector.load %arg4[%c0_14, %c0_15] : memref<1x128xf32, #tpu.memory_space<vmem>>, vector<1x128xf32>
      %15 = vector.broadcast %14 : vector<1x128xf32> to vector<256x128xf32>
      %16 = arith.mulf %12, %15 : vector<256x128xf32>
      %c0_16 = arith.constant 0 : index
      %c0_17 = arith.constant 0 : index
      %17 = vector.load %arg5[%c0_16, %c0_17] : memref<1x128xf32, #tpu.memory_space<vmem>>, vector<1x128xf32>
      %18 = vector.broadcast %17 : vector<1x128xf32> to vector<256x128xf32>
      %19 = arith.addf %16, %18 : vector<256x128xf32>
      %cst_18 = arith.constant 0.000000e+00 : f32
      %20 = vector.broadcast %cst_18 : f32 to vector<256x128xf32>
      %21 = arith.maximumf %19, %20 : vector<256x128xf32>
      %22 = arith.truncf %21 : vector<256x128xf32> to vector<256x128xbf16>
      %c0_19 = arith.constant 0 : index
      %c0_20 = arith.constant 0 : index
      %23 = vector.load %arg6[%c0_19, %c0_20] : memref<256x128xbf16, #tpu.memory_space<vmem>>, vector<256x128xbf16>
      tpu.vector_store %arg6[%c0_19, %c0_20], %22 {strides = array<i32>} : memref<256x128xbf16, #tpu.memory_space<vmem>>, vector<256x128xbf16>,
    } else {
    }
    return
  }
  func.func @transform_0(%arg0: i32, %arg1: i32) -> (i32, i32) {
    %c0_i32 = arith.constant 0 : i32
    return %arg0, %arg1 : i32, i32
  }
  func.func @transform_1(%arg0: i32, %arg1: i32) -> (i32, i32) {
    %c0_i32 = arith.constant 0 : i32
    %c0_i32_0 = arith.constant 0 : i32
    return %arg1, %c0_i32 : i32, i32
  }
  func.func @transform_2(%arg0: i32, %arg1: i32) -> (i32, i32) {
    %c0_i32 = arith.constant 0 : i32
    %c0_i32_0 = arith.constant 0 : i32
    %c0_i32_1 = arith.constant 0 : i32
    return %c0_i32, %c0_i32_0 : i32, i32
  }
  func.func @transform_3(%arg0: i32, %arg1: i32) -> (i32, i32) {
    %c0_i32 = arith.constant 0 : i32
    %c0_i32_0 = arith.constant 0 : i32
    %c0_i32_1 = arith.constant 0 : i32
    return %c0_i32, %c0_i32_0 : i32, i32
  }
  func.func @transform_4(%arg0: i32, %arg1: i32) -> (i32, i32) {
    %c0_i32 = arith.constant 0 : i32
    %c0_i32_0 = arith.constant 0 : i32
    return %arg0, %c0_i32 : i32, i32
  }
  func.func @transform_5(%arg0: i32, %arg1: i32) -> (i32, i32) {
    %c0_i32 = arith.constant 0 : i32
    %c0_i32_0 = arith.constant 0 : i32
    return %arg0, %c0_i32 : i32, i32
  }
}

module attributes {stable_mosaic.version = 11 : i64} {
  func.func @_conv_kernel(%arg0: i32, %arg1: i32, %arg2: memref<256x256xbf16, #tpu.memory_space<vmem>>, %arg3: memref<256x128xbf16, #tpu.memory_space<vmem>>, %arg4: memref<1x128xf32, #tpu.memory_space<vmem>>, %arg5: memref<1x128xf32, #tpu.memory_space<vmem>>, %arg6: memref<256x128xbf16, #tpu.memory_space<vmem>>, %arg7: memref<256x128xf32, #tpu.memory_space<vmem>>) attributes {dimension_semantics = [#tpu.dimension_semantics<parallel>, #tpu.dimension_semantics<arbitrary>], iteration_bounds = array<i64: 2, 1>, scalar_prefetch = 0 : i64, scratch_operands = 1 : i64, tpu.core_type = #tpu.core_type<tc>, window_params = [{transform_indices = @transform_0, window_bounds = array<i64: 256, 256>}, {transform_indices = @transform_1, window_bounds = array<i64: 256, 128>}, {pipeline_mode = #tpu.pipeline_mode<synchronous>, transform_indices = @transform_2, window_bounds = array<i64: 1, 128>}, {pipeline_mode = #tpu.pipeline_mode<synchronous>, transform_indices = @transform_3, window_bounds = array<i64: 1, 128>}, {transform_indices = @transform_4, window_bounds = array<i64: 256, 128>}]} {
    %c0_i32 = arith.constant 0 : i32
    %0 = arith.cmpi eq, %arg1, %c0_i32 : i32
    %1 = arith.extui %0 : i1 to i32
    %c0_i32_0 = arith.constant 0 : i32
    %2 = arith.cmpi ne, %1, %c0_i32_0 : i32
    scf.if %2 {
      %cst_10 = arith.constant 0.000000e+00 : f32
      %12 = vector.broadcast %cst_10 : f32 to vector<256x128xf32>
      %c0_11 = arith.constant 0 : index
      %c0_12 = arith.constant 0 : index
      %13 = vector.load %arg7[%c0_11, %c0_12] : memref<256x128xf32, #tpu.memory_space<vmem>>, vector<256x128xf32>
      tpu.vector_store %arg7[%c0_11, %c0_12], %12 {strides = array<i32>} : memref<256x128xf32, #tpu.memory_space<vmem>>, vector<256x128xf32>,
    } else {
    }
    %c0 = arith.constant 0 : index
    %c0_1 = arith.constant 0 : index
    %3 = vector.load %arg7[%c0, %c0_1] : memref<256x128xf32, #tpu.memory_space<vmem>>, vector<256x128xf32>
    %c0_2 = arith.constant 0 : index
    %c0_3 = arith.constant 0 : index
    %4 = vector.load %arg2[%c0_2, %c0_3] : memref<256x256xbf16, #tpu.memory_space<vmem>>, vector<256x256xbf16>
    %c0_4 = arith.constant 0 : index
    %c0_5 = arith.constant 0 : index
    %5 = vector.load %arg3[%c0_4, %c0_5] : memref<256x128xbf16, #tpu.memory_space<vmem>>, vector<256x128xbf16>
    %cst = arith.constant dense<0.000000e+00> : vector<256x128xf32>
    %6 = tpu.matmul %4, %5, %cst {dimension_numbers = #tpu.dot_dimension_numbers<[1], [0], [0], [1], [0, 0, 1, 1], [], []>} : vector<256x256xbf16>, vector<256x128xbf16>, vector<256x128xf32> -> vector<256x128xf32>
    %7 = arith.addf %3, %6 : vector<256x128xf32>
    %c0_6 = arith.constant 0 : index
    %c0_7 = arith.constant 0 : index
    %8 = vector.load %arg7[%c0_6, %c0_7] : memref<256x128xf32, #tpu.memory_space<vmem>>, vector<256x128xf32>
    tpu.vector_store %arg7[%c0_6, %c0_7], %7 {strides = array<i32>} : memref<256x128xf32, #tpu.memory_space<vmem>>, vector<256x128xf32>,
    %c0_i32_8 = arith.constant 0 : i32
    %9 = arith.cmpi eq, %arg1, %c0_i32_8 : i32
    %10 = arith.extui %9 : i1 to i32
    %c0_i32_9 = arith.constant 0 : i32
    %11 = arith.cmpi ne, %10, %c0_i32_9 : i32
    scf.if %11 {
      %c0_10 = arith.constant 0 : index
      %c0_11 = arith.constant 0 : index
      %12 = vector.load %arg7[%c0_10, %c0_11] : memref<256x128xf32, #tpu.memory_space<vmem>>, vector<256x128xf32>
      %c0_12 = arith.constant 0 : index
      %c0_13 = arith.constant 0 : index
      %13 = vector.load %arg4[%c0_12, %c0_13] : memref<1x128xf32, #tpu.memory_space<vmem>>, vector<1x128xf32>
      %14 = vector.broadcast %13 : vector<1x128xf32> to vector<256x128xf32>
      %15 = arith.mulf %12, %14 : vector<256x128xf32>
      %c0_14 = arith.constant 0 : index
      %c0_15 = arith.constant 0 : index
      %16 = vector.load %arg5[%c0_14, %c0_15] : memref<1x128xf32, #tpu.memory_space<vmem>>, vector<1x128xf32>
      %17 = vector.broadcast %16 : vector<1x128xf32> to vector<256x128xf32>
      %18 = arith.addf %15, %17 : vector<256x128xf32>
      %cst_16 = arith.constant 0.000000e+00 : f32
      %19 = vector.broadcast %cst_16 : f32 to vector<256x128xf32>
      %20 = arith.maximumf %18, %19 : vector<256x128xf32>
      %21 = arith.truncf %20 : vector<256x128xf32> to vector<256x128xbf16>
      %c0_17 = arith.constant 0 : index
      %c0_18 = arith.constant 0 : index
      %22 = vector.load %arg6[%c0_17, %c0_18] : memref<256x128xbf16, #tpu.memory_space<vmem>>, vector<256x128xbf16>
      tpu.vector_store %arg6[%c0_17, %c0_18], %21 {strides = array<i32>} : memref<256x128xbf16, #tpu.memory_space<vmem>>, vector<256x128xbf16>,
    } else {
    }
    return
  }
  func.func @transform_0(%arg0: i32, %arg1: i32) -> (i32, i32) {
    %c0_i32 = arith.constant 0 : i32
    return %arg0, %arg1 : i32, i32
  }
  func.func @transform_1(%arg0: i32, %arg1: i32) -> (i32, i32) {
    %c0_i32 = arith.constant 0 : i32
    %c0_i32_0 = arith.constant 0 : i32
    return %arg1, %c0_i32 : i32, i32
  }
  func.func @transform_2(%arg0: i32, %arg1: i32) -> (i32, i32) {
    %c0_i32 = arith.constant 0 : i32
    %c0_i32_0 = arith.constant 0 : i32
    %c0_i32_1 = arith.constant 0 : i32
    return %c0_i32, %c0_i32_0 : i32, i32
  }
  func.func @transform_3(%arg0: i32, %arg1: i32) -> (i32, i32) {
    %c0_i32 = arith.constant 0 : i32
    %c0_i32_0 = arith.constant 0 : i32
    %c0_i32_1 = arith.constant 0 : i32
    return %c0_i32, %c0_i32_0 : i32, i32
  }
  func.func @transform_4(%arg0: i32, %arg1: i32) -> (i32, i32) {
    %c0_i32 = arith.constant 0 : i32
    %c0_i32_0 = arith.constant 0 : i32
    return %arg0, %c0_i32 : i32, i32
  }
}

module attributes {stable_mosaic.version = 11 : i64} {
  func.func @_conv_kernel(%arg0: i32, %arg1: i32, %arg2: memref<256x256xbf16, #tpu.memory_space<vmem>>, %arg3: memref<256x128xbf16, #tpu.memory_space<vmem>>, %arg4: memref<1x128xf32, #tpu.memory_space<vmem>>, %arg5: memref<1x128xf32, #tpu.memory_space<vmem>>, %arg6: memref<256x128xf32, #tpu.memory_space<vmem>>, %arg7: memref<256x128xbf16, #tpu.memory_space<vmem>>, %arg8: memref<256x128xf32, #tpu.memory_space<vmem>>) attributes {dimension_semantics = [#tpu.dimension_semantics<parallel>, #tpu.dimension_semantics<arbitrary>], iteration_bounds = array<i64: 2, 1>, scalar_prefetch = 0 : i64, scratch_operands = 1 : i64, tpu.core_type = #tpu.core_type<tc>, window_params = [{transform_indices = @transform_0, window_bounds = array<i64: 256, 256>}, {transform_indices = @transform_1, window_bounds = array<i64: 256, 128>}, {pipeline_mode = #tpu.pipeline_mode<synchronous>, transform_indices = @transform_2, window_bounds = array<i64: 1, 128>}, {pipeline_mode = #tpu.pipeline_mode<synchronous>, transform_indices = @transform_3, window_bounds = array<i64: 1, 128>}, {transform_indices = @transform_4, window_bounds = array<i64: 256, 128>}, {transform_indices = @transform_5, window_bounds = array<i64: 256, 128>}]} {
    %c0_i32 = arith.constant 0 : i32
    %0 = arith.cmpi eq, %arg1, %c0_i32 : i32
    %1 = arith.extui %0 : i1 to i32
    %c0_i32_0 = arith.constant 0 : i32
    %2 = arith.cmpi ne, %1, %c0_i32_0 : i32
    scf.if %2 {
      %cst_10 = arith.constant 0.000000e+00 : f32
      %12 = vector.broadcast %cst_10 : f32 to vector<256x128xf32>
      %c0_11 = arith.constant 0 : index
      %c0_12 = arith.constant 0 : index
      %13 = vector.load %arg8[%c0_11, %c0_12] : memref<256x128xf32, #tpu.memory_space<vmem>>, vector<256x128xf32>
      tpu.vector_store %arg8[%c0_11, %c0_12], %12 {strides = array<i32>} : memref<256x128xf32, #tpu.memory_space<vmem>>, vector<256x128xf32>,
    } else {
    }
    %c0 = arith.constant 0 : index
    %c0_1 = arith.constant 0 : index
    %3 = vector.load %arg8[%c0, %c0_1] : memref<256x128xf32, #tpu.memory_space<vmem>>, vector<256x128xf32>
    %c0_2 = arith.constant 0 : index
    %c0_3 = arith.constant 0 : index
    %4 = vector.load %arg2[%c0_2, %c0_3] : memref<256x256xbf16, #tpu.memory_space<vmem>>, vector<256x256xbf16>
    %c0_4 = arith.constant 0 : index
    %c0_5 = arith.constant 0 : index
    %5 = vector.load %arg3[%c0_4, %c0_5] : memref<256x128xbf16, #tpu.memory_space<vmem>>, vector<256x128xbf16>
    %cst = arith.constant dense<0.000000e+00> : vector<256x128xf32>
    %6 = tpu.matmul %4, %5, %cst {dimension_numbers = #tpu.dot_dimension_numbers<[1], [0], [0], [1], [0, 0, 1, 1], [], []>} : vector<256x256xbf16>, vector<256x128xbf16>, vector<256x128xf32> -> vector<256x128xf32>
    %7 = arith.addf %3, %6 : vector<256x128xf32>
    %c0_6 = arith.constant 0 : index
    %c0_7 = arith.constant 0 : index
    %8 = vector.load %arg8[%c0_6, %c0_7] : memref<256x128xf32, #tpu.memory_space<vmem>>, vector<256x128xf32>
    tpu.vector_store %arg8[%c0_6, %c0_7], %7 {strides = array<i32>} : memref<256x128xf32, #tpu.memory_space<vmem>>, vector<256x128xf32>,
    %c0_i32_8 = arith.constant 0 : i32
    %9 = arith.cmpi eq, %arg1, %c0_i32_8 : i32
    %10 = arith.extui %9 : i1 to i32
    %c0_i32_9 = arith.constant 0 : i32
    %11 = arith.cmpi ne, %10, %c0_i32_9 : i32
    scf.if %11 {
      %c0_10 = arith.constant 0 : index
      %c0_11 = arith.constant 0 : index
      %12 = vector.load %arg8[%c0_10, %c0_11] : memref<256x128xf32, #tpu.memory_space<vmem>>, vector<256x128xf32>
      %c0_12 = arith.constant 0 : index
      %c0_13 = arith.constant 0 : index
      %13 = vector.load %arg6[%c0_12, %c0_13] : memref<256x128xf32, #tpu.memory_space<vmem>>, vector<256x128xf32>
      %14 = arith.addf %12, %13 : vector<256x128xf32>
      %c0_14 = arith.constant 0 : index
      %c0_15 = arith.constant 0 : index
      %15 = vector.load %arg4[%c0_14, %c0_15] : memref<1x128xf32, #tpu.memory_space<vmem>>, vector<1x128xf32>
      %16 = vector.broadcast %15 : vector<1x128xf32> to vector<256x128xf32>
      %17 = arith.mulf %14, %16 : vector<256x128xf32>
      %c0_16 = arith.constant 0 : index
      %c0_17 = arith.constant 0 : index
      %18 = vector.load %arg5[%c0_16, %c0_17] : memref<1x128xf32, #tpu.memory_space<vmem>>, vector<1x128xf32>
      %19 = vector.broadcast %18 : vector<1x128xf32> to vector<256x128xf32>
      %20 = arith.addf %17, %19 : vector<256x128xf32>
      %cst_18 = arith.constant 0.000000e+00 : f32
      %21 = vector.broadcast %cst_18 : f32 to vector<256x128xf32>
      %22 = arith.maximumf %20, %21 : vector<256x128xf32>
      %23 = arith.truncf %22 : vector<256x128xf32> to vector<256x128xbf16>
      %c0_19 = arith.constant 0 : index
      %c0_20 = arith.constant 0 : index
      %24 = vector.load %arg7[%c0_19, %c0_20] : memref<256x128xbf16, #tpu.memory_space<vmem>>, vector<256x128xbf16>
      tpu.vector_store %arg7[%c0_19, %c0_20], %23 {strides = array<i32>} : memref<256x128xbf16, #tpu.memory_space<vmem>>, vector<256x128xbf16>,
    } else {
    }
    return
  }
  func.func @transform_0(%arg0: i32, %arg1: i32) -> (i32, i32) {
    %c0_i32 = arith.constant 0 : i32
    return %arg0, %arg1 : i32, i32
  }
  func.func @transform_1(%arg0: i32, %arg1: i32) -> (i32, i32) {
    %c0_i32 = arith.constant 0 : i32
    %c0_i32_0 = arith.constant 0 : i32
    return %arg1, %c0_i32 : i32, i32
  }
  func.func @transform_2(%arg0: i32, %arg1: i32) -> (i32, i32) {
    %c0_i32 = arith.constant 0 : i32
    %c0_i32_0 = arith.constant 0 : i32
    %c0_i32_1 = arith.constant 0 : i32
    return %c0_i32, %c0_i32_0 : i32, i32
  }
  func.func @transform_3(%arg0: i32, %arg1: i32) -> (i32, i32) {
    %c0_i32 = arith.constant 0 : i32
    %c0_i32_0 = arith.constant 0 : i32
    %c0_i32_1 = arith.constant 0 : i32
    return %c0_i32, %c0_i32_0 : i32, i32
  }
  func.func @transform_4(%arg0: i32, %arg1: i32) -> (i32, i32) {
    %c0_i32 = arith.constant 0 : i32
    %c0_i32_0 = arith.constant 0 : i32
    return %arg0, %c0_i32 : i32, i32
  }
  func.func @transform_5(%arg0: i32, %arg1: i32) -> (i32, i32) {
    %c0_i32 = arith.constant 0 : i32
    %c0_i32_0 = arith.constant 0 : i32
    return %arg0, %c0_i32 : i32, i32
  }
}

module attributes {stable_mosaic.version = 11 : i64} {
  func.func @_conv_kernel(%arg0: i32, %arg1: i32, %arg2: memref<128x256xbf16, #tpu.memory_space<vmem>>, %arg3: memref<256x128xbf16, #tpu.memory_space<vmem>>, %arg4: memref<1x128xf32, #tpu.memory_space<vmem>>, %arg5: memref<1x128xf32, #tpu.memory_space<vmem>>, %arg6: memref<128x128xbf16, #tpu.memory_space<vmem>>, %arg7: memref<128x128xf32, #tpu.memory_space<vmem>>) attributes {dimension_semantics = [#tpu.dimension_semantics<parallel>, #tpu.dimension_semantics<arbitrary>], iteration_bounds = array<i64: 1, 1>, scalar_prefetch = 0 : i64, scratch_operands = 1 : i64, tpu.core_type = #tpu.core_type<tc>, window_params = [{transform_indices = @transform_0, window_bounds = array<i64: 128, 256>}, {transform_indices = @transform_1, window_bounds = array<i64: 256, 128>}, {pipeline_mode = #tpu.pipeline_mode<synchronous>, transform_indices = @transform_2, window_bounds = array<i64: 1, 128>}, {pipeline_mode = #tpu.pipeline_mode<synchronous>, transform_indices = @transform_3, window_bounds = array<i64: 1, 128>}, {transform_indices = @transform_4, window_bounds = array<i64: 128, 128>}]} {
    %c0_i32 = arith.constant 0 : i32
    %0 = arith.cmpi eq, %arg1, %c0_i32 : i32
    %1 = arith.extui %0 : i1 to i32
    %c0_i32_0 = arith.constant 0 : i32
    %2 = arith.cmpi ne, %1, %c0_i32_0 : i32
    scf.if %2 {
      %cst_10 = arith.constant 0.000000e+00 : f32
      %12 = vector.broadcast %cst_10 : f32 to vector<128x128xf32>
      %c0_11 = arith.constant 0 : index
      %c0_12 = arith.constant 0 : index
      %13 = vector.load %arg7[%c0_11, %c0_12] : memref<128x128xf32, #tpu.memory_space<vmem>>, vector<128x128xf32>
      tpu.vector_store %arg7[%c0_11, %c0_12], %12 {strides = array<i32>} : memref<128x128xf32, #tpu.memory_space<vmem>>, vector<128x128xf32>,
    } else {
    }
    %c0 = arith.constant 0 : index
    %c0_1 = arith.constant 0 : index
    %3 = vector.load %arg7[%c0, %c0_1] : memref<128x128xf32, #tpu.memory_space<vmem>>, vector<128x128xf32>
    %c0_2 = arith.constant 0 : index
    %c0_3 = arith.constant 0 : index
    %4 = vector.load %arg2[%c0_2, %c0_3] : memref<128x256xbf16, #tpu.memory_space<vmem>>, vector<128x256xbf16>
    %c0_4 = arith.constant 0 : index
    %c0_5 = arith.constant 0 : index
    %5 = vector.load %arg3[%c0_4, %c0_5] : memref<256x128xbf16, #tpu.memory_space<vmem>>, vector<256x128xbf16>
    %cst = arith.constant dense<0.000000e+00> : vector<128x128xf32>
    %6 = tpu.matmul %4, %5, %cst {dimension_numbers = #tpu.dot_dimension_numbers<[1], [0], [0], [1], [0, 0, 1, 1], [], []>} : vector<128x256xbf16>, vector<256x128xbf16>, vector<128x128xf32> -> vector<128x128xf32>
    %7 = arith.addf %3, %6 : vector<128x128xf32>
    %c0_6 = arith.constant 0 : index
    %c0_7 = arith.constant 0 : index
    %8 = vector.load %arg7[%c0_6, %c0_7] : memref<128x128xf32, #tpu.memory_space<vmem>>, vector<128x128xf32>
    tpu.vector_store %arg7[%c0_6, %c0_7], %7 {strides = array<i32>} : memref<128x128xf32, #tpu.memory_space<vmem>>, vector<128x128xf32>,
    %c0_i32_8 = arith.constant 0 : i32
    %9 = arith.cmpi eq, %arg1, %c0_i32_8 : i32
    %10 = arith.extui %9 : i1 to i32
    %c0_i32_9 = arith.constant 0 : i32
    %11 = arith.cmpi ne, %10, %c0_i32_9 : i32
    scf.if %11 {
      %c0_10 = arith.constant 0 : index
      %c0_11 = arith.constant 0 : index
      %12 = vector.load %arg7[%c0_10, %c0_11] : memref<128x128xf32, #tpu.memory_space<vmem>>, vector<128x128xf32>
      %c0_12 = arith.constant 0 : index
      %c0_13 = arith.constant 0 : index
      %13 = vector.load %arg4[%c0_12, %c0_13] : memref<1x128xf32, #tpu.memory_space<vmem>>, vector<1x128xf32>
      %14 = vector.broadcast %13 : vector<1x128xf32> to vector<128x128xf32>
      %15 = arith.mulf %12, %14 : vector<128x128xf32>
      %c0_14 = arith.constant 0 : index
      %c0_15 = arith.constant 0 : index
      %16 = vector.load %arg5[%c0_14, %c0_15] : memref<1x128xf32, #tpu.memory_space<vmem>>, vector<1x128xf32>
      %17 = vector.broadcast %16 : vector<1x128xf32> to vector<128x128xf32>
      %18 = arith.addf %15, %17 : vector<128x128xf32>
      %cst_16 = arith.constant 0.000000e+00 : f32
      %19 = vector.broadcast %cst_16 : f32 to vector<128x128xf32>
      %20 = arith.maximumf %18, %19 : vector<128x128xf32>
      %21 = arith.truncf %20 : vector<128x128xf32> to vector<128x128xbf16>
      %c0_17 = arith.constant 0 : index
      %c0_18 = arith.constant 0 : index
      %22 = vector.load %arg6[%c0_17, %c0_18] : memref<128x128xbf16, #tpu.memory_space<vmem>>, vector<128x128xbf16>
      tpu.vector_store %arg6[%c0_17, %c0_18], %21 {strides = array<i32>} : memref<128x128xbf16, #tpu.memory_space<vmem>>, vector<128x128xbf16>,
    } else {
    }
    return
  }
  func.func @transform_0(%arg0: i32, %arg1: i32) -> (i32, i32) {
    %c0_i32 = arith.constant 0 : i32
    return %arg0, %arg1 : i32, i32
  }
  func.func @transform_1(%arg0: i32, %arg1: i32) -> (i32, i32) {
    %c0_i32 = arith.constant 0 : i32
    %c0_i32_0 = arith.constant 0 : i32
    return %arg1, %c0_i32 : i32, i32
  }
  func.func @transform_2(%arg0: i32, %arg1: i32) -> (i32, i32) {
    %c0_i32 = arith.constant 0 : i32
    %c0_i32_0 = arith.constant 0 : i32
    %c0_i32_1 = arith.constant 0 : i32
    return %c0_i32, %c0_i32_0 : i32, i32
  }
  func.func @transform_3(%arg0: i32, %arg1: i32) -> (i32, i32) {
    %c0_i32 = arith.constant 0 : i32
    %c0_i32_0 = arith.constant 0 : i32
    %c0_i32_1 = arith.constant 0 : i32
    return %c0_i32, %c0_i32_0 : i32, i32
  }
  func.func @transform_4(%arg0: i32, %arg1: i32) -> (i32, i32) {
    %c0_i32 = arith.constant 0 : i32
    %c0_i32_0 = arith.constant 0 : i32
    return %arg0, %c0_i32 : i32, i32
  }
}

module attributes {stable_mosaic.version = 11 : i64} {
  func.func @_conv_kernel(%arg0: i32, %arg1: i32, %arg2: memref<128x128xbf16, #tpu.memory_space<vmem>>, %arg3: memref<128x128xbf16, #tpu.memory_space<vmem>>, %arg4: memref<1x128xf32, #tpu.memory_space<vmem>>, %arg5: memref<1x128xf32, #tpu.memory_space<vmem>>, %arg6: memref<128x128xf32, #tpu.memory_space<vmem>>, %arg7: memref<128x128xf32, #tpu.memory_space<vmem>>) attributes {dimension_semantics = [#tpu.dimension_semantics<parallel>, #tpu.dimension_semantics<arbitrary>], iteration_bounds = array<i64: 1, 1>, scalar_prefetch = 0 : i64, scratch_operands = 1 : i64, tpu.core_type = #tpu.core_type<tc>, window_params = [{transform_indices = @transform_0, window_bounds = array<i64: 128, 128>}, {transform_indices = @transform_1, window_bounds = array<i64: 128, 128>}, {pipeline_mode = #tpu.pipeline_mode<synchronous>, transform_indices = @transform_2, window_bounds = array<i64: 1, 128>}, {pipeline_mode = #tpu.pipeline_mode<synchronous>, transform_indices = @transform_3, window_bounds = array<i64: 1, 128>}, {transform_indices = @transform_4, window_bounds = array<i64: 128, 128>}]} {
    %c0_i32 = arith.constant 0 : i32
    %0 = arith.cmpi eq, %arg1, %c0_i32 : i32
    %1 = arith.extui %0 : i1 to i32
    %c0_i32_0 = arith.constant 0 : i32
    %2 = arith.cmpi ne, %1, %c0_i32_0 : i32
    scf.if %2 {
      %cst_10 = arith.constant 0.000000e+00 : f32
      %12 = vector.broadcast %cst_10 : f32 to vector<128x128xf32>
      %c0_11 = arith.constant 0 : index
      %c0_12 = arith.constant 0 : index
      %13 = vector.load %arg7[%c0_11, %c0_12] : memref<128x128xf32, #tpu.memory_space<vmem>>, vector<128x128xf32>
      tpu.vector_store %arg7[%c0_11, %c0_12], %12 {strides = array<i32>} : memref<128x128xf32, #tpu.memory_space<vmem>>, vector<128x128xf32>,
    } else {
    }
    %c0 = arith.constant 0 : index
    %c0_1 = arith.constant 0 : index
    %3 = vector.load %arg7[%c0, %c0_1] : memref<128x128xf32, #tpu.memory_space<vmem>>, vector<128x128xf32>
    %c0_2 = arith.constant 0 : index
    %c0_3 = arith.constant 0 : index
    %4 = vector.load %arg2[%c0_2, %c0_3] : memref<128x128xbf16, #tpu.memory_space<vmem>>, vector<128x128xbf16>
    %c0_4 = arith.constant 0 : index
    %c0_5 = arith.constant 0 : index
    %5 = vector.load %arg3[%c0_4, %c0_5] : memref<128x128xbf16, #tpu.memory_space<vmem>>, vector<128x128xbf16>
    %cst = arith.constant dense<0.000000e+00> : vector<128x128xf32>
    %6 = tpu.matmul %4, %5, %cst {dimension_numbers = #tpu.dot_dimension_numbers<[1], [0], [0], [1], [0, 0, 1, 1], [], []>} : vector<128x128xbf16>, vector<128x128xbf16>, vector<128x128xf32> -> vector<128x128xf32>
    %7 = arith.addf %3, %6 : vector<128x128xf32>
    %c0_6 = arith.constant 0 : index
    %c0_7 = arith.constant 0 : index
    %8 = vector.load %arg7[%c0_6, %c0_7] : memref<128x128xf32, #tpu.memory_space<vmem>>, vector<128x128xf32>
    tpu.vector_store %arg7[%c0_6, %c0_7], %7 {strides = array<i32>} : memref<128x128xf32, #tpu.memory_space<vmem>>, vector<128x128xf32>,
    %c0_i32_8 = arith.constant 0 : i32
    %9 = arith.cmpi eq, %arg1, %c0_i32_8 : i32
    %10 = arith.extui %9 : i1 to i32
    %c0_i32_9 = arith.constant 0 : i32
    %11 = arith.cmpi ne, %10, %c0_i32_9 : i32
    scf.if %11 {
      %c0_10 = arith.constant 0 : index
      %c0_11 = arith.constant 0 : index
      %12 = vector.load %arg7[%c0_10, %c0_11] : memref<128x128xf32, #tpu.memory_space<vmem>>, vector<128x128xf32>
      %c0_12 = arith.constant 0 : index
      %c0_13 = arith.constant 0 : index
      %13 = vector.load %arg4[%c0_12, %c0_13] : memref<1x128xf32, #tpu.memory_space<vmem>>, vector<1x128xf32>
      %14 = vector.broadcast %13 : vector<1x128xf32> to vector<128x128xf32>
      %15 = arith.mulf %12, %14 : vector<128x128xf32>
      %c0_14 = arith.constant 0 : index
      %c0_15 = arith.constant 0 : index
      %16 = vector.load %arg5[%c0_14, %c0_15] : memref<1x128xf32, #tpu.memory_space<vmem>>, vector<1x128xf32>
      %17 = vector.broadcast %16 : vector<1x128xf32> to vector<128x128xf32>
      %18 = arith.addf %15, %17 : vector<128x128xf32>
      %c0_16 = arith.constant 0 : index
      %c0_17 = arith.constant 0 : index
      %19 = vector.load %arg6[%c0_16, %c0_17] : memref<128x128xf32, #tpu.memory_space<vmem>>, vector<128x128xf32>
      tpu.vector_store %arg6[%c0_16, %c0_17], %18 {strides = array<i32>} : memref<128x128xf32, #tpu.memory_space<vmem>>, vector<128x128xf32>,
    } else {
    }
    return
  }
  func.func @transform_0(%arg0: i32, %arg1: i32) -> (i32, i32) {
    %c0_i32 = arith.constant 0 : i32
    return %arg0, %arg1 : i32, i32
  }
  func.func @transform_1(%arg0: i32, %arg1: i32) -> (i32, i32) {
    %c0_i32 = arith.constant 0 : i32
    %c0_i32_0 = arith.constant 0 : i32
    return %arg1, %c0_i32 : i32, i32
  }
  func.func @transform_2(%arg0: i32, %arg1: i32) -> (i32, i32) {
    %c0_i32 = arith.constant 0 : i32
    %c0_i32_0 = arith.constant 0 : i32
    %c0_i32_1 = arith.constant 0 : i32
    return %c0_i32, %c0_i32_0 : i32, i32
  }
  func.func @transform_3(%arg0: i32, %arg1: i32) -> (i32, i32) {
    %c0_i32 = arith.constant 0 : i32
    %c0_i32_0 = arith.constant 0 : i32
    %c0_i32_1 = arith.constant 0 : i32
    return %c0_i32, %c0_i32_0 : i32, i32
  }
  func.func @transform_4(%arg0: i32, %arg1: i32) -> (i32, i32) {
    %c0_i32 = arith.constant 0 : i32
    %c0_i32_0 = arith.constant 0 : i32
    return %arg0, %c0_i32 : i32, i32
  }
}

module attributes {stable_mosaic.version = 11 : i64} {
  func.func @_conv_kernel(%arg0: i32, %arg1: i32, %arg2: memref<128x384xbf16, #tpu.memory_space<vmem>>, %arg3: memref<384x128xbf16, #tpu.memory_space<vmem>>, %arg4: memref<1x128xf32, #tpu.memory_space<vmem>>, %arg5: memref<1x128xf32, #tpu.memory_space<vmem>>, %arg6: memref<128x128xf32, #tpu.memory_space<vmem>>, %arg7: memref<128x128xbf16, #tpu.memory_space<vmem>>, %arg8: memref<128x128xf32, #tpu.memory_space<vmem>>) attributes {dimension_semantics = [#tpu.dimension_semantics<parallel>, #tpu.dimension_semantics<arbitrary>], iteration_bounds = array<i64: 1, 1>, scalar_prefetch = 0 : i64, scratch_operands = 1 : i64, tpu.core_type = #tpu.core_type<tc>, window_params = [{transform_indices = @transform_0, window_bounds = array<i64: 128, 384>}, {transform_indices = @transform_1, window_bounds = array<i64: 384, 128>}, {pipeline_mode = #tpu.pipeline_mode<synchronous>, transform_indices = @transform_2, window_bounds = array<i64: 1, 128>}, {pipeline_mode = #tpu.pipeline_mode<synchronous>, transform_indices = @transform_3, window_bounds = array<i64: 1, 128>}, {transform_indices = @transform_4, window_bounds = array<i64: 128, 128>}, {transform_indices = @transform_5, window_bounds = array<i64: 128, 128>}]} {
    %c0_i32 = arith.constant 0 : i32
    %0 = arith.cmpi eq, %arg1, %c0_i32 : i32
    %1 = arith.extui %0 : i1 to i32
    %c0_i32_0 = arith.constant 0 : i32
    %2 = arith.cmpi ne, %1, %c0_i32_0 : i32
    scf.if %2 {
      %cst_10 = arith.constant 0.000000e+00 : f32
      %12 = vector.broadcast %cst_10 : f32 to vector<128x128xf32>
      %c0_11 = arith.constant 0 : index
      %c0_12 = arith.constant 0 : index
      %13 = vector.load %arg8[%c0_11, %c0_12] : memref<128x128xf32, #tpu.memory_space<vmem>>, vector<128x128xf32>
      tpu.vector_store %arg8[%c0_11, %c0_12], %12 {strides = array<i32>} : memref<128x128xf32, #tpu.memory_space<vmem>>, vector<128x128xf32>,
    } else {
    }
    %c0 = arith.constant 0 : index
    %c0_1 = arith.constant 0 : index
    %3 = vector.load %arg8[%c0, %c0_1] : memref<128x128xf32, #tpu.memory_space<vmem>>, vector<128x128xf32>
    %c0_2 = arith.constant 0 : index
    %c0_3 = arith.constant 0 : index
    %4 = vector.load %arg2[%c0_2, %c0_3] : memref<128x384xbf16, #tpu.memory_space<vmem>>, vector<128x384xbf16>
    %c0_4 = arith.constant 0 : index
    %c0_5 = arith.constant 0 : index
    %5 = vector.load %arg3[%c0_4, %c0_5] : memref<384x128xbf16, #tpu.memory_space<vmem>>, vector<384x128xbf16>
    %cst = arith.constant dense<0.000000e+00> : vector<128x128xf32>
    %6 = tpu.matmul %4, %5, %cst {dimension_numbers = #tpu.dot_dimension_numbers<[1], [0], [0], [1], [0, 0, 1, 1], [], []>} : vector<128x384xbf16>, vector<384x128xbf16>, vector<128x128xf32> -> vector<128x128xf32>
    %7 = arith.addf %3, %6 : vector<128x128xf32>
    %c0_6 = arith.constant 0 : index
    %c0_7 = arith.constant 0 : index
    %8 = vector.load %arg8[%c0_6, %c0_7] : memref<128x128xf32, #tpu.memory_space<vmem>>, vector<128x128xf32>
    tpu.vector_store %arg8[%c0_6, %c0_7], %7 {strides = array<i32>} : memref<128x128xf32, #tpu.memory_space<vmem>>, vector<128x128xf32>,
    %c0_i32_8 = arith.constant 0 : i32
    %9 = arith.cmpi eq, %arg1, %c0_i32_8 : i32
    %10 = arith.extui %9 : i1 to i32
    %c0_i32_9 = arith.constant 0 : i32
    %11 = arith.cmpi ne, %10, %c0_i32_9 : i32
    scf.if %11 {
      %c0_10 = arith.constant 0 : index
      %c0_11 = arith.constant 0 : index
      %12 = vector.load %arg8[%c0_10, %c0_11] : memref<128x128xf32, #tpu.memory_space<vmem>>, vector<128x128xf32>
      %c0_12 = arith.constant 0 : index
      %c0_13 = arith.constant 0 : index
      %13 = vector.load %arg6[%c0_12, %c0_13] : memref<128x128xf32, #tpu.memory_space<vmem>>, vector<128x128xf32>
      %14 = arith.addf %12, %13 : vector<128x128xf32>
      %c0_14 = arith.constant 0 : index
      %c0_15 = arith.constant 0 : index
      %15 = vector.load %arg4[%c0_14, %c0_15] : memref<1x128xf32, #tpu.memory_space<vmem>>, vector<1x128xf32>
      %16 = vector.broadcast %15 : vector<1x128xf32> to vector<128x128xf32>
      %17 = arith.mulf %14, %16 : vector<128x128xf32>
      %c0_16 = arith.constant 0 : index
      %c0_17 = arith.constant 0 : index
      %18 = vector.load %arg5[%c0_16, %c0_17] : memref<1x128xf32, #tpu.memory_space<vmem>>, vector<1x128xf32>
      %19 = vector.broadcast %18 : vector<1x128xf32> to vector<128x128xf32>
      %20 = arith.addf %17, %19 : vector<128x128xf32>
      %cst_18 = arith.constant 0.000000e+00 : f32
      %21 = vector.broadcast %cst_18 : f32 to vector<128x128xf32>
      %22 = arith.maximumf %20, %21 : vector<128x128xf32>
      %23 = arith.truncf %22 : vector<128x128xf32> to vector<128x128xbf16>
      %c0_19 = arith.constant 0 : index
      %c0_20 = arith.constant 0 : index
      %24 = vector.load %arg7[%c0_19, %c0_20] : memref<128x128xbf16, #tpu.memory_space<vmem>>, vector<128x128xbf16>
      tpu.vector_store %arg7[%c0_19, %c0_20], %23 {strides = array<i32>} : memref<128x128xbf16, #tpu.memory_space<vmem>>, vector<128x128xbf16>,
    } else {
    }
    return
  }
  func.func @transform_0(%arg0: i32, %arg1: i32) -> (i32, i32) {
    %c0_i32 = arith.constant 0 : i32
    return %arg0, %arg1 : i32, i32
  }
  func.func @transform_1(%arg0: i32, %arg1: i32) -> (i32, i32) {
    %c0_i32 = arith.constant 0 : i32
    %c0_i32_0 = arith.constant 0 : i32
    return %arg1, %c0_i32 : i32, i32
  }
  func.func @transform_2(%arg0: i32, %arg1: i32) -> (i32, i32) {
    %c0_i32 = arith.constant 0 : i32
    %c0_i32_0 = arith.constant 0 : i32
    %c0_i32_1 = arith.constant 0 : i32
    return %c0_i32, %c0_i32_0 : i32, i32
  }
  func.func @transform_3(%arg0: i32, %arg1: i32) -> (i32, i32) {
    %c0_i32 = arith.constant 0 : i32
    %c0_i32_0 = arith.constant 0 : i32
    %c0_i32_1 = arith.constant 0 : i32
    return %c0_i32, %c0_i32_0 : i32, i32
  }
  func.func @transform_4(%arg0: i32, %arg1: i32) -> (i32, i32) {
    %c0_i32 = arith.constant 0 : i32
    %c0_i32_0 = arith.constant 0 : i32
    return %arg0, %c0_i32 : i32, i32
  }
  func.func @transform_5(%arg0: i32, %arg1: i32) -> (i32, i32) {
    %c0_i32 = arith.constant 0 : i32
    %c0_i32_0 = arith.constant 0 : i32
    return %arg0, %c0_i32 : i32, i32
  }
}

module attributes {stable_mosaic.version = 11 : i64} {
  func.func @_conv_kernel(%arg0: i32, %arg1: i32, %arg2: memref<32x384xbf16, #tpu.memory_space<vmem>>, %arg3: memref<384x128xbf16, #tpu.memory_space<vmem>>, %arg4: memref<1x128xf32, #tpu.memory_space<vmem>>, %arg5: memref<1x128xf32, #tpu.memory_space<vmem>>, %arg6: memref<32x128xbf16, #tpu.memory_space<vmem>>, %arg7: memref<32x128xf32, #tpu.memory_space<vmem>>) attributes {dimension_semantics = [#tpu.dimension_semantics<parallel>, #tpu.dimension_semantics<arbitrary>], iteration_bounds = array<i64: 1, 1>, scalar_prefetch = 0 : i64, scratch_operands = 1 : i64, tpu.core_type = #tpu.core_type<tc>, window_params = [{transform_indices = @transform_0, window_bounds = array<i64: 32, 384>}, {transform_indices = @transform_1, window_bounds = array<i64: 384, 128>}, {pipeline_mode = #tpu.pipeline_mode<synchronous>, transform_indices = @transform_2, window_bounds = array<i64: 1, 128>}, {pipeline_mode = #tpu.pipeline_mode<synchronous>, transform_indices = @transform_3, window_bounds = array<i64: 1, 128>}, {transform_indices = @transform_4, window_bounds = array<i64: 32, 128>}]} {
    %c0_i32 = arith.constant 0 : i32
    %0 = arith.cmpi eq, %arg1, %c0_i32 : i32
    %1 = arith.extui %0 : i1 to i32
    %c0_i32_0 = arith.constant 0 : i32
    %2 = arith.cmpi ne, %1, %c0_i32_0 : i32
    scf.if %2 {
      %cst_10 = arith.constant 0.000000e+00 : f32
      %12 = vector.broadcast %cst_10 : f32 to vector<32x128xf32>
      %c0_11 = arith.constant 0 : index
      %c0_12 = arith.constant 0 : index
      %13 = vector.load %arg7[%c0_11, %c0_12] : memref<32x128xf32, #tpu.memory_space<vmem>>, vector<32x128xf32>
      tpu.vector_store %arg7[%c0_11, %c0_12], %12 {strides = array<i32>} : memref<32x128xf32, #tpu.memory_space<vmem>>, vector<32x128xf32>,
    } else {
    }
    %c0 = arith.constant 0 : index
    %c0_1 = arith.constant 0 : index
    %3 = vector.load %arg7[%c0, %c0_1] : memref<32x128xf32, #tpu.memory_space<vmem>>, vector<32x128xf32>
    %c0_2 = arith.constant 0 : index
    %c0_3 = arith.constant 0 : index
    %4 = vector.load %arg2[%c0_2, %c0_3] : memref<32x384xbf16, #tpu.memory_space<vmem>>, vector<32x384xbf16>
    %c0_4 = arith.constant 0 : index
    %c0_5 = arith.constant 0 : index
    %5 = vector.load %arg3[%c0_4, %c0_5] : memref<384x128xbf16, #tpu.memory_space<vmem>>, vector<384x128xbf16>
    %cst = arith.constant dense<0.000000e+00> : vector<32x128xf32>
    %6 = tpu.matmul %4, %5, %cst {dimension_numbers = #tpu.dot_dimension_numbers<[1], [0], [0], [1], [0, 0, 1, 1], [], []>} : vector<32x384xbf16>, vector<384x128xbf16>, vector<32x128xf32> -> vector<32x128xf32>
    %7 = arith.addf %3, %6 : vector<32x128xf32>
    %c0_6 = arith.constant 0 : index
    %c0_7 = arith.constant 0 : index
    %8 = vector.load %arg7[%c0_6, %c0_7] : memref<32x128xf32, #tpu.memory_space<vmem>>, vector<32x128xf32>
    tpu.vector_store %arg7[%c0_6, %c0_7], %7 {strides = array<i32>} : memref<32x128xf32, #tpu.memory_space<vmem>>, vector<32x128xf32>,
    %c0_i32_8 = arith.constant 0 : i32
    %9 = arith.cmpi eq, %arg1, %c0_i32_8 : i32
    %10 = arith.extui %9 : i1 to i32
    %c0_i32_9 = arith.constant 0 : i32
    %11 = arith.cmpi ne, %10, %c0_i32_9 : i32
    scf.if %11 {
      %c0_10 = arith.constant 0 : index
      %c0_11 = arith.constant 0 : index
      %12 = vector.load %arg7[%c0_10, %c0_11] : memref<32x128xf32, #tpu.memory_space<vmem>>, vector<32x128xf32>
      %c0_12 = arith.constant 0 : index
      %c0_13 = arith.constant 0 : index
      %13 = vector.load %arg4[%c0_12, %c0_13] : memref<1x128xf32, #tpu.memory_space<vmem>>, vector<1x128xf32>
      %14 = vector.broadcast %13 : vector<1x128xf32> to vector<32x128xf32>
      %15 = arith.mulf %12, %14 : vector<32x128xf32>
      %c0_14 = arith.constant 0 : index
      %c0_15 = arith.constant 0 : index
      %16 = vector.load %arg5[%c0_14, %c0_15] : memref<1x128xf32, #tpu.memory_space<vmem>>, vector<1x128xf32>
      %17 = vector.broadcast %16 : vector<1x128xf32> to vector<32x128xf32>
      %18 = arith.addf %15, %17 : vector<32x128xf32>
      %cst_16 = arith.constant 0.000000e+00 : f32
      %19 = vector.broadcast %cst_16 : f32 to vector<32x128xf32>
      %20 = arith.maximumf %18, %19 : vector<32x128xf32>
      %21 = arith.truncf %20 : vector<32x128xf32> to vector<32x128xbf16>
      %c0_17 = arith.constant 0 : index
      %c0_18 = arith.constant 0 : index
      %22 = vector.load %arg6[%c0_17, %c0_18] : memref<32x128xbf16, #tpu.memory_space<vmem>>, vector<32x128xbf16>
      tpu.vector_store %arg6[%c0_17, %c0_18], %21 {strides = array<i32>} : memref<32x128xbf16, #tpu.memory_space<vmem>>, vector<32x128xbf16>,
    } else {
    }
    return
  }
  func.func @transform_0(%arg0: i32, %arg1: i32) -> (i32, i32) {
    %c0_i32 = arith.constant 0 : i32
    return %arg0, %arg1 : i32, i32
  }
  func.func @transform_1(%arg0: i32, %arg1: i32) -> (i32, i32) {
    %c0_i32 = arith.constant 0 : i32
    %c0_i32_0 = arith.constant 0 : i32
    return %arg1, %c0_i32 : i32, i32
  }
  func.func @transform_2(%arg0: i32, %arg1: i32) -> (i32, i32) {
    %c0_i32 = arith.constant 0 : i32
    %c0_i32_0 = arith.constant 0 : i32
    %c0_i32_1 = arith.constant 0 : i32
    return %c0_i32, %c0_i32_0 : i32, i32
  }
  func.func @transform_3(%arg0: i32, %arg1: i32) -> (i32, i32) {
    %c0_i32 = arith.constant 0 : i32
    %c0_i32_0 = arith.constant 0 : i32
    %c0_i32_1 = arith.constant 0 : i32
    return %c0_i32, %c0_i32_0 : i32, i32
  }
  func.func @transform_4(%arg0: i32, %arg1: i32) -> (i32, i32) {
    %c0_i32 = arith.constant 0 : i32
    %c0_i32_0 = arith.constant 0 : i32
    return %arg0, %c0_i32 : i32, i32
  }
}

module attributes {stable_mosaic.version = 11 : i64} {
  func.func @_conv_kernel(%arg0: i32, %arg1: i32, %arg2: memref<32x128xbf16, #tpu.memory_space<vmem>>, %arg3: memref<128x128xbf16, #tpu.memory_space<vmem>>, %arg4: memref<1x128xf32, #tpu.memory_space<vmem>>, %arg5: memref<1x128xf32, #tpu.memory_space<vmem>>, %arg6: memref<32x128xf32, #tpu.memory_space<vmem>>, %arg7: memref<32x128xf32, #tpu.memory_space<vmem>>) attributes {dimension_semantics = [#tpu.dimension_semantics<parallel>, #tpu.dimension_semantics<arbitrary>], iteration_bounds = array<i64: 1, 1>, scalar_prefetch = 0 : i64, scratch_operands = 1 : i64, tpu.core_type = #tpu.core_type<tc>, window_params = [{transform_indices = @transform_0, window_bounds = array<i64: 32, 128>}, {transform_indices = @transform_1, window_bounds = array<i64: 128, 128>}, {pipeline_mode = #tpu.pipeline_mode<synchronous>, transform_indices = @transform_2, window_bounds = array<i64: 1, 128>}, {pipeline_mode = #tpu.pipeline_mode<synchronous>, transform_indices = @transform_3, window_bounds = array<i64: 1, 128>}, {transform_indices = @transform_4, window_bounds = array<i64: 32, 128>}]} {
    %c0_i32 = arith.constant 0 : i32
    %0 = arith.cmpi eq, %arg1, %c0_i32 : i32
    %1 = arith.extui %0 : i1 to i32
    %c0_i32_0 = arith.constant 0 : i32
    %2 = arith.cmpi ne, %1, %c0_i32_0 : i32
    scf.if %2 {
      %cst_10 = arith.constant 0.000000e+00 : f32
      %12 = vector.broadcast %cst_10 : f32 to vector<32x128xf32>
      %c0_11 = arith.constant 0 : index
      %c0_12 = arith.constant 0 : index
      %13 = vector.load %arg7[%c0_11, %c0_12] : memref<32x128xf32, #tpu.memory_space<vmem>>, vector<32x128xf32>
      tpu.vector_store %arg7[%c0_11, %c0_12], %12 {strides = array<i32>} : memref<32x128xf32, #tpu.memory_space<vmem>>, vector<32x128xf32>,
    } else {
    }
    %c0 = arith.constant 0 : index
    %c0_1 = arith.constant 0 : index
    %3 = vector.load %arg7[%c0, %c0_1] : memref<32x128xf32, #tpu.memory_space<vmem>>, vector<32x128xf32>
    %c0_2 = arith.constant 0 : index
    %c0_3 = arith.constant 0 : index
    %4 = vector.load %arg2[%c0_2, %c0_3] : memref<32x128xbf16, #tpu.memory_space<vmem>>, vector<32x128xbf16>
    %c0_4 = arith.constant 0 : index
    %c0_5 = arith.constant 0 : index
    %5 = vector.load %arg3[%c0_4, %c0_5] : memref<128x128xbf16, #tpu.memory_space<vmem>>, vector<128x128xbf16>
    %cst = arith.constant dense<0.000000e+00> : vector<32x128xf32>
    %6 = tpu.matmul %4, %5, %cst {dimension_numbers = #tpu.dot_dimension_numbers<[1], [0], [0], [1], [0, 0, 1, 1], [], []>} : vector<32x128xbf16>, vector<128x128xbf16>, vector<32x128xf32> -> vector<32x128xf32>
    %7 = arith.addf %3, %6 : vector<32x128xf32>
    %c0_6 = arith.constant 0 : index
    %c0_7 = arith.constant 0 : index
    %8 = vector.load %arg7[%c0_6, %c0_7] : memref<32x128xf32, #tpu.memory_space<vmem>>, vector<32x128xf32>
    tpu.vector_store %arg7[%c0_6, %c0_7], %7 {strides = array<i32>} : memref<32x128xf32, #tpu.memory_space<vmem>>, vector<32x128xf32>,
    %c0_i32_8 = arith.constant 0 : i32
    %9 = arith.cmpi eq, %arg1, %c0_i32_8 : i32
    %10 = arith.extui %9 : i1 to i32
    %c0_i32_9 = arith.constant 0 : i32
    %11 = arith.cmpi ne, %10, %c0_i32_9 : i32
    scf.if %11 {
      %c0_10 = arith.constant 0 : index
      %c0_11 = arith.constant 0 : index
      %12 = vector.load %arg7[%c0_10, %c0_11] : memref<32x128xf32, #tpu.memory_space<vmem>>, vector<32x128xf32>
      %c0_12 = arith.constant 0 : index
      %c0_13 = arith.constant 0 : index
      %13 = vector.load %arg4[%c0_12, %c0_13] : memref<1x128xf32, #tpu.memory_space<vmem>>, vector<1x128xf32>
      %14 = vector.broadcast %13 : vector<1x128xf32> to vector<32x128xf32>
      %15 = arith.mulf %12, %14 : vector<32x128xf32>
      %c0_14 = arith.constant 0 : index
      %c0_15 = arith.constant 0 : index
      %16 = vector.load %arg5[%c0_14, %c0_15] : memref<1x128xf32, #tpu.memory_space<vmem>>, vector<1x128xf32>
      %17 = vector.broadcast %16 : vector<1x128xf32> to vector<32x128xf32>
      %18 = arith.addf %15, %17 : vector<32x128xf32>
      %c0_16 = arith.constant 0 : index
      %c0_17 = arith.constant 0 : index
      %19 = vector.load %arg6[%c0_16, %c0_17] : memref<32x128xf32, #tpu.memory_space<vmem>>, vector<32x128xf32>
      tpu.vector_store %arg6[%c0_16, %c0_17], %18 {strides = array<i32>} : memref<32x128xf32, #tpu.memory_space<vmem>>, vector<32x128xf32>,
    } else {
    }
    return
  }
  func.func @transform_0(%arg0: i32, %arg1: i32) -> (i32, i32) {
    %c0_i32 = arith.constant 0 : i32
    return %arg0, %arg1 : i32, i32
  }
  func.func @transform_1(%arg0: i32, %arg1: i32) -> (i32, i32) {
    %c0_i32 = arith.constant 0 : i32
    %c0_i32_0 = arith.constant 0 : i32
    return %arg1, %c0_i32 : i32, i32
  }
  func.func @transform_2(%arg0: i32, %arg1: i32) -> (i32, i32) {
    %c0_i32 = arith.constant 0 : i32
    %c0_i32_0 = arith.constant 0 : i32
    %c0_i32_1 = arith.constant 0 : i32
    return %c0_i32, %c0_i32_0 : i32, i32
  }
  func.func @transform_3(%arg0: i32, %arg1: i32) -> (i32, i32) {
    %c0_i32 = arith.constant 0 : i32
    %c0_i32_0 = arith.constant 0 : i32
    %c0_i32_1 = arith.constant 0 : i32
    return %c0_i32, %c0_i32_0 : i32, i32
  }
  func.func @transform_4(%arg0: i32, %arg1: i32) -> (i32, i32) {
    %c0_i32 = arith.constant 0 : i32
    %c0_i32_0 = arith.constant 0 : i32
    return %arg0, %c0_i32 : i32, i32
  }
}

module attributes {stable_mosaic.version = 11 : i64} {
  func.func @_conv_kernel(%arg0: i32, %arg1: i32, %arg2: memref<32x640xbf16, #tpu.memory_space<vmem>>, %arg3: memref<640x128xbf16, #tpu.memory_space<vmem>>, %arg4: memref<1x128xf32, #tpu.memory_space<vmem>>, %arg5: memref<1x128xf32, #tpu.memory_space<vmem>>, %arg6: memref<32x128xf32, #tpu.memory_space<vmem>>, %arg7: memref<32x128xbf16, #tpu.memory_space<vmem>>, %arg8: memref<32x128xf32, #tpu.memory_space<vmem>>) attributes {dimension_semantics = [#tpu.dimension_semantics<parallel>, #tpu.dimension_semantics<arbitrary>], iteration_bounds = array<i64: 1, 1>, scalar_prefetch = 0 : i64, scratch_operands = 1 : i64, tpu.core_type = #tpu.core_type<tc>, window_params = [{transform_indices = @transform_0, window_bounds = array<i64: 32, 640>}, {transform_indices = @transform_1, window_bounds = array<i64: 640, 128>}, {pipeline_mode = #tpu.pipeline_mode<synchronous>, transform_indices = @transform_2, window_bounds = array<i64: 1, 128>}, {pipeline_mode = #tpu.pipeline_mode<synchronous>, transform_indices = @transform_3, window_bounds = array<i64: 1, 128>}, {transform_indices = @transform_4, window_bounds = array<i64: 32, 128>}, {transform_indices = @transform_5, window_bounds = array<i64: 32, 128>}]} {
    %c0_i32 = arith.constant 0 : i32
    %0 = arith.cmpi eq, %arg1, %c0_i32 : i32
    %1 = arith.extui %0 : i1 to i32
    %c0_i32_0 = arith.constant 0 : i32
    %2 = arith.cmpi ne, %1, %c0_i32_0 : i32
    scf.if %2 {
      %cst_10 = arith.constant 0.000000e+00 : f32
      %12 = vector.broadcast %cst_10 : f32 to vector<32x128xf32>
      %c0_11 = arith.constant 0 : index
      %c0_12 = arith.constant 0 : index
      %13 = vector.load %arg8[%c0_11, %c0_12] : memref<32x128xf32, #tpu.memory_space<vmem>>, vector<32x128xf32>
      tpu.vector_store %arg8[%c0_11, %c0_12], %12 {strides = array<i32>} : memref<32x128xf32, #tpu.memory_space<vmem>>, vector<32x128xf32>,
    } else {
    }
    %c0 = arith.constant 0 : index
    %c0_1 = arith.constant 0 : index
    %3 = vector.load %arg8[%c0, %c0_1] : memref<32x128xf32, #tpu.memory_space<vmem>>, vector<32x128xf32>
    %c0_2 = arith.constant 0 : index
    %c0_3 = arith.constant 0 : index
    %4 = vector.load %arg2[%c0_2, %c0_3] : memref<32x640xbf16, #tpu.memory_space<vmem>>, vector<32x640xbf16>
    %c0_4 = arith.constant 0 : index
    %c0_5 = arith.constant 0 : index
    %5 = vector.load %arg3[%c0_4, %c0_5] : memref<640x128xbf16, #tpu.memory_space<vmem>>, vector<640x128xbf16>
    %cst = arith.constant dense<0.000000e+00> : vector<32x128xf32>
    %6 = tpu.matmul %4, %5, %cst {dimension_numbers = #tpu.dot_dimension_numbers<[1], [0], [0], [1], [0, 0, 1, 1], [], []>} : vector<32x640xbf16>, vector<640x128xbf16>, vector<32x128xf32> -> vector<32x128xf32>
    %7 = arith.addf %3, %6 : vector<32x128xf32>
    %c0_6 = arith.constant 0 : index
    %c0_7 = arith.constant 0 : index
    %8 = vector.load %arg8[%c0_6, %c0_7] : memref<32x128xf32, #tpu.memory_space<vmem>>, vector<32x128xf32>
    tpu.vector_store %arg8[%c0_6, %c0_7], %7 {strides = array<i32>} : memref<32x128xf32, #tpu.memory_space<vmem>>, vector<32x128xf32>,
    %c0_i32_8 = arith.constant 0 : i32
    %9 = arith.cmpi eq, %arg1, %c0_i32_8 : i32
    %10 = arith.extui %9 : i1 to i32
    %c0_i32_9 = arith.constant 0 : i32
    %11 = arith.cmpi ne, %10, %c0_i32_9 : i32
    scf.if %11 {
      %c0_10 = arith.constant 0 : index
      %c0_11 = arith.constant 0 : index
      %12 = vector.load %arg8[%c0_10, %c0_11] : memref<32x128xf32, #tpu.memory_space<vmem>>, vector<32x128xf32>
      %c0_12 = arith.constant 0 : index
      %c0_13 = arith.constant 0 : index
      %13 = vector.load %arg6[%c0_12, %c0_13] : memref<32x128xf32, #tpu.memory_space<vmem>>, vector<32x128xf32>
      %14 = arith.addf %12, %13 : vector<32x128xf32>
      %c0_14 = arith.constant 0 : index
      %c0_15 = arith.constant 0 : index
      %15 = vector.load %arg4[%c0_14, %c0_15] : memref<1x128xf32, #tpu.memory_space<vmem>>, vector<1x128xf32>
      %16 = vector.broadcast %15 : vector<1x128xf32> to vector<32x128xf32>
      %17 = arith.mulf %14, %16 : vector<32x128xf32>
      %c0_16 = arith.constant 0 : index
      %c0_17 = arith.constant 0 : index
      %18 = vector.load %arg5[%c0_16, %c0_17] : memref<1x128xf32, #tpu.memory_space<vmem>>, vector<1x128xf32>
      %19 = vector.broadcast %18 : vector<1x128xf32> to vector<32x128xf32>
      %20 = arith.addf %17, %19 : vector<32x128xf32>
      %cst_18 = arith.constant 0.000000e+00 : f32
      %21 = vector.broadcast %cst_18 : f32 to vector<32x128xf32>
      %22 = arith.maximumf %20, %21 : vector<32x128xf32>
      %23 = arith.truncf %22 : vector<32x128xf32> to vector<32x128xbf16>
      %c0_19 = arith.constant 0 : index
      %c0_20 = arith.constant 0 : index
      %24 = vector.load %arg7[%c0_19, %c0_20] : memref<32x128xbf16, #tpu.memory_space<vmem>>, vector<32x128xbf16>
      tpu.vector_store %arg7[%c0_19, %c0_20], %23 {strides = array<i32>} : memref<32x128xbf16, #tpu.memory_space<vmem>>, vector<32x128xbf16>,
    } else {
    }
    return
  }
  func.func @transform_0(%arg0: i32, %arg1: i32) -> (i32, i32) {
    %c0_i32 = arith.constant 0 : i32
    return %arg0, %arg1 : i32, i32
  }
  func.func @transform_1(%arg0: i32, %arg1: i32) -> (i32, i32) {
    %c0_i32 = arith.constant 0 : i32
    %c0_i32_0 = arith.constant 0 : i32
    return %arg1, %c0_i32 : i32, i32
  }
  func.func @transform_2(%arg0: i32, %arg1: i32) -> (i32, i32) {
    %c0_i32 = arith.constant 0 : i32
    %c0_i32_0 = arith.constant 0 : i32
    %c0_i32_1 = arith.constant 0 : i32
    return %c0_i32, %c0_i32_0 : i32, i32
  }
  func.func @transform_3(%arg0: i32, %arg1: i32) -> (i32, i32) {
    %c0_i32 = arith.constant 0 : i32
    %c0_i32_0 = arith.constant 0 : i32
    %c0_i32_1 = arith.constant 0 : i32
    return %c0_i32, %c0_i32_0 : i32, i32
  }
  func.func @transform_4(%arg0: i32, %arg1: i32) -> (i32, i32) {
    %c0_i32 = arith.constant 0 : i32
    %c0_i32_0 = arith.constant 0 : i32
    return %arg0, %c0_i32 : i32, i32
  }
  func.func @transform_5(%arg0: i32, %arg1: i32) -> (i32, i32) {
    %c0_i32 = arith.constant 0 : i32
    %c0_i32_0 = arith.constant 0 : i32
    return %arg0, %c0_i32 : i32, i32
  }
}

module attributes {stable_mosaic.version = 11 : i64} {
  func.func @_head_kernel(%arg0: i32, %arg1: memref<2x16x128xbf16, #tpu.memory_space<vmem>>, %arg2: memref<128x128xf32, #tpu.memory_space<vmem>>, %arg3: memref<1x128xf32, #tpu.memory_space<vmem>>, %arg4: memref<128x128xf32, #tpu.memory_space<vmem>>, %arg5: memref<1x128xf32, #tpu.memory_space<vmem>>, %arg6: memref<2x128xf32, #tpu.memory_space<vmem>>) attributes {dimension_semantics = [#tpu.dimension_semantics<arbitrary>], iteration_bounds = array<i64: 1>, scalar_prefetch = 0 : i64, scratch_operands = 0 : i64, tpu.core_type = #tpu.core_type<tc>, window_params = [{pipeline_mode = #tpu.pipeline_mode<synchronous>, transform_indices = @transform_0, window_bounds = array<i64: 2, 16, 128>}, {pipeline_mode = #tpu.pipeline_mode<synchronous>, transform_indices = @transform_1, window_bounds = array<i64: 128, 128>}, {pipeline_mode = #tpu.pipeline_mode<synchronous>, transform_indices = @transform_2, window_bounds = array<i64: 1, 128>}, {pipeline_mode = #tpu.pipeline_mode<synchronous>, transform_indices = @transform_3, window_bounds = array<i64: 128, 128>}, {pipeline_mode = #tpu.pipeline_mode<synchronous>, transform_indices = @transform_4, window_bounds = array<i64: 1, 128>}, {pipeline_mode = #tpu.pipeline_mode<synchronous>, transform_indices = @transform_5, window_bounds = array<i64: 2, 128>}]} {
    %c0 = arith.constant 0 : index
    %c0_0 = arith.constant 0 : index
    %c0_1 = arith.constant 0 : index
    %0 = vector.load %arg1[%c0, %c0_0, %c0_1] : memref<2x16x128xbf16, #tpu.memory_space<vmem>>, vector<2x16x128xbf16>
    %1 = arith.extf %0 : vector<2x16x128xbf16> to vector<2x16x128xf32>
    %cst = arith.constant dense<0.000000e+00> : vector<2x128xf32>
    %2 = vector.multi_reduction <add>, %1, %cst [1] : vector<2x16x128xf32> to vector<2x128xf32>
    %cst_2 = arith.constant 6.250000e-02 : f32
    %3 = vector.broadcast %cst_2 : f32 to vector<2x128xf32>
    %4 = arith.mulf %2, %3 : vector<2x128xf32>
    %c0_3 = arith.constant 0 : index
    %c0_4 = arith.constant 0 : index
    %5 = vector.load %arg2[%c0_3, %c0_4] : memref<128x128xf32, #tpu.memory_space<vmem>>, vector<128x128xf32>
    %cst_5 = arith.constant dense<0.000000e+00> : vector<2x128xf32>
    %6 = tpu.matmul %4, %5, %cst_5 {dimension_numbers = #tpu.dot_dimension_numbers<[1], [0], [0], [1], [0, 0, 1, 1], [], []>} : vector<2x128xf32>, vector<128x128xf32>, vector<2x128xf32> -> vector<2x128xf32>
    %c0_6 = arith.constant 0 : index
    %c0_7 = arith.constant 0 : index
    %7 = vector.load %arg3[%c0_6, %c0_7] : memref<1x128xf32, #tpu.memory_space<vmem>>, vector<1x128xf32>
    %8 = vector.broadcast %7 : vector<1x128xf32> to vector<2x128xf32>
    %9 = arith.addf %6, %8 : vector<2x128xf32>
    %c0_8 = arith.constant 0 : index
    %c0_9 = arith.constant 0 : index
    %10 = vector.load %arg4[%c0_8, %c0_9] : memref<128x128xf32, #tpu.memory_space<vmem>>, vector<128x128xf32>
    %cst_10 = arith.constant dense<0.000000e+00> : vector<2x128xf32>
    %11 = tpu.matmul %9, %10, %cst_10 {dimension_numbers = #tpu.dot_dimension_numbers<[1], [0], [0], [1], [0, 0, 1, 1], [], []>} : vector<2x128xf32>, vector<128x128xf32>, vector<2x128xf32> -> vector<2x128xf32>
    %c0_11 = arith.constant 0 : index
    %c0_12 = arith.constant 0 : index
    %12 = vector.load %arg5[%c0_11, %c0_12] : memref<1x128xf32, #tpu.memory_space<vmem>>, vector<1x128xf32>
    %13 = vector.broadcast %12 : vector<1x128xf32> to vector<2x128xf32>
    %14 = arith.addf %11, %13 : vector<2x128xf32>
    %c0_13 = arith.constant 0 : index
    %c0_14 = arith.constant 0 : index
    %15 = vector.load %arg6[%c0_13, %c0_14] : memref<2x128xf32, #tpu.memory_space<vmem>>, vector<2x128xf32>
    tpu.vector_store %arg6[%c0_13, %c0_14], %14 {strides = array<i32>} : memref<2x128xf32, #tpu.memory_space<vmem>>, vector<2x128xf32>,
    return
  }
  func.func @transform_0(%arg0: i32) -> (i32, i32, i32) {
    %c0_i32 = arith.constant 0 : i32
    %c0_i32_0 = arith.constant 0 : i32
    %c0_i32_1 = arith.constant 0 : i32
    %c0_i32_2 = arith.constant 0 : i32
    return %c0_i32, %c0_i32_0, %c0_i32_1 : i32, i32, i32
  }
  func.func @transform_1(%arg0: i32) -> (i32, i32) {
    %c0_i32 = arith.constant 0 : i32
    %c0_i32_0 = arith.constant 0 : i32
    %c0_i32_1 = arith.constant 0 : i32
    return %c0_i32, %c0_i32_0 : i32, i32
  }
  func.func @transform_2(%arg0: i32) -> (i32, i32) {
    %c0_i32 = arith.constant 0 : i32
    %c0_i32_0 = arith.constant 0 : i32
    %c0_i32_1 = arith.constant 0 : i32
    return %c0_i32, %c0_i32_0 : i32, i32
  }
  func.func @transform_3(%arg0: i32) -> (i32, i32) {
    %c0_i32 = arith.constant 0 : i32
    %c0_i32_0 = arith.constant 0 : i32
    %c0_i32_1 = arith.constant 0 : i32
    return %c0_i32, %c0_i32_0 : i32, i32
  }
  func.func @transform_4(%arg0: i32) -> (i32, i32) {
    %c0_i32 = arith.constant 0 : i32
    %c0_i32_0 = arith.constant 0 : i32
    %c0_i32_1 = arith.constant 0 : i32
    return %c0_i32, %c0_i32_0 : i32, i32
  }
  func.func @transform_5(%arg0: i32) -> (i32, i32) {
    %c0_i32 = arith.constant 0 : i32
    %c0_i32_0 = arith.constant 0 : i32
    %c0_i32_1 = arith.constant 0 : i32
    return %c0_i32, %c0_i32_0 : i32, i32
  }
}

</mosaic_0001>

<llo_original>
// kernel: haframe_wrn_forward.10
$region0: #{haframe_wrn_forward.10}
  #allocation0 [shape = 'u32[]', space=smem, size = 0x4, offset = 0x4, fixed_abs, tag = 'smem constant byte address 0x4 - core index']
  #allocation1 [shape = 'u32[144,128]{1,0:T(1,128)}', space=vmem, size = 0x12000, scoped, tag = 'internal scratch']
  #allocation2 [shape = 'f32[256,128]{1,0:T(8,128)}', space=vmem, size = 0x20000, scoped, tag = 'scratch operand']
  %s0 = inlined_call_operand.vmem [shape: bf16[512,128], index: 0, kind: input, shape index: {}]
  %s1 = inlined_call_operand.vmem [shape: bf16[128,128], index: 1, kind: input, shape index: {}]
  %s2 = inlined_call_operand.vmem [shape: f32[1,128], index: 2, kind: input, shape index: {}]
  %s3 = inlined_call_operand.vmem [shape: f32[1,128], index: 3, kind: input, shape index: {}]
  %s4 = inlined_call_operand.vmem [shape: bf16[512,128], index: 4, kind: output, shape index: {0}]
  %s5 = inlined_call_operand.vmem [shape: f32[512,128], index: 5, kind: output, shape index: {1}]
  %6 = xla_tuple %s4, %s5
  %s7 = sld [smem:[#allocation0]]
  $region65: #{haframe_wrn_forward.10} parent=0
    _
  %s9 = ssub.s32 1, %s7
  %s10 = scalar_select 0, %s9, %s7
  loop: start=0, step=1, limit=4
  $region2: #{haframe_wrn_forward.10} parent=0 // loop_pre_header
    _
  $region3: #{haframe_wrn_forward.10} parent=0 // loop_header
    %s12 = sphi 0, %s16
    %p13 = scmp.ge.s32.totalorder %s12, 4
    %s19 = sphi 0, %s31
    %s20 = sphi 0, %s27
    %s21 = sphi 0, %s19
    %s22 = sphi 0, %s20
    %s23 = sphi 0, %s21
    %s24 = sphi 0, %s22
    %s36 = sphi 0, %s38
    %s39 = sphi 0, %s36
    %s40 = sphi 0, %s39
    %s56 = sphi 0, %s40
    %s62 = sphi 0, %s64
    %s65 = sphi 0, %s62
    %s66 = sphi 0, %s65
    %s82 = sphi 0, %s66
    %s86 = sphi 0, %s86
    %s88 = sphi 0, %s86
    %s89 = sphi 0, %s88
    %s103 = sphi 0, %s89
    %s107 = sphi 0, %s107
    %s109 = sphi 0, %s107
    %s110 = sphi 0, %s109
    %s124 = sphi 0, %s110
    %s130 = sphi 0, %s132
    %s133 = sphi 0, %s130
    %s134 = sphi 0, %s133
    %s150 = sphi 0, %s134
    %s156 = sphi 0, %s158
    %s159 = sphi 0, %s156
    %s160 = sphi 0, %s159
    %s176 = sphi 0, %s160
  $region4: #{haframe_wrn_forward.10} parent=0 // loop_header_branch
    %15 = sbr.rel (%p13) target = $region8
  $region5: #{haframe_wrn_forward.10} parent=0 // loop_body
    %s17 = ssub.s32 %s12, 1
    %s18 = ssub.s32 %s12, 2
    %s25 = sadd.s32 1, %s20
    %p26 = scmp.ge.s32.totalorder %s25, 1
    %s27 = scalar_select %p26, 0, %s25
    %s28 = sadd.s32 1, %s19
    %s29 = scalar_select %p26, %s28, %s19
    %p30 = scmp.ge.s32.totalorder %s29, 2
    %s31 = scalar_select %p30, 0, %s29
    %s32 = ssub.s32 %s19, %s31
    %s33 = ssub.s32 %s20, %s27
    %s34 = sor.u32 %s32, %s33
    %p35 = scmp.eq.s32.totalorder %s34, 0
    %s37 = sadd.s32 %s36, 1
    %s38 = scalar_select %p35, %s36, %s37
    %p41 = pneg %p35
    %p42 = scmp.eq.s32.totalorder %s12, 1
    %p43 = por %p41, %p42
    %p44 = scmp.ne.s32.totalorder %s36, %s39
    %p45 = scmp.eq.s32.totalorder %s12, 0
    %p46 = por %p44, %p45
    %p47 = scmp.ne.s32.totalorder %s36, %s39
    %p48 = scmp.eq.s32.totalorder %s17, 1
    %p49 = por %p47, %p48
    %p50 = scmp.ne.s32.totalorder %s39, %s40
    %p51 = scmp.eq.s32.totalorder %s17, 0
    %p52 = por %p50, %p51
    %p53 = scmp.ne.s32.totalorder %s39, %s40
    %p54 = scmp.eq.s32.totalorder %s18, 1
    %p55 = por %p53, %p54
    %p57 = scmp.ne.s32.totalorder %s40, %s56
    %p58 = scmp.eq.s32.totalorder %s18, 0
    %p59 = por %p57, %p58
    %s60 = ssub.s32 %s20, %s27
    %p61 = scmp.eq.s32.totalorder %s60, 0
    %s63 = sadd.s32 %s62, 1
    %s64 = scalar_select %p61, %s62, %s63
    %p67 = pneg %p61
    %p68 = scmp.eq.s32.totalorder %s12, 1
    %p69 = por %p67, %p68
    %p70 = scmp.ne.s32.totalorder %s62, %s65
    %p71 = scmp.eq.s32.totalorder %s12, 0
    %p72 = por %p70, %p71
    %p73 = scmp.ne.s32.totalorder %s62, %s65
    %p74 = scmp.eq.s32.totalorder %s17, 1
    %p75 = por %p73, %p74
    %p76 = scmp.ne.s32.totalorder %s65, %s66
    %p77 = scmp.eq.s32.totalorder %s17, 0
    %p78 = por %p76, %p77
    %p79 = scmp.ne.s32.totalorder %s65, %s66
    %p80 = scmp.eq.s32.totalorder %s18, 1
    %p81 = por %p79, %p80
    %p83 = scmp.ne.s32.totalorder %s66, %s82
    %p84 = scmp.eq.s32.totalorder %s18, 0
    %p85 = por %p83, %p84
    %s87 = sadd.s32 %s86, 1
    %p90 = scmp.eq.s32.totalorder %s12, 1
    %p91 = scmp.ne.s32.totalorder %s86, %s88
    %p92 = scmp.eq.s32.totalorder %s12, 0
    %p93 = por %p91, %p92
    %p94 = scmp.ne.s32.totalorder %s86, %s88
    %p95 = scmp.eq.s32.totalorder %s17, 1
    %p96 = por %p94, %p95
    %p97 = scmp.ne.s32.totalorder %s88, %s89
    %p98 = scmp.eq.s32.totalorder %s17, 0
    %p99 = por %p97, %p98
    %p100 = scmp.ne.s32.totalorder %s88, %s89
    %p101 = scmp.eq.s32.totalorder %s18, 1
    %p102 = por %p100, %p101
    %p104 = scmp.ne.s32.totalorder %s89, %s103
    %p105 = scmp.eq.s32.totalorder %s18, 0
    %p106 = por %p104, %p105
    %s108 = sadd.s32 %s107, 1
    %p111 = scmp.eq.s32.totalorder %s12, 1
    %p112 = scmp.ne.s32.totalorder %s107, %s109
    %p113 = scmp.eq.s32.totalorder %s12, 0
    %p114 = por %p112, %p113
    %p115 = scmp.ne.s32.totalorder %s107, %s109
    %p116 = scmp.eq.s32.totalorder %s17, 1
    %p117 = por %p115, %p116
    %p118 = scmp.ne.s32.totalorder %s109, %s110
    %p119 = scmp.eq.s32.totalorder %s17, 0
    %p120 = por %p118, %p119
    %p121 = scmp.ne.s32.totalorder %s109, %s110
    %p122 = scmp.eq.s32.totalorder %s18, 1
    %p123 = por %p121, %p122
    %p125 = scmp.ne.s32.totalorder %s110, %s124
    %p126 = scmp.eq.s32.totalorder %s18, 0
    %p127 = por %p125, %p126
    %s128 = ssub.s32 %s19, %s31
    %p129 = scmp.eq.s32.totalorder %s128, 0
    %s131 = sadd.s32 %s130, 1
    %s132 = scalar_select %p129, %s130, %s131
    %p135 = pneg %p129
    %p136 = scmp.eq.s32.totalorder %s12, 1
    %p137 = por %p135, %p136
    %p138 = scmp.ne.s32.totalorder %s130, %s133
    %p139 = scmp.eq.s32.totalorder %s12, 0
    %p140 = por %p138, %p139
    %p141 = scmp.ne.s32.totalorder %s130, %s133
    %p142 = scmp.eq.s32.totalorder %s17, 1
    %p143 = por %p141, %p142
    %p144 = scmp.ne.s32.totalorder %s133, %s134
    %p145 = scmp.eq.s32.totalorder %s17, 0
    %p146 = por %p144, %p145
    %p147 = scmp.ne.s32.totalorder %s133, %s134
    %p148 = scmp.eq.s32.totalorder %s18, 1
    %p149 = por %p147, %p148
    %p151 = scmp.ne.s32.totalorder %s134, %s150
    %p152 = scmp.eq.s32.totalorder %s18, 0
    %p153 = por %p151, %p152
    %s154 = ssub.s32 %s19, %s31
    %p155 = scmp.eq.s32.totalorder %s154, 0
    %s157 = sadd.s32 %s156, 1
    %s158 = scalar_select %p155, %s156, %s157
    %p161 = pneg %p155
    %p162 = scmp.eq.s32.totalorder %s12, 1
    %p163 = por %p161, %p162
    %p164 = scmp.ne.s32.totalorder %s156, %s159
    %p165 = scmp.eq.s32.totalorder %s12, 0
    %p166 = por %p164, %p165
    %p167 = scmp.ne.s32.totalorder %s156, %s159
    %p168 = scmp.eq.s32.totalorder %s17, 1
    %p169 = por %p167, %p168
    %p170 = scmp.ne.s32.totalorder %s159, %s160
    %p171 = scmp.eq.s32.totalorder %s17, 0
    %p172 = por %p170, %p171
    %p173 = scmp.ne.s32.totalorder %s159, %s160
    %p174 = scmp.eq.s32.totalorder %s18, 1
    %p175 = por %p173, %p174
    %p177 = scmp.ne.s32.totalorder %s160, %s176
    %p178 = scmp.eq.s32.totalorder %s18, 0
    %p179 = por %p177, %p178
    %p180 = scmp.le.s32.totalorder 1, %s12
    %p181 = scmp.lt.s32.totalorder %s12, 3
    %p182 = pnand %p180, %p181
    %p183 = pneg %p182
    // Predicated region
    $region9: #{haframe_wrn_forward.10} parent=5 // pred_check
      _
    $region10: #{haframe_wrn_forward.10} parent=5 // pred_check_branch
      %185 = sbr.rel (%p182) target = $region12
    $region11: #{haframe_wrn_forward.10} parent=5 // pred_region
      %s186 = ssub.s32 %s12, 1
      // Predicated region
      $region13: #{haframe_wrn_forward.10} parent=11 // pred_check
        %p187 = pneg %p78
      $region14: #{haframe_wrn_forward.10} parent=11 // pred_check_branch
        %189 = sbr.rel (%p187) target = $region16
      $region15: #{haframe_wrn_forward.10} parent=11 // pred_region
        %s190 = smul.u32 16, %s22
        %p191 = scmp.lt.s32.totalorder %s190, 15
        %s192 = scalar_select %p191, %s190, 15
        %s193 = smul.addr %s192, 4
        %s194 = scalar_lea.vmem %s1, %s193
        %s195 = smul.u32 16, %s22
      $region16: #{haframe_wrn_forward.10} parent=11 // pred_fallthru
        _
      // Predicated region
      $region17: #{haframe_wrn_forward.10} parent=11 // pred_check
        %p196 = pneg %p99
      $region18: #{haframe_wrn_forward.10} parent=11 // pred_check_branch
        %198 = sbr.rel (%p196) target = $region20
      $region19: #{haframe_wrn_forward.10} parent=11 // pred_region
        _
      $region20: #{haframe_wrn_forward.10} parent=11 // pred_fallthru
        _
      // Predicated region
      $region21: #{haframe_wrn_forward.10} parent=11 // pred_check
        %p199 = pneg %p120
      $region22: #{haframe_wrn_forward.10} parent=11 // pred_check_branch
        %201 = sbr.rel (%p199) target = $region24
      $region23: #{haframe_wrn_forward.10} parent=11 // pred_region
        _
      $region24: #{haframe_wrn_forward.10} parent=11 // pred_fallthru
        _
    $region12: #{haframe_wrn_forward.10} parent=5 // pred_fallthru
      _
    %p202 = scmp.lt.s32.totalorder %s12, 2
    // Predicated region
    $region25: #{haframe_wrn_forward.10} parent=5 // pred_check
      %p203 = pneg %p202
    $region26: #{haframe_wrn_forward.10} parent=5 // pred_check_branch
      %205 = sbr.rel (%p203) target = $region28
    $region27: #{haframe_wrn_forward.10} parent=5 // pred_region
      // Predicated region
      $region29: #{haframe_wrn_forward.10} parent=27 // pred_check
        %p206 = pneg %p46
      $region30: #{haframe_wrn_forward.10} parent=27 // pred_check_branch
        %208 = sbr.rel (%p206) target = $region32
      $region31: #{haframe_wrn_forward.10} parent=27 // pred_region
        %s209 = smul.u32 32, %s19
        %p210 = scmp.lt.s32.totalorder %s209, 63
        %s211 = scalar_select %p210, %s209, 63
        %p212 = scmp.lt.s32.totalorder %s20, 0
        %s213 = scalar_select %p212, %s20, 0
        %s214 = sadd.s32 %s213, %s211
        %s215 = smul.addr %s214, 4
        %s216 = scalar_lea.vmem %s0, %s215
        %s217 = smul.u32 32, %s19
      $region32: #{haframe_wrn_forward.10} parent=27 // pred_fallthru
        _
    $region28: #{haframe_wrn_forward.10} parent=5 // pred_fallthru
      _
    %p218 = scmp.le.s32.totalorder 1, %s12
    %p219 = scmp.lt.s32.totalorder %s12, 3
    %p220 = pnand %p218, %p219
    %p221 = pneg %p220
    // Predicated region
    $region33: #{haframe_wrn_forward.10} parent=5 // pred_check
      _
    $region34: #{haframe_wrn_forward.10} parent=5 // pred_check_branch
      %223 = sbr.rel (%p220) target = $region36
    $region35: #{haframe_wrn_forward.10} parent=5 // pred_region
      %s224 = ssub.s32 %s12, 1
      %s225 = smul.u32 32, %s21
      %p226 = scmp.lt.s32.totalorder %s225, 63
      %s227 = scalar_select %p226, %s225, 63
      %p228 = scmp.lt.s32.totalorder %s22, 0
      %s229 = scalar_select %p228, %s22, 0
      %s230 = sadd.s32 %s229, %s227
      %s231 = smul.addr %s230, 4
      %s232 = scalar_lea.vmem %s0, %s231
      %p233 = pneg %p52
      %p234 = pneg %p49
      %s235 = smul.u32 16, %s22
      %p236 = scmp.lt.s32.totalorder %s235, 15
      %s237 = scalar_select %p236, %s235, 15
      %s238 = smul.addr %s237, 4
      %s239 = scalar_lea.vmem %s1, %s238
      %p240 = pneg %p78
      %p241 = pneg %p75
      %p242 = pneg %p99
      %p243 = pneg %p96
      %p244 = pneg %p120
      %p245 = pneg %p117
      %p246 = pneg %p146
      %p247 = pneg %p143
      %s248 = smul.u32 32, %s21
      %p249 = scmp.lt.s32.totalorder %s248, 63
      %s250 = scalar_select %p249, %s248, 63
      %s251 = smul.addr %s250, 4
      %s252 = scalar_lea.vmem %s4, %s251
      %p253 = pneg %p172
      %p254 = pneg %p169
      %s255 = smul.u32 32, %s21
      %p256 = scmp.lt.s32.totalorder %s255, 63
      %s257 = scalar_select %p256, %s255, 63
      %s258 = smul.addr %s257, 8
      %s259 = scalar_lea.vmem %s5, %s258
      %s260 = smul.u32 32, %s21
      %p261 = scmp.lt.s32.totalorder %s260, 63
      %s262 = scalar_select %p261, %s260, 63
      %p263 = scmp.lt.s32.totalorder %s22, 0
      %s264 = scalar_select %p263, %s22, 0
      %s265 = sadd.s32 %s264, %s262
      %s266 = smul.addr %s265, 4
      %s267 = scalar_lea.vmem %s0, %s266
      %s268 = smul.u32 32, %s21
      %s269 = smul.u32 16, %s22
      %p270 = scmp.lt.s32.totalorder %s269, 15
      %s271 = scalar_select %p270, %s269, 15
      %s272 = smul.addr %s271, 4
      %s273 = scalar_lea.vmem %s1, %s272
      %s274 = smul.u32 16, %s22
      %s275 = smul.u32 32, %s21
      %p276 = scmp.lt.s32.totalorder %s275, 63
      %s277 = scalar_select %p276, %s275, 63
      %s278 = smul.addr %s277, 4
      %s279 = scalar_lea.vmem %s4, %s278
      %s280 = smul.u32 32, %s21
      %s281 = smul.u32 32, %s21
      %p282 = scmp.lt.s32.totalorder %s281, 63
      %s283 = scalar_select %p282, %s281, 63
      %s284 = smul.addr %s283, 8
      %s285 = scalar_lea.vmem %s5, %s284
      %s286 = smul.u32 32, %s21
      %p288 = scmp.eq.s32.totalorder %s22, 0
      // Predicated region
      $region37: #{haframe_wrn_forward.10} parent=35 // pred_check
        %p289 = pneg %p288
      $region38: #{haframe_wrn_forward.10} parent=35 // pred_check_branch
        %291 = sbr.rel (%p289) target = $region40
      $region39: #{haframe_wrn_forward.10} parent=35 // pred_region
        %292 = vst [vmem:[#allocation2] sm:$0xff] 0.0
        %293 = vst [vmem:[#allocation2 + $0x8] sm:$0xff] 0.0
        %294 = vst [vmem:[#allocation2 + $0x10] sm:$0xff] 0.0
        %295 = vst [vmem:[#allocation2 + $0x18] sm:$0xff] 0.0
        %296 = vst [vmem:[#allocation2 + $0x20] sm:$0xff] 0.0
        %297 = vst [vmem:[#allocation2 + $0x28] sm:$0xff] 0.0
        %298 = vst [vmem:[#allocation2 + $0x30] sm:$0xff] 0.0
        %299 = vst [vmem:[#allocation2 + $0x38] sm:$0xff] 0.0
        %300 = vst [vmem:[#allocation2 + $0x40] sm:$0xff] 0.0
        %301 = vst [vmem:[#allocation2 + $0x48] sm:$0xff] 0.0
        %302 = vst [vmem:[#allocation2 + $0x50] sm:$0xff] 0.0
        %303 = vst [vmem:[#allocation2 + $0x58] sm:$0xff] 0.0
        %304 = vst [vmem:[#allocation2 + $0x60] sm:$0xff] 0.0
        %305 = vst [vmem:[#allocation2 + $0x68] sm:$0xff] 0.0
        %306 = vst [vmem:[#allocation2 + $0x70] sm:$0xff] 0.0
        %307 = vst [vmem:[#allocation2 + $0x78] sm:$0xff] 0.0
        %308 = vst [vmem:[#allocation2 + $0x80] sm:$0xff] 0.0
        %309 = vst [vmem:[#allocation2 + $0x88] sm:$0xff] 0.0
        %310 = vst [vmem:[#allocation2 + $0x90] sm:$0xff] 0.0
        %311 = vst [vmem:[#allocation2 + $0x98] sm:$0xff] 0.0
        %312 = vst [vmem:[#allocation2 + $0xa0] sm:$0xff] 0.0
        %313 = vst [vmem:[#allocation2 + $0xa8] sm:$0xff] 0.0
        %314 = vst [vmem:[#allocation2 + $0xb0] sm:$0xff] 0.0
        %315 = vst [vmem:[#allocation2 + $0xb8] sm:$0xff] 0.0
        %316 = vst [vmem:[#allocation2 + $0xc0] sm:$0xff] 0.0
        %317 = vst [vmem:[#allocation2 + $0xc8] sm:$0xff] 0.0
        %318 = vst [vmem:[#allocation2 + $0xd0] sm:$0xff] 0.0
        %319 = vst [vmem:[#allocation2 + $0xd8] sm:$0xff] 0.0
        %320 = vst [vmem:[#allocation2 + $0xe0] sm:$0xff] 0.0
        %321 = vst [vmem:[#allocation2 + $0xe8] sm:$0xff] 0.0
        %322 = vst [vmem:[#allocation2 + $0xf0] sm:$0xff] 0.0
        %323 = vst [vmem:[#allocation2 + $0xf8] sm:$0xff] 0.0
      $region40: #{haframe_wrn_forward.10} parent=35 // pred_fallthru
        _
      %v324 = vld [vmem:[#allocation2] sm:$0xff]
      %v325 = vld [vmem:[#allocation2 + $0x8] sm:$0xff]
      %v326 = vld [vmem:[#allocation2 + $0x10] sm:$0xff]
      %v327 = vld [vmem:[#allocation2 + $0x18] sm:$0xff]
      %v328 = vld [vmem:[#allocation2 + $0x20] sm:$0xff]
      %v329 = vld [vmem:[#allocation2 + $0x28] sm:$0xff]
      %v330 = vld [vmem:[#allocation2 + $0x30] sm:$0xff]
      %v331 = vld [vmem:[#allocation2 + $0x38] sm:$0xff]
      %v332 = vld [vmem:[#allocation2 + $0x40] sm:$0xff]
      %v333 = vld [vmem:[#allocation2 + $0x48] sm:$0xff]
      %v334 = vld [vmem:[#allocation2 + $0x50] sm:$0xff]
      %v335 = vld [vmem:[#allocation2 + $0x58] sm:$0xff]
      %v336 = vld [vmem:[#allocation2 + $0x60] sm:$0xff]
      %v337 = vld [vmem:[#allocation2 + $0x68] sm:$0xff]
      %v338 = vld [vmem:[#allocation2 + $0x70] sm:$0xff]
      %v339 = vld [vmem:[#allocation2 + $0x78] sm:$0xff]
      %v340 = vld [vmem:[#allocation2 + $0x80] sm:$0xff]
      %v341 = vld [vmem:[#allocation2 + $0x88] sm:$0xff]
      %v342 = vld [vmem:[#allocation2 + $0x90] sm:$0xff]
      %v343 = vld [vmem:[#allocation2 + $0x98] sm:$0xff]
      %v344 = vld [vmem:[#allocation2 + $0xa0] sm:$0xff]
      %v345 = vld [vmem:[#allocation2 + $0xa8] sm:$0xff]
      %v346 = vld [vmem:[#allocation2 + $0xb0] sm:$0xff]
      %v347 = vld [vmem:[#allocation2 + $0xb8] sm:$0xff]
      %v348 = vld [vmem:[#allocation2 + $0xc0] sm:$0xff]
      %v349 = vld [vmem:[#allocation2 + $0xc8] sm:$0xff]
      %v350 = vld [vmem:[#allocation2 + $0xd0] sm:$0xff]
      %v351 = vld [vmem:[#allocation2 + $0xd8] sm:$0xff]
      %v352 = vld [vmem:[#allocation2 + $0xe0] sm:$0xff]
      %v353 = vld [vmem:[#allocation2 + $0xe8] sm:$0xff]
      %v354 = vld [vmem:[#allocation2 + $0xf0] sm:$0xff]
      %v355 = vld [vmem:[#allocation2 + $0xf8] sm:$0xff]
      %v356 = vld [vmem:[%s267] sm:$0xf]
      %v357 = vld [vmem:[%s267 + $0x4] sm:$0xf]
      %v358 = vld [vmem:[%s267 + $0x8] sm:$0xf]
      %v359 = vld [vmem:[%s267 + $0xc] sm:$0xf]
      %v360 = vld [vmem:[%s267 + $0x10] sm:$0xf]
      %v361 = vld [vmem:[%s267 + $0x14] sm:$0xf]
      %v362 = vld [vmem:[%s267 + $0x18] sm:$0xf]
      %v363 = vld [vmem:[%s267 + $0x1c] sm:$0xf]
      %v364 = vld [vmem:[%s267 + $0x20] sm:$0xf]
      %v365 = vld [vmem:[%s267 + $0x24] sm:$0xf]
      %v366 = vld [vmem:[%s267 + $0x28] sm:$0xf]
      %v367 = vld [vmem:[%s267 + $0x2c] sm:$0xf]
      %v368 = vld [vmem:[%s267 + $0x30] sm:$0xf]
      %v369 = vld [vmem:[%s267 + $0x34] sm:$0xf]
      %v370 = vld [vmem:[%s267 + $0x38] sm:$0xf]
      %v371 = vld [vmem:[%s267 + $0x3c] sm:$0xf]
      %v372 = vld [vmem:[%s267 + $0x40] sm:$0xf]
      %v373 = vld [vmem:[%s267 + $0x44] sm:$0xf]
      %v374 = vld [vmem:[%s267 + $0x48] sm:$0xf]
      %v375 = vld [vmem:[%s267 + $0x4c] sm:$0xf]
      %v376 = vld [vmem:[%s267 + $0x50] sm:$0xf]
      %v377 = vld [vmem:[%s267 + $0x54] sm:$0xf]
      %v378 = vld [vmem:[%s267 + $0x58] sm:$0xf]
      %v379 = vld [vmem:[%s267 + $0x5c] sm:$0xf]
      %v380 = vld [vmem:[%s267 + $0x60] sm:$0xf]
      %v381 = vld [vmem:[%s267 + $0x64] sm:$0xf]
      %v382 = vld [vmem:[%s267 + $0x68] sm:$0xf]
      %v383 = vld [vmem:[%s267 + $0x6c] sm:$0xf]
      %v384 = vld [vmem:[%s267 + $0x70] sm:$0xf]
      %v385 = vld [vmem:[%s267 + $0x74] sm:$0xf]
      %v386 = vld [vmem:[%s267 + $0x78] sm:$0xf]
      %v387 = vld [vmem:[%s267 + $0x7c] sm:$0xf]
      %v388 = vld [vmem:[%s273] sm:$0xf]
      %v389 = vld [vmem:[%s273 + $0x4] sm:$0xf]
      %v390 = vld [vmem:[%s273 + $0x8] sm:$0xf]
      %v391 = vld [vmem:[%s273 + $0xc] sm:$0xf]
      %v392 = vld [vmem:[%s273 + $0x10] sm:$0xf]
      %v393 = vld [vmem:[%s273 + $0x14] sm:$0xf]
      %v394 = vld [vmem:[%s273 + $0x18] sm:$0xf]
      %v395 = vld [vmem:[%s273 + $0x1c] sm:$0xf]
      %v396 = vld [vmem:[%s273 + $0x20] sm:$0xf]
      %v397 = vld [vmem:[%s273 + $0x24] sm:$0xf]
      %v398 = vld [vmem:[%s273 + $0x28] sm:$0xf]
      %v399 = vld [vmem:[%s273 + $0x2c] sm:$0xf]
      %v400 = vld [vmem:[%s273 + $0x30] sm:$0xf]
      %v401 = vld [vmem:[%s273 + $0x34] sm:$0xf]
      %v402 = vld [vmem:[%s273 + $0x38] sm:$0xf]
      %v403 = vld [vmem:[%s273 + $0x3c] sm:$0xf]
      %v436 = vunpack.c.l.b16 %v356
      %v437 = vunpack.c.l.b16 %v357
      %v438 = vunpack.c.l.b16 %v358
      %v439 = vunpack.c.l.b16 %v359
      %v440 = vunpack.c.l.b16 %v360
      %v441 = vunpack.c.l.b16 %v361
      %v442 = vunpack.c.l.b16 %v362
      %v443 = vunpack.c.l.b16 %v363
      %v444 = vunpack.c.l.b16 %v364
      %v445 = vunpack.c.l.b16 %v365
      %v446 = vunpack.c.l.b16 %v366
      %v447 = vunpack.c.l.b16 %v367
      %v448 = vunpack.c.l.b16 %v368
      %v449 = vunpack.c.l.b16 %v369
      %v450 = vunpack.c.l.b16 %v370
      %v451 = vunpack.c.l.b16 %v371
      %v452 = vunpack.c.l.b16 %v372
      %v453 = vunpack.c.l.b16 %v373
      %v454 = vunpack.c.l.b16 %v374
      %v455 = vunpack.c.l.b16 %v375
      %v456 = vunpack.c.l.b16 %v376
      %v457 = vunpack.c.l.b16 %v377
      %v458 = vunpack.c.l.b16 %v378
      %v459 = vunpack.c.l.b16 %v379
      %v460 = vunpack.c.l.b16 %v380
      %v461 = vunpack.c.l.b16 %v381
      %v462 = vunpack.c.l.b16 %v382
      %v463 = vunpack.c.l.b16 %v383
      %v464 = vunpack.c.l.b16 %v384
      %v465 = vunpack.c.l.b16 %v385
      %v466 = vunpack.c.l.b16 %v386
      %v467 = vunpack.c.l.b16 %v387
      %v468 = vpack.c.b16 %v437, %v436
      %v469 = vpack.c.b16 %v439, %v438
      %v470 = vpack.c.b16 %v441, %v440
      %v471 = vpack.c.b16 %v443, %v442
      %v472 = vpack.c.b16 %v445, %v444
      %v473 = vpack.c.b16 %v447, %v446
      %v474 = vpack.c.b16 %v449, %v448
      %v475 = vpack.c.b16 %v451, %v450
      %v476 = vpack.c.b16 %v453, %v452
      %v477 = vpack.c.b16 %v455, %v454
      %v478 = vpack.c.b16 %v457, %v456
      %v479 = vpack.c.b16 %v459, %v458
      %v480 = vpack.c.b16 %v461, %v460
      %v481 = vpack.c.b16 %v463, %v462
      %v482 = vpack.c.b16 %v465, %v464
      %v483 = vpack.c.b16 %v467, %v466
      %v516 = vunpack.c.l.b16 %v388
      %v517 = vunpack.c.l.b16 %v389
      %v518 = vunpack.c.l.b16 %v390
      %v519 = vunpack.c.l.b16 %v391
      %v520 = vunpack.c.l.b16 %v392
      %v521 = vunpack.c.l.b16 %v393
      %v522 = vunpack.c.l.b16 %v394
      %v523 = vunpack.c.l.b16 %v395
      %v524 = vunpack.c.l.b16 %v396
      %v525 = vunpack.c.l.b16 %v397
      %v526 = vunpack.c.l.b16 %v398
      %v527 = vunpack.c.l.b16 %v399
      %v528 = vunpack.c.l.b16 %v400
      %v529 = vunpack.c.l.b16 %v401
      %v530 = vunpack.c.l.b16 %v402
      %v531 = vunpack.c.l.b16 %v403
      %v532 = vpack.c.b16 %v517, %v516
      %v533 = vpack.c.b16 %v519, %v518
      %v534 = vpack.c.b16 %v521, %v520
      %v535 = vpack.c.b16 %v523, %v522
      %v536 = vpack.c.b16 %v525, %v524
      %v537 = vpack.c.b16 %v527, %v526
      %v538 = vpack.c.b16 %v529, %v528
      %v539 = vpack.c.b16 %v531, %v530
      %548 = vmatprep.subr.bf16.mxu0 0
      %549 = vmatpush1.bf16.msra.mxu0 %v532
      %550 = vmatprep.subr.bf16.mxu0 0
      %551 = vmatpush1.bf16.msra.mxu0 %v533
      %552 = vmatprep.subr.bf16.mxu0 0
      %553 = vmatpush1.bf16.msra.mxu0 %v534
      %554 = vmatprep.subr.bf16.mxu0 0
      %555 = vmatpush1.bf16.msra.mxu0 %v535
      %556 = vmatprep.subr.bf16.mxu0 0
      %557 = vmatpush1.bf16.msra.mxu0 %v536
      %558 = vmatprep.subr.bf16.mxu0 0
      %559 = vmatpush1.bf16.msra.mxu0 %v537
      %560 = vmatprep.subr.bf16.mxu0 0
      %561 = vmatpush1.bf16.msra.mxu0 %v538
      %562 = vmatprep.subr.bf16.mxu0 0
      %563 = vmatpush1.bf16.msra.mxu0 %v539
      %564 = vmatprep.subr.bf16.mxu0 0
      %565 = vmatpush1.bf16.msra.mxu0 0
      %566 = vmatprep.subr.bf16.mxu0 0
      %567 = vmatpush1.bf16.msra.mxu0 0
      %568 = vmatprep.subr.bf16.mxu0 0
      %569 = vmatpush1.bf16.msra.mxu0 0
      %570 = vmatprep.subr.bf16.mxu0 0
      %571 = vmatpush1.bf16.msra.mxu0 0
      %572 = vmatprep.subr.bf16.mxu0 0
      %573 = vmatpush1.bf16.msra.mxu0 0
      %574 = vmatprep.subr.bf16.mxu0 0
      %575 = vmatpush1.bf16.msra.mxu0 0
      %576 = vmatprep.subr.bf16.mxu0 0
      %577 = vmatpush1.bf16.msra.mxu0 0
      %578 = vmatprep.subr.bf16.mxu0 0
      %579 = vmatpush1.bf16.msra.mxu0 0
      %580 = vmatprep.mubr.bf16.mxu0 0
      %581 = vmatmul.mubr.bf16.gmra.mrb[0].mxu0 %v468
      %v582 = vpop.f32.mrb[0].mxu0
      %v583 = vadd.f32 0.0, %v582
      %v584 = vpop.f32.mrb[0].mxu0
      %v585 = vpop.f32.mrb[0].mxu0
      %v586 = vadd.f32 0.0, %v585
      %v587 = vpop.f32.mrb[0].mxu0
      %588 = vmatprep.mubr.bf16.mxu0 0
      %589 = vmatmul.mubr.bf16.gmra.mrb[0].mxu0 %v469
      %v590 = vpop.f32.mrb[0].mxu0
      %v591 = vadd.f32 0.0, %v590
      %v592 = vpop.f32.mrb[0].mxu0
      %v593 = vpop.f32.mrb[0].mxu0
      %v594 = vadd.f32 0.0, %v593
      %v595 = vpop.f32.mrb[0].mxu0
      %596 = vmatprep.mubr.bf16.mxu0 0
      %597 = vmatmul.mubr.bf16.gmra.mrb[0].mxu0 %v470
      %v598 = vpop.f32.mrb[0].mxu0
      %v599 = vadd.f32 0.0, %v598
      %v600 = vpop.f32.mrb[0].mxu0
      %v601 = vpop.f32.mrb[0].mxu0
      %v602 = vadd.f32 0.0, %v601
      %v603 = vpop.f32.mrb[0].mxu0
      %604 = vmatprep.mubr.bf16.mxu0 0
      %605 = vmatmul.mubr.bf16.gmra.mrb[0].mxu0 %v471
      %v606 = vpop.f32.mrb[0].mxu0
      %v607 = vadd.f32 0.0, %v606
      %v608 = vpop.f32.mrb[0].mxu0
      %v609 = vpop.f32.mrb[0].mxu0
      %v610 = vadd.f32 0.0, %v609
      %v611 = vpop.f32.mrb[0].mxu0
      %612 = vmatprep.mubr.bf16.mxu0 0
      %613 = vmatmul.mubr.bf16.gmra.mrb[0].mxu0 %v472
      %v614 = vpop.f32.mrb[0].mxu0
      %v615 = vadd.f32 0.0, %v614
      %v616 = vpop.f32.mrb[0].mxu0
      %v617 = vpop.f32.mrb[0].mxu0
      %v618 = vadd.f32 0.0, %v617
      %v619 = vpop.f32.mrb[0].mxu0
      %620 = vmatprep.mubr.bf16.mxu0 0
      %621 = vmatmul.mubr.bf16.gmra.mrb[0].mxu0 %v473
      %v622 = vpop.f32.mrb[0].mxu0
      %v623 = vadd.f32 0.0, %v622
      %v624 = vpop.f32.mrb[0].mxu0
      %v625 = vpop.f32.mrb[0].mxu0
      %v626 = vadd.f32 0.0, %v625
      %v627 = vpop.f32.mrb[0].mxu0
      %628 = vmatprep.mubr.bf16.mxu0 0
      %629 = vmatmul.mubr.bf16.gmra.mrb[0].mxu0 %v474
      %v630 = vpop.f32.mrb[0].mxu0
      %v631 = vadd.f32 0.0, %v630
      %v632 = vpop.f32.mrb[0].mxu0
      %v633 = vpop.f32.mrb[0].mxu0
      %v634 = vadd.f32 0.0, %v633
      %v635 = vpop.f32.mrb[0].mxu0
      %636 = vmatprep.mubr.bf16.mxu0 0
      %637 = vmatmul.mubr.bf16.gmra.mrb[0].mxu0 %v475
      %v638 = vpop.f32.mrb[0].mxu0
      %v639 = vadd.f32 0.0, %v638
      %v640 = vpop.f32.mrb[0].mxu0
      %v641 = vpop.f32.mrb[0].mxu0
      %v642 = vadd.f32 0.0, %v641
      %v643 = vpop.f32.mrb[0].mxu0
      %644 = vmatprep.mubr.bf16.mxu0 0
      %645 = vmatmul.mubr.bf16.gmra.mrb[0].mxu0 %v476
      %v646 = vpop.f32.mrb[0].mxu0
      %v647 = vadd.f32 0.0, %v646
      %v648 = vpop.f32.mrb[0].mxu0
      %v649 = vpop.f32.mrb[0].mxu0
      %v650 = vadd.f32 0.0, %v649
      %v651 = vpop.f32.mrb[0].mxu0
      %652 = vmatprep.mubr.bf16.mxu0 0
      %653 = vmatmul.mubr.bf16.gmra.mrb[0].mxu0 %v477
      %v654 = vpop.f32.mrb[0].mxu0
      %v655 = vadd.f32 0.0, %v654
      %v656 = vpop.f32.mrb[0].mxu0
      %v657 = vpop.f32.mrb[0].mxu0
      %v658 = vadd.f32 0.0, %v657
      %v659 = vpop.f32.mrb[0].mxu0
      %660 = vmatprep.mubr.bf16.mxu0 0
      %661 = vmatmul.mubr.bf16.gmra.mrb[0].mxu0 %v478
      %v662 = vpop.f32.mrb[0].mxu0
      %v663 = vadd.f32 0.0, %v662
      %v664 = vpop.f32.mrb[0].mxu0
      %v665 = vpop.f32.mrb[0].mxu0
      %v666 = vadd.f32 0.0, %v665
      %v667 = vpop.f32.mrb[0].mxu0
      %668 = vmatprep.mubr.bf16.mxu0 0
      %669 = vmatmul.mubr.bf16.gmra.mrb[0].mxu0 %v479
      %v670 = vpop.f32.mrb[0].mxu0
      %v671 = vadd.f32 0.0, %v670
      %v672 = vpop.f32.mrb[0].mxu0
      %v673 = vpop.f32.mrb[0].mxu0
      %v674 = vadd.f32 0.0, %v673
      %v675 = vpop.f32.mrb[0].mxu0
      %676 = vmatprep.mubr.bf16.mxu0 0
      %677 = vmatmul.mubr.bf16.gmra.mrb[0].mxu0 %v480
      %v678 = vpop.f32.mrb[0].mxu0
      %v679 = vadd.f32 0.0, %v678
      %v680 = vpop.f32.mrb[0].mxu0
      %v681 = vpop.f32.mrb[0].mxu0
      %v682 = vadd.f32 0.0, %v681
      %v683 = vpop.f32.mrb[0].mxu0
      %684 = vmatprep.mubr.bf16.mxu0 0
      %685 = vmatmul.mubr.bf16.gmra.mrb[0].mxu0 %v481
      %v686 = vpop.f32.mrb[0].mxu0
      %v687 = vadd.f32 0.0, %v686
      %v688 = vpop.f32.mrb[0].mxu0
      %v689 = vpop.f32.mrb[0].mxu0
      %v690 = vadd.f32 0.0, %v689
      %v691 = vpop.f32.mrb[0].mxu0
      %692 = vmatprep.mubr.bf16.mxu0 0
      %693 = vmatmul.mubr.bf16.gmra.mrb[0].mxu0 %v482
      %v694 = vpop.f32.mrb[0].mxu0
      %v695 = vadd.f32 0.0, %v694
      %v696 = vpop.f32.mrb[0].mxu0
      %v697 = vpop.f32.mrb[0].mxu0
      %v698 = vadd.f32 0.0, %v697
      %v699 = vpop.f32.mrb[0].mxu0
      %700 = vmatprep.mubr.bf16.mxu0 0
      %701 = vmatmul.mubr.bf16.gmra.mrb[0].mxu0 %v483
      %v702 = vpop.f32.mrb[0].mxu0
      %v703 = vadd.f32 0.0, %v702
      %v704 = vpop.f32.mrb[0].mxu0
      %v705 = vpop.f32.mrb[0].mxu0
      %v706 = vadd.f32 0.0, %v705
      %v707 = vpop.f32.mrb[0].mxu0
      %708 = vdwg.mxu0
      %v709 = vadd.f32 %v324, %v583
      %v710 = vadd.f32 %v325, %v586
      %v711 = vadd.f32 %v326, %v591
      %v712 = vadd.f32 %v327, %v594
      %v713 = vadd.f32 %v328, %v599
      %v714 = vadd.f32 %v329, %v602
      %v715 = vadd.f32 %v330, %v607
      %v716 = vadd.f32 %v331, %v610
      %v717 = vadd.f32 %v332, %v615
      %v718 = vadd.f32 %v333, %v618
      %v719 = vadd.f32 %v334, %v623
      %v720 = vadd.f32 %v335, %v626
      %v721 = vadd.f32 %v336, %v631
      %v722 = vadd.f32 %v337, %v634
      %v723 = vadd.f32 %v338, %v639
      %v724 = vadd.f32 %v339, %v642
      %v725 = vadd.f32 %v340, %v647
      %v726 = vadd.f32 %v341, %v650
      %v727 = vadd.f32 %v342, %v655
      %v728 = vadd.f32 %v343, %v658
      %v729 = vadd.f32 %v344, %v663
      %v730 = vadd.f32 %v345, %v666
      %v731 = vadd.f32 %v346, %v671
      %v732 = vadd.f32 %v347, %v674
      %v733 = vadd.f32 %v348, %v679
      %v734 = vadd.f32 %v349, %v682
      %v735 = vadd.f32 %v350, %v687
      %v736 = vadd.f32 %v351, %v690
      %v737 = vadd.f32 %v352, %v695
      %v738 = vadd.f32 %v353, %v698
      %v739 = vadd.f32 %v354, %v703
      %v740 = vadd.f32 %v355, %v706
      %741 = vst [vmem:[#allocation2] sm:$0xff] %v709
      %742 = vst [vmem:[#allocation2 + $0x8] sm:$0xff] %v710
      %743 = vst [vmem:[#allocation2 + $0x10] sm:$0xff] %v711
      %744 = vst [vmem:[#allocation2 + $0x18] sm:$0xff] %v712
      %745 = vst [vmem:[#allocation2 + $0x20] sm:$0xff] %v713
      %746 = vst [vmem:[#allocation2 + $0x28] sm:$0xff] %v714
      %747 = vst [vmem:[#allocation2 + $0x30] sm:$0xff] %v715
      %748 = vst [vmem:[#allocation2 + $0x38] sm:$0xff] %v716
      %749 = vst [vmem:[#allocation2 + $0x40] sm:$0xff] %v717
      %750 = vst [vmem:[#allocation2 + $0x48] sm:$0xff] %v718
      %751 = vst [vmem:[#allocation2 + $0x50] sm:$0xff] %v719
      %752 = vst [vmem:[#allocation2 + $0x58] sm:$0xff] %v720
      %753 = vst [vmem:[#allocation2 + $0x60] sm:$0xff] %v721
      %754 = vst [vmem:[#allocation2 + $0x68] sm:$0xff] %v722
      %755 = vst [vmem:[#allocation2 + $0x70] sm:$0xff] %v723
      %756 = vst [vmem:[#allocation2 + $0x78] sm:$0xff] %v724
      %757 = vst [vmem:[#allocation2 + $0x80] sm:$0xff] %v725
      %758 = vst [vmem:[#allocation2 + $0x88] sm:$0xff] %v726
      %759 = vst [vmem:[#allocation2 + $0x90] sm:$0xff] %v727
      %760 = vst [vmem:[#allocation2 + $0x98] sm:$0xff] %v728
      %761 = vst [vmem:[#allocation2 + $0xa0] sm:$0xff] %v729
      %762 = vst [vmem:[#allocation2 + $0xa8] sm:$0xff] %v730
      %763 = vst [vmem:[#allocation2 + $0xb0] sm:$0xff] %v731
      %764 = vst [vmem:[#allocation2 + $0xb8] sm:$0xff] %v732
      %765 = vst [vmem:[#allocation2 + $0xc0] sm:$0xff] %v733
      %766 = vst [vmem:[#allocation2 + $0xc8] sm:$0xff] %v734
      %767 = vst [vmem:[#allocation2 + $0xd0] sm:$0xff] %v735
      %768 = vst [vmem:[#allocation2 + $0xd8] sm:$0xff] %v736
      %769 = vst [vmem:[#allocation2 + $0xe0] sm:$0xff] %v737
      %770 = vst [vmem:[#allocation2 + $0xe8] sm:$0xff] %v738
      %771 = vst [vmem:[#allocation2 + $0xf0] sm:$0xff] %v739
      %772 = vst [vmem:[#allocation2 + $0xf8] sm:$0xff] %v740
      // Predicated region
      $region41: #{haframe_wrn_forward.10} parent=35 // pred_check
        %p773 = pneg %p288
      $region42: #{haframe_wrn_forward.10} parent=35 // pred_check_branch
        %775 = sbr.rel (%p773) target = $region44
      $region43: #{haframe_wrn_forward.10} parent=35 // pred_region
        %v776 = vld [vmem:[#allocation2] sm:$0xff]
        %v777 = vld [vmem:[#allocation2 + $0x8] sm:$0xff]
        %v778 = vld [vmem:[#allocation2 + $0x10] sm:$0xff]
        %v779 = vld [vmem:[#allocation2 + $0x18] sm:$0xff]
        %v780 = vld [vmem:[#allocation2 + $0x20] sm:$0xff]
        %v781 = vld [vmem:[#allocation2 + $0x28] sm:$0xff]
        %v782 = vld [vmem:[#allocation2 + $0x30] sm:$0xff]
        %v783 = vld [vmem:[#allocation2 + $0x38] sm:$0xff]
        %v784 = vld [vmem:[#allocation2 + $0x40] sm:$0xff]
        %v785 = vld [vmem:[#allocation2 + $0x48] sm:$0xff]
        %v786 = vld [vmem:[#allocation2 + $0x50] sm:$0xff]
        %v787 = vld [vmem:[#allocation2 + $0x58] sm:$0xff]
        %v788 = vld [vmem:[#allocation2 + $0x60] sm:$0xff]
        %v789 = vld [vmem:[#allocation2 + $0x68] sm:$0xff]
        %v790 = vld [vmem:[#allocation2 + $0x70] sm:$0xff]
        %v791 = vld [vmem:[#allocation2 + $0x78] sm:$0xff]
        %v792 = vld [vmem:[#allocation2 + $0x80] sm:$0xff]
        %v793 = vld [vmem:[#allocation2 + $0x88] sm:$0xff]
        %v794 = vld [vmem:[#allocation2 + $0x90] sm:$0xff]
        %v795 = vld [vmem:[#allocation2 + $0x98] sm:$0xff]
        %v796 = vld [vmem:[#allocation2 + $0xa0] sm:$0xff]
        %v797 = vld [vmem:[#allocation2 + $0xa8] sm:$0xff]
        %v798 = vld [vmem:[#allocation2 + $0xb0] sm:$0xff]
        %v799 = vld [vmem:[#allocation2 + $0xb8] sm:$0xff]
        %v800 = vld [vmem:[#allocation2 + $0xc0] sm:$0xff]
        %v801 = vld [vmem:[#allocation2 + $0xc8] sm:$0xff]
        %v802 = vld [vmem:[#allocation2 + $0xd0] sm:$0xff]
        %v803 = vld [vmem:[#allocation2 + $0xd8] sm:$0xff]
        %v804 = vld [vmem:[#allocation2 + $0xe0] sm:$0xff]
        %v805 = vld [vmem:[#allocation2 + $0xe8] sm:$0xff]
        %v806 = vld [vmem:[#allocation2 + $0xf0] sm:$0xff]
        %v807 = vld [vmem:[#allocation2 + $0xf8] sm:$0xff]
        %808 = vst [vmem:[%s285] sm:$0xff] %v776
        %809 = vst [vmem:[%s285 + $0x8] sm:$0xff] %v777
        %810 = vst [vmem:[%s285 + $0x10] sm:$0xff] %v778
        %811 = vst [vmem:[%s285 + $0x18] sm:$0xff] %v779
        %812 = vst [vmem:[%s285 + $0x20] sm:$0xff] %v780
        %813 = vst [vmem:[%s285 + $0x28] sm:$0xff] %v781
        %814 = vst [vmem:[%s285 + $0x30] sm:$0xff] %v782
        %815 = vst [vmem:[%s285 + $0x38] sm:$0xff] %v783
        %816 = vst [vmem:[%s285 + $0x40] sm:$0xff] %v784
        %817 = vst [vmem:[%s285 + $0x48] sm:$0xff] %v785
        %818 = vst [vmem:[%s285 + $0x50] sm:$0xff] %v786
        %819 = vst [vmem:[%s285 + $0x58] sm:$0xff] %v787
        %820 = vst [vmem:[%s285 + $0x60] sm:$0xff] %v788
        %821 = vst [vmem:[%s285 + $0x68] sm:$0xff] %v789
        %822 = vst [vmem:[%s285 + $0x70] sm:$0xff] %v790
        %823 = vst [vmem:[%s285 + $0x78] sm:$0xff] %v791
        %824 = vst [vmem:[%s285 + $0x80] sm:$0xff] %v792
        %825 = vst [vmem:[%s285 + $0x88] sm:$0xff] %v793
        %826 = vst [vmem:[%s285 + $0x90] sm:$0xff] %v794
        %827 = vst [vmem:[%s285 + $0x98] sm:$0xff] %v795
        %828 = vst [vmem:[%s285 + $0xa0] sm:$0xff] %v796
        %829 = vst [vmem:[%s285 + $0xa8] sm:$0xff] %v797
        %830 = vst [vmem:[%s285 + $0xb0] sm:$0xff] %v798
        %831 = vst [vmem:[%s285 + $0xb8] sm:$0xff] %v799
        %832 = vst [vmem:[%s285 + $0xc0] sm:$0xff] %v800
        %833 = vst [vmem:[%s285 + $0xc8] sm:$0xff] %v801
        %834 = vst [vmem:[%s285 + $0xd0] sm:$0xff] %v802
        %835 = vst [vmem:[%s285 + $0xd8] sm:$0xff] %v803
        %836 = vst [vmem:[%s285 + $0xe0] sm:$0xff] %v804
        %837 = vst [vmem:[%s285 + $0xe8] sm:$0xff] %v805
        %838 = vst [vmem:[%s285 + $0xf0] sm:$0xff] %v806
        %839 = vst [vmem:[%s285 + $0xf8] sm:$0xff] %v807
        %v840 = vld [vmem:[%s2] sm:$0x1]
        %v842 = vlaneseq
        %v843 = vshrl.u32 %v842, 7
        %v844 = vsub.s32 0, %v843
        %v845 = vrot.slane %v840, %v844
        %v847 = vmul.f32 %v776, %v845
        %v848 = vmul.f32 %v777, %v845
        %v849 = vmul.f32 %v778, %v845
        %v850 = vmul.f32 %v779, %v845
        %v851 = vmul.f32 %v780, %v845
        %v852 = vmul.f32 %v781, %v845
        %v853 = vmul.f32 %v782, %v845
        %v854 = vmul.f32 %v783, %v845
        %v855 = vmul.f32 %v784, %v845
        %v856 = vmul.f32 %v785, %v845
        %v857 = vmul.f32 %v786, %v845
        %v858 = vmul.f32 %v787, %v845
        %v859 = vmul.f32 %v788, %v845
        %v860 = vmul.f32 %v789, %v845
        %v861 = vmul.f32 %v790, %v845
        %v862 = vmul.f32 %v791, %v845
        %v863 = vmul.f32 %v792, %v845
        %v864 = vmul.f32 %v793, %v845
        %v865 = vmul.f32 %v794, %v845
        %v866 = vmul.f32 %v795, %v845
        %v867 = vmul.f32 %v796, %v845
        %v868 = vmul.f32 %v797, %v845
        %v869 = vmul.f32 %v798, %v845
        %v870 = vmul.f32 %v799, %v845
        %v871 = vmul.f32 %v800, %v845
        %v872 = vmul.f32 %v801, %v845
        %v873 = vmul.f32 %v802, %v845
        %v874 = vmul.f32 %v803, %v845
        %v875 = vmul.f32 %v804, %v845
        %v876 = vmul.f32 %v805, %v845
        %v877 = vmul.f32 %v806, %v845
        %v878 = vmul.f32 %v807, %v845
        %v879 = vld [vmem:[%s3] sm:$0x1]
        %v881 = vlaneseq
        %v882 = vshrl.u32 %v881, 7
        %v883 = vsub.s32 0, %v882
        %v884 = vrot.slane %v879, %v883
        %v886 = vadd.f32 %v847, %v884
        %v887 = vadd.f32 %v848, %v884
        %v888 = vadd.f32 %v849, %v884
        %v889 = vadd.f32 %v850, %v884
        %v890 = vadd.f32 %v851, %v884
        %v891 = vadd.f32 %v852, %v884
        %v892 = vadd.f32 %v853, %v884
        %v893 = vadd.f32 %v854, %v884
        %v894 = vadd.f32 %v855, %v884
        %v895 = vadd.f32 %v856, %v884
        %v896 = vadd.f32 %v857, %v884
        %v897 = vadd.f32 %v858, %v884
        %v898 = vadd.f32 %v859, %v884
        %v899 = vadd.f32 %v860, %v884
        %v900 = vadd.f32 %v861, %v884
        %v901 = vadd.f32 %v862, %v884
        %v902 = vadd.f32 %v863, %v884
        %v903 = vadd.f32 %v864, %v884
        %v904 = vadd.f32 %v865, %v884
        %v905 = vadd.f32 %v866, %v884
        %v906 = vadd.f32 %v867, %v884
        %v907 = vadd.f32 %v868, %v884
        %v908 = vadd.f32 %v869, %v884
        %v909 = vadd.f32 %v870, %v884
        %v910 = vadd.f32 %v871, %v884
        %v911 = vadd.f32 %v872, %v884
        %v912 = vadd.f32 %v873, %v884
        %v913 = vadd.f32 %v874, %v884
        %v914 = vadd.f32 %v875, %v884
        %v915 = vadd.f32 %v876, %v884
        %v916 = vadd.f32 %v877, %v884
        %v917 = vadd.f32 %v878, %v884
        %v918 = vmax.f32 %v886, 0.0
        %v919 = vmax.f32 %v887, 0.0
        %v920 = vmax.f32 %v888, 0.0
        %v921 = vmax.f32 %v889, 0.0
        %v922 = vmax.f32 %v890, 0.0
        %v923 = vmax.f32 %v891, 0.0
        %v924 = vmax.f32 %v892, 0.0
        %v925 = vmax.f32 %v893, 0.0
        %v926 = vmax.f32 %v894, 0.0
        %v927 = vmax.f32 %v895, 0.0
        %v928 = vmax.f32 %v896, 0.0
        %v929 = vmax.f32 %v897, 0.0
        %v930 = vmax.f32 %v898, 0.0
        %v931 = vmax.f32 %v899, 0.0
        %v932 = vmax.f32 %v900, 0.0
        %v933 = vmax.f32 %v901, 0.0
        %v934 = vmax.f32 %v902, 0.0
        %v935 = vmax.f32 %v903, 0.0
        %v936 = vmax.f32 %v904, 0.0
        %v937 = vmax.f32 %v905, 0.0
        %v938 = vmax.f32 %v906, 0.0
        %v939 = vmax.f32 %v907, 0.0
        %v940 = vmax.f32 %v908, 0.0
        %v941 = vmax.f32 %v909, 0.0
        %v942 = vmax.f32 %v910, 0.0
        %v943 = vmax.f32 %v911, 0.0
        %v944 = vmax.f32 %v912, 0.0
        %v945 = vmax.f32 %v913, 0.0
        %v946 = vmax.f32 %v914, 0.0
        %v947 = vmax.f32 %v915, 0.0
        %v948 = vmax.f32 %v916, 0.0
        %v949 = vmax.f32 %v917, 0.0
        %v950 = vpack.c.bf16 %v919, %v918
        %v951 = vpack.c.bf16 %v921, %v920
        %v952 = vpack.c.bf16 %v923, %v922
        %v953 = vpack.c.bf16 %v925, %v924
        %v954 = vpack.c.bf16 %v927, %v926
        %v955 = vpack.c.bf16 %v929, %v928
        %v956 = vpack.c.bf16 %v931, %v930
        %v957 = vpack.c.bf16 %v933, %v932
        %v958 = vpack.c.bf16 %v935, %v934
        %v959 = vpack.c.bf16 %v937, %v936
        %v960 = vpack.c.bf16 %v939, %v938
        %v961 = vpack.c.bf16 %v941, %v940
        %v962 = vpack.c.bf16 %v943, %v942
        %v963 = vpack.c.bf16 %v945, %v944
        %v964 = vpack.c.bf16 %v947, %v946
        %v965 = vpack.c.bf16 %v949, %v948
        %v982 = vunpack.c.l.b16 %v950
        %v983 = vunpack.c.h.b16 %v950
        %v984 = vunpack.c.l.b16 %v951
        %v985 = vunpack.c.h.b16 %v951
        %v986 = vunpack.c.l.b16 %v952
        %v987 = vunpack.c.h.b16 %v952
        %v988 = vunpack.c.l.b16 %v953
        %v989 = vunpack.c.h.b16 %v953
        %v990 = vunpack.c.l.b16 %v954
        %v991 = vunpack.c.h.b16 %v954
        %v992 = vunpack.c.l.b16 %v955
        %v993 = vunpack.c.h.b16 %v955
        %v994 = vunpack.c.l.b16 %v956
        %v995 = vunpack.c.h.b16 %v956
        %v996 = vunpack.c.l.b16 %v957
        %v997 = vunpack.c.h.b16 %v957
        %v998 = vunpack.c.l.b16 %v958
        %v999 = vunpack.c.h.b16 %v958
        %v1000 = vunpack.c.l.b16 %v959
        %v1001 = vunpack.c.h.b16 %v959
        %v1002 = vunpack.c.l.b16 %v960
        %v1003 = vunpack.c.h.b16 %v960
        %v1004 = vunpack.c.l.b16 %v961
        %v1005 = vunpack.c.h.b16 %v961
        %v1006 = vunpack.c.l.b16 %v962
        %v1007 = vunpack.c.h.b16 %v962
        %v1008 = vunpack.c.l.b16 %v963
        %v1009 = vunpack.c.h.b16 %v963
        %v1010 = vunpack.c.l.b16 %v964
        %v1011 = vunpack.c.h.b16 %v964
        %v1012 = vunpack.c.l.b16 %v965
        %v1013 = vunpack.c.h.b16 %v965
        %v1014 = vpack.c.b16 %v982, %v982
        %v1015 = vpack.c.b16 %v983, %v983
        %v1016 = vpack.c.b16 %v984, %v984
        %v1017 = vpack.c.b16 %v985, %v985
        %v1018 = vpack.c.b16 %v986, %v986
        %v1019 = vpack.c.b16 %v987, %v987
        %v1020 = vpack.c.b16 %v988, %v988
        %v1021 = vpack.c.b16 %v989, %v989
        %v1022 = vpack.c.b16 %v990, %v990
        %v1023 = vpack.c.b16 %v991, %v991
        %v1024 = vpack.c.b16 %v992, %v992
        %v1025 = vpack.c.b16 %v993, %v993
        %v1026 = vpack.c.b16 %v994, %v994
        %v1027 = vpack.c.b16 %v995, %v995
        %v1028 = vpack.c.b16 %v996, %v996
        %v1029 = vpack.c.b16 %v997, %v997
        %v1030 = vpack.c.b16 %v998, %v998
        %v1031 = vpack.c.b16 %v999, %v999
        %v1032 = vpack.c.b16 %v1000, %v1000
        %v1033 = vpack.c.b16 %v1001, %v1001
        %v1034 = vpack.c.b16 %v1002, %v1002
        %v1035 = vpack.c.b16 %v1003, %v1003
        %v1036 = vpack.c.b16 %v1004, %v1004
        %v1037 = vpack.c.b16 %v1005, %v1005
        %v1038 = vpack.c.b16 %v1006, %v1006
        %v1039 = vpack.c.b16 %v1007, %v1007
        %v1040 = vpack.c.b16 %v1008, %v1008
        %v1041 = vpack.c.b16 %v1009, %v1009
        %v1042 = vpack.c.b16 %v1010, %v1010
        %v1043 = vpack.c.b16 %v1011, %v1011
        %v1044 = vpack.c.b16 %v1012, %v1012
        %v1045 = vpack.c.b16 %v1013, %v1013
        %1078 = vst [vmem:[%s279] sm:$0xf] %v1014
        %1079 = vst [vmem:[%s279 + $0x4] sm:$0xf] %v1015
        %1080 = vst [vmem:[%s279 + $0x8] sm:$0xf] %v1016
        %1081 = vst [vmem:[%s279 + $0xc] sm:$0xf] %v1017
        %1082 = vst [vmem:[%s279 + $0x10] sm:$0xf] %v1018
        %1083 = vst [vmem:[%s279 + $0x14] sm:$0xf] %v1019
        %1084 = vst [vmem:[%s279 + $0x18] sm:$0xf] %v1020
        %1085 = vst [vmem:[%s279 + $0x1c] sm:$0xf] %v1021
        %1086 = vst [vmem:[%s279 + $0x20] sm:$0xf] %v1022
        %1087 = vst [vmem:[%s279 + $0x24] sm:$0xf] %v1023
        %1088 = vst [vmem:[%s279 + $0x28] sm:$0xf] %v1024
        %1089 = vst [vmem:[%s279 + $0x2c] sm:$0xf] %v1025
        %1090 = vst [vmem:[%s279 + $0x30] sm:$0xf] %v1026
        %1091 = vst [vmem:[%s279 + $0x34] sm:$0xf] %v1027
        %1092 = vst [vmem:[%s279 + $0x38] sm:$0xf] %v1028
        %1093 = vst [vmem:[%s279 + $0x3c] sm:$0xf] %v1029
        %1094 = vst [vmem:[%s279 + $0x40] sm:$0xf] %v1030
        %1095 = vst [vmem:[%s279 + $0x44] sm:$0xf] %v1031
        %1096 = vst [vmem:[%s279 + $0x48] sm:$0xf] %v1032
        %1097 = vst [vmem:[%s279 + $0x4c] sm:$0xf] %v1033
        %1098 = vst [vmem:[%s279 + $0x50] sm:$0xf] %v1034
        %1099 = vst [vmem:[%s279 + $0x54] sm:$0xf] %v1035
        %1100 = vst [vmem:[%s279 + $0x58] sm:$0xf] %v1036
        %1101 = vst [vmem:[%s279 + $0x5c] sm:$0xf] %v1037
        %1102 = vst [vmem:[%s279 + $0x60] sm:$0xf] %v1038
        %1103 = vst [vmem:[%s279 + $0x64] sm:$0xf] %v1039
        %1104 = vst [vmem:[%s279 + $0x68] sm:$0xf] %v1040
        %1105 = vst [vmem:[%s279 + $0x6c] sm:$0xf] %v1041
        %1106 = vst [vmem:[%s279 + $0x70] sm:$0xf] %v1042
        %1107 = vst [vmem:[%s279 + $0x74] sm:$0xf] %v1043
        %1108 = vst [vmem:[%s279 + $0x78] sm:$0xf] %v1044
        %1109 = vst [vmem:[%s279 + $0x7c] sm:$0xf] %v1045
      $region44: #{haframe_wrn_forward.10} parent=35 // pred_fallthru
        _
      %s1110 = smul.u32 32, %s21
      %p1111 = scmp.lt.s32.totalorder %s1110, 63
      %s1112 = scalar_select %p1111, %s1110, 63
      %s1113 = smul.addr %s1112, 4
      %s1114 = scalar_lea.vmem %s4, %s1113
      %s1115 = smul.u32 32, %s21
      %p1116 = scmp.lt.s32.totalorder %s1115, 63
      %s1117 = scalar_select %p1116, %s1115, 63
      %s1118 = smul.addr %s1117, 8
      %s1119 = scalar_lea.vmem %s5, %s1118
      // Predicated region
      $region45: #{haframe_wrn_forward.10} parent=35 // pred_check
        %p1120 = pneg %p143
      $region46: #{haframe_wrn_forward.10} parent=35 // pred_check_branch
        %1122 = sbr.rel (%p1120) target = $region48
      $region47: #{haframe_wrn_forward.10} parent=35 // pred_region
        %s1123 = smul.u32 32, %s21
      $region48: #{haframe_wrn_forward.10} parent=35 // pred_fallthru
        _
      // Predicated region
      $region49: #{haframe_wrn_forward.10} parent=35 // pred_check
        %p1124 = pneg %p169
      $region50: #{haframe_wrn_forward.10} parent=35 // pred_check_branch
        %1126 = sbr.rel (%p1124) target = $region52
      $region51: #{haframe_wrn_forward.10} parent=35 // pred_region
        %s1127 = smul.u32 32, %s21
      $region52: #{haframe_wrn_forward.10} parent=35 // pred_fallthru
        _
    $region36: #{haframe_wrn_forward.10} parent=5 // pred_fallthru
      _
    %p1128 = scmp.le.s32.totalorder 2, %s12
    // Predicated region
    $region53: #{haframe_wrn_forward.10} parent=5 // pred_check
      %p1129 = pneg %p1128
    $region54: #{haframe_wrn_forward.10} parent=5 // pred_check_branch
      %1131 = sbr.rel (%p1129) target = $region56
    $region55: #{haframe_wrn_forward.10} parent=5 // pred_region
      %s1132 = ssub.s32 %s12, 2
      // Predicated region
      $region57: #{haframe_wrn_forward.10} parent=55 // pred_check
        %p1133 = pneg %p149
      $region58: #{haframe_wrn_forward.10} parent=55 // pred_check_branch
        %1135 = sbr.rel (%p1133) target = $region60
      $region59: #{haframe_wrn_forward.10} parent=55 // pred_region
        %s1136 = smul.u32 32, %s23
        %p1137 = scmp.lt.s32.totalorder %s1136, 63
        %s1138 = scalar_select %p1137, %s1136, 63
        %s1139 = smul.addr %s1138, 4
        %s1140 = scalar_lea.vmem %s4, %s1139
      $region60: #{haframe_wrn_forward.10} parent=55 // pred_fallthru
        _
      // Predicated region
      $region61: #{haframe_wrn_forward.10} parent=55 // pred_check
        %p1141 = pneg %p175
      $region62: #{haframe_wrn_forward.10} parent=55 // pred_check_branch
        %1143 = sbr.rel (%p1141) target = $region64
      $region63: #{haframe_wrn_forward.10} parent=55 // pred_region
        %s1144 = smul.u32 32, %s23
        %p1145 = scmp.lt.s32.totalorder %s1144, 63
        %s1146 = scalar_select %p1145, %s1144, 63
        %s1147 = smul.addr %s1146, 8
        %s1148 = scalar_lea.vmem %s5, %s1147
      $region64: #{haframe_wrn_forward.10} parent=55 // pred_fallthru
        _
    $region56: #{haframe_wrn_forward.10} parent=5 // pred_fallthru
      _
  $region6: #{haframe_wrn_forward.10} parent=0 // loop_footer
    %s16 = sadd.s32 1, %s12
  $region7: #{haframe_wrn_forward.10} parent=0 // loop_footer_branch
    %11 = sbr.rel target = $region3
  $region8: #{haframe_wrn_forward.10} parent=0 // loop_exit
    _

// kernel: haframe_wrn_forward.11
$region0: #{haframe_wrn_forward.11}
  #allocation0 [shape = 'u32[]', space=smem, size = 0x4, offset = 0x4, fixed_abs, tag = 'smem constant byte address 0x4 - core index']
  #allocation1 [shape = 'u32[144,128]{1,0:T(1,128)}', space=vmem, size = 0x12000, scoped, tag = 'internal scratch']
  #allocation2 [shape = 'f32[256,128]{1,0:T(8,128)}', space=vmem, size = 0x20000, scoped, tag = 'scratch operand']
  %s0 = inlined_call_operand.vmem [shape: bf16[512,256], index: 0, kind: input, shape index: {}]
  %s1 = inlined_call_operand.vmem [shape: bf16[256,128], index: 1, kind: input, shape index: {}]
  %s2 = inlined_call_operand.vmem [shape: f32[1,128], index: 2, kind: input, shape index: {}]
  %s3 = inlined_call_operand.vmem [shape: f32[1,128], index: 3, kind: input, shape index: {}]
  %s4 = inlined_call_operand.vmem [shape: bf16[512,128], index: 4, kind: output, shape index: {}]
  %s5 = sld [smem:[#allocation0]]
  $region57: #{haframe_wrn_forward.11} parent=0
    _
  %s7 = ssub.s32 1, %s5
  %s8 = scalar_select 0, %s7, %s5
  loop: start=0, step=1, limit=4
  $region2: #{haframe_wrn_forward.11} parent=0 // loop_pre_header
    _
  $region3: #{haframe_wrn_forward.11} parent=0 // loop_header
    %s10 = sphi 0, %s14
    %p11 = scmp.ge.s32.totalorder %s10, 4
    %s17 = sphi 0, %s29
    %s18 = sphi 0, %s25
    %s19 = sphi 0, %s17
    %s20 = sphi 0, %s18
    %s21 = sphi 0, %s19
    %s22 = sphi 0, %s20
    %s34 = sphi 0, %s36
    %s37 = sphi 0, %s34
    %s38 = sphi 0, %s37
    %s54 = sphi 0, %s38
    %s60 = sphi 0, %s62
    %s63 = sphi 0, %s60
    %s64 = sphi 0, %s63
    %s80 = sphi 0, %s64
    %s84 = sphi 0, %s84
    %s86 = sphi 0, %s84
    %s87 = sphi 0, %s86
    %s101 = sphi 0, %s87
    %s105 = sphi 0, %s105
    %s107 = sphi 0, %s105
    %s108 = sphi 0, %s107
    %s122 = sphi 0, %s108
    %s128 = sphi 0, %s130
    %s131 = sphi 0, %s128
    %s132 = sphi 0, %s131
    %s148 = sphi 0, %s132
  $region4: #{haframe_wrn_forward.11} parent=0 // loop_header_branch
    %13 = sbr.rel (%p11) target = $region8
  $region5: #{haframe_wrn_forward.11} parent=0 // loop_body
    %s15 = ssub.s32 %s10, 1
    %s16 = ssub.s32 %s10, 2
    %s23 = sadd.s32 1, %s18
    %p24 = scmp.ge.s32.totalorder %s23, 1
    %s25 = scalar_select %p24, 0, %s23
    %s26 = sadd.s32 1, %s17
    %s27 = scalar_select %p24, %s26, %s17
    %p28 = scmp.ge.s32.totalorder %s27, 2
    %s29 = scalar_select %p28, 0, %s27
    %s30 = ssub.s32 %s17, %s29
    %s31 = ssub.s32 %s18, %s25
    %s32 = sor.u32 %s30, %s31
    %p33 = scmp.eq.s32.totalorder %s32, 0
    %s35 = sadd.s32 %s34, 1
    %s36 = scalar_select %p33, %s34, %s35
    %p39 = pneg %p33
    %p40 = scmp.eq.s32.totalorder %s10, 1
    %p41 = por %p39, %p40
    %p42 = scmp.ne.s32.totalorder %s34, %s37
    %p43 = scmp.eq.s32.totalorder %s10, 0
    %p44 = por %p42, %p43
    %p45 = scmp.ne.s32.totalorder %s34, %s37
    %p46 = scmp.eq.s32.totalorder %s15, 1
    %p47 = por %p45, %p46
    %p48 = scmp.ne.s32.totalorder %s37, %s38
    %p49 = scmp.eq.s32.totalorder %s15, 0
    %p50 = por %p48, %p49
    %p51 = scmp.ne.s32.totalorder %s37, %s38
    %p52 = scmp.eq.s32.totalorder %s16, 1
    %p53 = por %p51, %p52
    %p55 = scmp.ne.s32.totalorder %s38, %s54
    %p56 = scmp.eq.s32.totalorder %s16, 0
    %p57 = por %p55, %p56
    %s58 = ssub.s32 %s18, %s25
    %p59 = scmp.eq.s32.totalorder %s58, 0
    %s61 = sadd.s32 %s60, 1
    %s62 = scalar_select %p59, %s60, %s61
    %p65 = pneg %p59
    %p66 = scmp.eq.s32.totalorder %s10, 1
    %p67 = por %p65, %p66
    %p68 = scmp.ne.s32.totalorder %s60, %s63
    %p69 = scmp.eq.s32.totalorder %s10, 0
    %p70 = por %p68, %p69
    %p71 = scmp.ne.s32.totalorder %s60, %s63
    %p72 = scmp.eq.s32.totalorder %s15, 1
    %p73 = por %p71, %p72
    %p74 = scmp.ne.s32.totalorder %s63, %s64
    %p75 = scmp.eq.s32.totalorder %s15, 0
    %p76 = por %p74, %p75
    %p77 = scmp.ne.s32.totalorder %s63, %s64
    %p78 = scmp.eq.s32.totalorder %s16, 1
    %p79 = por %p77, %p78
    %p81 = scmp.ne.s32.totalorder %s64, %s80
    %p82 = scmp.eq.s32.totalorder %s16, 0
    %p83 = por %p81, %p82
    %s85 = sadd.s32 %s84, 1
    %p88 = scmp.eq.s32.totalorder %s10, 1
    %p89 = scmp.ne.s32.totalorder %s84, %s86
    %p90 = scmp.eq.s32.totalorder %s10, 0
    %p91 = por %p89, %p90
    %p92 = scmp.ne.s32.totalorder %s84, %s86
    %p93 = scmp.eq.s32.totalorder %s15, 1
    %p94 = por %p92, %p93
    %p95 = scmp.ne.s32.totalorder %s86, %s87
    %p96 = scmp.eq.s32.totalorder %s15, 0
    %p97 = por %p95, %p96
    %p98 = scmp.ne.s32.totalorder %s86, %s87
    %p99 = scmp.eq.s32.totalorder %s16, 1
    %p100 = por %p98, %p99
    %p102 = scmp.ne.s32.totalorder %s87, %s101
    %p103 = scmp.eq.s32.totalorder %s16, 0
    %p104 = por %p102, %p103
    %s106 = sadd.s32 %s105, 1
    %p109 = scmp.eq.s32.totalorder %s10, 1
    %p110 = scmp.ne.s32.totalorder %s105, %s107
    %p111 = scmp.eq.s32.totalorder %s10, 0
    %p112 = por %p110, %p111
    %p113 = scmp.ne.s32.totalorder %s105, %s107
    %p114 = scmp.eq.s32.totalorder %s15, 1
    %p115 = por %p113, %p114
    %p116 = scmp.ne.s32.totalorder %s107, %s108
    %p117 = scmp.eq.s32.totalorder %s15, 0
    %p118 = por %p116, %p117
    %p119 = scmp.ne.s32.totalorder %s107, %s108
    %p120 = scmp.eq.s32.totalorder %s16, 1
    %p121 = por %p119, %p120
    %p123 = scmp.ne.s32.totalorder %s108, %s122
    %p124 = scmp.eq.s32.totalorder %s16, 0
    %p125 = por %p123, %p124
    %s126 = ssub.s32 %s17, %s29
    %p127 = scmp.eq.s32.totalorder %s126, 0
    %s129 = sadd.s32 %s128, 1
    %s130 = scalar_select %p127, %s128, %s129
    %p133 = pneg %p127
    %p134 = scmp.eq.s32.totalorder %s10, 1
    %p135 = por %p133, %p134
    %p136 = scmp.ne.s32.totalorder %s128, %s131
    %p137 = scmp.eq.s32.totalorder %s10, 0
    %p138 = por %p136, %p137
    %p139 = scmp.ne.s32.totalorder %s128, %s131
    %p140 = scmp.eq.s32.totalorder %s15, 1
    %p141 = por %p139, %p140
    %p142 = scmp.ne.s32.totalorder %s131, %s132
    %p143 = scmp.eq.s32.totalorder %s15, 0
    %p144 = por %p142, %p143
    %p145 = scmp.ne.s32.totalorder %s131, %s132
    %p146 = scmp.eq.s32.totalorder %s16, 1
    %p147 = por %p145, %p146
    %p149 = scmp.ne.s32.totalorder %s132, %s148
    %p150 = scmp.eq.s32.totalorder %s16, 0
    %p151 = por %p149, %p150
    %p152 = scmp.le.s32.totalorder 1, %s10
    %p153 = scmp.lt.s32.totalorder %s10, 3
    %p154 = pnand %p152, %p153
    %p155 = pneg %p154
    // Predicated region
    $region9: #{haframe_wrn_forward.11} parent=5 // pred_check
      _
    $region10: #{haframe_wrn_forward.11} parent=5 // pred_check_branch
      %157 = sbr.rel (%p154) target = $region12
    $region11: #{haframe_wrn_forward.11} parent=5 // pred_region
      %s158 = ssub.s32 %s10, 1
      // Predicated region
      $region13: #{haframe_wrn_forward.11} parent=11 // pred_check
        %p159 = pneg %p76
      $region14: #{haframe_wrn_forward.11} parent=11 // pred_check_branch
        %161 = sbr.rel (%p159) target = $region16
      $region15: #{haframe_wrn_forward.11} parent=11 // pred_region
        %s162 = smul.u32 32, %s20
        %p163 = scmp.lt.s32.totalorder %s162, 31
        %s164 = scalar_select %p163, %s162, 31
        %s165 = smul.addr %s164, 4
        %s166 = scalar_lea.vmem %s1, %s165
        %s167 = smul.u32 32, %s20
      $region16: #{haframe_wrn_forward.11} parent=11 // pred_fallthru
        _
      // Predicated region
      $region17: #{haframe_wrn_forward.11} parent=11 // pred_check
        %p168 = pneg %p97
      $region18: #{haframe_wrn_forward.11} parent=11 // pred_check_branch
        %170 = sbr.rel (%p168) target = $region20
      $region19: #{haframe_wrn_forward.11} parent=11 // pred_region
        _
      $region20: #{haframe_wrn_forward.11} parent=11 // pred_fallthru
        _
      // Predicated region
      $region21: #{haframe_wrn_forward.11} parent=11 // pred_check
        %p171 = pneg %p118
      $region22: #{haframe_wrn_forward.11} parent=11 // pred_check_branch
        %173 = sbr.rel (%p171) target = $region24
      $region23: #{haframe_wrn_forward.11} parent=11 // pred_region
        _
      $region24: #{haframe_wrn_forward.11} parent=11 // pred_fallthru
        _
    $region12: #{haframe_wrn_forward.11} parent=5 // pred_fallthru
      _
    %p174 = scmp.lt.s32.totalorder %s10, 2
    // Predicated region
    $region25: #{haframe_wrn_forward.11} parent=5 // pred_check
      %p175 = pneg %p174
    $region26: #{haframe_wrn_forward.11} parent=5 // pred_check_branch
      %177 = sbr.rel (%p175) target = $region28
    $region27: #{haframe_wrn_forward.11} parent=5 // pred_region
      // Predicated region
      $region29: #{haframe_wrn_forward.11} parent=27 // pred_check
        %p178 = pneg %p44
      $region30: #{haframe_wrn_forward.11} parent=27 // pred_check_branch
        %180 = sbr.rel (%p178) target = $region32
      $region31: #{haframe_wrn_forward.11} parent=27 // pred_region
        %s181 = smul.u32 32, %s17
        %s182 = smul.u32 2, %s18
        %p183 = scmp.lt.s32.totalorder %s181, 63
        %s184 = scalar_select %p183, %s181, 63
        %p185 = scmp.lt.s32.totalorder %s182, 1
        %s186 = scalar_select %p185, %s182, 1
        %s187 = smul.addr %s184, 2
        %s188 = sadd.s32 %s186, %s187
        %s189 = smul.addr %s188, 4
        %s190 = scalar_lea.vmem %s0, %s189
        %s191 = smul.u32 32, %s17
        %s192 = smul.u32 2, %s18
      $region32: #{haframe_wrn_forward.11} parent=27 // pred_fallthru
        _
    $region28: #{haframe_wrn_forward.11} parent=5 // pred_fallthru
      _
    %p193 = scmp.le.s32.totalorder 1, %s10
    %p194 = scmp.lt.s32.totalorder %s10, 3
    %p195 = pnand %p193, %p194
    %p196 = pneg %p195
    // Predicated region
    $region33: #{haframe_wrn_forward.11} parent=5 // pred_check
      _
    $region34: #{haframe_wrn_forward.11} parent=5 // pred_check_branch
      %198 = sbr.rel (%p195) target = $region36
    $region35: #{haframe_wrn_forward.11} parent=5 // pred_region
      %s199 = ssub.s32 %s10, 1
      %s200 = smul.u32 32, %s19
      %s201 = smul.u32 2, %s20
      %p202 = scmp.lt.s32.totalorder %s200, 63
      %s203 = scalar_select %p202, %s200, 63
      %p204 = scmp.lt.s32.totalorder %s201, 1
      %s205 = scalar_select %p204, %s201, 1
      %s206 = smul.addr %s203, 2
      %s207 = sadd.s32 %s205, %s206
      %s208 = smul.addr %s207, 4
      %s209 = scalar_lea.vmem %s0, %s208
      %p210 = pneg %p50
      %p211 = pneg %p47
      %s212 = smul.u32 32, %s20
      %p213 = scmp.lt.s32.totalorder %s212, 31
      %s214 = scalar_select %p213, %s212, 31
      %s215 = smul.addr %s214, 4
      %s216 = scalar_lea.vmem %s1, %s215
      %p217 = pneg %p76
      %p218 = pneg %p73
      %p219 = pneg %p97
      %p220 = pneg %p94
      %p221 = pneg %p118
      %p222 = pneg %p115
      %p223 = pneg %p144
      %p224 = pneg %p141
      %s225 = smul.u32 32, %s19
      %p226 = scmp.lt.s32.totalorder %s225, 63
      %s227 = scalar_select %p226, %s225, 63
      %s228 = smul.addr %s227, 4
      %s229 = scalar_lea.vmem %s4, %s228
      %s230 = smul.u32 32, %s19
      %s231 = smul.u32 2, %s20
      %p232 = scmp.lt.s32.totalorder %s230, 63
      %s233 = scalar_select %p232, %s230, 63
      %p234 = scmp.lt.s32.totalorder %s231, 1
      %s235 = scalar_select %p234, %s231, 1
      %s236 = smul.addr %s233, 2
      %s237 = sadd.s32 %s235, %s236
      %s238 = smul.addr %s237, 4
      %s239 = scalar_lea.vmem %s0, %s238
      %s240 = smul.u32 32, %s19
      %s241 = smul.u32 2, %s20
      %s242 = smul.u32 32, %s20
      %p243 = scmp.lt.s32.totalorder %s242, 31
      %s244 = scalar_select %p243, %s242, 31
      %s245 = smul.addr %s244, 4
      %s246 = scalar_lea.vmem %s1, %s245
      %s247 = smul.u32 32, %s20
      %s248 = smul.u32 32, %s19
      %p249 = scmp.lt.s32.totalorder %s248, 63
      %s250 = scalar_select %p249, %s248, 63
      %s251 = smul.addr %s250, 4
      %s252 = scalar_lea.vmem %s4, %s251
      %s253 = smul.u32 32, %s19
      %p255 = scmp.eq.s32.totalorder %s20, 0
      // Predicated region
      $region37: #{haframe_wrn_forward.11} parent=35 // pred_check
        %p256 = pneg %p255
      $region38: #{haframe_wrn_forward.11} parent=35 // pred_check_branch
        %258 = sbr.rel (%p256) target = $region40
      $region39: #{haframe_wrn_forward.11} parent=35 // pred_region
        %259 = vst [vmem:[#allocation2] sm:$0xff] 0.0
        %260 = vst [vmem:[#allocation2 + $0x8] sm:$0xff] 0.0
        %261 = vst [vmem:[#allocation2 + $0x10] sm:$0xff] 0.0
        %262 = vst [vmem:[#allocation2 + $0x18] sm:$0xff] 0.0
        %263 = vst [vmem:[#allocation2 + $0x20] sm:$0xff] 0.0
        %264 = vst [vmem:[#allocation2 + $0x28] sm:$0xff] 0.0
        %265 = vst [vmem:[#allocation2 + $0x30] sm:$0xff] 0.0
        %266 = vst [vmem:[#allocation2 + $0x38] sm:$0xff] 0.0
        %267 = vst [vmem:[#allocation2 + $0x40] sm:$0xff] 0.0
        %268 = vst [vmem:[#allocation2 + $0x48] sm:$0xff] 0.0
        %269 = vst [vmem:[#allocation2 + $0x50] sm:$0xff] 0.0
        %270 = vst [vmem:[#allocation2 + $0x58] sm:$0xff] 0.0
        %271 = vst [vmem:[#allocation2 + $0x60] sm:$0xff] 0.0
        %272 = vst [vmem:[#allocation2 + $0x68] sm:$0xff] 0.0
        %273 = vst [vmem:[#allocation2 + $0x70] sm:$0xff] 0.0
        %274 = vst [vmem:[#allocation2 + $0x78] sm:$0xff] 0.0
        %275 = vst [vmem:[#allocation2 + $0x80] sm:$0xff] 0.0
        %276 = vst [vmem:[#allocation2 + $0x88] sm:$0xff] 0.0
        %277 = vst [vmem:[#allocation2 + $0x90] sm:$0xff] 0.0
        %278 = vst [vmem:[#allocation2 + $0x98] sm:$0xff] 0.0
        %279 = vst [vmem:[#allocation2 + $0xa0] sm:$0xff] 0.0
        %280 = vst [vmem:[#allocation2 + $0xa8] sm:$0xff] 0.0
        %281 = vst [vmem:[#allocation2 + $0xb0] sm:$0xff] 0.0
        %282 = vst [vmem:[#allocation2 + $0xb8] sm:$0xff] 0.0
        %283 = vst [vmem:[#allocation2 + $0xc0] sm:$0xff] 0.0
        %284 = vst [vmem:[#allocation2 + $0xc8] sm:$0xff] 0.0
        %285 = vst [vmem:[#allocation2 + $0xd0] sm:$0xff] 0.0
        %286 = vst [vmem:[#allocation2 + $0xd8] sm:$0xff] 0.0
        %287 = vst [vmem:[#allocation2 + $0xe0] sm:$0xff] 0.0
        %288 = vst [vmem:[#allocation2 + $0xe8] sm:$0xff] 0.0
        %289 = vst [vmem:[#allocation2 + $0xf0] sm:$0xff] 0.0
        %290 = vst [vmem:[#allocation2 + $0xf8] sm:$0xff] 0.0
      $region40: #{haframe_wrn_forward.11} parent=35 // pred_fallthru
        _
      %v291 = vld [vmem:[#allocation2] sm:$0xff]
      %v292 = vld [vmem:[#allocation2 + $0x8] sm:$0xff]
      %v293 = vld [vmem:[#allocation2 + $0x10] sm:$0xff]
      %v294 = vld [vmem:[#allocation2 + $0x18] sm:$0xff]
      %v295 = vld [vmem:[#allocation2 + $0x20] sm:$0xff]
      %v296 = vld [vmem:[#allocation2 + $0x28] sm:$0xff]
      %v297 = vld [vmem:[#allocation2 + $0x30] sm:$0xff]
      %v298 = vld [vmem:[#allocation2 + $0x38] sm:$0xff]
      %v299 = vld [vmem:[#allocation2 + $0x40] sm:$0xff]
      %v300 = vld [vmem:[#allocation2 + $0x48] sm:$0xff]
      %v301 = vld [vmem:[#allocation2 + $0x50] sm:$0xff]
      %v302 = vld [vmem:[#allocation2 + $0x58] sm:$0xff]
      %v303 = vld [vmem:[#allocation2 + $0x60] sm:$0xff]
      %v304 = vld [vmem:[#allocation2 + $0x68] sm:$0xff]
      %v305 = vld [vmem:[#allocation2 + $0x70] sm:$0xff]
      %v306 = vld [vmem:[#allocation2 + $0x78] sm:$0xff]
      %v307 = vld [vmem:[#allocation2 + $0x80] sm:$0xff]
      %v308 = vld [vmem:[#allocation2 + $0x88] sm:$0xff]
      %v309 = vld [vmem:[#allocation2 + $0x90] sm:$0xff]
      %v310 = vld [vmem:[#allocation2 + $0x98] sm:$0xff]
      %v311 = vld [vmem:[#allocation2 + $0xa0] sm:$0xff]
      %v312 = vld [vmem:[#allocation2 + $0xa8] sm:$0xff]
      %v313 = vld [vmem:[#allocation2 + $0xb0] sm:$0xff]
      %v314 = vld [vmem:[#allocation2 + $0xb8] sm:$0xff]
      %v315 = vld [vmem:[#allocation2 + $0xc0] sm:$0xff]
      %v316 = vld [vmem:[#allocation2 + $0xc8] sm:$0xff]
      %v317 = vld [vmem:[#allocation2 + $0xd0] sm:$0xff]
      %v318 = vld [vmem:[#allocation2 + $0xd8] sm:$0xff]
      %v319 = vld [vmem:[#allocation2 + $0xe0] sm:$0xff]
      %v320 = vld [vmem:[#allocation2 + $0xe8] sm:$0xff]
      %v321 = vld [vmem:[#allocation2 + $0xf0] sm:$0xff]
      %v322 = vld [vmem:[#allocation2 + $0xf8] sm:$0xff]
      %v323 = vld [vmem:[%s239] sm:$0xff]
      %v324 = vld [vmem:[%s239 + $0x8] sm:$0xff]
      %v325 = vld [vmem:[%s239 + $0x10] sm:$0xff]
      %v326 = vld [vmem:[%s239 + $0x18] sm:$0xff]
      %v327 = vld [vmem:[%s239 + $0x20] sm:$0xff]
      %v328 = vld [vmem:[%s239 + $0x28] sm:$0xff]
      %v329 = vld [vmem:[%s239 + $0x30] sm:$0xff]
      %v330 = vld [vmem:[%s239 + $0x38] sm:$0xff]
      %v331 = vld [vmem:[%s239 + $0x40] sm:$0xff]
      %v332 = vld [vmem:[%s239 + $0x48] sm:$0xff]
      %v333 = vld [vmem:[%s239 + $0x50] sm:$0xff]
      %v334 = vld [vmem:[%s239 + $0x58] sm:$0xff]
      %v335 = vld [vmem:[%s239 + $0x60] sm:$0xff]
      %v336 = vld [vmem:[%s239 + $0x68] sm:$0xff]
      %v337 = vld [vmem:[%s239 + $0x70] sm:$0xff]
      %v338 = vld [vmem:[%s239 + $0x78] sm:$0xff]
      %v339 = vld [vmem:[%s239 + $0x80] sm:$0xff]
      %v340 = vld [vmem:[%s239 + $0x88] sm:$0xff]
      %v341 = vld [vmem:[%s239 + $0x90] sm:$0xff]
      %v342 = vld [vmem:[%s239 + $0x98] sm:$0xff]
      %v343 = vld [vmem:[%s239 + $0xa0] sm:$0xff]
      %v344 = vld [vmem:[%s239 + $0xa8] sm:$0xff]
      %v345 = vld [vmem:[%s239 + $0xb0] sm:$0xff]
      %v346 = vld [vmem:[%s239 + $0xb8] sm:$0xff]
      %v347 = vld [vmem:[%s239 + $0xc0] sm:$0xff]
      %v348 = vld [vmem:[%s239 + $0xc8] sm:$0xff]
      %v349 = vld [vmem:[%s239 + $0xd0] sm:$0xff]
      %v350 = vld [vmem:[%s239 + $0xd8] sm:$0xff]
      %v351 = vld [vmem:[%s239 + $0xe0] sm:$0xff]
      %v352 = vld [vmem:[%s239 + $0xe8] sm:$0xff]
      %v353 = vld [vmem:[%s239 + $0xf0] sm:$0xff]
      %v354 = vld [vmem:[%s239 + $0xf8] sm:$0xff]
      %v355 = vld [vmem:[%s246] sm:$0xf]
      %v356 = vld [vmem:[%s246 + $0x4] sm:$0xf]
      %v357 = vld [vmem:[%s246 + $0x8] sm:$0xf]
      %v358 = vld [vmem:[%s246 + $0xc] sm:$0xf]
      %v359 = vld [vmem:[%s246 + $0x10] sm:$0xf]
      %v360 = vld [vmem:[%s246 + $0x14] sm:$0xf]
      %v361 = vld [vmem:[%s246 + $0x18] sm:$0xf]
      %v362 = vld [vmem:[%s246 + $0x1c] sm:$0xf]
      %v363 = vld [vmem:[%s246 + $0x20] sm:$0xf]
      %v364 = vld [vmem:[%s246 + $0x24] sm:$0xf]
      %v365 = vld [vmem:[%s246 + $0x28] sm:$0xf]
      %v366 = vld [vmem:[%s246 + $0x2c] sm:$0xf]
      %v367 = vld [vmem:[%s246 + $0x30] sm:$0xf]
      %v368 = vld [vmem:[%s246 + $0x34] sm:$0xf]
      %v369 = vld [vmem:[%s246 + $0x38] sm:$0xf]
      %v370 = vld [vmem:[%s246 + $0x3c] sm:$0xf]
      %v371 = vld [vmem:[%s246 + $0x40] sm:$0xf]
      %v372 = vld [vmem:[%s246 + $0x44] sm:$0xf]
      %v373 = vld [vmem:[%s246 + $0x48] sm:$0xf]
      %v374 = vld [vmem:[%s246 + $0x4c] sm:$0xf]
      %v375 = vld [vmem:[%s246 + $0x50] sm:$0xf]
      %v376 = vld [vmem:[%s246 + $0x54] sm:$0xf]
      %v377 = vld [vmem:[%s246 + $0x58] sm:$0xf]
      %v378 = vld [vmem:[%s246 + $0x5c] sm:$0xf]
      %v379 = vld [vmem:[%s246 + $0x60] sm:$0xf]
      %v380 = vld [vmem:[%s246 + $0x64] sm:$0xf]
      %v381 = vld [vmem:[%s246 + $0x68] sm:$0xf]
      %v382 = vld [vmem:[%s246 + $0x6c] sm:$0xf]
      %v383 = vld [vmem:[%s246 + $0x70] sm:$0xf]
      %v384 = vld [vmem:[%s246 + $0x74] sm:$0xf]
      %v385 = vld [vmem:[%s246 + $0x78] sm:$0xf]
      %v386 = vld [vmem:[%s246 + $0x7c] sm:$0xf]
      %v419 = vunpack.c.l.b16 %v323
      %v420 = vunpack.c.h.b16 %v323
      %v421 = vunpack.c.l.b16 %v324
      %v422 = vunpack.c.h.b16 %v324
      %v423 = vunpack.c.l.b16 %v325
      %v424 = vunpack.c.h.b16 %v325
      %v425 = vunpack.c.l.b16 %v326
      %v426 = vunpack.c.h.b16 %v326
      %v427 = vunpack.c.l.b16 %v327
      %v428 = vunpack.c.h.b16 %v327
      %v429 = vunpack.c.l.b16 %v328
      %v430 = vunpack.c.h.b16 %v328
      %v431 = vunpack.c.l.b16 %v329
      %v432 = vunpack.c.h.b16 %v329
      %v433 = vunpack.c.l.b16 %v330
      %v434 = vunpack.c.h.b16 %v330
      %v435 = vunpack.c.l.b16 %v331
      %v436 = vunpack.c.h.b16 %v331
      %v437 = vunpack.c.l.b16 %v332
      %v438 = vunpack.c.h.b16 %v332
      %v439 = vunpack.c.l.b16 %v333
      %v440 = vunpack.c.h.b16 %v333
      %v441 = vunpack.c.l.b16 %v334
      %v442 = vunpack.c.h.b16 %v334
      %v443 = vunpack.c.l.b16 %v335
      %v444 = vunpack.c.h.b16 %v335
      %v445 = vunpack.c.l.b16 %v336
      %v446 = vunpack.c.h.b16 %v336
      %v447 = vunpack.c.l.b16 %v337
      %v448 = vunpack.c.h.b16 %v337
      %v449 = vunpack.c.l.b16 %v338
      %v450 = vunpack.c.h.b16 %v338
      %v451 = vunpack.c.l.b16 %v339
      %v452 = vunpack.c.h.b16 %v339
      %v453 = vunpack.c.l.b16 %v340
      %v454 = vunpack.c.h.b16 %v340
      %v455 = vunpack.c.l.b16 %v341
      %v456 = vunpack.c.h.b16 %v341
      %v457 = vunpack.c.l.b16 %v342
      %v458 = vunpack.c.h.b16 %v342
      %v459 = vunpack.c.l.b16 %v343
      %v460 = vunpack.c.h.b16 %v343
      %v461 = vunpack.c.l.b16 %v344
      %v462 = vunpack.c.h.b16 %v344
      %v463 = vunpack.c.l.b16 %v345
      %v464 = vunpack.c.h.b16 %v345
      %v465 = vunpack.c.l.b16 %v346
      %v466 = vunpack.c.h.b16 %v346
      %v467 = vunpack.c.l.b16 %v347
      %v468 = vunpack.c.h.b16 %v347
      %v469 = vunpack.c.l.b16 %v348
      %v470 = vunpack.c.h.b16 %v348
      %v471 = vunpack.c.l.b16 %v349
      %v472 = vunpack.c.h.b16 %v349
      %v473 = vunpack.c.l.b16 %v350
      %v474 = vunpack.c.h.b16 %v350
      %v475 = vunpack.c.l.b16 %v351
      %v476 = vunpack.c.h.b16 %v351
      %v477 = vunpack.c.l.b16 %v352
      %v478 = vunpack.c.h.b16 %v352
      %v479 = vunpack.c.l.b16 %v353
      %v480 = vunpack.c.h.b16 %v353
      %v481 = vunpack.c.l.b16 %v354
      %v482 = vunpack.c.h.b16 %v354
      %v483 = vpack.c.b16 %v421, %v419
      %v484 = vpack.c.b16 %v422, %v420
      %v485 = vpack.c.b16 %v425, %v423
      %v486 = vpack.c.b16 %v426, %v424
      %v487 = vpack.c.b16 %v429, %v427
      %v488 = vpack.c.b16 %v430, %v428
      %v489 = vpack.c.b16 %v433, %v431
      %v490 = vpack.c.b16 %v434, %v432
      %v491 = vpack.c.b16 %v437, %v435
      %v492 = vpack.c.b16 %v438, %v436
      %v493 = vpack.c.b16 %v441, %v439
      %v494 = vpack.c.b16 %v442, %v440
      %v495 = vpack.c.b16 %v445, %v443
      %v496 = vpack.c.b16 %v446, %v444
      %v497 = vpack.c.b16 %v449, %v447
      %v498 = vpack.c.b16 %v450, %v448
      %v499 = vpack.c.b16 %v453, %v451
      %v500 = vpack.c.b16 %v454, %v452
      %v501 = vpack.c.b16 %v457, %v455
      %v502 = vpack.c.b16 %v458, %v456
      %v503 = vpack.c.b16 %v461, %v459
      %v504 = vpack.c.b16 %v462, %v460
      %v505 = vpack.c.b16 %v465, %v463
      %v506 = vpack.c.b16 %v466, %v464
      %v507 = vpack.c.b16 %v469, %v467
      %v508 = vpack.c.b16 %v470, %v468
      %v509 = vpack.c.b16 %v473, %v471
      %v510 = vpack.c.b16 %v474, %v472
      %v511 = vpack.c.b16 %v477, %v475
      %v512 = vpack.c.b16 %v478, %v476
      %v513 = vpack.c.b16 %v481, %v479
      %v514 = vpack.c.b16 %v482, %v480
      %v579 = vunpack.c.l.b16 %v355
      %v580 = vunpack.c.l.b16 %v356
      %v581 = vunpack.c.l.b16 %v357
      %v582 = vunpack.c.l.b16 %v358
      %v583 = vunpack.c.l.b16 %v359
      %v584 = vunpack.c.l.b16 %v360
      %v585 = vunpack.c.l.b16 %v361
      %v586 = vunpack.c.l.b16 %v362
      %v587 = vunpack.c.l.b16 %v363
      %v588 = vunpack.c.l.b16 %v364
      %v589 = vunpack.c.l.b16 %v365
      %v590 = vunpack.c.l.b16 %v366
      %v591 = vunpack.c.l.b16 %v367
      %v592 = vunpack.c.l.b16 %v368
      %v593 = vunpack.c.l.b16 %v369
      %v594 = vunpack.c.l.b16 %v370
      %v595 = vunpack.c.l.b16 %v371
      %v596 = vunpack.c.l.b16 %v372
      %v597 = vunpack.c.l.b16 %v373
      %v598 = vunpack.c.l.b16 %v374
      %v599 = vunpack.c.l.b16 %v375
      %v600 = vunpack.c.l.b16 %v376
      %v601 = vunpack.c.l.b16 %v377
      %v602 = vunpack.c.l.b16 %v378
      %v603 = vunpack.c.l.b16 %v379
      %v604 = vunpack.c.l.b16 %v380
      %v605 = vunpack.c.l.b16 %v381
      %v606 = vunpack.c.l.b16 %v382
      %v607 = vunpack.c.l.b16 %v383
      %v608 = vunpack.c.l.b16 %v384
      %v609 = vunpack.c.l.b16 %v385
      %v610 = vunpack.c.l.b16 %v386
      %v611 = vpack.c.b16 %v580, %v579
      %v612 = vpack.c.b16 %v582, %v581
      %v613 = vpack.c.b16 %v584, %v583
      %v614 = vpack.c.b16 %v586, %v585
      %v615 = vpack.c.b16 %v588, %v587
      %v616 = vpack.c.b16 %v590, %v589
      %v617 = vpack.c.b16 %v592, %v591
      %v618 = vpack.c.b16 %v594, %v593
      %v619 = vpack.c.b16 %v596, %v595
      %v620 = vpack.c.b16 %v598, %v597
      %v621 = vpack.c.b16 %v600, %v599
      %v622 = vpack.c.b16 %v602, %v601
      %v623 = vpack.c.b16 %v604, %v603
      %v624 = vpack.c.b16 %v606, %v605
      %v625 = vpack.c.b16 %v608, %v607
      %v626 = vpack.c.b16 %v610, %v609
      %643 = vmatprep.subr.bf16.mxu0 0
      %644 = vmatpush1.bf16.msra.mxu0 %v611
      %645 = vmatprep.subr.bf16.mxu0 0
      %646 = vmatpush1.bf16.msra.mxu0 %v612
      %647 = vmatprep.subr.bf16.mxu0 0
      %648 = vmatpush1.bf16.msra.mxu0 %v613
      %649 = vmatprep.subr.bf16.mxu0 0
      %650 = vmatpush1.bf16.msra.mxu0 %v614
      %651 = vmatprep.subr.bf16.mxu0 0
      %652 = vmatpush1.bf16.msra.mxu0 %v615
      %653 = vmatprep.subr.bf16.mxu0 0
      %654 = vmatpush1.bf16.msra.mxu0 %v616
      %655 = vmatprep.subr.bf16.mxu0 0
      %656 = vmatpush1.bf16.msra.mxu0 %v617
      %657 = vmatprep.subr.bf16.mxu0 0
      %658 = vmatpush1.bf16.msra.mxu0 %v618
      %659 = vmatprep.subr.bf16.mxu0 0
      %660 = vmatpush1.bf16.msra.mxu0 %v619
      %661 = vmatprep.subr.bf16.mxu0 0
      %662 = vmatpush1.bf16.msra.mxu0 %v620
      %663 = vmatprep.subr.bf16.mxu0 0
      %664 = vmatpush1.bf16.msra.mxu0 %v621
      %665 = vmatprep.subr.bf16.mxu0 0
      %666 = vmatpush1.bf16.msra.mxu0 %v622
      %667 = vmatprep.subr.bf16.mxu0 0
      %668 = vmatpush1.bf16.msra.mxu0 %v623
      %669 = vmatprep.subr.bf16.mxu0 0
      %670 = vmatpush1.bf16.msra.mxu0 %v624
      %671 = vmatprep.subr.bf16.mxu0 0
      %672 = vmatpush1.bf16.msra.mxu0 %v625
      %673 = vmatprep.subr.bf16.mxu0 0
      %674 = vmatpush1.bf16.msra.mxu0 %v626
      %675 = vmatprep.mubr.bf16.mxu0 %v484
      %676 = vmatmul.mubr.bf16.gmra.mrb[0].mxu0 %v483
      %v677 = vpop.f32.mrb[0].mxu0
      %v678 = vadd.f32 0.0, %v677
      %v679 = vpop.f32.mrb[0].mxu0
      %v680 = vpop.f32.mrb[0].mxu0
      %v681 = vadd.f32 0.0, %v680
      %v682 = vpop.f32.mrb[0].mxu0
      %683 = vmatprep.mubr.bf16.mxu0 %v486
      %684 = vmatmul.mubr.bf16.gmra.mrb[0].mxu0 %v485
      %v685 = vpop.f32.mrb[0].mxu0
      %v686 = vadd.f32 0.0, %v685
      %v687 = vpop.f32.mrb[0].mxu0
      %v688 = vpop.f32.mrb[0].mxu0
      %v689 = vadd.f32 0.0, %v688
      %v690 = vpop.f32.mrb[0].mxu0
      %691 = vmatprep.mubr.bf16.mxu0 %v488
      %692 = vmatmul.mubr.bf16.gmra.mrb[0].mxu0 %v487
      %v693 = vpop.f32.mrb[0].mxu0
      %v694 = vadd.f32 0.0, %v693
      %v695 = vpop.f32.mrb[0].mxu0
      %v696 = vpop.f32.mrb[0].mxu0
      %v697 = vadd.f32 0.0, %v696
      %v698 = vpop.f32.mrb[0].mxu0
      %699 = vmatprep.mubr.bf16.mxu0 %v490
      %700 = vmatmul.mubr.bf16.gmra.mrb[0].mxu0 %v489
      %v701 = vpop.f32.mrb[0].mxu0
      %v702 = vadd.f32 0.0, %v701
      %v703 = vpop.f32.mrb[0].mxu0
      %v704 = vpop.f32.mrb[0].mxu0
      %v705 = vadd.f32 0.0, %v704
      %v706 = vpop.f32.mrb[0].mxu0
      %707 = vmatprep.mubr.bf16.mxu0 %v492
      %708 = vmatmul.mubr.bf16.gmra.mrb[0].mxu0 %v491
      %v709 = vpop.f32.mrb[0].mxu0
      %v710 = vadd.f32 0.0, %v709
      %v711 = vpop.f32.mrb[0].mxu0
      %v712 = vpop.f32.mrb[0].mxu0
      %v713 = vadd.f32 0.0, %v712
      %v714 = vpop.f32.mrb[0].mxu0
      %715 = vmatprep.mubr.bf16.mxu0 %v494
      %716 = vmatmul.mubr.bf16.gmra.mrb[0].mxu0 %v493
      %v717 = vpop.f32.mrb[0].mxu0
      %v718 = vadd.f32 0.0, %v717
      %v719 = vpop.f32.mrb[0].mxu0
      %v720 = vpop.f32.mrb[0].mxu0
      %v721 = vadd.f32 0.0, %v720
      %v722 = vpop.f32.mrb[0].mxu0
      %723 = vmatprep.mubr.bf16.mxu0 %v496
      %724 = vmatmul.mubr.bf16.gmra.mrb[0].mxu0 %v495
      %v725 = vpop.f32.mrb[0].mxu0
      %v726 = vadd.f32 0.0, %v725
      %v727 = vpop.f32.mrb[0].mxu0
      %v728 = vpop.f32.mrb[0].mxu0
      %v729 = vadd.f32 0.0, %v728
      %v730 = vpop.f32.mrb[0].mxu0
      %731 = vmatprep.mubr.bf16.mxu0 %v498
      %732 = vmatmul.mubr.bf16.gmra.mrb[0].mxu0 %v497
      %v733 = vpop.f32.mrb[0].mxu0
      %v734 = vadd.f32 0.0, %v733
      %v735 = vpop.f32.mrb[0].mxu0
      %v736 = vpop.f32.mrb[0].mxu0
      %v737 = vadd.f32 0.0, %v736
      %v738 = vpop.f32.mrb[0].mxu0
      %739 = vmatprep.mubr.bf16.mxu0 %v500
      %740 = vmatmul.mubr.bf16.gmra.mrb[0].mxu0 %v499
      %v741 = vpop.f32.mrb[0].mxu0
      %v742 = vadd.f32 0.0, %v741
      %v743 = vpop.f32.mrb[0].mxu0
      %v744 = vpop.f32.mrb[0].mxu0
      %v745 = vadd.f32 0.0, %v744
      %v746 = vpop.f32.mrb[0].mxu0
      %747 = vmatprep.mubr.bf16.mxu0 %v502
      %748 = vmatmul.mubr.bf16.gmra.mrb[0].mxu0 %v501
      %v749 = vpop.f32.mrb[0].mxu0
      %v750 = vadd.f32 0.0, %v749
      %v751 = vpop.f32.mrb[0].mxu0
      %v752 = vpop.f32.mrb[0].mxu0
      %v753 = vadd.f32 0.0, %v752
      %v754 = vpop.f32.mrb[0].mxu0
      %755 = vmatprep.mubr.bf16.mxu0 %v504
      %756 = vmatmul.mubr.bf16.gmra.mrb[0].mxu0 %v503
      %v757 = vpop.f32.mrb[0].mxu0
      %v758 = vadd.f32 0.0, %v757
      %v759 = vpop.f32.mrb[0].mxu0
      %v760 = vpop.f32.mrb[0].mxu0
      %v761 = vadd.f32 0.0, %v760
      %v762 = vpop.f32.mrb[0].mxu0
      %763 = vmatprep.mubr.bf16.mxu0 %v506
      %764 = vmatmul.mubr.bf16.gmra.mrb[0].mxu0 %v505
      %v765 = vpop.f32.mrb[0].mxu0
      %v766 = vadd.f32 0.0, %v765
      %v767 = vpop.f32.mrb[0].mxu0
      %v768 = vpop.f32.mrb[0].mxu0
      %v769 = vadd.f32 0.0, %v768
      %v770 = vpop.f32.mrb[0].mxu0
      %771 = vmatprep.mubr.bf16.mxu0 %v508
      %772 = vmatmul.mubr.bf16.gmra.mrb[0].mxu0 %v507
      %v773 = vpop.f32.mrb[0].mxu0
      %v774 = vadd.f32 0.0, %v773
      %v775 = vpop.f32.mrb[0].mxu0
      %v776 = vpop.f32.mrb[0].mxu0
      %v777 = vadd.f32 0.0, %v776
      %v778 = vpop.f32.mrb[0].mxu0
      %779 = vmatprep.mubr.bf16.mxu0 %v510
      %780 = vmatmul.mubr.bf16.gmra.mrb[0].mxu0 %v509
      %v781 = vpop.f32.mrb[0].mxu0
      %v782 = vadd.f32 0.0, %v781
      %v783 = vpop.f32.mrb[0].mxu0
      %v784 = vpop.f32.mrb[0].mxu0
      %v785 = vadd.f32 0.0, %v784
      %v786 = vpop.f32.mrb[0].mxu0
      %787 = vmatprep.mubr.bf16.mxu0 %v512
      %788 = vmatmul.mubr.bf16.gmra.mrb[0].mxu0 %v511
      %v789 = vpop.f32.mrb[0].mxu0
      %v790 = vadd.f32 0.0, %v789
      %v791 = vpop.f32.mrb[0].mxu0
      %v792 = vpop.f32.mrb[0].mxu0
      %v793 = vadd.f32 0.0, %v792
      %v794 = vpop.f32.mrb[0].mxu0
      %795 = vmatprep.mubr.bf16.mxu0 %v514
      %796 = vmatmul.mubr.bf16.gmra.mrb[0].mxu0 %v513
      %v797 = vpop.f32.mrb[0].mxu0
      %v798 = vadd.f32 0.0, %v797
      %v799 = vpop.f32.mrb[0].mxu0
      %v800 = vpop.f32.mrb[0].mxu0
      %v801 = vadd.f32 0.0, %v800
      %v802 = vpop.f32.mrb[0].mxu0
      %803 = vdwg.mxu0
      %v804 = vadd.f32 %v291, %v678
      %v805 = vadd.f32 %v292, %v681
      %v806 = vadd.f32 %v293, %v686
      %v807 = vadd.f32 %v294, %v689
      %v808 = vadd.f32 %v295, %v694
      %v809 = vadd.f32 %v296, %v697
      %v810 = vadd.f32 %v297, %v702
      %v811 = vadd.f32 %v298, %v705
      %v812 = vadd.f32 %v299, %v710
      %v813 = vadd.f32 %v300, %v713
      %v814 = vadd.f32 %v301, %v718
      %v815 = vadd.f32 %v302, %v721
      %v816 = vadd.f32 %v303, %v726
      %v817 = vadd.f32 %v304, %v729
      %v818 = vadd.f32 %v305, %v734
      %v819 = vadd.f32 %v306, %v737
      %v820 = vadd.f32 %v307, %v742
      %v821 = vadd.f32 %v308, %v745
      %v822 = vadd.f32 %v309, %v750
      %v823 = vadd.f32 %v310, %v753
      %v824 = vadd.f32 %v311, %v758
      %v825 = vadd.f32 %v312, %v761
      %v826 = vadd.f32 %v313, %v766
      %v827 = vadd.f32 %v314, %v769
      %v828 = vadd.f32 %v315, %v774
      %v829 = vadd.f32 %v316, %v777
      %v830 = vadd.f32 %v317, %v782
      %v831 = vadd.f32 %v318, %v785
      %v832 = vadd.f32 %v319, %v790
      %v833 = vadd.f32 %v320, %v793
      %v834 = vadd.f32 %v321, %v798
      %v835 = vadd.f32 %v322, %v801
      %836 = vst [vmem:[#allocation2] sm:$0xff] %v804
      %837 = vst [vmem:[#allocation2 + $0x8] sm:$0xff] %v805
      %838 = vst [vmem:[#allocation2 + $0x10] sm:$0xff] %v806
      %839 = vst [vmem:[#allocation2 + $0x18] sm:$0xff] %v807
      %840 = vst [vmem:[#allocation2 + $0x20] sm:$0xff] %v808
      %841 = vst [vmem:[#allocation2 + $0x28] sm:$0xff] %v809
      %842 = vst [vmem:[#allocation2 + $0x30] sm:$0xff] %v810
      %843 = vst [vmem:[#allocation2 + $0x38] sm:$0xff] %v811
      %844 = vst [vmem:[#allocation2 + $0x40] sm:$0xff] %v812
      %845 = vst [vmem:[#allocation2 + $0x48] sm:$0xff] %v813
      %846 = vst [vmem:[#allocation2 + $0x50] sm:$0xff] %v814
      %847 = vst [vmem:[#allocation2 + $0x58] sm:$0xff] %v815
      %848 = vst [vmem:[#allocation2 + $0x60] sm:$0xff] %v816
      %849 = vst [vmem:[#allocation2 + $0x68] sm:$0xff] %v817
      %850 = vst [vmem:[#allocation2 + $0x70] sm:$0xff] %v818
      %851 = vst [vmem:[#allocation2 + $0x78] sm:$0xff] %v819
      %852 = vst [vmem:[#allocation2 + $0x80] sm:$0xff] %v820
      %853 = vst [vmem:[#allocation2 + $0x88] sm:$0xff] %v821
      %854 = vst [vmem:[#allocation2 + $0x90] sm:$0xff] %v822
      %855 = vst [vmem:[#allocation2 + $0x98] sm:$0xff] %v823
      %856 = vst [vmem:[#allocation2 + $0xa0] sm:$0xff] %v824
      %857 = vst [vmem:[#allocation2 + $0xa8] sm:$0xff] %v825
      %858 = vst [vmem:[#allocation2 + $0xb0] sm:$0xff] %v826
      %859 = vst [vmem:[#allocation2 + $0xb8] sm:$0xff] %v827
      %860 = vst [vmem:[#allocation2 + $0xc0] sm:$0xff] %v828
      %861 = vst [vmem:[#allocation2 + $0xc8] sm:$0xff] %v829
      %862 = vst [vmem:[#allocation2 + $0xd0] sm:$0xff] %v830
      %863 = vst [vmem:[#allocation2 + $0xd8] sm:$0xff] %v831
      %864 = vst [vmem:[#allocation2 + $0xe0] sm:$0xff] %v832
      %865 = vst [vmem:[#allocation2 + $0xe8] sm:$0xff] %v833
      %866 = vst [vmem:[#allocation2 + $0xf0] sm:$0xff] %v834
      %867 = vst [vmem:[#allocation2 + $0xf8] sm:$0xff] %v835
      // Predicated region
      $region41: #{haframe_wrn_forward.11} parent=35 // pred_check
        %p868 = pneg %p255
      $region42: #{haframe_wrn_forward.11} parent=35 // pred_check_branch
        %870 = sbr.rel (%p868) target = $region44
      $region43: #{haframe_wrn_forward.11} parent=35 // pred_region
        %v871 = vld [vmem:[#allocation2] sm:$0xff]
        %v872 = vld [vmem:[#allocation2 + $0x8] sm:$0xff]
        %v873 = vld [vmem:[#allocation2 + $0x10] sm:$0xff]
        %v874 = vld [vmem:[#allocation2 + $0x18] sm:$0xff]
        %v875 = vld [vmem:[#allocation2 + $0x20] sm:$0xff]
        %v876 = vld [vmem:[#allocation2 + $0x28] sm:$0xff]
        %v877 = vld [vmem:[#allocation2 + $0x30] sm:$0xff]
        %v878 = vld [vmem:[#allocation2 + $0x38] sm:$0xff]
        %v879 = vld [vmem:[#allocation2 + $0x40] sm:$0xff]
        %v880 = vld [vmem:[#allocation2 + $0x48] sm:$0xff]
        %v881 = vld [vmem:[#allocation2 + $0x50] sm:$0xff]
        %v882 = vld [vmem:[#allocation2 + $0x58] sm:$0xff]
        %v883 = vld [vmem:[#allocation2 + $0x60] sm:$0xff]
        %v884 = vld [vmem:[#allocation2 + $0x68] sm:$0xff]
        %v885 = vld [vmem:[#allocation2 + $0x70] sm:$0xff]
        %v886 = vld [vmem:[#allocation2 + $0x78] sm:$0xff]
        %v887 = vld [vmem:[#allocation2 + $0x80] sm:$0xff]
        %v888 = vld [vmem:[#allocation2 + $0x88] sm:$0xff]
        %v889 = vld [vmem:[#allocation2 + $0x90] sm:$0xff]
        %v890 = vld [vmem:[#allocation2 + $0x98] sm:$0xff]
        %v891 = vld [vmem:[#allocation2 + $0xa0] sm:$0xff]
        %v892 = vld [vmem:[#allocation2 + $0xa8] sm:$0xff]
        %v893 = vld [vmem:[#allocation2 + $0xb0] sm:$0xff]
        %v894 = vld [vmem:[#allocation2 + $0xb8] sm:$0xff]
        %v895 = vld [vmem:[#allocation2 + $0xc0] sm:$0xff]
        %v896 = vld [vmem:[#allocation2 + $0xc8] sm:$0xff]
        %v897 = vld [vmem:[#allocation2 + $0xd0] sm:$0xff]
        %v898 = vld [vmem:[#allocation2 + $0xd8] sm:$0xff]
        %v899 = vld [vmem:[#allocation2 + $0xe0] sm:$0xff]
        %v900 = vld [vmem:[#allocation2 + $0xe8] sm:$0xff]
        %v901 = vld [vmem:[#allocation2 + $0xf0] sm:$0xff]
        %v902 = vld [vmem:[#allocation2 + $0xf8] sm:$0xff]
        %v903 = vld [vmem:[%s2] sm:$0x1]
        %v905 = vlaneseq
        %v906 = vshrl.u32 %v905, 7
        %v907 = vsub.s32 0, %v906
        %v908 = vrot.slane %v903, %v907
        %v910 = vmul.f32 %v871, %v908
        %v911 = vmul.f32 %v872, %v908
        %v912 = vmul.f32 %v873, %v908
        %v913 = vmul.f32 %v874, %v908
        %v914 = vmul.f32 %v875, %v908
        %v915 = vmul.f32 %v876, %v908
        %v916 = vmul.f32 %v877, %v908
        %v917 = vmul.f32 %v878, %v908
        %v918 = vmul.f32 %v879, %v908
        %v919 = vmul.f32 %v880, %v908
        %v920 = vmul.f32 %v881, %v908
        %v921 = vmul.f32 %v882, %v908
        %v922 = vmul.f32 %v883, %v908
        %v923 = vmul.f32 %v884, %v908
        %v924 = vmul.f32 %v885, %v908
        %v925 = vmul.f32 %v886, %v908
        %v926 = vmul.f32 %v887, %v908
        %v927 = vmul.f32 %v888, %v908
        %v928 = vmul.f32 %v889, %v908
        %v929 = vmul.f32 %v890, %v908
        %v930 = vmul.f32 %v891, %v908
        %v931 = vmul.f32 %v892, %v908
        %v932 = vmul.f32 %v893, %v908
        %v933 = vmul.f32 %v894, %v908
        %v934 = vmul.f32 %v895, %v908
        %v935 = vmul.f32 %v896, %v908
        %v936 = vmul.f32 %v897, %v908
        %v937 = vmul.f32 %v898, %v908
        %v938 = vmul.f32 %v899, %v908
        %v939 = vmul.f32 %v900, %v908
        %v940 = vmul.f32 %v901, %v908
        %v941 = vmul.f32 %v902, %v908
        %v942 = vld [vmem:[%s3] sm:$0x1]
        %v944 = vlaneseq
        %v945 = vshrl.u32 %v944, 7
        %v946 = vsub.s32 0, %v945
        %v947 = vrot.slane %v942, %v946
        %v949 = vadd.f32 %v910, %v947
        %v950 = vadd.f32 %v911, %v947
        %v951 = vadd.f32 %v912, %v947
        %v952 = vadd.f32 %v913, %v947
        %v953 = vadd.f32 %v914, %v947
        %v954 = vadd.f32 %v915, %v947
        %v955 = vadd.f32 %v916, %v947
        %v956 = vadd.f32 %v917, %v947
        %v957 = vadd.f32 %v918, %v947
        %v958 = vadd.f32 %v919, %v947
        %v959 = vadd.f32 %v920, %v947
        %v960 = vadd.f32 %v921, %v947
        %v961 = vadd.f32 %v922, %v947
        %v962 = vadd.f32 %v923, %v947
        %v963 = vadd.f32 %v924, %v947
        %v964 = vadd.f32 %v925, %v947
        %v965 = vadd.f32 %v926, %v947
        %v966 = vadd.f32 %v927, %v947
        %v967 = vadd.f32 %v928, %v947
        %v968 = vadd.f32 %v929, %v947
        %v969 = vadd.f32 %v930, %v947
        %v970 = vadd.f32 %v931, %v947
        %v971 = vadd.f32 %v932, %v947
        %v972 = vadd.f32 %v933, %v947
        %v973 = vadd.f32 %v934, %v947
        %v974 = vadd.f32 %v935, %v947
        %v975 = vadd.f32 %v936, %v947
        %v976 = vadd.f32 %v937, %v947
        %v977 = vadd.f32 %v938, %v947
        %v978 = vadd.f32 %v939, %v947
        %v979 = vadd.f32 %v940, %v947
        %v980 = vadd.f32 %v941, %v947
        %v981 = vmax.f32 %v949, 0.0
        %v982 = vmax.f32 %v950, 0.0
        %v983 = vmax.f32 %v951, 0.0
        %v984 = vmax.f32 %v952, 0.0
        %v985 = vmax.f32 %v953, 0.0
        %v986 = vmax.f32 %v954, 0.0
        %v987 = vmax.f32 %v955, 0.0
        %v988 = vmax.f32 %v956, 0.0
        %v989 = vmax.f32 %v957, 0.0
        %v990 = vmax.f32 %v958, 0.0
        %v991 = vmax.f32 %v959, 0.0
        %v992 = vmax.f32 %v960, 0.0
        %v993 = vmax.f32 %v961, 0.0
        %v994 = vmax.f32 %v962, 0.0
        %v995 = vmax.f32 %v963, 0.0
        %v996 = vmax.f32 %v964, 0.0
        %v997 = vmax.f32 %v965, 0.0
        %v998 = vmax.f32 %v966, 0.0
        %v999 = vmax.f32 %v967, 0.0
        %v1000 = vmax.f32 %v968, 0.0
        %v1001 = vmax.f32 %v969, 0.0
        %v1002 = vmax.f32 %v970, 0.0
        %v1003 = vmax.f32 %v971, 0.0
        %v1004 = vmax.f32 %v972, 0.0
        %v1005 = vmax.f32 %v973, 0.0
        %v1006 = vmax.f32 %v974, 0.0
        %v1007 = vmax.f32 %v975, 0.0
        %v1008 = vmax.f32 %v976, 0.0
        %v1009 = vmax.f32 %v977, 0.0
        %v1010 = vmax.f32 %v978, 0.0
        %v1011 = vmax.f32 %v979, 0.0
        %v1012 = vmax.f32 %v980, 0.0
        %v1013 = vpack.c.bf16 %v982, %v981
        %v1014 = vpack.c.bf16 %v984, %v983
        %v1015 = vpack.c.bf16 %v986, %v985
        %v1016 = vpack.c.bf16 %v988, %v987
        %v1017 = vpack.c.bf16 %v990, %v989
        %v1018 = vpack.c.bf16 %v992, %v991
        %v1019 = vpack.c.bf16 %v994, %v993
        %v1020 = vpack.c.bf16 %v996, %v995
        %v1021 = vpack.c.bf16 %v998, %v997
        %v1022 = vpack.c.bf16 %v1000, %v999
        %v1023 = vpack.c.bf16 %v1002, %v1001
        %v1024 = vpack.c.bf16 %v1004, %v1003
        %v1025 = vpack.c.bf16 %v1006, %v1005
        %v1026 = vpack.c.bf16 %v1008, %v1007
        %v1027 = vpack.c.bf16 %v1010, %v1009
        %v1028 = vpack.c.bf16 %v1012, %v1011
        %v1045 = vunpack.c.l.b16 %v1013
        %v1046 = vunpack.c.h.b16 %v1013
        %v1047 = vunpack.c.l.b16 %v1014
        %v1048 = vunpack.c.h.b16 %v1014
        %v1049 = vunpack.c.l.b16 %v1015
        %v1050 = vunpack.c.h.b16 %v1015
        %v1051 = vunpack.c.l.b16 %v1016
        %v1052 = vunpack.c.h.b16 %v1016
        %v1053 = vunpack.c.l.b16 %v1017
        %v1054 = vunpack.c.h.b16 %v1017
        %v1055 = vunpack.c.l.b16 %v1018
        %v1056 = vunpack.c.h.b16 %v1018
        %v1057 = vunpack.c.l.b16 %v1019
        %v1058 = vunpack.c.h.b16 %v1019
        %v1059 = vunpack.c.l.b16 %v1020
        %v1060 = vunpack.c.h.b16 %v1020
        %v1061 = vunpack.c.l.b16 %v1021
        %v1062 = vunpack.c.h.b16 %v1021
        %v1063 = vunpack.c.l.b16 %v1022
        %v1064 = vunpack.c.h.b16 %v1022
        %v1065 = vunpack.c.l.b16 %v1023
        %v1066 = vunpack.c.h.b16 %v1023
        %v1067 = vunpack.c.l.b16 %v1024
        %v1068 = vunpack.c.h.b16 %v1024
        %v1069 = vunpack.c.l.b16 %v1025
        %v1070 = vunpack.c.h.b16 %v1025
        %v1071 = vunpack.c.l.b16 %v1026
        %v1072 = vunpack.c.h.b16 %v1026
        %v1073 = vunpack.c.l.b16 %v1027
        %v1074 = vunpack.c.h.b16 %v1027
        %v1075 = vunpack.c.l.b16 %v1028
        %v1076 = vunpack.c.h.b16 %v1028
        %v1077 = vpack.c.b16 %v1045, %v1045
        %v1078 = vpack.c.b16 %v1046, %v1046
        %v1079 = vpack.c.b16 %v1047, %v1047
        %v1080 = vpack.c.b16 %v1048, %v1048
        %v1081 = vpack.c.b16 %v1049, %v1049
        %v1082 = vpack.c.b16 %v1050, %v1050
        %v1083 = vpack.c.b16 %v1051, %v1051
        %v1084 = vpack.c.b16 %v1052, %v1052
        %v1085 = vpack.c.b16 %v1053, %v1053
        %v1086 = vpack.c.b16 %v1054, %v1054
        %v1087 = vpack.c.b16 %v1055, %v1055
        %v1088 = vpack.c.b16 %v1056, %v1056
        %v1089 = vpack.c.b16 %v1057, %v1057
        %v1090 = vpack.c.b16 %v1058, %v1058
        %v1091 = vpack.c.b16 %v1059, %v1059
        %v1092 = vpack.c.b16 %v1060, %v1060
        %v1093 = vpack.c.b16 %v1061, %v1061
        %v1094 = vpack.c.b16 %v1062, %v1062
        %v1095 = vpack.c.b16 %v1063, %v1063
        %v1096 = vpack.c.b16 %v1064, %v1064
        %v1097 = vpack.c.b16 %v1065, %v1065
        %v1098 = vpack.c.b16 %v1066, %v1066
        %v1099 = vpack.c.b16 %v1067, %v1067
        %v1100 = vpack.c.b16 %v1068, %v1068
        %v1101 = vpack.c.b16 %v1069, %v1069
        %v1102 = vpack.c.b16 %v1070, %v1070
        %v1103 = vpack.c.b16 %v1071, %v1071
        %v1104 = vpack.c.b16 %v1072, %v1072
        %v1105 = vpack.c.b16 %v1073, %v1073
        %v1106 = vpack.c.b16 %v1074, %v1074
        %v1107 = vpack.c.b16 %v1075, %v1075
        %v1108 = vpack.c.b16 %v1076, %v1076
        %1141 = vst [vmem:[%s252] sm:$0xf] %v1077
        %1142 = vst [vmem:[%s252 + $0x4] sm:$0xf] %v1078
        %1143 = vst [vmem:[%s252 + $0x8] sm:$0xf] %v1079
        %1144 = vst [vmem:[%s252 + $0xc] sm:$0xf] %v1080
        %1145 = vst [vmem:[%s252 + $0x10] sm:$0xf] %v1081
        %1146 = vst [vmem:[%s252 + $0x14] sm:$0xf] %v1082
        %1147 = vst [vmem:[%s252 + $0x18] sm:$0xf] %v1083
        %1148 = vst [vmem:[%s252 + $0x1c] sm:$0xf] %v1084
        %1149 = vst [vmem:[%s252 + $0x20] sm:$0xf] %v1085
        %1150 = vst [vmem:[%s252 + $0x24] sm:$0xf] %v1086
        %1151 = vst [vmem:[%s252 + $0x28] sm:$0xf] %v1087
        %1152 = vst [vmem:[%s252 + $0x2c] sm:$0xf] %v1088
        %1153 = vst [vmem:[%s252 + $0x30] sm:$0xf] %v1089
        %1154 = vst [vmem:[%s252 + $0x34] sm:$0xf] %v1090
        %1155 = vst [vmem:[%s252 + $0x38] sm:$0xf] %v1091
        %1156 = vst [vmem:[%s252 + $0x3c] sm:$0xf] %v1092
        %1157 = vst [vmem:[%s252 + $0x40] sm:$0xf] %v1093
        %1158 = vst [vmem:[%s252 + $0x44] sm:$0xf] %v1094
        %1159 = vst [vmem:[%s252 + $0x48] sm:$0xf] %v1095
        %1160 = vst [vmem:[%s252 + $0x4c] sm:$0xf] %v1096
        %1161 = vst [vmem:[%s252 + $0x50] sm:$0xf] %v1097
        %1162 = vst [vmem:[%s252 + $0x54] sm:$0xf] %v1098
        %1163 = vst [vmem:[%s252 + $0x58] sm:$0xf] %v1099
        %1164 = vst [vmem:[%s252 + $0x5c] sm:$0xf] %v1100
        %1165 = vst [vmem:[%s252 + $0x60] sm:$0xf] %v1101
        %1166 = vst [vmem:[%s252 + $0x64] sm:$0xf] %v1102
        %1167 = vst [vmem:[%s252 + $0x68] sm:$0xf] %v1103
        %1168 = vst [vmem:[%s252 + $0x6c] sm:$0xf] %v1104
        %1169 = vst [vmem:[%s252 + $0x70] sm:$0xf] %v1105
        %1170 = vst [vmem:[%s252 + $0x74] sm:$0xf] %v1106
        %1171 = vst [vmem:[%s252 + $0x78] sm:$0xf] %v1107
        %1172 = vst [vmem:[%s252 + $0x7c] sm:$0xf] %v1108
      $region44: #{haframe_wrn_forward.11} parent=35 // pred_fallthru
        _
      %s1173 = smul.u32 32, %s19
      %p1174 = scmp.lt.s32.totalorder %s1173, 63
      %s1175 = scalar_select %p1174, %s1173, 63
      %s1176 = smul.addr %s1175, 4
      %s1177 = scalar_lea.vmem %s4, %s1176
      // Predicated region
      $region45: #{haframe_wrn_forward.11} parent=35 // pred_check
        %p1178 = pneg %p141
      $region46: #{haframe_wrn_forward.11} parent=35 // pred_check_branch
        %1180 = sbr.rel (%p1178) target = $region48
      $region47: #{haframe_wrn_forward.11} parent=35 // pred_region
        %s1181 = smul.u32 32, %s19
      $region48: #{haframe_wrn_forward.11} parent=35 // pred_fallthru
        _
    $region36: #{haframe_wrn_forward.11} parent=5 // pred_fallthru
      _
    %p1182 = scmp.le.s32.totalorder 2, %s10
    // Predicated region
    $region49: #{haframe_wrn_forward.11} parent=5 // pred_check
      %p1183 = pneg %p1182
    $region50: #{haframe_wrn_forward.11} parent=5 // pred_check_branch
      %1185 = sbr.rel (%p1183) target = $region52
    $region51: #{haframe_wrn_forward.11} parent=5 // pred_region
      %s1186 = ssub.s32 %s10, 2
      // Predicated region
      $region53: #{haframe_wrn_forward.11} parent=51 // pred_check
        %p1187 = pneg %p147
      $region54: #{haframe_wrn_forward.11} parent=51 // pred_check_branch
        %1189 = sbr.rel (%p1187) target = $region56
      $region55: #{haframe_wrn_forward.11} parent=51 // pred_region
        %s1190 = smul.u32 32, %s21
        %p1191 = scmp.lt.s32.totalorder %s1190, 63
        %s1192 = scalar_select %p1191, %s1190, 63
        %s1193 = smul.addr %s1192, 4
        %s1194 = scalar_lea.vmem %s4, %s1193
      $region56: #{haframe_wrn_forward.11} parent=51 // pred_fallthru
        _
    $region52: #{haframe_wrn_forward.11} parent=5 // pred_fallthru
      _
  $region6: #{haframe_wrn_forward.11} parent=0 // loop_footer
    %s14 = sadd.s32 1, %s10
  $region7: #{haframe_wrn_forward.11} parent=0 // loop_footer_branch
    %9 = sbr.rel target = $region3
  $region8: #{haframe_wrn_forward.11} parent=0 // loop_exit
    _

// kernel: haframe_wrn_forward.12
$region0: #{haframe_wrn_forward.12}
  #allocation0 [shape = 'u32[]', space=smem, size = 0x4, offset = 0x4, fixed_abs, tag = 'smem constant byte address 0x4 - core index']
  #allocation1 [shape = 'u32[144,128]{1,0:T(1,128)}', space=vmem, size = 0x12000, scoped, tag = 'internal scratch']
  #allocation2 [shape = 'f32[256,128]{1,0:T(8,128)}', space=vmem, size = 0x20000, scoped, tag = 'scratch operand']
  %s0 = inlined_call_operand.vmem [shape: bf16[512,256], index: 0, kind: input, shape index: {}]
  %s1 = inlined_call_operand.vmem [shape: bf16[256,128], index: 1, kind: input, shape index: {}]
  %s2 = inlined_call_operand.vmem [shape: f32[1,128], index: 2, kind: input, shape index: {}]
  %s3 = inlined_call_operand.vmem [shape: f32[1,128], index: 3, kind: input, shape index: {}]
  %s4 = inlined_call_operand.vmem [shape: f32[512,128], index: 4, kind: input, shape index: {}]
  %s5 = inlined_call_operand.vmem [shape: bf16[512,128], index: 5, kind: output, shape index: {}]
  %s6 = sld [smem:[#allocation0]]
  $region61: #{haframe_wrn_forward.12} parent=0
    _
  %s8 = ssub.s32 1, %s6
  %s9 = scalar_select 0, %s8, %s6
  loop: start=0, step=1, limit=4
  $region2: #{haframe_wrn_forward.12} parent=0 // loop_pre_header
    _
  $region3: #{haframe_wrn_forward.12} parent=0 // loop_header
    %s11 = sphi 0, %s15
    %p12 = scmp.ge.s32.totalorder %s11, 4
    %s18 = sphi 0, %s30
    %s19 = sphi 0, %s26
    %s20 = sphi 0, %s18
    %s21 = sphi 0, %s19
    %s22 = sphi 0, %s20
    %s23 = sphi 0, %s21
    %s35 = sphi 0, %s37
    %s38 = sphi 0, %s35
    %s39 = sphi 0, %s38
    %s55 = sphi 0, %s39
    %s61 = sphi 0, %s63
    %s64 = sphi 0, %s61
    %s65 = sphi 0, %s64
    %s81 = sphi 0, %s65
    %s85 = sphi 0, %s85
    %s87 = sphi 0, %s85
    %s88 = sphi 0, %s87
    %s102 = sphi 0, %s88
    %s106 = sphi 0, %s106
    %s108 = sphi 0, %s106
    %s109 = sphi 0, %s108
    %s123 = sphi 0, %s109
    %s129 = sphi 0, %s131
    %s132 = sphi 0, %s129
    %s133 = sphi 0, %s132
    %s149 = sphi 0, %s133
    %s155 = sphi 0, %s157
    %s158 = sphi 0, %s155
    %s159 = sphi 0, %s158
    %s175 = sphi 0, %s159
  $region4: #{haframe_wrn_forward.12} parent=0 // loop_header_branch
    %14 = sbr.rel (%p12) target = $region8
  $region5: #{haframe_wrn_forward.12} parent=0 // loop_body
    %s16 = ssub.s32 %s11, 1
    %s17 = ssub.s32 %s11, 2
    %s24 = sadd.s32 1, %s19
    %p25 = scmp.ge.s32.totalorder %s24, 1
    %s26 = scalar_select %p25, 0, %s24
    %s27 = sadd.s32 1, %s18
    %s28 = scalar_select %p25, %s27, %s18
    %p29 = scmp.ge.s32.totalorder %s28, 2
    %s30 = scalar_select %p29, 0, %s28
    %s31 = ssub.s32 %s18, %s30
    %s32 = ssub.s32 %s19, %s26
    %s33 = sor.u32 %s31, %s32
    %p34 = scmp.eq.s32.totalorder %s33, 0
    %s36 = sadd.s32 %s35, 1
    %s37 = scalar_select %p34, %s35, %s36
    %p40 = pneg %p34
    %p41 = scmp.eq.s32.totalorder %s11, 1
    %p42 = por %p40, %p41
    %p43 = scmp.ne.s32.totalorder %s35, %s38
    %p44 = scmp.eq.s32.totalorder %s11, 0
    %p45 = por %p43, %p44
    %p46 = scmp.ne.s32.totalorder %s35, %s38
    %p47 = scmp.eq.s32.totalorder %s16, 1
    %p48 = por %p46, %p47
    %p49 = scmp.ne.s32.totalorder %s38, %s39
    %p50 = scmp.eq.s32.totalorder %s16, 0
    %p51 = por %p49, %p50
    %p52 = scmp.ne.s32.totalorder %s38, %s39
    %p53 = scmp.eq.s32.totalorder %s17, 1
    %p54 = por %p52, %p53
    %p56 = scmp.ne.s32.totalorder %s39, %s55
    %p57 = scmp.eq.s32.totalorder %s17, 0
    %p58 = por %p56, %p57
    %s59 = ssub.s32 %s19, %s26
    %p60 = scmp.eq.s32.totalorder %s59, 0
    %s62 = sadd.s32 %s61, 1
    %s63 = scalar_select %p60, %s61, %s62
    %p66 = pneg %p60
    %p67 = scmp.eq.s32.totalorder %s11, 1
    %p68 = por %p66, %p67
    %p69 = scmp.ne.s32.totalorder %s61, %s64
    %p70 = scmp.eq.s32.totalorder %s11, 0
    %p71 = por %p69, %p70
    %p72 = scmp.ne.s32.totalorder %s61, %s64
    %p73 = scmp.eq.s32.totalorder %s16, 1
    %p74 = por %p72, %p73
    %p75 = scmp.ne.s32.totalorder %s64, %s65
    %p76 = scmp.eq.s32.totalorder %s16, 0
    %p77 = por %p75, %p76
    %p78 = scmp.ne.s32.totalorder %s64, %s65
    %p79 = scmp.eq.s32.totalorder %s17, 1
    %p80 = por %p78, %p79
    %p82 = scmp.ne.s32.totalorder %s65, %s81
    %p83 = scmp.eq.s32.totalorder %s17, 0
    %p84 = por %p82, %p83
    %s86 = sadd.s32 %s85, 1
    %p89 = scmp.eq.s32.totalorder %s11, 1
    %p90 = scmp.ne.s32.totalorder %s85, %s87
    %p91 = scmp.eq.s32.totalorder %s11, 0
    %p92 = por %p90, %p91
    %p93 = scmp.ne.s32.totalorder %s85, %s87
    %p94 = scmp.eq.s32.totalorder %s16, 1
    %p95 = por %p93, %p94
    %p96 = scmp.ne.s32.totalorder %s87, %s88
    %p97 = scmp.eq.s32.totalorder %s16, 0
    %p98 = por %p96, %p97
    %p99 = scmp.ne.s32.totalorder %s87, %s88
    %p100 = scmp.eq.s32.totalorder %s17, 1
    %p101 = por %p99, %p100
    %p103 = scmp.ne.s32.totalorder %s88, %s102
    %p104 = scmp.eq.s32.totalorder %s17, 0
    %p105 = por %p103, %p104
    %s107 = sadd.s32 %s106, 1
    %p110 = scmp.eq.s32.totalorder %s11, 1
    %p111 = scmp.ne.s32.totalorder %s106, %s108
    %p112 = scmp.eq.s32.totalorder %s11, 0
    %p113 = por %p111, %p112
    %p114 = scmp.ne.s32.totalorder %s106, %s108
    %p115 = scmp.eq.s32.totalorder %s16, 1
    %p116 = por %p114, %p115
    %p117 = scmp.ne.s32.totalorder %s108, %s109
    %p118 = scmp.eq.s32.totalorder %s16, 0
    %p119 = por %p117, %p118
    %p120 = scmp.ne.s32.totalorder %s108, %s109
    %p121 = scmp.eq.s32.totalorder %s17, 1
    %p122 = por %p120, %p121
    %p124 = scmp.ne.s32.totalorder %s109, %s123
    %p125 = scmp.eq.s32.totalorder %s17, 0
    %p126 = por %p124, %p125
    %s127 = ssub.s32 %s18, %s30
    %p128 = scmp.eq.s32.totalorder %s127, 0
    %s130 = sadd.s32 %s129, 1
    %s131 = scalar_select %p128, %s129, %s130
    %p134 = pneg %p128
    %p135 = scmp.eq.s32.totalorder %s11, 1
    %p136 = por %p134, %p135
    %p137 = scmp.ne.s32.totalorder %s129, %s132
    %p138 = scmp.eq.s32.totalorder %s11, 0
    %p139 = por %p137, %p138
    %p140 = scmp.ne.s32.totalorder %s129, %s132
    %p141 = scmp.eq.s32.totalorder %s16, 1
    %p142 = por %p140, %p141
    %p143 = scmp.ne.s32.totalorder %s132, %s133
    %p144 = scmp.eq.s32.totalorder %s16, 0
    %p145 = por %p143, %p144
    %p146 = scmp.ne.s32.totalorder %s132, %s133
    %p147 = scmp.eq.s32.totalorder %s17, 1
    %p148 = por %p146, %p147
    %p150 = scmp.ne.s32.totalorder %s133, %s149
    %p151 = scmp.eq.s32.totalorder %s17, 0
    %p152 = por %p150, %p151
    %s153 = ssub.s32 %s18, %s30
    %p154 = scmp.eq.s32.totalorder %s153, 0
    %s156 = sadd.s32 %s155, 1
    %s157 = scalar_select %p154, %s155, %s156
    %p160 = pneg %p154
    %p161 = scmp.eq.s32.totalorder %s11, 1
    %p162 = por %p160, %p161
    %p163 = scmp.ne.s32.totalorder %s155, %s158
    %p164 = scmp.eq.s32.totalorder %s11, 0
    %p165 = por %p163, %p164
    %p166 = scmp.ne.s32.totalorder %s155, %s158
    %p167 = scmp.eq.s32.totalorder %s16, 1
    %p168 = por %p166, %p167
    %p169 = scmp.ne.s32.totalorder %s158, %s159
    %p170 = scmp.eq.s32.totalorder %s16, 0
    %p171 = por %p169, %p170
    %p172 = scmp.ne.s32.totalorder %s158, %s159
    %p173 = scmp.eq.s32.totalorder %s17, 1
    %p174 = por %p172, %p173
    %p176 = scmp.ne.s32.totalorder %s159, %s175
    %p177 = scmp.eq.s32.totalorder %s17, 0
    %p178 = por %p176, %p177
    %p179 = scmp.le.s32.totalorder 1, %s11
    %p180 = scmp.lt.s32.totalorder %s11, 3
    %p181 = pnand %p179, %p180
    %p182 = pneg %p181
    // Predicated region
    $region9: #{haframe_wrn_forward.12} parent=5 // pred_check
      _
    $region10: #{haframe_wrn_forward.12} parent=5 // pred_check_branch
      %184 = sbr.rel (%p181) target = $region12
    $region11: #{haframe_wrn_forward.12} parent=5 // pred_region
      %s185 = ssub.s32 %s11, 1
      // Predicated region
      $region13: #{haframe_wrn_forward.12} parent=11 // pred_check
        %p186 = pneg %p77
      $region14: #{haframe_wrn_forward.12} parent=11 // pred_check_branch
        %188 = sbr.rel (%p186) target = $region16
      $region15: #{haframe_wrn_forward.12} parent=11 // pred_region
        %s189 = smul.u32 32, %s21
        %p190 = scmp.lt.s32.totalorder %s189, 31
        %s191 = scalar_select %p190, %s189, 31
        %s192 = smul.addr %s191, 4
        %s193 = scalar_lea.vmem %s1, %s192
        %s194 = smul.u32 32, %s21
      $region16: #{haframe_wrn_forward.12} parent=11 // pred_fallthru
        _
      // Predicated region
      $region17: #{haframe_wrn_forward.12} parent=11 // pred_check
        %p195 = pneg %p98
      $region18: #{haframe_wrn_forward.12} parent=11 // pred_check_branch
        %197 = sbr.rel (%p195) target = $region20
      $region19: #{haframe_wrn_forward.12} parent=11 // pred_region
        _
      $region20: #{haframe_wrn_forward.12} parent=11 // pred_fallthru
        _
      // Predicated region
      $region21: #{haframe_wrn_forward.12} parent=11 // pred_check
        %p198 = pneg %p119
      $region22: #{haframe_wrn_forward.12} parent=11 // pred_check_branch
        %200 = sbr.rel (%p198) target = $region24
      $region23: #{haframe_wrn_forward.12} parent=11 // pred_region
        _
      $region24: #{haframe_wrn_forward.12} parent=11 // pred_fallthru
        _
    $region12: #{haframe_wrn_forward.12} parent=5 // pred_fallthru
      _
    %p201 = scmp.lt.s32.totalorder %s11, 2
    // Predicated region
    $region25: #{haframe_wrn_forward.12} parent=5 // pred_check
      %p202 = pneg %p201
    $region26: #{haframe_wrn_forward.12} parent=5 // pred_check_branch
      %204 = sbr.rel (%p202) target = $region28
    $region27: #{haframe_wrn_forward.12} parent=5 // pred_region
      // Predicated region
      $region29: #{haframe_wrn_forward.12} parent=27 // pred_check
        %p205 = pneg %p45
      $region30: #{haframe_wrn_forward.12} parent=27 // pred_check_branch
        %207 = sbr.rel (%p205) target = $region32
      $region31: #{haframe_wrn_forward.12} parent=27 // pred_region
        %s208 = smul.u32 32, %s18
        %s209 = smul.u32 2, %s19
        %p210 = scmp.lt.s32.totalorder %s208, 63
        %s211 = scalar_select %p210, %s208, 63
        %p212 = scmp.lt.s32.totalorder %s209, 1
        %s213 = scalar_select %p212, %s209, 1
        %s214 = smul.addr %s211, 2
        %s215 = sadd.s32 %s213, %s214
        %s216 = smul.addr %s215, 4
        %s217 = scalar_lea.vmem %s0, %s216
        %s218 = smul.u32 32, %s18
        %s219 = smul.u32 2, %s19
      $region32: #{haframe_wrn_forward.12} parent=27 // pred_fallthru
        _
      // Predicated region
      $region33: #{haframe_wrn_forward.12} parent=27 // pred_check
        %p220 = pneg %p139
      $region34: #{haframe_wrn_forward.12} parent=27 // pred_check_branch
        %222 = sbr.rel (%p220) target = $region36
      $region35: #{haframe_wrn_forward.12} parent=27 // pred_region
        %s223 = smul.u32 32, %s18
        %p224 = scmp.lt.s32.totalorder %s223, 63
        %s225 = scalar_select %p224, %s223, 63
        %s226 = smul.addr %s225, 8
        %s227 = scalar_lea.vmem %s4, %s226
        %s228 = smul.u32 32, %s18
      $region36: #{haframe_wrn_forward.12} parent=27 // pred_fallthru
        _
    $region28: #{haframe_wrn_forward.12} parent=5 // pred_fallthru
      _
    %p229 = scmp.le.s32.totalorder 1, %s11
    %p230 = scmp.lt.s32.totalorder %s11, 3
    %p231 = pnand %p229, %p230
    %p232 = pneg %p231
    // Predicated region
    $region37: #{haframe_wrn_forward.12} parent=5 // pred_check
      _
    $region38: #{haframe_wrn_forward.12} parent=5 // pred_check_branch
      %234 = sbr.rel (%p231) target = $region40
    $region39: #{haframe_wrn_forward.12} parent=5 // pred_region
      %s235 = ssub.s32 %s11, 1
      %s236 = smul.u32 32, %s20
      %s237 = smul.u32 2, %s21
      %p238 = scmp.lt.s32.totalorder %s236, 63
      %s239 = scalar_select %p238, %s236, 63
      %p240 = scmp.lt.s32.totalorder %s237, 1
      %s241 = scalar_select %p240, %s237, 1
      %s242 = smul.addr %s239, 2
      %s243 = sadd.s32 %s241, %s242
      %s244 = smul.addr %s243, 4
      %s245 = scalar_lea.vmem %s0, %s244
      %p246 = pneg %p51
      %p247 = pneg %p48
      %s248 = smul.u32 32, %s21
      %p249 = scmp.lt.s32.totalorder %s248, 31
      %s250 = scalar_select %p249, %s248, 31
      %s251 = smul.addr %s250, 4
      %s252 = scalar_lea.vmem %s1, %s251
      %p253 = pneg %p77
      %p254 = pneg %p74
      %p255 = pneg %p98
      %p256 = pneg %p95
      %p257 = pneg %p119
      %p258 = pneg %p116
      %s259 = smul.u32 32, %s20
      %p260 = scmp.lt.s32.totalorder %s259, 63
      %s261 = scalar_select %p260, %s259, 63
      %s262 = smul.addr %s261, 8
      %s263 = scalar_lea.vmem %s4, %s262
      %p264 = pneg %p145
      %p265 = pneg %p142
      %p266 = pneg %p171
      %p267 = pneg %p168
      %s268 = smul.u32 32, %s20
      %p269 = scmp.lt.s32.totalorder %s268, 63
      %s270 = scalar_select %p269, %s268, 63
      %s271 = smul.addr %s270, 4
      %s272 = scalar_lea.vmem %s5, %s271
      %s273 = smul.u32 32, %s20
      %s274 = smul.u32 2, %s21
      %p275 = scmp.lt.s32.totalorder %s273, 63
      %s276 = scalar_select %p275, %s273, 63
      %p277 = scmp.lt.s32.totalorder %s274, 1
      %s278 = scalar_select %p277, %s274, 1
      %s279 = smul.addr %s276, 2
      %s280 = sadd.s32 %s278, %s279
      %s281 = smul.addr %s280, 4
      %s282 = scalar_lea.vmem %s0, %s281
      %s283 = smul.u32 32, %s20
      %s284 = smul.u32 2, %s21
      %s285 = smul.u32 32, %s21
      %p286 = scmp.lt.s32.totalorder %s285, 31
      %s287 = scalar_select %p286, %s285, 31
      %s288 = smul.addr %s287, 4
      %s289 = scalar_lea.vmem %s1, %s288
      %s290 = smul.u32 32, %s21
      %s291 = smul.u32 32, %s20
      %p292 = scmp.lt.s32.totalorder %s291, 63
      %s293 = scalar_select %p292, %s291, 63
      %s294 = smul.addr %s293, 8
      %s295 = scalar_lea.vmem %s4, %s294
      %s296 = smul.u32 32, %s20
      %s297 = smul.u32 32, %s20
      %p298 = scmp.lt.s32.totalorder %s297, 63
      %s299 = scalar_select %p298, %s297, 63
      %s300 = smul.addr %s299, 4
      %s301 = scalar_lea.vmem %s5, %s300
      %s302 = smul.u32 32, %s20
      %p304 = scmp.eq.s32.totalorder %s21, 0
      // Predicated region
      $region41: #{haframe_wrn_forward.12} parent=39 // pred_check
        %p305 = pneg %p304
      $region42: #{haframe_wrn_forward.12} parent=39 // pred_check_branch
        %307 = sbr.rel (%p305) target = $region44
      $region43: #{haframe_wrn_forward.12} parent=39 // pred_region
        %308 = vst [vmem:[#allocation2] sm:$0xff] 0.0
        %309 = vst [vmem:[#allocation2 + $0x8] sm:$0xff] 0.0
        %310 = vst [vmem:[#allocation2 + $0x10] sm:$0xff] 0.0
        %311 = vst [vmem:[#allocation2 + $0x18] sm:$0xff] 0.0
        %312 = vst [vmem:[#allocation2 + $0x20] sm:$0xff] 0.0
        %313 = vst [vmem:[#allocation2 + $0x28] sm:$0xff] 0.0
        %314 = vst [vmem:[#allocation2 + $0x30] sm:$0xff] 0.0
        %315 = vst [vmem:[#allocation2 + $0x38] sm:$0xff] 0.0
        %316 = vst [vmem:[#allocation2 + $0x40] sm:$0xff] 0.0
        %317 = vst [vmem:[#allocation2 + $0x48] sm:$0xff] 0.0
        %318 = vst [vmem:[#allocation2 + $0x50] sm:$0xff] 0.0
        %319 = vst [vmem:[#allocation2 + $0x58] sm:$0xff] 0.0
        %320 = vst [vmem:[#allocation2 + $0x60] sm:$0xff] 0.0
        %321 = vst [vmem:[#allocation2 + $0x68] sm:$0xff] 0.0
        %322 = vst [vmem:[#allocation2 + $0x70] sm:$0xff] 0.0
        %323 = vst [vmem:[#allocation2 + $0x78] sm:$0xff] 0.0
        %324 = vst [vmem:[#allocation2 + $0x80] sm:$0xff] 0.0
        %325 = vst [vmem:[#allocation2 + $0x88] sm:$0xff] 0.0
        %326 = vst [vmem:[#allocation2 + $0x90] sm:$0xff] 0.0
        %327 = vst [vmem:[#allocation2 + $0x98] sm:$0xff] 0.0
        %328 = vst [vmem:[#allocation2 + $0xa0] sm:$0xff] 0.0
        %329 = vst [vmem:[#allocation2 + $0xa8] sm:$0xff] 0.0
        %330 = vst [vmem:[#allocation2 + $0xb0] sm:$0xff] 0.0
        %331 = vst [vmem:[#allocation2 + $0xb8] sm:$0xff] 0.0
        %332 = vst [vmem:[#allocation2 + $0xc0] sm:$0xff] 0.0
        %333 = vst [vmem:[#allocation2 + $0xc8] sm:$0xff] 0.0
        %334 = vst [vmem:[#allocation2 + $0xd0] sm:$0xff] 0.0
        %335 = vst [vmem:[#allocation2 + $0xd8] sm:$0xff] 0.0
        %336 = vst [vmem:[#allocation2 + $0xe0] sm:$0xff] 0.0
        %337 = vst [vmem:[#allocation2 + $0xe8] sm:$0xff] 0.0
        %338 = vst [vmem:[#allocation2 + $0xf0] sm:$0xff] 0.0
        %339 = vst [vmem:[#allocation2 + $0xf8] sm:$0xff] 0.0
      $region44: #{haframe_wrn_forward.12} parent=39 // pred_fallthru
        _
      %v340 = vld [vmem:[#allocation2] sm:$0xff]
      %v341 = vld [vmem:[#allocation2 + $0x8] sm:$0xff]
      %v342 = vld [vmem:[#allocation2 + $0x10] sm:$0xff]
      %v343 = vld [vmem:[#allocation2 + $0x18] sm:$0xff]
      %v344 = vld [vmem:[#allocation2 + $0x20] sm:$0xff]
      %v345 = vld [vmem:[#allocation2 + $0x28] sm:$0xff]
      %v346 = vld [vmem:[#allocation2 + $0x30] sm:$0xff]
      %v347 = vld [vmem:[#allocation2 + $0x38] sm:$0xff]
      %v348 = vld [vmem:[#allocation2 + $0x40] sm:$0xff]
      %v349 = vld [vmem:[#allocation2 + $0x48] sm:$0xff]
      %v350 = vld [vmem:[#allocation2 + $0x50] sm:$0xff]
      %v351 = vld [vmem:[#allocation2 + $0x58] sm:$0xff]
      %v352 = vld [vmem:[#allocation2 + $0x60] sm:$0xff]
      %v353 = vld [vmem:[#allocation2 + $0x68] sm:$0xff]
      %v354 = vld [vmem:[#allocation2 + $0x70] sm:$0xff]
      %v355 = vld [vmem:[#allocation2 + $0x78] sm:$0xff]
      %v356 = vld [vmem:[#allocation2 + $0x80] sm:$0xff]
      %v357 = vld [vmem:[#allocation2 + $0x88] sm:$0xff]
      %v358 = vld [vmem:[#allocation2 + $0x90] sm:$0xff]
      %v359 = vld [vmem:[#allocation2 + $0x98] sm:$0xff]
      %v360 = vld [vmem:[#allocation2 + $0xa0] sm:$0xff]
      %v361 = vld [vmem:[#allocation2 + $0xa8] sm:$0xff]
      %v362 = vld [vmem:[#allocation2 + $0xb0] sm:$0xff]
      %v363 = vld [vmem:[#allocation2 + $0xb8] sm:$0xff]
      %v364 = vld [vmem:[#allocation2 + $0xc0] sm:$0xff]
      %v365 = vld [vmem:[#allocation2 + $0xc8] sm:$0xff]
      %v366 = vld [vmem:[#allocation2 + $0xd0] sm:$0xff]
      %v367 = vld [vmem:[#allocation2 + $0xd8] sm:$0xff]
      %v368 = vld [vmem:[#allocation2 + $0xe0] sm:$0xff]
      %v369 = vld [vmem:[#allocation2 + $0xe8] sm:$0xff]
      %v370 = vld [vmem:[#allocation2 + $0xf0] sm:$0xff]
      %v371 = vld [vmem:[#allocation2 + $0xf8] sm:$0xff]
      %v372 = vld [vmem:[%s282] sm:$0xff]
      %v373 = vld [vmem:[%s282 + $0x8] sm:$0xff]
      %v374 = vld [vmem:[%s282 + $0x10] sm:$0xff]
      %v375 = vld [vmem:[%s282 + $0x18] sm:$0xff]
      %v376 = vld [vmem:[%s282 + $0x20] sm:$0xff]
      %v377 = vld [vmem:[%s282 + $0x28] sm:$0xff]
      %v378 = vld [vmem:[%s282 + $0x30] sm:$0xff]
      %v379 = vld [vmem:[%s282 + $0x38] sm:$0xff]
      %v380 = vld [vmem:[%s282 + $0x40] sm:$0xff]
      %v381 = vld [vmem:[%s282 + $0x48] sm:$0xff]
      %v382 = vld [vmem:[%s282 + $0x50] sm:$0xff]
      %v383 = vld [vmem:[%s282 + $0x58] sm:$0xff]
      %v384 = vld [vmem:[%s282 + $0x60] sm:$0xff]
      %v385 = vld [vmem:[%s282 + $0x68] sm:$0xff]
      %v386 = vld [vmem:[%s282 + $0x70] sm:$0xff]
      %v387 = vld [vmem:[%s282 + $0x78] sm:$0xff]
      %v388 = vld [vmem:[%s282 + $0x80] sm:$0xff]
      %v389 = vld [vmem:[%s282 + $0x88] sm:$0xff]
      %v390 = vld [vmem:[%s282 + $0x90] sm:$0xff]
      %v391 = vld [vmem:[%s282 + $0x98] sm:$0xff]
      %v392 = vld [vmem:[%s282 + $0xa0] sm:$0xff]
      %v393 = vld [vmem:[%s282 + $0xa8] sm:$0xff]
      %v394 = vld [vmem:[%s282 + $0xb0] sm:$0xff]
      %v395 = vld [vmem:[%s282 + $0xb8] sm:$0xff]
      %v396 = vld [vmem:[%s282 + $0xc0] sm:$0xff]
      %v397 = vld [vmem:[%s282 + $0xc8] sm:$0xff]
      %v398 = vld [vmem:[%s282 + $0xd0] sm:$0xff]
      %v399 = vld [vmem:[%s282 + $0xd8] sm:$0xff]
      %v400 = vld [vmem:[%s282 + $0xe0] sm:$0xff]
      %v401 = vld [vmem:[%s282 + $0xe8] sm:$0xff]
      %v402 = vld [vmem:[%s282 + $0xf0] sm:$0xff]
      %v403 = vld [vmem:[%s282 + $0xf8] sm:$0xff]
      %v404 = vld [vmem:[%s289] sm:$0xf]
      %v405 = vld [vmem:[%s289 + $0x4] sm:$0xf]
      %v406 = vld [vmem:[%s289 + $0x8] sm:$0xf]
      %v407 = vld [vmem:[%s289 + $0xc] sm:$0xf]
      %v408 = vld [vmem:[%s289 + $0x10] sm:$0xf]
      %v409 = vld [vmem:[%s289 + $0x14] sm:$0xf]
      %v410 = vld [vmem:[%s289 + $0x18] sm:$0xf]
      %v411 = vld [vmem:[%s289 + $0x1c] sm:$0xf]
      %v412 = vld [vmem:[%s289 + $0x20] sm:$0xf]
      %v413 = vld [vmem:[%s289 + $0x24] sm:$0xf]
      %v414 = vld [vmem:[%s289 + $0x28] sm:$0xf]
      %v415 = vld [vmem:[%s289 + $0x2c] sm:$0xf]
      %v416 = vld [vmem:[%s289 + $0x30] sm:$0xf]
      %v417 = vld [vmem:[%s289 + $0x34] sm:$0xf]
      %v418 = vld [vmem:[%s289 + $0x38] sm:$0xf]
      %v419 = vld [vmem:[%s289 + $0x3c] sm:$0xf]
      %v420 = vld [vmem:[%s289 + $0x40] sm:$0xf]
      %v421 = vld [vmem:[%s289 + $0x44] sm:$0xf]
      %v422 = vld [vmem:[%s289 + $0x48] sm:$0xf]
      %v423 = vld [vmem:[%s289 + $0x4c] sm:$0xf]
      %v424 = vld [vmem:[%s289 + $0x50] sm:$0xf]
      %v425 = vld [vmem:[%s289 + $0x54] sm:$0xf]
      %v426 = vld [vmem:[%s289 + $0x58] sm:$0xf]
      %v427 = vld [vmem:[%s289 + $0x5c] sm:$0xf]
      %v428 = vld [vmem:[%s289 + $0x60] sm:$0xf]
      %v429 = vld [vmem:[%s289 + $0x64] sm:$0xf]
      %v430 = vld [vmem:[%s289 + $0x68] sm:$0xf]
      %v431 = vld [vmem:[%s289 + $0x6c] sm:$0xf]
      %v432 = vld [vmem:[%s289 + $0x70] sm:$0xf]
      %v433 = vld [vmem:[%s289 + $0x74] sm:$0xf]
      %v434 = vld [vmem:[%s289 + $0x78] sm:$0xf]
      %v435 = vld [vmem:[%s289 + $0x7c] sm:$0xf]
      %v468 = vunpack.c.l.b16 %v372
      %v469 = vunpack.c.h.b16 %v372
      %v470 = vunpack.c.l.b16 %v373
      %v471 = vunpack.c.h.b16 %v373
      %v472 = vunpack.c.l.b16 %v374
      %v473 = vunpack.c.h.b16 %v374
      %v474 = vunpack.c.l.b16 %v375
      %v475 = vunpack.c.h.b16 %v375
      %v476 = vunpack.c.l.b16 %v376
      %v477 = vunpack.c.h.b16 %v376
      %v478 = vunpack.c.l.b16 %v377
      %v479 = vunpack.c.h.b16 %v377
      %v480 = vunpack.c.l.b16 %v378
      %v481 = vunpack.c.h.b16 %v378
      %v482 = vunpack.c.l.b16 %v379
      %v483 = vunpack.c.h.b16 %v379
      %v484 = vunpack.c.l.b16 %v380
      %v485 = vunpack.c.h.b16 %v380
      %v486 = vunpack.c.l.b16 %v381
      %v487 = vunpack.c.h.b16 %v381
      %v488 = vunpack.c.l.b16 %v382
      %v489 = vunpack.c.h.b16 %v382
      %v490 = vunpack.c.l.b16 %v383
      %v491 = vunpack.c.h.b16 %v383
      %v492 = vunpack.c.l.b16 %v384
      %v493 = vunpack.c.h.b16 %v384
      %v494 = vunpack.c.l.b16 %v385
      %v495 = vunpack.c.h.b16 %v385
      %v496 = vunpack.c.l.b16 %v386
      %v497 = vunpack.c.h.b16 %v386
      %v498 = vunpack.c.l.b16 %v387
      %v499 = vunpack.c.h.b16 %v387
      %v500 = vunpack.c.l.b16 %v388
      %v501 = vunpack.c.h.b16 %v388
      %v502 = vunpack.c.l.b16 %v389
      %v503 = vunpack.c.h.b16 %v389
      %v504 = vunpack.c.l.b16 %v390
      %v505 = vunpack.c.h.b16 %v390
      %v506 = vunpack.c.l.b16 %v391
      %v507 = vunpack.c.h.b16 %v391
      %v508 = vunpack.c.l.b16 %v392
      %v509 = vunpack.c.h.b16 %v392
      %v510 = vunpack.c.l.b16 %v393
      %v511 = vunpack.c.h.b16 %v393
      %v512 = vunpack.c.l.b16 %v394
      %v513 = vunpack.c.h.b16 %v394
      %v514 = vunpack.c.l.b16 %v395
      %v515 = vunpack.c.h.b16 %v395
      %v516 = vunpack.c.l.b16 %v396
      %v517 = vunpack.c.h.b16 %v396
      %v518 = vunpack.c.l.b16 %v397
      %v519 = vunpack.c.h.b16 %v397
      %v520 = vunpack.c.l.b16 %v398
      %v521 = vunpack.c.h.b16 %v398
      %v522 = vunpack.c.l.b16 %v399
      %v523 = vunpack.c.h.b16 %v399
      %v524 = vunpack.c.l.b16 %v400
      %v525 = vunpack.c.h.b16 %v400
      %v526 = vunpack.c.l.b16 %v401
      %v527 = vunpack.c.h.b16 %v401
      %v528 = vunpack.c.l.b16 %v402
      %v529 = vunpack.c.h.b16 %v402
      %v530 = vunpack.c.l.b16 %v403
      %v531 = vunpack.c.h.b16 %v403
      %v532 = vpack.c.b16 %v470, %v468
      %v533 = vpack.c.b16 %v471, %v469
      %v534 = vpack.c.b16 %v474, %v472
      %v535 = vpack.c.b16 %v475, %v473
      %v536 = vpack.c.b16 %v478, %v476
      %v537 = vpack.c.b16 %v479, %v477
      %v538 = vpack.c.b16 %v482, %v480
      %v539 = vpack.c.b16 %v483, %v481
      %v540 = vpack.c.b16 %v486, %v484
      %v541 = vpack.c.b16 %v487, %v485
      %v542 = vpack.c.b16 %v490, %v488
      %v543 = vpack.c.b16 %v491, %v489
      %v544 = vpack.c.b16 %v494, %v492
      %v545 = vpack.c.b16 %v495, %v493
      %v546 = vpack.c.b16 %v498, %v496
      %v547 = vpack.c.b16 %v499, %v497
      %v548 = vpack.c.b16 %v502, %v500
      %v549 = vpack.c.b16 %v503, %v501
      %v550 = vpack.c.b16 %v506, %v504
      %v551 = vpack.c.b16 %v507, %v505
      %v552 = vpack.c.b16 %v510, %v508
      %v553 = vpack.c.b16 %v511, %v509
      %v554 = vpack.c.b16 %v514, %v512
      %v555 = vpack.c.b16 %v515, %v513
      %v556 = vpack.c.b16 %v518, %v516
      %v557 = vpack.c.b16 %v519, %v517
      %v558 = vpack.c.b16 %v522, %v520
      %v559 = vpack.c.b16 %v523, %v521
      %v560 = vpack.c.b16 %v526, %v524
      %v561 = vpack.c.b16 %v527, %v525
      %v562 = vpack.c.b16 %v530, %v528
      %v563 = vpack.c.b16 %v531, %v529
      %v628 = vunpack.c.l.b16 %v404
      %v629 = vunpack.c.l.b16 %v405
      %v630 = vunpack.c.l.b16 %v406
      %v631 = vunpack.c.l.b16 %v407
      %v632 = vunpack.c.l.b16 %v408
      %v633 = vunpack.c.l.b16 %v409
      %v634 = vunpack.c.l.b16 %v410
      %v635 = vunpack.c.l.b16 %v411
      %v636 = vunpack.c.l.b16 %v412
      %v637 = vunpack.c.l.b16 %v413
      %v638 = vunpack.c.l.b16 %v414
      %v639 = vunpack.c.l.b16 %v415
      %v640 = vunpack.c.l.b16 %v416
      %v641 = vunpack.c.l.b16 %v417
      %v642 = vunpack.c.l.b16 %v418
      %v643 = vunpack.c.l.b16 %v419
      %v644 = vunpack.c.l.b16 %v420
      %v645 = vunpack.c.l.b16 %v421
      %v646 = vunpack.c.l.b16 %v422
      %v647 = vunpack.c.l.b16 %v423
      %v648 = vunpack.c.l.b16 %v424
      %v649 = vunpack.c.l.b16 %v425
      %v650 = vunpack.c.l.b16 %v426
      %v651 = vunpack.c.l.b16 %v427
      %v652 = vunpack.c.l.b16 %v428
      %v653 = vunpack.c.l.b16 %v429
      %v654 = vunpack.c.l.b16 %v430
      %v655 = vunpack.c.l.b16 %v431
      %v656 = vunpack.c.l.b16 %v432
      %v657 = vunpack.c.l.b16 %v433
      %v658 = vunpack.c.l.b16 %v434
      %v659 = vunpack.c.l.b16 %v435
      %v660 = vpack.c.b16 %v629, %v628
      %v661 = vpack.c.b16 %v631, %v630
      %v662 = vpack.c.b16 %v633, %v632
      %v663 = vpack.c.b16 %v635, %v634
      %v664 = vpack.c.b16 %v637, %v636
      %v665 = vpack.c.b16 %v639, %v638
      %v666 = vpack.c.b16 %v641, %v640
      %v667 = vpack.c.b16 %v643, %v642
      %v668 = vpack.c.b16 %v645, %v644
      %v669 = vpack.c.b16 %v647, %v646
      %v670 = vpack.c.b16 %v649, %v648
      %v671 = vpack.c.b16 %v651, %v650
      %v672 = vpack.c.b16 %v653, %v652
      %v673 = vpack.c.b16 %v655, %v654
      %v674 = vpack.c.b16 %v657, %v656
      %v675 = vpack.c.b16 %v659, %v658
      %692 = vmatprep.subr.bf16.mxu0 0
      %693 = vmatpush1.bf16.msra.mxu0 %v660
      %694 = vmatprep.subr.bf16.mxu0 0
      %695 = vmatpush1.bf16.msra.mxu0 %v661
      %696 = vmatprep.subr.bf16.mxu0 0
      %697 = vmatpush1.bf16.msra.mxu0 %v662
      %698 = vmatprep.subr.bf16.mxu0 0
      %699 = vmatpush1.bf16.msra.mxu0 %v663
      %700 = vmatprep.subr.bf16.mxu0 0
      %701 = vmatpush1.bf16.msra.mxu0 %v664
      %702 = vmatprep.subr.bf16.mxu0 0
      %703 = vmatpush1.bf16.msra.mxu0 %v665
      %704 = vmatprep.subr.bf16.mxu0 0
      %705 = vmatpush1.bf16.msra.mxu0 %v666
      %706 = vmatprep.subr.bf16.mxu0 0
      %707 = vmatpush1.bf16.msra.mxu0 %v667
      %708 = vmatprep.subr.bf16.mxu0 0
      %709 = vmatpush1.bf16.msra.mxu0 %v668
      %710 = vmatprep.subr.bf16.mxu0 0
      %711 = vmatpush1.bf16.msra.mxu0 %v669
      %712 = vmatprep.subr.bf16.mxu0 0
      %713 = vmatpush1.bf16.msra.mxu0 %v670
      %714 = vmatprep.subr.bf16.mxu0 0
      %715 = vmatpush1.bf16.msra.mxu0 %v671
      %716 = vmatprep.subr.bf16.mxu0 0
      %717 = vmatpush1.bf16.msra.mxu0 %v672
      %718 = vmatprep.subr.bf16.mxu0 0
      %719 = vmatpush1.bf16.msra.mxu0 %v673
      %720 = vmatprep.subr.bf16.mxu0 0
      %721 = vmatpush1.bf16.msra.mxu0 %v674
      %722 = vmatprep.subr.bf16.mxu0 0
      %723 = vmatpush1.bf16.msra.mxu0 %v675
      %724 = vmatprep.mubr.bf16.mxu0 %v533
      %725 = vmatmul.mubr.bf16.gmra.mrb[0].mxu0 %v532
      %v726 = vpop.f32.mrb[0].mxu0
      %v727 = vadd.f32 0.0, %v726
      %v728 = vpop.f32.mrb[0].mxu0
      %v729 = vpop.f32.mrb[0].mxu0
      %v730 = vadd.f32 0.0, %v729
      %v731 = vpop.f32.mrb[0].mxu0
      %732 = vmatprep.mubr.bf16.mxu0 %v535
      %733 = vmatmul.mubr.bf16.gmra.mrb[0].mxu0 %v534
      %v734 = vpop.f32.mrb[0].mxu0
      %v735 = vadd.f32 0.0, %v734
      %v736 = vpop.f32.mrb[0].mxu0
      %v737 = vpop.f32.mrb[0].mxu0
      %v738 = vadd.f32 0.0, %v737
      %v739 = vpop.f32.mrb[0].mxu0
      %740 = vmatprep.mubr.bf16.mxu0 %v537
      %741 = vmatmul.mubr.bf16.gmra.mrb[0].mxu0 %v536
      %v742 = vpop.f32.mrb[0].mxu0
      %v743 = vadd.f32 0.0, %v742
      %v744 = vpop.f32.mrb[0].mxu0
      %v745 = vpop.f32.mrb[0].mxu0
      %v746 = vadd.f32 0.0, %v745
      %v747 = vpop.f32.mrb[0].mxu0
      %748 = vmatprep.mubr.bf16.mxu0 %v539
      %749 = vmatmul.mubr.bf16.gmra.mrb[0].mxu0 %v538
      %v750 = vpop.f32.mrb[0].mxu0
      %v751 = vadd.f32 0.0, %v750
      %v752 = vpop.f32.mrb[0].mxu0
      %v753 = vpop.f32.mrb[0].mxu0
      %v754 = vadd.f32 0.0, %v753
      %v755 = vpop.f32.mrb[0].mxu0
      %756 = vmatprep.mubr.bf16.mxu0 %v541
      %757 = vmatmul.mubr.bf16.gmra.mrb[0].mxu0 %v540
      %v758 = vpop.f32.mrb[0].mxu0
      %v759 = vadd.f32 0.0, %v758
      %v760 = vpop.f32.mrb[0].mxu0
      %v761 = vpop.f32.mrb[0].mxu0
      %v762 = vadd.f32 0.0, %v761
      %v763 = vpop.f32.mrb[0].mxu0
      %764 = vmatprep.mubr.bf16.mxu0 %v543
      %765 = vmatmul.mubr.bf16.gmra.mrb[0].mxu0 %v542
      %v766 = vpop.f32.mrb[0].mxu0
      %v767 = vadd.f32 0.0, %v766
      %v768 = vpop.f32.mrb[0].mxu0
      %v769 = vpop.f32.mrb[0].mxu0
      %v770 = vadd.f32 0.0, %v769
      %v771 = vpop.f32.mrb[0].mxu0
      %772 = vmatprep.mubr.bf16.mxu0 %v545
      %773 = vmatmul.mubr.bf16.gmra.mrb[0].mxu0 %v544
      %v774 = vpop.f32.mrb[0].mxu0
      %v775 = vadd.f32 0.0, %v774
      %v776 = vpop.f32.mrb[0].mxu0
      %v777 = vpop.f32.mrb[0].mxu0
      %v778 = vadd.f32 0.0, %v777
      %v779 = vpop.f32.mrb[0].mxu0
      %780 = vmatprep.mubr.bf16.mxu0 %v547
      %781 = vmatmul.mubr.bf16.gmra.mrb[0].mxu0 %v546
      %v782 = vpop.f32.mrb[0].mxu0
      %v783 = vadd.f32 0.0, %v782
      %v784 = vpop.f32.mrb[0].mxu0
      %v785 = vpop.f32.mrb[0].mxu0
      %v786 = vadd.f32 0.0, %v785
      %v787 = vpop.f32.mrb[0].mxu0
      %788 = vmatprep.mubr.bf16.mxu0 %v549
      %789 = vmatmul.mubr.bf16.gmra.mrb[0].mxu0 %v548
      %v790 = vpop.f32.mrb[0].mxu0
      %v791 = vadd.f32 0.0, %v790
      %v792 = vpop.f32.mrb[0].mxu0
      %v793 = vpop.f32.mrb[0].mxu0
      %v794 = vadd.f32 0.0, %v793
      %v795 = vpop.f32.mrb[0].mxu0
      %796 = vmatprep.mubr.bf16.mxu0 %v551
      %797 = vmatmul.mubr.bf16.gmra.mrb[0].mxu0 %v550
      %v798 = vpop.f32.mrb[0].mxu0
      %v799 = vadd.f32 0.0, %v798
      %v800 = vpop.f32.mrb[0].mxu0
      %v801 = vpop.f32.mrb[0].mxu0
      %v802 = vadd.f32 0.0, %v801
      %v803 = vpop.f32.mrb[0].mxu0
      %804 = vmatprep.mubr.bf16.mxu0 %v553
      %805 = vmatmul.mubr.bf16.gmra.mrb[0].mxu0 %v552
      %v806 = vpop.f32.mrb[0].mxu0
      %v807 = vadd.f32 0.0, %v806
      %v808 = vpop.f32.mrb[0].mxu0
      %v809 = vpop.f32.mrb[0].mxu0
      %v810 = vadd.f32 0.0, %v809
      %v811 = vpop.f32.mrb[0].mxu0
      %812 = vmatprep.mubr.bf16.mxu0 %v555
      %813 = vmatmul.mubr.bf16.gmra.mrb[0].mxu0 %v554
      %v814 = vpop.f32.mrb[0].mxu0
      %v815 = vadd.f32 0.0, %v814
      %v816 = vpop.f32.mrb[0].mxu0
      %v817 = vpop.f32.mrb[0].mxu0
      %v818 = vadd.f32 0.0, %v817
      %v819 = vpop.f32.mrb[0].mxu0
      %820 = vmatprep.mubr.bf16.mxu0 %v557
      %821 = vmatmul.mubr.bf16.gmra.mrb[0].mxu0 %v556
      %v822 = vpop.f32.mrb[0].mxu0
      %v823 = vadd.f32 0.0, %v822
      %v824 = vpop.f32.mrb[0].mxu0
      %v825 = vpop.f32.mrb[0].mxu0
      %v826 = vadd.f32 0.0, %v825
      %v827 = vpop.f32.mrb[0].mxu0
      %828 = vmatprep.mubr.bf16.mxu0 %v559
      %829 = vmatmul.mubr.bf16.gmra.mrb[0].mxu0 %v558
      %v830 = vpop.f32.mrb[0].mxu0
      %v831 = vadd.f32 0.0, %v830
      %v832 = vpop.f32.mrb[0].mxu0
      %v833 = vpop.f32.mrb[0].mxu0
      %v834 = vadd.f32 0.0, %v833
      %v835 = vpop.f32.mrb[0].mxu0
      %836 = vmatprep.mubr.bf16.mxu0 %v561
      %837 = vmatmul.mubr.bf16.gmra.mrb[0].mxu0 %v560
      %v838 = vpop.f32.mrb[0].mxu0
      %v839 = vadd.f32 0.0, %v838
      %v840 = vpop.f32.mrb[0].mxu0
      %v841 = vpop.f32.mrb[0].mxu0
      %v842 = vadd.f32 0.0, %v841
      %v843 = vpop.f32.mrb[0].mxu0
      %844 = vmatprep.mubr.bf16.mxu0 %v563
      %845 = vmatmul.mubr.bf16.gmra.mrb[0].mxu0 %v562
      %v846 = vpop.f32.mrb[0].mxu0
      %v847 = vadd.f32 0.0, %v846
      %v848 = vpop.f32.mrb[0].mxu0
      %v849 = vpop.f32.mrb[0].mxu0
      %v850 = vadd.f32 0.0, %v849
      %v851 = vpop.f32.mrb[0].mxu0
      %852 = vdwg.mxu0
      %v853 = vadd.f32 %v340, %v727
      %v854 = vadd.f32 %v341, %v730
      %v855 = vadd.f32 %v342, %v735
      %v856 = vadd.f32 %v343, %v738
      %v857 = vadd.f32 %v344, %v743
      %v858 = vadd.f32 %v345, %v746
      %v859 = vadd.f32 %v346, %v751
      %v860 = vadd.f32 %v347, %v754
      %v861 = vadd.f32 %v348, %v759
      %v862 = vadd.f32 %v349, %v762
      %v863 = vadd.f32 %v350, %v767
      %v864 = vadd.f32 %v351, %v770
      %v865 = vadd.f32 %v352, %v775
      %v866 = vadd.f32 %v353, %v778
      %v867 = vadd.f32 %v354, %v783
      %v868 = vadd.f32 %v355, %v786
      %v869 = vadd.f32 %v356, %v791
      %v870 = vadd.f32 %v357, %v794
      %v871 = vadd.f32 %v358, %v799
      %v872 = vadd.f32 %v359, %v802
      %v873 = vadd.f32 %v360, %v807
      %v874 = vadd.f32 %v361, %v810
      %v875 = vadd.f32 %v362, %v815
      %v876 = vadd.f32 %v363, %v818
      %v877 = vadd.f32 %v364, %v823
      %v878 = vadd.f32 %v365, %v826
      %v879 = vadd.f32 %v366, %v831
      %v880 = vadd.f32 %v367, %v834
      %v881 = vadd.f32 %v368, %v839
      %v882 = vadd.f32 %v369, %v842
      %v883 = vadd.f32 %v370, %v847
      %v884 = vadd.f32 %v371, %v850
      %885 = vst [vmem:[#allocation2] sm:$0xff] %v853
      %886 = vst [vmem:[#allocation2 + $0x8] sm:$0xff] %v854
      %887 = vst [vmem:[#allocation2 + $0x10] sm:$0xff] %v855
      %888 = vst [vmem:[#allocation2 + $0x18] sm:$0xff] %v856
      %889 = vst [vmem:[#allocation2 + $0x20] sm:$0xff] %v857
      %890 = vst [vmem:[#allocation2 + $0x28] sm:$0xff] %v858
      %891 = vst [vmem:[#allocation2 + $0x30] sm:$0xff] %v859
      %892 = vst [vmem:[#allocation2 + $0x38] sm:$0xff] %v860
      %893 = vst [vmem:[#allocation2 + $0x40] sm:$0xff] %v861
      %894 = vst [vmem:[#allocation2 + $0x48] sm:$0xff] %v862
      %895 = vst [vmem:[#allocation2 + $0x50] sm:$0xff] %v863
      %896 = vst [vmem:[#allocation2 + $0x58] sm:$0xff] %v864
      %897 = vst [vmem:[#allocation2 + $0x60] sm:$0xff] %v865
      %898 = vst [vmem:[#allocation2 + $0x68] sm:$0xff] %v866
      %899 = vst [vmem:[#allocation2 + $0x70] sm:$0xff] %v867
      %900 = vst [vmem:[#allocation2 + $0x78] sm:$0xff] %v868
      %901 = vst [vmem:[#allocation2 + $0x80] sm:$0xff] %v869
      %902 = vst [vmem:[#allocation2 + $0x88] sm:$0xff] %v870
      %903 = vst [vmem:[#allocation2 + $0x90] sm:$0xff] %v871
      %904 = vst [vmem:[#allocation2 + $0x98] sm:$0xff] %v872
      %905 = vst [vmem:[#allocation2 + $0xa0] sm:$0xff] %v873
      %906 = vst [vmem:[#allocation2 + $0xa8] sm:$0xff] %v874
      %907 = vst [vmem:[#allocation2 + $0xb0] sm:$0xff] %v875
      %908 = vst [vmem:[#allocation2 + $0xb8] sm:$0xff] %v876
      %909 = vst [vmem:[#allocation2 + $0xc0] sm:$0xff] %v877
      %910 = vst [vmem:[#allocation2 + $0xc8] sm:$0xff] %v878
      %911 = vst [vmem:[#allocation2 + $0xd0] sm:$0xff] %v879
      %912 = vst [vmem:[#allocation2 + $0xd8] sm:$0xff] %v880
      %913 = vst [vmem:[#allocation2 + $0xe0] sm:$0xff] %v881
      %914 = vst [vmem:[#allocation2 + $0xe8] sm:$0xff] %v882
      %915 = vst [vmem:[#allocation2 + $0xf0] sm:$0xff] %v883
      %916 = vst [vmem:[#allocation2 + $0xf8] sm:$0xff] %v884
      // Predicated region
      $region45: #{haframe_wrn_forward.12} parent=39 // pred_check
        %p917 = pneg %p304
      $region46: #{haframe_wrn_forward.12} parent=39 // pred_check_branch
        %919 = sbr.rel (%p917) target = $region48
      $region47: #{haframe_wrn_forward.12} parent=39 // pred_region
        %v920 = vld [vmem:[#allocation2] sm:$0xff]
        %v921 = vld [vmem:[#allocation2 + $0x8] sm:$0xff]
        %v922 = vld [vmem:[#allocation2 + $0x10] sm:$0xff]
        %v923 = vld [vmem:[#allocation2 + $0x18] sm:$0xff]
        %v924 = vld [vmem:[#allocation2 + $0x20] sm:$0xff]
        %v925 = vld [vmem:[#allocation2 + $0x28] sm:$0xff]
        %v926 = vld [vmem:[#allocation2 + $0x30] sm:$0xff]
        %v927 = vld [vmem:[#allocation2 + $0x38] sm:$0xff]
        %v928 = vld [vmem:[#allocation2 + $0x40] sm:$0xff]
        %v929 = vld [vmem:[#allocation2 + $0x48] sm:$0xff]
        %v930 = vld [vmem:[#allocation2 + $0x50] sm:$0xff]
        %v931 = vld [vmem:[#allocation2 + $0x58] sm:$0xff]
        %v932 = vld [vmem:[#allocation2 + $0x60] sm:$0xff]
        %v933 = vld [vmem:[#allocation2 + $0x68] sm:$0xff]
        %v934 = vld [vmem:[#allocation2 + $0x70] sm:$0xff]
        %v935 = vld [vmem:[#allocation2 + $0x78] sm:$0xff]
        %v936 = vld [vmem:[#allocation2 + $0x80] sm:$0xff]
        %v937 = vld [vmem:[#allocation2 + $0x88] sm:$0xff]
        %v938 = vld [vmem:[#allocation2 + $0x90] sm:$0xff]
        %v939 = vld [vmem:[#allocation2 + $0x98] sm:$0xff]
        %v940 = vld [vmem:[#allocation2 + $0xa0] sm:$0xff]
        %v941 = vld [vmem:[#allocation2 + $0xa8] sm:$0xff]
        %v942 = vld [vmem:[#allocation2 + $0xb0] sm:$0xff]
        %v943 = vld [vmem:[#allocation2 + $0xb8] sm:$0xff]
        %v944 = vld [vmem:[#allocation2 + $0xc0] sm:$0xff]
        %v945 = vld [vmem:[#allocation2 + $0xc8] sm:$0xff]
        %v946 = vld [vmem:[#allocation2 + $0xd0] sm:$0xff]
        %v947 = vld [vmem:[#allocation2 + $0xd8] sm:$0xff]
        %v948 = vld [vmem:[#allocation2 + $0xe0] sm:$0xff]
        %v949 = vld [vmem:[#allocation2 + $0xe8] sm:$0xff]
        %v950 = vld [vmem:[#allocation2 + $0xf0] sm:$0xff]
        %v951 = vld [vmem:[#allocation2 + $0xf8] sm:$0xff]
        %v952 = vld [vmem:[%s295] sm:$0xff]
        %v953 = vld [vmem:[%s295 + $0x8] sm:$0xff]
        %v954 = vld [vmem:[%s295 + $0x10] sm:$0xff]
        %v955 = vld [vmem:[%s295 + $0x18] sm:$0xff]
        %v956 = vld [vmem:[%s295 + $0x20] sm:$0xff]
        %v957 = vld [vmem:[%s295 + $0x28] sm:$0xff]
        %v958 = vld [vmem:[%s295 + $0x30] sm:$0xff]
        %v959 = vld [vmem:[%s295 + $0x38] sm:$0xff]
        %v960 = vld [vmem:[%s295 + $0x40] sm:$0xff]
        %v961 = vld [vmem:[%s295 + $0x48] sm:$0xff]
        %v962 = vld [vmem:[%s295 + $0x50] sm:$0xff]
        %v963 = vld [vmem:[%s295 + $0x58] sm:$0xff]
        %v964 = vld [vmem:[%s295 + $0x60] sm:$0xff]
        %v965 = vld [vmem:[%s295 + $0x68] sm:$0xff]
        %v966 = vld [vmem:[%s295 + $0x70] sm:$0xff]
        %v967 = vld [vmem:[%s295 + $0x78] sm:$0xff]
        %v968 = vld [vmem:[%s295 + $0x80] sm:$0xff]
        %v969 = vld [vmem:[%s295 + $0x88] sm:$0xff]
        %v970 = vld [vmem:[%s295 + $0x90] sm:$0xff]
        %v971 = vld [vmem:[%s295 + $0x98] sm:$0xff]
        %v972 = vld [vmem:[%s295 + $0xa0] sm:$0xff]
        %v973 = vld [vmem:[%s295 + $0xa8] sm:$0xff]
        %v974 = vld [vmem:[%s295 + $0xb0] sm:$0xff]
        %v975 = vld [vmem:[%s295 + $0xb8] sm:$0xff]
        %v976 = vld [vmem:[%s295 + $0xc0] sm:$0xff]
        %v977 = vld [vmem:[%s295 + $0xc8] sm:$0xff]
        %v978 = vld [vmem:[%s295 + $0xd0] sm:$0xff]
        %v979 = vld [vmem:[%s295 + $0xd8] sm:$0xff]
        %v980 = vld [vmem:[%s295 + $0xe0] sm:$0xff]
        %v981 = vld [vmem:[%s295 + $0xe8] sm:$0xff]
        %v982 = vld [vmem:[%s295 + $0xf0] sm:$0xff]
        %v983 = vld [vmem:[%s295 + $0xf8] sm:$0xff]
        %v984 = vadd.f32 %v920, %v952
        %v985 = vadd.f32 %v921, %v953
        %v986 = vadd.f32 %v922, %v954
        %v987 = vadd.f32 %v923, %v955
        %v988 = vadd.f32 %v924, %v956
        %v989 = vadd.f32 %v925, %v957
        %v990 = vadd.f32 %v926, %v958
        %v991 = vadd.f32 %v927, %v959
        %v992 = vadd.f32 %v928, %v960
        %v993 = vadd.f32 %v929, %v961
        %v994 = vadd.f32 %v930, %v962
        %v995 = vadd.f32 %v931, %v963
        %v996 = vadd.f32 %v932, %v964
        %v997 = vadd.f32 %v933, %v965
        %v998 = vadd.f32 %v934, %v966
        %v999 = vadd.f32 %v935, %v967
        %v1000 = vadd.f32 %v936, %v968
        %v1001 = vadd.f32 %v937, %v969
        %v1002 = vadd.f32 %v938, %v970
        %v1003 = vadd.f32 %v939, %v971
        %v1004 = vadd.f32 %v940, %v972
        %v1005 = vadd.f32 %v941, %v973
        %v1006 = vadd.f32 %v942, %v974
        %v1007 = vadd.f32 %v943, %v975
        %v1008 = vadd.f32 %v944, %v976
        %v1009 = vadd.f32 %v945, %v977
        %v1010 = vadd.f32 %v946, %v978
        %v1011 = vadd.f32 %v947, %v979
        %v1012 = vadd.f32 %v948, %v980
        %v1013 = vadd.f32 %v949, %v981
        %v1014 = vadd.f32 %v950, %v982
        %v1015 = vadd.f32 %v951, %v983
        %v1016 = vld [vmem:[%s2] sm:$0x1]
        %v1018 = vlaneseq
        %v1019 = vshrl.u32 %v1018, 7
        %v1020 = vsub.s32 0, %v1019
        %v1021 = vrot.slane %v1016, %v1020
        %v1023 = vmul.f32 %v984, %v1021
        %v1024 = vmul.f32 %v985, %v1021
        %v1025 = vmul.f32 %v986, %v1021
        %v1026 = vmul.f32 %v987, %v1021
        %v1027 = vmul.f32 %v988, %v1021
        %v1028 = vmul.f32 %v989, %v1021
        %v1029 = vmul.f32 %v990, %v1021
        %v1030 = vmul.f32 %v991, %v1021
        %v1031 = vmul.f32 %v992, %v1021
        %v1032 = vmul.f32 %v993, %v1021
        %v1033 = vmul.f32 %v994, %v1021
        %v1034 = vmul.f32 %v995, %v1021
        %v1035 = vmul.f32 %v996, %v1021
        %v1036 = vmul.f32 %v997, %v1021
        %v1037 = vmul.f32 %v998, %v1021
        %v1038 = vmul.f32 %v999, %v1021
        %v1039 = vmul.f32 %v1000, %v1021
        %v1040 = vmul.f32 %v1001, %v1021
        %v1041 = vmul.f32 %v1002, %v1021
        %v1042 = vmul.f32 %v1003, %v1021
        %v1043 = vmul.f32 %v1004, %v1021
        %v1044 = vmul.f32 %v1005, %v1021
        %v1045 = vmul.f32 %v1006, %v1021
        %v1046 = vmul.f32 %v1007, %v1021
        %v1047 = vmul.f32 %v1008, %v1021
        %v1048 = vmul.f32 %v1009, %v1021
        %v1049 = vmul.f32 %v1010, %v1021
        %v1050 = vmul.f32 %v1011, %v1021
        %v1051 = vmul.f32 %v1012, %v1021
        %v1052 = vmul.f32 %v1013, %v1021
        %v1053 = vmul.f32 %v1014, %v1021
        %v1054 = vmul.f32 %v1015, %v1021
        %v1055 = vld [vmem:[%s3] sm:$0x1]
        %v1057 = vlaneseq
        %v1058 = vshrl.u32 %v1057, 7
        %v1059 = vsub.s32 0, %v1058
        %v1060 = vrot.slane %v1055, %v1059
        %v1062 = vadd.f32 %v1023, %v1060
        %v1063 = vadd.f32 %v1024, %v1060
        %v1064 = vadd.f32 %v1025, %v1060
        %v1065 = vadd.f32 %v1026, %v1060
        %v1066 = vadd.f32 %v1027, %v1060
        %v1067 = vadd.f32 %v1028, %v1060
        %v1068 = vadd.f32 %v1029, %v1060
        %v1069 = vadd.f32 %v1030, %v1060
        %v1070 = vadd.f32 %v1031, %v1060
        %v1071 = vadd.f32 %v1032, %v1060
        %v1072 = vadd.f32 %v1033, %v1060
        %v1073 = vadd.f32 %v1034, %v1060
        %v1074 = vadd.f32 %v1035, %v1060
        %v1075 = vadd.f32 %v1036, %v1060
        %v1076 = vadd.f32 %v1037, %v1060
        %v1077 = vadd.f32 %v1038, %v1060
        %v1078 = vadd.f32 %v1039, %v1060
        %v1079 = vadd.f32 %v1040, %v1060
        %v1080 = vadd.f32 %v1041, %v1060
        %v1081 = vadd.f32 %v1042, %v1060
        %v1082 = vadd.f32 %v1043, %v1060
        %v1083 = vadd.f32 %v1044, %v1060
        %v1084 = vadd.f32 %v1045, %v1060
        %v1085 = vadd.f32 %v1046, %v1060
        %v1086 = vadd.f32 %v1047, %v1060
        %v1087 = vadd.f32 %v1048, %v1060
        %v1088 = vadd.f32 %v1049, %v1060
        %v1089 = vadd.f32 %v1050, %v1060
        %v1090 = vadd.f32 %v1051, %v1060
        %v1091 = vadd.f32 %v1052, %v1060
        %v1092 = vadd.f32 %v1053, %v1060
        %v1093 = vadd.f32 %v1054, %v1060
        %v1094 = vmax.f32 %v1062, 0.0
        %v1095 = vmax.f32 %v1063, 0.0
        %v1096 = vmax.f32 %v1064, 0.0
        %v1097 = vmax.f32 %v1065, 0.0
        %v1098 = vmax.f32 %v1066, 0.0
        %v1099 = vmax.f32 %v1067, 0.0
        %v1100 = vmax.f32 %v1068, 0.0
        %v1101 = vmax.f32 %v1069, 0.0
        %v1102 = vmax.f32 %v1070, 0.0
        %v1103 = vmax.f32 %v1071, 0.0
        %v1104 = vmax.f32 %v1072, 0.0
        %v1105 = vmax.f32 %v1073, 0.0
        %v1106 = vmax.f32 %v1074, 0.0
        %v1107 = vmax.f32 %v1075, 0.0
        %v1108 = vmax.f32 %v1076, 0.0
        %v1109 = vmax.f32 %v1077, 0.0
        %v1110 = vmax.f32 %v1078, 0.0
        %v1111 = vmax.f32 %v1079, 0.0
        %v1112 = vmax.f32 %v1080, 0.0
        %v1113 = vmax.f32 %v1081, 0.0
        %v1114 = vmax.f32 %v1082, 0.0
        %v1115 = vmax.f32 %v1083, 0.0
        %v1116 = vmax.f32 %v1084, 0.0
        %v1117 = vmax.f32 %v1085, 0.0
        %v1118 = vmax.f32 %v1086, 0.0
        %v1119 = vmax.f32 %v1087, 0.0
        %v1120 = vmax.f32 %v1088, 0.0
        %v1121 = vmax.f32 %v1089, 0.0
        %v1122 = vmax.f32 %v1090, 0.0
        %v1123 = vmax.f32 %v1091, 0.0
        %v1124 = vmax.f32 %v1092, 0.0
        %v1125 = vmax.f32 %v1093, 0.0
        %v1126 = vpack.c.bf16 %v1095, %v1094
        %v1127 = vpack.c.bf16 %v1097, %v1096
        %v1128 = vpack.c.bf16 %v1099, %v1098
        %v1129 = vpack.c.bf16 %v1101, %v1100
        %v1130 = vpack.c.bf16 %v1103, %v1102
        %v1131 = vpack.c.bf16 %v1105, %v1104
        %v1132 = vpack.c.bf16 %v1107, %v1106
        %v1133 = vpack.c.bf16 %v1109, %v1108
        %v1134 = vpack.c.bf16 %v1111, %v1110
        %v1135 = vpack.c.bf16 %v1113, %v1112
        %v1136 = vpack.c.bf16 %v1115, %v1114
        %v1137 = vpack.c.bf16 %v1117, %v1116
        %v1138 = vpack.c.bf16 %v1119, %v1118
        %v1139 = vpack.c.bf16 %v1121, %v1120
        %v1140 = vpack.c.bf16 %v1123, %v1122
        %v1141 = vpack.c.bf16 %v1125, %v1124
        %v1158 = vunpack.c.l.b16 %v1126
        %v1159 = vunpack.c.h.b16 %v1126
        %v1160 = vunpack.c.l.b16 %v1127
        %v1161 = vunpack.c.h.b16 %v1127
        %v1162 = vunpack.c.l.b16 %v1128
        %v1163 = vunpack.c.h.b16 %v1128
        %v1164 = vunpack.c.l.b16 %v1129
        %v1165 = vunpack.c.h.b16 %v1129
        %v1166 = vunpack.c.l.b16 %v1130
        %v1167 = vunpack.c.h.b16 %v1130
        %v1168 = vunpack.c.l.b16 %v1131
        %v1169 = vunpack.c.h.b16 %v1131
        %v1170 = vunpack.c.l.b16 %v1132
        %v1171 = vunpack.c.h.b16 %v1132
        %v1172 = vunpack.c.l.b16 %v1133
        %v1173 = vunpack.c.h.b16 %v1133
        %v1174 = vunpack.c.l.b16 %v1134
        %v1175 = vunpack.c.h.b16 %v1134
        %v1176 = vunpack.c.l.b16 %v1135
        %v1177 = vunpack.c.h.b16 %v1135
        %v1178 = vunpack.c.l.b16 %v1136
        %v1179 = vunpack.c.h.b16 %v1136
        %v1180 = vunpack.c.l.b16 %v1137
        %v1181 = vunpack.c.h.b16 %v1137
        %v1182 = vunpack.c.l.b16 %v1138
        %v1183 = vunpack.c.h.b16 %v1138
        %v1184 = vunpack.c.l.b16 %v1139
        %v1185 = vunpack.c.h.b16 %v1139
        %v1186 = vunpack.c.l.b16 %v1140
        %v1187 = vunpack.c.h.b16 %v1140
        %v1188 = vunpack.c.l.b16 %v1141
        %v1189 = vunpack.c.h.b16 %v1141
        %v1190 = vpack.c.b16 %v1158, %v1158
        %v1191 = vpack.c.b16 %v1159, %v1159
        %v1192 = vpack.c.b16 %v1160, %v1160
        %v1193 = vpack.c.b16 %v1161, %v1161
        %v1194 = vpack.c.b16 %v1162, %v1162
        %v1195 = vpack.c.b16 %v1163, %v1163
        %v1196 = vpack.c.b16 %v1164, %v1164
        %v1197 = vpack.c.b16 %v1165, %v1165
        %v1198 = vpack.c.b16 %v1166, %v1166
        %v1199 = vpack.c.b16 %v1167, %v1167
        %v1200 = vpack.c.b16 %v1168, %v1168
        %v1201 = vpack.c.b16 %v1169, %v1169
        %v1202 = vpack.c.b16 %v1170, %v1170
        %v1203 = vpack.c.b16 %v1171, %v1171
        %v1204 = vpack.c.b16 %v1172, %v1172
        %v1205 = vpack.c.b16 %v1173, %v1173
        %v1206 = vpack.c.b16 %v1174, %v1174
        %v1207 = vpack.c.b16 %v1175, %v1175
        %v1208 = vpack.c.b16 %v1176, %v1176
        %v1209 = vpack.c.b16 %v1177, %v1177
        %v1210 = vpack.c.b16 %v1178, %v1178
        %v1211 = vpack.c.b16 %v1179, %v1179
        %v1212 = vpack.c.b16 %v1180, %v1180
        %v1213 = vpack.c.b16 %v1181, %v1181
        %v1214 = vpack.c.b16 %v1182, %v1182
        %v1215 = vpack.c.b16 %v1183, %v1183
        %v1216 = vpack.c.b16 %v1184, %v1184
        %v1217 = vpack.c.b16 %v1185, %v1185
        %v1218 = vpack.c.b16 %v1186, %v1186
        %v1219 = vpack.c.b16 %v1187, %v1187
        %v1220 = vpack.c.b16 %v1188, %v1188
        %v1221 = vpack.c.b16 %v1189, %v1189
        %1254 = vst [vmem:[%s301] sm:$0xf] %v1190
        %1255 = vst [vmem:[%s301 + $0x4] sm:$0xf] %v1191
        %1256 = vst [vmem:[%s301 + $0x8] sm:$0xf] %v1192
        %1257 = vst [vmem:[%s301 + $0xc] sm:$0xf] %v1193
        %1258 = vst [vmem:[%s301 + $0x10] sm:$0xf] %v1194
        %1259 = vst [vmem:[%s301 + $0x14] sm:$0xf] %v1195
        %1260 = vst [vmem:[%s301 + $0x18] sm:$0xf] %v1196
        %1261 = vst [vmem:[%s301 + $0x1c] sm:$0xf] %v1197
        %1262 = vst [vmem:[%s301 + $0x20] sm:$0xf] %v1198
        %1263 = vst [vmem:[%s301 + $0x24] sm:$0xf] %v1199
        %1264 = vst [vmem:[%s301 + $0x28] sm:$0xf] %v1200
        %1265 = vst [vmem:[%s301 + $0x2c] sm:$0xf] %v1201
        %1266 = vst [vmem:[%s301 + $0x30] sm:$0xf] %v1202
        %1267 = vst [vmem:[%s301 + $0x34] sm:$0xf] %v1203
        %1268 = vst [vmem:[%s301 + $0x38] sm:$0xf] %v1204
        %1269 = vst [vmem:[%s301 + $0x3c] sm:$0xf] %v1205
        %1270 = vst [vmem:[%s301 + $0x40] sm:$0xf] %v1206
        %1271 = vst [vmem:[%s301 + $0x44] sm:$0xf] %v1207
        %1272 = vst [vmem:[%s301 + $0x48] sm:$0xf] %v1208
        %1273 = vst [vmem:[%s301 + $0x4c] sm:$0xf] %v1209
        %1274 = vst [vmem:[%s301 + $0x50] sm:$0xf] %v1210
        %1275 = vst [vmem:[%s301 + $0x54] sm:$0xf] %v1211
        %1276 = vst [vmem:[%s301 + $0x58] sm:$0xf] %v1212
        %1277 = vst [vmem:[%s301 + $0x5c] sm:$0xf] %v1213
        %1278 = vst [vmem:[%s301 + $0x60] sm:$0xf] %v1214
        %1279 = vst [vmem:[%s301 + $0x64] sm:$0xf] %v1215
        %1280 = vst [vmem:[%s301 + $0x68] sm:$0xf] %v1216
        %1281 = vst [vmem:[%s301 + $0x6c] sm:$0xf] %v1217
        %1282 = vst [vmem:[%s301 + $0x70] sm:$0xf] %v1218
        %1283 = vst [vmem:[%s301 + $0x74] sm:$0xf] %v1219
        %1284 = vst [vmem:[%s301 + $0x78] sm:$0xf] %v1220
        %1285 = vst [vmem:[%s301 + $0x7c] sm:$0xf] %v1221
      $region48: #{haframe_wrn_forward.12} parent=39 // pred_fallthru
        _
      %s1286 = smul.u32 32, %s20
      %p1287 = scmp.lt.s32.totalorder %s1286, 63
      %s1288 = scalar_select %p1287, %s1286, 63
      %s1289 = smul.addr %s1288, 4
      %s1290 = scalar_lea.vmem %s5, %s1289
      // Predicated region
      $region49: #{haframe_wrn_forward.12} parent=39 // pred_check
        %p1291 = pneg %p168
      $region50: #{haframe_wrn_forward.12} parent=39 // pred_check_branch
        %1293 = sbr.rel (%p1291) target = $region52
      $region51: #{haframe_wrn_forward.12} parent=39 // pred_region
        %s1294 = smul.u32 32, %s20
      $region52: #{haframe_wrn_forward.12} parent=39 // pred_fallthru
        _
    $region40: #{haframe_wrn_forward.12} parent=5 // pred_fallthru
      _
    %p1295 = scmp.le.s32.totalorder 2, %s11
    // Predicated region
    $region53: #{haframe_wrn_forward.12} parent=5 // pred_check
      %p1296 = pneg %p1295
    $region54: #{haframe_wrn_forward.12} parent=5 // pred_check_branch
      %1298 = sbr.rel (%p1296) target = $region56
    $region55: #{haframe_wrn_forward.12} parent=5 // pred_region
      %s1299 = ssub.s32 %s11, 2
      // Predicated region
      $region57: #{haframe_wrn_forward.12} parent=55 // pred_check
        %p1300 = pneg %p174
      $region58: #{haframe_wrn_forward.12} parent=55 // pred_check_branch
        %1302 = sbr.rel (%p1300) target = $region60
      $region59: #{haframe_wrn_forward.12} parent=55 // pred_region
        %s1303 = smul.u32 32, %s22
        %p1304 = scmp.lt.s32.totalorder %s1303, 63
        %s1305 = scalar_select %p1304, %s1303, 63
        %s1306 = smul.addr %s1305, 4
        %s1307 = scalar_lea.vmem %s5, %s1306
      $region60: #{haframe_wrn_forward.12} parent=55 // pred_fallthru
        _
    $region56: #{haframe_wrn_forward.12} parent=5 // pred_fallthru
      _
  $region6: #{haframe_wrn_forward.12} parent=0 // loop_footer
    %s15 = sadd.s32 1, %s11
  $region7: #{haframe_wrn_forward.12} parent=0 // loop_footer_branch
    %10 = sbr.rel target = $region3
  $region8: #{haframe_wrn_forward.12} parent=0 // loop_exit
    _

// kernel: haframe_wrn_forward.14
$region0: #{haframe_wrn_forward.14}
  #allocation0 [shape = 'u32[]', space=smem, size = 0x4, offset = 0x4, fixed_abs, tag = 'smem constant byte address 0x4 - core index']
  #allocation1 [shape = 'u32[144,128]{1,0:T(1,128)}', space=vmem, size = 0x12000, scoped, tag = 'internal scratch']
  #allocation2 [shape = 'f32[128,128]{1,0:T(8,128)}', space=vmem, size = 0x10000, scoped, tag = 'scratch operand']
  %s0 = inlined_call_operand.vmem [shape: bf16[128,256], index: 0, kind: input, shape index: {}]
  %s1 = inlined_call_operand.vmem [shape: bf16[256,128], index: 1, kind: input, shape index: {}]
  %s2 = inlined_call_operand.vmem [shape: f32[1,128], index: 2, kind: input, shape index: {}]
  %s3 = inlined_call_operand.vmem [shape: f32[1,128], index: 3, kind: input, shape index: {}]
  %s4 = inlined_call_operand.vmem [shape: bf16[128,128], index: 4, kind: output, shape index: {}]
  %s5 = sld [smem:[#allocation0]]
  $region34: #{haframe_wrn_forward.14} parent=0
    _
  %s7 = ssub.s32 1, %s5
  %s8 = scalar_select 0, %s7, %s5
  // Predicated region
  $region2: #{haframe_wrn_forward.14} parent=0 // pred_check
    _
  $region3: #{haframe_wrn_forward.14} parent=0 // pred_check_branch
    %10 = sbr.rel (0) target = $region5
  $region4: #{haframe_wrn_forward.14} parent=0 // pred_region
    _
  $region5: #{haframe_wrn_forward.14} parent=0 // pred_fallthru
    _
  // Predicated region
  $region6: #{haframe_wrn_forward.14} parent=0 // pred_check
    _
  $region7: #{haframe_wrn_forward.14} parent=0 // pred_check_branch
    %12 = sbr.rel (0) target = $region9
  $region8: #{haframe_wrn_forward.14} parent=0 // pred_region
    _
  $region9: #{haframe_wrn_forward.14} parent=0 // pred_fallthru
    _
  // Predicated region
  $region10: #{haframe_wrn_forward.14} parent=0 // pred_check
    _
  $region11: #{haframe_wrn_forward.14} parent=0 // pred_check_branch
    %14 = sbr.rel (0) target = $region13
  $region12: #{haframe_wrn_forward.14} parent=0 // pred_region
    _
  $region13: #{haframe_wrn_forward.14} parent=0 // pred_fallthru
    _
  // Predicated region
  $region14: #{haframe_wrn_forward.14} parent=0 // pred_check
    _
  $region15: #{haframe_wrn_forward.14} parent=0 // pred_check_branch
    %16 = sbr.rel (0) target = $region17
  $region16: #{haframe_wrn_forward.14} parent=0 // pred_region
    _
  $region17: #{haframe_wrn_forward.14} parent=0 // pred_fallthru
    _
  %p18 = scmp.eq.s32.totalorder 0, 0
  // Predicated region
  $region18: #{haframe_wrn_forward.14} parent=0 // pred_check
    %p19 = pneg %p18
  $region19: #{haframe_wrn_forward.14} parent=0 // pred_check_branch
    %21 = sbr.rel (%p19) target = $region21
  $region20: #{haframe_wrn_forward.14} parent=0 // pred_region
    %22 = vst [vmem:[#allocation2] sm:$0xff] 0.0
    %23 = vst [vmem:[#allocation2 + $0x8] sm:$0xff] 0.0
    %24 = vst [vmem:[#allocation2 + $0x10] sm:$0xff] 0.0
    %25 = vst [vmem:[#allocation2 + $0x18] sm:$0xff] 0.0
    %26 = vst [vmem:[#allocation2 + $0x20] sm:$0xff] 0.0
    %27 = vst [vmem:[#allocation2 + $0x28] sm:$0xff] 0.0
    %28 = vst [vmem:[#allocation2 + $0x30] sm:$0xff] 0.0
    %29 = vst [vmem:[#allocation2 + $0x38] sm:$0xff] 0.0
    %30 = vst [vmem:[#allocation2 + $0x40] sm:$0xff] 0.0
    %31 = vst [vmem:[#allocation2 + $0x48] sm:$0xff] 0.0
    %32 = vst [vmem:[#allocation2 + $0x50] sm:$0xff] 0.0
    %33 = vst [vmem:[#allocation2 + $0x58] sm:$0xff] 0.0
    %34 = vst [vmem:[#allocation2 + $0x60] sm:$0xff] 0.0
    %35 = vst [vmem:[#allocation2 + $0x68] sm:$0xff] 0.0
    %36 = vst [vmem:[#allocation2 + $0x70] sm:$0xff] 0.0
    %37 = vst [vmem:[#allocation2 + $0x78] sm:$0xff] 0.0
  $region21: #{haframe_wrn_forward.14} parent=0 // pred_fallthru
    _
  %v38 = vld [vmem:[#allocation2] sm:$0xff]
  %v39 = vld [vmem:[#allocation2 + $0x8] sm:$0xff]
  %v40 = vld [vmem:[#allocation2 + $0x10] sm:$0xff]
  %v41 = vld [vmem:[#allocation2 + $0x18] sm:$0xff]
  %v42 = vld [vmem:[#allocation2 + $0x20] sm:$0xff]
  %v43 = vld [vmem:[#allocation2 + $0x28] sm:$0xff]
  %v44 = vld [vmem:[#allocation2 + $0x30] sm:$0xff]
  %v45 = vld [vmem:[#allocation2 + $0x38] sm:$0xff]
  %v46 = vld [vmem:[#allocation2 + $0x40] sm:$0xff]
  %v47 = vld [vmem:[#allocation2 + $0x48] sm:$0xff]
  %v48 = vld [vmem:[#allocation2 + $0x50] sm:$0xff]
  %v49 = vld [vmem:[#allocation2 + $0x58] sm:$0xff]
  %v50 = vld [vmem:[#allocation2 + $0x60] sm:$0xff]
  %v51 = vld [vmem:[#allocation2 + $0x68] sm:$0xff]
  %v52 = vld [vmem:[#allocation2 + $0x70] sm:$0xff]
  %v53 = vld [vmem:[#allocation2 + $0x78] sm:$0xff]
  %v54 = vld [vmem:[%s0] sm:$0xff]
  %v55 = vld [vmem:[%s0 + $0x8] sm:$0xff]
  %v56 = vld [vmem:[%s0 + $0x10] sm:$0xff]
  %v57 = vld [vmem:[%s0 + $0x18] sm:$0xff]
  %v58 = vld [vmem:[%s0 + $0x20] sm:$0xff]
  %v59 = vld [vmem:[%s0 + $0x28] sm:$0xff]
  %v60 = vld [vmem:[%s0 + $0x30] sm:$0xff]
  %v61 = vld [vmem:[%s0 + $0x38] sm:$0xff]
  %v62 = vld [vmem:[%s0 + $0x40] sm:$0xff]
  %v63 = vld [vmem:[%s0 + $0x48] sm:$0xff]
  %v64 = vld [vmem:[%s0 + $0x50] sm:$0xff]
  %v65 = vld [vmem:[%s0 + $0x58] sm:$0xff]
  %v66 = vld [vmem:[%s0 + $0x60] sm:$0xff]
  %v67 = vld [vmem:[%s0 + $0x68] sm:$0xff]
  %v68 = vld [vmem:[%s0 + $0x70] sm:$0xff]
  %v69 = vld [vmem:[%s0 + $0x78] sm:$0xff]
  %v70 = vld [vmem:[%s1] sm:$0xf]
  %v71 = vld [vmem:[%s1 + $0x4] sm:$0xf]
  %v72 = vld [vmem:[%s1 + $0x8] sm:$0xf]
  %v73 = vld [vmem:[%s1 + $0xc] sm:$0xf]
  %v74 = vld [vmem:[%s1 + $0x10] sm:$0xf]
  %v75 = vld [vmem:[%s1 + $0x14] sm:$0xf]
  %v76 = vld [vmem:[%s1 + $0x18] sm:$0xf]
  %v77 = vld [vmem:[%s1 + $0x1c] sm:$0xf]
  %v78 = vld [vmem:[%s1 + $0x20] sm:$0xf]
  %v79 = vld [vmem:[%s1 + $0x24] sm:$0xf]
  %v80 = vld [vmem:[%s1 + $0x28] sm:$0xf]
  %v81 = vld [vmem:[%s1 + $0x2c] sm:$0xf]
  %v82 = vld [vmem:[%s1 + $0x30] sm:$0xf]
  %v83 = vld [vmem:[%s1 + $0x34] sm:$0xf]
  %v84 = vld [vmem:[%s1 + $0x38] sm:$0xf]
  %v85 = vld [vmem:[%s1 + $0x3c] sm:$0xf]
  %v86 = vld [vmem:[%s1 + $0x40] sm:$0xf]
  %v87 = vld [vmem:[%s1 + $0x44] sm:$0xf]
  %v88 = vld [vmem:[%s1 + $0x48] sm:$0xf]
  %v89 = vld [vmem:[%s1 + $0x4c] sm:$0xf]
  %v90 = vld [vmem:[%s1 + $0x50] sm:$0xf]
  %v91 = vld [vmem:[%s1 + $0x54] sm:$0xf]
  %v92 = vld [vmem:[%s1 + $0x58] sm:$0xf]
  %v93 = vld [vmem:[%s1 + $0x5c] sm:$0xf]
  %v94 = vld [vmem:[%s1 + $0x60] sm:$0xf]
  %v95 = vld [vmem:[%s1 + $0x64] sm:$0xf]
  %v96 = vld [vmem:[%s1 + $0x68] sm:$0xf]
  %v97 = vld [vmem:[%s1 + $0x6c] sm:$0xf]
  %v98 = vld [vmem:[%s1 + $0x70] sm:$0xf]
  %v99 = vld [vmem:[%s1 + $0x74] sm:$0xf]
  %v100 = vld [vmem:[%s1 + $0x78] sm:$0xf]
  %v101 = vld [vmem:[%s1 + $0x7c] sm:$0xf]
  %v118 = vunpack.c.l.b16 %v54
  %v119 = vunpack.c.h.b16 %v54
  %v120 = vunpack.c.l.b16 %v55
  %v121 = vunpack.c.h.b16 %v55
  %v122 = vunpack.c.l.b16 %v56
  %v123 = vunpack.c.h.b16 %v56
  %v124 = vunpack.c.l.b16 %v57
  %v125 = vunpack.c.h.b16 %v57
  %v126 = vunpack.c.l.b16 %v58
  %v127 = vunpack.c.h.b16 %v58
  %v128 = vunpack.c.l.b16 %v59
  %v129 = vunpack.c.h.b16 %v59
  %v130 = vunpack.c.l.b16 %v60
  %v131 = vunpack.c.h.b16 %v60
  %v132 = vunpack.c.l.b16 %v61
  %v133 = vunpack.c.h.b16 %v61
  %v134 = vunpack.c.l.b16 %v62
  %v135 = vunpack.c.h.b16 %v62
  %v136 = vunpack.c.l.b16 %v63
  %v137 = vunpack.c.h.b16 %v63
  %v138 = vunpack.c.l.b16 %v64
  %v139 = vunpack.c.h.b16 %v64
  %v140 = vunpack.c.l.b16 %v65
  %v141 = vunpack.c.h.b16 %v65
  %v142 = vunpack.c.l.b16 %v66
  %v143 = vunpack.c.h.b16 %v66
  %v144 = vunpack.c.l.b16 %v67
  %v145 = vunpack.c.h.b16 %v67
  %v146 = vunpack.c.l.b16 %v68
  %v147 = vunpack.c.h.b16 %v68
  %v148 = vunpack.c.l.b16 %v69
  %v149 = vunpack.c.h.b16 %v69
  %v150 = vpack.c.b16 %v120, %v118
  %v151 = vpack.c.b16 %v121, %v119
  %v152 = vpack.c.b16 %v124, %v122
  %v153 = vpack.c.b16 %v125, %v123
  %v154 = vpack.c.b16 %v128, %v126
  %v155 = vpack.c.b16 %v129, %v127
  %v156 = vpack.c.b16 %v132, %v130
  %v157 = vpack.c.b16 %v133, %v131
  %v158 = vpack.c.b16 %v136, %v134
  %v159 = vpack.c.b16 %v137, %v135
  %v160 = vpack.c.b16 %v140, %v138
  %v161 = vpack.c.b16 %v141, %v139
  %v162 = vpack.c.b16 %v144, %v142
  %v163 = vpack.c.b16 %v145, %v143
  %v164 = vpack.c.b16 %v148, %v146
  %v165 = vpack.c.b16 %v149, %v147
  %v214 = vunpack.c.l.b16 %v70
  %v215 = vunpack.c.l.b16 %v71
  %v216 = vunpack.c.l.b16 %v72
  %v217 = vunpack.c.l.b16 %v73
  %v218 = vunpack.c.l.b16 %v74
  %v219 = vunpack.c.l.b16 %v75
  %v220 = vunpack.c.l.b16 %v76
  %v221 = vunpack.c.l.b16 %v77
  %v222 = vunpack.c.l.b16 %v78
  %v223 = vunpack.c.l.b16 %v79
  %v224 = vunpack.c.l.b16 %v80
  %v225 = vunpack.c.l.b16 %v81
  %v226 = vunpack.c.l.b16 %v82
  %v227 = vunpack.c.l.b16 %v83
  %v228 = vunpack.c.l.b16 %v84
  %v229 = vunpack.c.l.b16 %v85
  %v230 = vunpack.c.l.b16 %v86
  %v231 = vunpack.c.l.b16 %v87
  %v232 = vunpack.c.l.b16 %v88
  %v233 = vunpack.c.l.b16 %v89
  %v234 = vunpack.c.l.b16 %v90
  %v235 = vunpack.c.l.b16 %v91
  %v236 = vunpack.c.l.b16 %v92
  %v237 = vunpack.c.l.b16 %v93
  %v238 = vunpack.c.l.b16 %v94
  %v239 = vunpack.c.l.b16 %v95
  %v240 = vunpack.c.l.b16 %v96
  %v241 = vunpack.c.l.b16 %v97
  %v242 = vunpack.c.l.b16 %v98
  %v243 = vunpack.c.l.b16 %v99
  %v244 = vunpack.c.l.b16 %v100
  %v245 = vunpack.c.l.b16 %v101
  %v246 = vpack.c.b16 %v215, %v214
  %v247 = vpack.c.b16 %v217, %v216
  %v248 = vpack.c.b16 %v219, %v218
  %v249 = vpack.c.b16 %v221, %v220
  %v250 = vpack.c.b16 %v223, %v222
  %v251 = vpack.c.b16 %v225, %v224
  %v252 = vpack.c.b16 %v227, %v226
  %v253 = vpack.c.b16 %v229, %v228
  %v254 = vpack.c.b16 %v231, %v230
  %v255 = vpack.c.b16 %v233, %v232
  %v256 = vpack.c.b16 %v235, %v234
  %v257 = vpack.c.b16 %v237, %v236
  %v258 = vpack.c.b16 %v239, %v238
  %v259 = vpack.c.b16 %v241, %v240
  %v260 = vpack.c.b16 %v243, %v242
  %v261 = vpack.c.b16 %v245, %v244
  %278 = vmatprep.subr.bf16.mxu0 0
  %279 = vmatpush1.bf16.msra.mxu0 %v246
  %280 = vmatprep.subr.bf16.mxu0 0
  %281 = vmatpush1.bf16.msra.mxu0 %v247
  %282 = vmatprep.subr.bf16.mxu0 0
  %283 = vmatpush1.bf16.msra.mxu0 %v248
  %284 = vmatprep.subr.bf16.mxu0 0
  %285 = vmatpush1.bf16.msra.mxu0 %v249
  %286 = vmatprep.subr.bf16.mxu0 0
  %287 = vmatpush1.bf16.msra.mxu0 %v250
  %288 = vmatprep.subr.bf16.mxu0 0
  %289 = vmatpush1.bf16.msra.mxu0 %v251
  %290 = vmatprep.subr.bf16.mxu0 0
  %291 = vmatpush1.bf16.msra.mxu0 %v252
  %292 = vmatprep.subr.bf16.mxu0 0
  %293 = vmatpush1.bf16.msra.mxu0 %v253
  %294 = vmatprep.subr.bf16.mxu0 0
  %295 = vmatpush1.bf16.msra.mxu0 %v254
  %296 = vmatprep.subr.bf16.mxu0 0
  %297 = vmatpush1.bf16.msra.mxu0 %v255
  %298 = vmatprep.subr.bf16.mxu0 0
  %299 = vmatpush1.bf16.msra.mxu0 %v256
  %300 = vmatprep.subr.bf16.mxu0 0
  %301 = vmatpush1.bf16.msra.mxu0 %v257
  %302 = vmatprep.subr.bf16.mxu0 0
  %303 = vmatpush1.bf16.msra.mxu0 %v258
  %304 = vmatprep.subr.bf16.mxu0 0
  %305 = vmatpush1.bf16.msra.mxu0 %v259
  %306 = vmatprep.subr.bf16.mxu0 0
  %307 = vmatpush1.bf16.msra.mxu0 %v260
  %308 = vmatprep.subr.bf16.mxu0 0
  %309 = vmatpush1.bf16.msra.mxu0 %v261
  %310 = vmatprep.mubr.bf16.mxu0 %v151
  %311 = vmatmul.mubr.bf16.gmra.mrb[0].mxu0 %v150
  %v312 = vpop.f32.mrb[0].mxu0
  %v313 = vadd.f32 0.0, %v312
  %v314 = vpop.f32.mrb[0].mxu0
  %v315 = vpop.f32.mrb[0].mxu0
  %v316 = vadd.f32 0.0, %v315
  %v317 = vpop.f32.mrb[0].mxu0
  %318 = vmatprep.mubr.bf16.mxu0 %v153
  %319 = vmatmul.mubr.bf16.gmra.mrb[0].mxu0 %v152
  %v320 = vpop.f32.mrb[0].mxu0
  %v321 = vadd.f32 0.0, %v320
  %v322 = vpop.f32.mrb[0].mxu0
  %v323 = vpop.f32.mrb[0].mxu0
  %v324 = vadd.f32 0.0, %v323
  %v325 = vpop.f32.mrb[0].mxu0
  %326 = vmatprep.mubr.bf16.mxu0 %v155
  %327 = vmatmul.mubr.bf16.gmra.mrb[0].mxu0 %v154
  %v328 = vpop.f32.mrb[0].mxu0
  %v329 = vadd.f32 0.0, %v328
  %v330 = vpop.f32.mrb[0].mxu0
  %v331 = vpop.f32.mrb[0].mxu0
  %v332 = vadd.f32 0.0, %v331
  %v333 = vpop.f32.mrb[0].mxu0
  %334 = vmatprep.mubr.bf16.mxu0 %v157
  %335 = vmatmul.mubr.bf16.gmra.mrb[0].mxu0 %v156
  %v336 = vpop.f32.mrb[0].mxu0
  %v337 = vadd.f32 0.0, %v336
  %v338 = vpop.f32.mrb[0].mxu0
  %v339 = vpop.f32.mrb[0].mxu0
  %v340 = vadd.f32 0.0, %v339
  %v341 = vpop.f32.mrb[0].mxu0
  %342 = vmatprep.mubr.bf16.mxu0 %v159
  %343 = vmatmul.mubr.bf16.gmra.mrb[0].mxu0 %v158
  %v344 = vpop.f32.mrb[0].mxu0
  %v345 = vadd.f32 0.0, %v344
  %v346 = vpop.f32.mrb[0].mxu0
  %v347 = vpop.f32.mrb[0].mxu0
  %v348 = vadd.f32 0.0, %v347
  %v349 = vpop.f32.mrb[0].mxu0
  %350 = vmatprep.mubr.bf16.mxu0 %v161
  %351 = vmatmul.mubr.bf16.gmra.mrb[0].mxu0 %v160
  %v352 = vpop.f32.mrb[0].mxu0
  %v353 = vadd.f32 0.0, %v352
  %v354 = vpop.f32.mrb[0].mxu0
  %v355 = vpop.f32.mrb[0].mxu0
  %v356 = vadd.f32 0.0, %v355
  %v357 = vpop.f32.mrb[0].mxu0
  %358 = vmatprep.mubr.bf16.mxu0 %v163
  %359 = vmatmul.mubr.bf16.gmra.mrb[0].mxu0 %v162
  %v360 = vpop.f32.mrb[0].mxu0
  %v361 = vadd.f32 0.0, %v360
  %v362 = vpop.f32.mrb[0].mxu0
  %v363 = vpop.f32.mrb[0].mxu0
  %v364 = vadd.f32 0.0, %v363
  %v365 = vpop.f32.mrb[0].mxu0
  %366 = vmatprep.mubr.bf16.mxu0 %v165
  %367 = vmatmul.mubr.bf16.gmra.mrb[0].mxu0 %v164
  %v368 = vpop.f32.mrb[0].mxu0
  %v369 = vadd.f32 0.0, %v368
  %v370 = vpop.f32.mrb[0].mxu0
  %v371 = vpop.f32.mrb[0].mxu0
  %v372 = vadd.f32 0.0, %v371
  %v373 = vpop.f32.mrb[0].mxu0
  %374 = vdwg.mxu0
  %v375 = vadd.f32 %v38, %v313
  %v376 = vadd.f32 %v39, %v316
  %v377 = vadd.f32 %v40, %v321
  %v378 = vadd.f32 %v41, %v324
  %v379 = vadd.f32 %v42, %v329
  %v380 = vadd.f32 %v43, %v332
  %v381 = vadd.f32 %v44, %v337
  %v382 = vadd.f32 %v45, %v340
  %v383 = vadd.f32 %v46, %v345
  %v384 = vadd.f32 %v47, %v348
  %v385 = vadd.f32 %v48, %v353
  %v386 = vadd.f32 %v49, %v356
  %v387 = vadd.f32 %v50, %v361
  %v388 = vadd.f32 %v51, %v364
  %v389 = vadd.f32 %v52, %v369
  %v390 = vadd.f32 %v53, %v372
  %391 = vst [vmem:[#allocation2] sm:$0xff] %v375
  %392 = vst [vmem:[#allocation2 + $0x8] sm:$0xff] %v376
  %393 = vst [vmem:[#allocation2 + $0x10] sm:$0xff] %v377
  %394 = vst [vmem:[#allocation2 + $0x18] sm:$0xff] %v378
  %395 = vst [vmem:[#allocation2 + $0x20] sm:$0xff] %v379
  %396 = vst [vmem:[#allocation2 + $0x28] sm:$0xff] %v380
  %397 = vst [vmem:[#allocation2 + $0x30] sm:$0xff] %v381
  %398 = vst [vmem:[#allocation2 + $0x38] sm:$0xff] %v382
  %399 = vst [vmem:[#allocation2 + $0x40] sm:$0xff] %v383
  %400 = vst [vmem:[#allocation2 + $0x48] sm:$0xff] %v384
  %401 = vst [vmem:[#allocation2 + $0x50] sm:$0xff] %v385
  %402 = vst [vmem:[#allocation2 + $0x58] sm:$0xff] %v386
  %403 = vst [vmem:[#allocation2 + $0x60] sm:$0xff] %v387
  %404 = vst [vmem:[#allocation2 + $0x68] sm:$0xff] %v388
  %405 = vst [vmem:[#allocation2 + $0x70] sm:$0xff] %v389
  %406 = vst [vmem:[#allocation2 + $0x78] sm:$0xff] %v390
  // Predicated region
  $region22: #{haframe_wrn_forward.14} parent=0 // pred_check
    %p407 = pneg %p18
  $region23: #{haframe_wrn_forward.14} parent=0 // pred_check_branch
    %409 = sbr.rel (%p407) target = $region25
  $region24: #{haframe_wrn_forward.14} parent=0 // pred_region
    %v410 = vld [vmem:[#allocation2] sm:$0xff]
    %v411 = vld [vmem:[#allocation2 + $0x8] sm:$0xff]
    %v412 = vld [vmem:[#allocation2 + $0x10] sm:$0xff]
    %v413 = vld [vmem:[#allocation2 + $0x18] sm:$0xff]
    %v414 = vld [vmem:[#allocation2 + $0x20] sm:$0xff]
    %v415 = vld [vmem:[#allocation2 + $0x28] sm:$0xff]
    %v416 = vld [vmem:[#allocation2 + $0x30] sm:$0xff]
    %v417 = vld [vmem:[#allocation2 + $0x38] sm:$0xff]
    %v418 = vld [vmem:[#allocation2 + $0x40] sm:$0xff]
    %v419 = vld [vmem:[#allocation2 + $0x48] sm:$0xff]
    %v420 = vld [vmem:[#allocation2 + $0x50] sm:$0xff]
    %v421 = vld [vmem:[#allocation2 + $0x58] sm:$0xff]
    %v422 = vld [vmem:[#allocation2 + $0x60] sm:$0xff]
    %v423 = vld [vmem:[#allocation2 + $0x68] sm:$0xff]
    %v424 = vld [vmem:[#allocation2 + $0x70] sm:$0xff]
    %v425 = vld [vmem:[#allocation2 + $0x78] sm:$0xff]
    %v426 = vld [vmem:[%s2] sm:$0x1]
    %v428 = vlaneseq
    %v429 = vshrl.u32 %v428, 7
    %v430 = vsub.s32 0, %v429
    %v431 = vrot.slane %v426, %v430
    %v433 = vmul.f32 %v410, %v431
    %v434 = vmul.f32 %v411, %v431
    %v435 = vmul.f32 %v412, %v431
    %v436 = vmul.f32 %v413, %v431
    %v437 = vmul.f32 %v414, %v431
    %v438 = vmul.f32 %v415, %v431
    %v439 = vmul.f32 %v416, %v431
    %v440 = vmul.f32 %v417, %v431
    %v441 = vmul.f32 %v418, %v431
    %v442 = vmul.f32 %v419, %v431
    %v443 = vmul.f32 %v420, %v431
    %v444 = vmul.f32 %v421, %v431
    %v445 = vmul.f32 %v422, %v431
    %v446 = vmul.f32 %v423, %v431
    %v447 = vmul.f32 %v424, %v431
    %v448 = vmul.f32 %v425, %v431
    %v449 = vld [vmem:[%s3] sm:$0x1]
    %v451 = vlaneseq
    %v452 = vshrl.u32 %v451, 7
    %v453 = vsub.s32 0, %v452
    %v454 = vrot.slane %v449, %v453
    %v456 = vadd.f32 %v433, %v454
    %v457 = vadd.f32 %v434, %v454
    %v458 = vadd.f32 %v435, %v454
    %v459 = vadd.f32 %v436, %v454
    %v460 = vadd.f32 %v437, %v454
    %v461 = vadd.f32 %v438, %v454
    %v462 = vadd.f32 %v439, %v454
    %v463 = vadd.f32 %v440, %v454
    %v464 = vadd.f32 %v441, %v454
    %v465 = vadd.f32 %v442, %v454
    %v466 = vadd.f32 %v443, %v454
    %v467 = vadd.f32 %v444, %v454
    %v468 = vadd.f32 %v445, %v454
    %v469 = vadd.f32 %v446, %v454
    %v470 = vadd.f32 %v447, %v454
    %v471 = vadd.f32 %v448, %v454
    %v472 = vmax.f32 %v456, 0.0
    %v473 = vmax.f32 %v457, 0.0
    %v474 = vmax.f32 %v458, 0.0
    %v475 = vmax.f32 %v459, 0.0
    %v476 = vmax.f32 %v460, 0.0
    %v477 = vmax.f32 %v461, 0.0
    %v478 = vmax.f32 %v462, 0.0
    %v479 = vmax.f32 %v463, 0.0
    %v480 = vmax.f32 %v464, 0.0
    %v481 = vmax.f32 %v465, 0.0
    %v482 = vmax.f32 %v466, 0.0
    %v483 = vmax.f32 %v467, 0.0
    %v484 = vmax.f32 %v468, 0.0
    %v485 = vmax.f32 %v469, 0.0
    %v486 = vmax.f32 %v470, 0.0
    %v487 = vmax.f32 %v471, 0.0
    %v488 = vpack.c.bf16 %v473, %v472
    %v489 = vpack.c.bf16 %v475, %v474
    %v490 = vpack.c.bf16 %v477, %v476
    %v491 = vpack.c.bf16 %v479, %v478
    %v492 = vpack.c.bf16 %v481, %v480
    %v493 = vpack.c.bf16 %v483, %v482
    %v494 = vpack.c.bf16 %v485, %v484
    %v495 = vpack.c.bf16 %v487, %v486
    %v504 = vunpack.c.l.b16 %v488
    %v505 = vunpack.c.h.b16 %v488
    %v506 = vunpack.c.l.b16 %v489
    %v507 = vunpack.c.h.b16 %v489
    %v508 = vunpack.c.l.b16 %v490
    %v509 = vunpack.c.h.b16 %v490
    %v510 = vunpack.c.l.b16 %v491
    %v511 = vunpack.c.h.b16 %v491
    %v512 = vunpack.c.l.b16 %v492
    %v513 = vunpack.c.h.b16 %v492
    %v514 = vunpack.c.l.b16 %v493
    %v515 = vunpack.c.h.b16 %v493
    %v516 = vunpack.c.l.b16 %v494
    %v517 = vunpack.c.h.b16 %v494
    %v518 = vunpack.c.l.b16 %v495
    %v519 = vunpack.c.h.b16 %v495
    %v520 = vpack.c.b16 %v504, %v504
    %v521 = vpack.c.b16 %v505, %v505
    %v522 = vpack.c.b16 %v506, %v506
    %v523 = vpack.c.b16 %v507, %v507
    %v524 = vpack.c.b16 %v508, %v508
    %v525 = vpack.c.b16 %v509, %v509
    %v526 = vpack.c.b16 %v510, %v510
    %v527 = vpack.c.b16 %v511, %v511
    %v528 = vpack.c.b16 %v512, %v512
    %v529 = vpack.c.b16 %v513, %v513
    %v530 = vpack.c.b16 %v514, %v514
    %v531 = vpack.c.b16 %v515, %v515
    %v532 = vpack.c.b16 %v516, %v516
    %v533 = vpack.c.b16 %v517, %v517
    %v534 = vpack.c.b16 %v518, %v518
    %v535 = vpack.c.b16 %v519, %v519
    %552 = vst [vmem:[%s4] sm:$0xf] %v520
    %553 = vst [vmem:[%s4 + $0x4] sm:$0xf] %v521
    %554 = vst [vmem:[%s4 + $0x8] sm:$0xf] %v522
    %555 = vst [vmem:[%s4 + $0xc] sm:$0xf] %v523
    %556 = vst [vmem:[%s4 + $0x10] sm:$0xf] %v524
    %557 = vst [vmem:[%s4 + $0x14] sm:$0xf] %v525
    %558 = vst [vmem:[%s4 + $0x18] sm:$0xf] %v526
    %559 = vst [vmem:[%s4 + $0x1c] sm:$0xf] %v527
    %560 = vst [vmem:[%s4 + $0x20] sm:$0xf] %v528
    %561 = vst [vmem:[%s4 + $0x24] sm:$0xf] %v529
    %562 = vst [vmem:[%s4 + $0x28] sm:$0xf] %v530
    %563 = vst [vmem:[%s4 + $0x2c] sm:$0xf] %v531
    %564 = vst [vmem:[%s4 + $0x30] sm:$0xf] %v532
    %565 = vst [vmem:[%s4 + $0x34] sm:$0xf] %v533
    %566 = vst [vmem:[%s4 + $0x38] sm:$0xf] %v534
    %567 = vst [vmem:[%s4 + $0x3c] sm:$0xf] %v535
  $region25: #{haframe_wrn_forward.14} parent=0 // pred_fallthru
    _
  // Predicated region
  $region26: #{haframe_wrn_forward.14} parent=0 // pred_check
    _
  $region27: #{haframe_wrn_forward.14} parent=0 // pred_check_branch
    %569 = sbr.rel (0) target = $region29
  $region28: #{haframe_wrn_forward.14} parent=0 // pred_region
    _
  $region29: #{haframe_wrn_forward.14} parent=0 // pred_fallthru
    _
  // Predicated region
  $region30: #{haframe_wrn_forward.14} parent=0 // pred_check
    _
  $region31: #{haframe_wrn_forward.14} parent=0 // pred_check_branch
    %571 = sbr.rel (0) target = $region33
  $region32: #{haframe_wrn_forward.14} parent=0 // pred_region
    _
  $region33: #{haframe_wrn_forward.14} parent=0 // pred_fallthru
    _

// kernel: haframe_wrn_forward.13
$region0: #{haframe_wrn_forward.13}
  #allocation0 [shape = 'u32[]', space=smem, size = 0x4, offset = 0x4, fixed_abs, tag = 'smem constant byte address 0x4 - core index']
  #allocation1 [shape = 'u32[144,128]{1,0:T(1,128)}', space=vmem, size = 0x12000, scoped, tag = 'internal scratch']
  #allocation2 [shape = 'f32[128,128]{1,0:T(8,128)}', space=vmem, size = 0x10000, scoped, tag = 'scratch operand']
  %s0 = inlined_call_operand.vmem [shape: bf16[128,128], index: 0, kind: input, shape index: {}]
  %s1 = inlined_call_operand.vmem [shape: bf16[128,128], index: 1, kind: input, shape index: {}]
  %s2 = inlined_call_operand.vmem [shape: f32[1,128], index: 2, kind: input, shape index: {}]
  %s3 = inlined_call_operand.vmem [shape: f32[1,128], index: 3, kind: input, shape index: {}]
  %s4 = inlined_call_operand.vmem [shape: f32[128,128], index: 4, kind: output, shape index: {}]
  %s5 = sld [smem:[#allocation0]]
  $region34: #{haframe_wrn_forward.13} parent=0
    _
  %s7 = ssub.s32 1, %s5
  %s8 = scalar_select 0, %s7, %s5
  // Predicated region
  $region2: #{haframe_wrn_forward.13} parent=0 // pred_check
    _
  $region3: #{haframe_wrn_forward.13} parent=0 // pred_check_branch
    %10 = sbr.rel (0) target = $region5
  $region4: #{haframe_wrn_forward.13} parent=0 // pred_region
    _
  $region5: #{haframe_wrn_forward.13} parent=0 // pred_fallthru
    _
  // Predicated region
  $region6: #{haframe_wrn_forward.13} parent=0 // pred_check
    _
  $region7: #{haframe_wrn_forward.13} parent=0 // pred_check_branch
    %12 = sbr.rel (0) target = $region9
  $region8: #{haframe_wrn_forward.13} parent=0 // pred_region
    _
  $region9: #{haframe_wrn_forward.13} parent=0 // pred_fallthru
    _
  // Predicated region
  $region10: #{haframe_wrn_forward.13} parent=0 // pred_check
    _
  $region11: #{haframe_wrn_forward.13} parent=0 // pred_check_branch
    %14 = sbr.rel (0) target = $region13
  $region12: #{haframe_wrn_forward.13} parent=0 // pred_region
    _
  $region13: #{haframe_wrn_forward.13} parent=0 // pred_fallthru
    _
  // Predicated region
  $region14: #{haframe_wrn_forward.13} parent=0 // pred_check
    _
  $region15: #{haframe_wrn_forward.13} parent=0 // pred_check_branch
    %16 = sbr.rel (0) target = $region17
  $region16: #{haframe_wrn_forward.13} parent=0 // pred_region
    _
  $region17: #{haframe_wrn_forward.13} parent=0 // pred_fallthru
    _
  %p18 = scmp.eq.s32.totalorder 0, 0
  // Predicated region
  $region18: #{haframe_wrn_forward.13} parent=0 // pred_check
    %p19 = pneg %p18
  $region19: #{haframe_wrn_forward.13} parent=0 // pred_check_branch
    %21 = sbr.rel (%p19) target = $region21
  $region20: #{haframe_wrn_forward.13} parent=0 // pred_region
    %22 = vst [vmem:[#allocation2] sm:$0xff] 0.0
    %23 = vst [vmem:[#allocation2 + $0x8] sm:$0xff] 0.0
    %24 = vst [vmem:[#allocation2 + $0x10] sm:$0xff] 0.0
    %25 = vst [vmem:[#allocation2 + $0x18] sm:$0xff] 0.0
    %26 = vst [vmem:[#allocation2 + $0x20] sm:$0xff] 0.0
    %27 = vst [vmem:[#allocation2 + $0x28] sm:$0xff] 0.0
    %28 = vst [vmem:[#allocation2 + $0x30] sm:$0xff] 0.0
    %29 = vst [vmem:[#allocation2 + $0x38] sm:$0xff] 0.0
    %30 = vst [vmem:[#allocation2 + $0x40] sm:$0xff] 0.0
    %31 = vst [vmem:[#allocation2 + $0x48] sm:$0xff] 0.0
    %32 = vst [vmem:[#allocation2 + $0x50] sm:$0xff] 0.0
    %33 = vst [vmem:[#allocation2 + $0x58] sm:$0xff] 0.0
    %34 = vst [vmem:[#allocation2 + $0x60] sm:$0xff] 0.0
    %35 = vst [vmem:[#allocation2 + $0x68] sm:$0xff] 0.0
    %36 = vst [vmem:[#allocation2 + $0x70] sm:$0xff] 0.0
    %37 = vst [vmem:[#allocation2 + $0x78] sm:$0xff] 0.0
  $region21: #{haframe_wrn_forward.13} parent=0 // pred_fallthru
    _
  %v38 = vld [vmem:[#allocation2] sm:$0xff]
  %v39 = vld [vmem:[#allocation2 + $0x8] sm:$0xff]
  %v40 = vld [vmem:[#allocation2 + $0x10] sm:$0xff]
  %v41 = vld [vmem:[#allocation2 + $0x18] sm:$0xff]
  %v42 = vld [vmem:[#allocation2 + $0x20] sm:$0xff]
  %v43 = vld [vmem:[#allocation2 + $0x28] sm:$0xff]
  %v44 = vld [vmem:[#allocation2 + $0x30] sm:$0xff]
  %v45 = vld [vmem:[#allocation2 + $0x38] sm:$0xff]
  %v46 = vld [vmem:[#allocation2 + $0x40] sm:$0xff]
  %v47 = vld [vmem:[#allocation2 + $0x48] sm:$0xff]
  %v48 = vld [vmem:[#allocation2 + $0x50] sm:$0xff]
  %v49 = vld [vmem:[#allocation2 + $0x58] sm:$0xff]
  %v50 = vld [vmem:[#allocation2 + $0x60] sm:$0xff]
  %v51 = vld [vmem:[#allocation2 + $0x68] sm:$0xff]
  %v52 = vld [vmem:[#allocation2 + $0x70] sm:$0xff]
  %v53 = vld [vmem:[#allocation2 + $0x78] sm:$0xff]
  %v54 = vld [vmem:[%s0] sm:$0xf]
  %v55 = vld [vmem:[%s0 + $0x4] sm:$0xf]
  %v56 = vld [vmem:[%s0 + $0x8] sm:$0xf]
  %v57 = vld [vmem:[%s0 + $0xc] sm:$0xf]
  %v58 = vld [vmem:[%s0 + $0x10] sm:$0xf]
  %v59 = vld [vmem:[%s0 + $0x14] sm:$0xf]
  %v60 = vld [vmem:[%s0 + $0x18] sm:$0xf]
  %v61 = vld [vmem:[%s0 + $0x1c] sm:$0xf]
  %v62 = vld [vmem:[%s0 + $0x20] sm:$0xf]
  %v63 = vld [vmem:[%s0 + $0x24] sm:$0xf]
  %v64 = vld [vmem:[%s0 + $0x28] sm:$0xf]
  %v65 = vld [vmem:[%s0 + $0x2c] sm:$0xf]
  %v66 = vld [vmem:[%s0 + $0x30] sm:$0xf]
  %v67 = vld [vmem:[%s0 + $0x34] sm:$0xf]
  %v68 = vld [vmem:[%s0 + $0x38] sm:$0xf]
  %v69 = vld [vmem:[%s0 + $0x3c] sm:$0xf]
  %v70 = vld [vmem:[%s1] sm:$0xf]
  %v71 = vld [vmem:[%s1 + $0x4] sm:$0xf]
  %v72 = vld [vmem:[%s1 + $0x8] sm:$0xf]
  %v73 = vld [vmem:[%s1 + $0xc] sm:$0xf]
  %v74 = vld [vmem:[%s1 + $0x10] sm:$0xf]
  %v75 = vld [vmem:[%s1 + $0x14] sm:$0xf]
  %v76 = vld [vmem:[%s1 + $0x18] sm:$0xf]
  %v77 = vld [vmem:[%s1 + $0x1c] sm:$0xf]
  %v78 = vld [vmem:[%s1 + $0x20] sm:$0xf]
  %v79 = vld [vmem:[%s1 + $0x24] sm:$0xf]
  %v80 = vld [vmem:[%s1 + $0x28] sm:$0xf]
  %v81 = vld [vmem:[%s1 + $0x2c] sm:$0xf]
  %v82 = vld [vmem:[%s1 + $0x30] sm:$0xf]
  %v83 = vld [vmem:[%s1 + $0x34] sm:$0xf]
  %v84 = vld [vmem:[%s1 + $0x38] sm:$0xf]
  %v85 = vld [vmem:[%s1 + $0x3c] sm:$0xf]
  %v102 = vunpack.c.l.b16 %v54
  %v103 = vunpack.c.l.b16 %v55
  %v104 = vunpack.c.l.b16 %v56
  %v105 = vunpack.c.l.b16 %v57
  %v106 = vunpack.c.l.b16 %v58
  %v107 = vunpack.c.l.b16 %v59
  %v108 = vunpack.c.l.b16 %v60
  %v109 = vunpack.c.l.b16 %v61
  %v110 = vunpack.c.l.b16 %v62
  %v111 = vunpack.c.l.b16 %v63
  %v112 = vunpack.c.l.b16 %v64
  %v113 = vunpack.c.l.b16 %v65
  %v114 = vunpack.c.l.b16 %v66
  %v115 = vunpack.c.l.b16 %v67
  %v116 = vunpack.c.l.b16 %v68
  %v117 = vunpack.c.l.b16 %v69
  %v118 = vpack.c.b16 %v103, %v102
  %v119 = vpack.c.b16 %v105, %v104
  %v120 = vpack.c.b16 %v107, %v106
  %v121 = vpack.c.b16 %v109, %v108
  %v122 = vpack.c.b16 %v111, %v110
  %v123 = vpack.c.b16 %v113, %v112
  %v124 = vpack.c.b16 %v115, %v114
  %v125 = vpack.c.b16 %v117, %v116
  %v150 = vunpack.c.l.b16 %v70
  %v151 = vunpack.c.l.b16 %v71
  %v152 = vunpack.c.l.b16 %v72
  %v153 = vunpack.c.l.b16 %v73
  %v154 = vunpack.c.l.b16 %v74
  %v155 = vunpack.c.l.b16 %v75
  %v156 = vunpack.c.l.b16 %v76
  %v157 = vunpack.c.l.b16 %v77
  %v158 = vunpack.c.l.b16 %v78
  %v159 = vunpack.c.l.b16 %v79
  %v160 = vunpack.c.l.b16 %v80
  %v161 = vunpack.c.l.b16 %v81
  %v162 = vunpack.c.l.b16 %v82
  %v163 = vunpack.c.l.b16 %v83
  %v164 = vunpack.c.l.b16 %v84
  %v165 = vunpack.c.l.b16 %v85
  %v166 = vpack.c.b16 %v151, %v150
  %v167 = vpack.c.b16 %v153, %v152
  %v168 = vpack.c.b16 %v155, %v154
  %v169 = vpack.c.b16 %v157, %v156
  %v170 = vpack.c.b16 %v159, %v158
  %v171 = vpack.c.b16 %v161, %v160
  %v172 = vpack.c.b16 %v163, %v162
  %v173 = vpack.c.b16 %v165, %v164
  %182 = vmatprep.subr.bf16.mxu0 0
  %183 = vmatpush1.bf16.msra.mxu0 %v166
  %184 = vmatprep.subr.bf16.mxu0 0
  %185 = vmatpush1.bf16.msra.mxu0 %v167
  %186 = vmatprep.subr.bf16.mxu0 0
  %187 = vmatpush1.bf16.msra.mxu0 %v168
  %188 = vmatprep.subr.bf16.mxu0 0
  %189 = vmatpush1.bf16.msra.mxu0 %v169
  %190 = vmatprep.subr.bf16.mxu0 0
  %191 = vmatpush1.bf16.msra.mxu0 %v170
  %192 = vmatprep.subr.bf16.mxu0 0
  %193 = vmatpush1.bf16.msra.mxu0 %v171
  %194 = vmatprep.subr.bf16.mxu0 0
  %195 = vmatpush1.bf16.msra.mxu0 %v172
  %196 = vmatprep.subr.bf16.mxu0 0
  %197 = vmatpush1.bf16.msra.mxu0 %v173
  %198 = vmatprep.subr.bf16.mxu0 0
  %199 = vmatpush1.bf16.msra.mxu0 0
  %200 = vmatprep.subr.bf16.mxu0 0
  %201 = vmatpush1.bf16.msra.mxu0 0
  %202 = vmatprep.subr.bf16.mxu0 0
  %203 = vmatpush1.bf16.msra.mxu0 0
  %204 = vmatprep.subr.bf16.mxu0 0
  %205 = vmatpush1.bf16.msra.mxu0 0
  %206 = vmatprep.subr.bf16.mxu0 0
  %207 = vmatpush1.bf16.msra.mxu0 0
  %208 = vmatprep.subr.bf16.mxu0 0
  %209 = vmatpush1.bf16.msra.mxu0 0
  %210 = vmatprep.subr.bf16.mxu0 0
  %211 = vmatpush1.bf16.msra.mxu0 0
  %212 = vmatprep.subr.bf16.mxu0 0
  %213 = vmatpush1.bf16.msra.mxu0 0
  %214 = vmatprep.mubr.bf16.mxu0 0
  %215 = vmatmul.mubr.bf16.gmra.mrb[0].mxu0 %v118
  %v216 = vpop.f32.mrb[0].mxu0
  %v217 = vadd.f32 0.0, %v216
  %v218 = vpop.f32.mrb[0].mxu0
  %v219 = vpop.f32.mrb[0].mxu0
  %v220 = vadd.f32 0.0, %v219
  %v221 = vpop.f32.mrb[0].mxu0
  %222 = vmatprep.mubr.bf16.mxu0 0
  %223 = vmatmul.mubr.bf16.gmra.mrb[0].mxu0 %v119
  %v224 = vpop.f32.mrb[0].mxu0
  %v225 = vadd.f32 0.0, %v224
  %v226 = vpop.f32.mrb[0].mxu0
  %v227 = vpop.f32.mrb[0].mxu0
  %v228 = vadd.f32 0.0, %v227
  %v229 = vpop.f32.mrb[0].mxu0
  %230 = vmatprep.mubr.bf16.mxu0 0
  %231 = vmatmul.mubr.bf16.gmra.mrb[0].mxu0 %v120
  %v232 = vpop.f32.mrb[0].mxu0
  %v233 = vadd.f32 0.0, %v232
  %v234 = vpop.f32.mrb[0].mxu0
  %v235 = vpop.f32.mrb[0].mxu0
  %v236 = vadd.f32 0.0, %v235
  %v237 = vpop.f32.mrb[0].mxu0
  %238 = vmatprep.mubr.bf16.mxu0 0
  %239 = vmatmul.mubr.bf16.gmra.mrb[0].mxu0 %v121
  %v240 = vpop.f32.mrb[0].mxu0
  %v241 = vadd.f32 0.0, %v240
  %v242 = vpop.f32.mrb[0].mxu0
  %v243 = vpop.f32.mrb[0].mxu0
  %v244 = vadd.f32 0.0, %v243
  %v245 = vpop.f32.mrb[0].mxu0
  %246 = vmatprep.mubr.bf16.mxu0 0
  %247 = vmatmul.mubr.bf16.gmra.mrb[0].mxu0 %v122
  %v248 = vpop.f32.mrb[0].mxu0
  %v249 = vadd.f32 0.0, %v248
  %v250 = vpop.f32.mrb[0].mxu0
  %v251 = vpop.f32.mrb[0].mxu0
  %v252 = vadd.f32 0.0, %v251
  %v253 = vpop.f32.mrb[0].mxu0
  %254 = vmatprep.mubr.bf16.mxu0 0
  %255 = vmatmul.mubr.bf16.gmra.mrb[0].mxu0 %v123
  %v256 = vpop.f32.mrb[0].mxu0
  %v257 = vadd.f32 0.0, %v256
  %v258 = vpop.f32.mrb[0].mxu0
  %v259 = vpop.f32.mrb[0].mxu0
  %v260 = vadd.f32 0.0, %v259
  %v261 = vpop.f32.mrb[0].mxu0
  %262 = vmatprep.mubr.bf16.mxu0 0
  %263 = vmatmul.mubr.bf16.gmra.mrb[0].mxu0 %v124
  %v264 = vpop.f32.mrb[0].mxu0
  %v265 = vadd.f32 0.0, %v264
  %v266 = vpop.f32.mrb[0].mxu0
  %v267 = vpop.f32.mrb[0].mxu0
  %v268 = vadd.f32 0.0, %v267
  %v269 = vpop.f32.mrb[0].mxu0
  %270 = vmatprep.mubr.bf16.mxu0 0
  %271 = vmatmul.mubr.bf16.gmra.mrb[0].mxu0 %v125
  %v272 = vpop.f32.mrb[0].mxu0
  %v273 = vadd.f32 0.0, %v272
  %v274 = vpop.f32.mrb[0].mxu0
  %v275 = vpop.f32.mrb[0].mxu0
  %v276 = vadd.f32 0.0, %v275
  %v277 = vpop.f32.mrb[0].mxu0
  %278 = vdwg.mxu0
  %v279 = vadd.f32 %v38, %v217
  %v280 = vadd.f32 %v39, %v220
  %v281 = vadd.f32 %v40, %v225
  %v282 = vadd.f32 %v41, %v228
  %v283 = vadd.f32 %v42, %v233
  %v284 = vadd.f32 %v43, %v236
  %v285 = vadd.f32 %v44, %v241
  %v286 = vadd.f32 %v45, %v244
  %v287 = vadd.f32 %v46, %v249
  %v288 = vadd.f32 %v47, %v252
  %v289 = vadd.f32 %v48, %v257
  %v290 = vadd.f32 %v49, %v260
  %v291 = vadd.f32 %v50, %v265
  %v292 = vadd.f32 %v51, %v268
  %v293 = vadd.f32 %v52, %v273
  %v294 = vadd.f32 %v53, %v276
  %295 = vst [vmem:[#allocation2] sm:$0xff] %v279
  %296 = vst [vmem:[#allocation2 + $0x8] sm:$0xff] %v280
  %297 = vst [vmem:[#allocation2 + $0x10] sm:$0xff] %v281
  %298 = vst [vmem:[#allocation2 + $0x18] sm:$0xff] %v282
  %299 = vst [vmem:[#allocation2 + $0x20] sm:$0xff] %v283
  %300 = vst [vmem:[#allocation2 + $0x28] sm:$0xff] %v284
  %301 = vst [vmem:[#allocation2 + $0x30] sm:$0xff] %v285
  %302 = vst [vmem:[#allocation2 + $0x38] sm:$0xff] %v286
  %303 = vst [vmem:[#allocation2 + $0x40] sm:$0xff] %v287
  %304 = vst [vmem:[#allocation2 + $0x48] sm:$0xff] %v288
  %305 = vst [vmem:[#allocation2 + $0x50] sm:$0xff] %v289
  %306 = vst [vmem:[#allocation2 + $0x58] sm:$0xff] %v290
  %307 = vst [vmem:[#allocation2 + $0x60] sm:$0xff] %v291
  %308 = vst [vmem:[#allocation2 + $0x68] sm:$0xff] %v292
  %309 = vst [vmem:[#allocation2 + $0x70] sm:$0xff] %v293
  %310 = vst [vmem:[#allocation2 + $0x78] sm:$0xff] %v294
  // Predicated region
  $region22: #{haframe_wrn_forward.13} parent=0 // pred_check
    %p311 = pneg %p18
  $region23: #{haframe_wrn_forward.13} parent=0 // pred_check_branch
    %313 = sbr.rel (%p311) target = $region25
  $region24: #{haframe_wrn_forward.13} parent=0 // pred_region
    %v314 = vld [vmem:[#allocation2] sm:$0xff]
    %v315 = vld [vmem:[#allocation2 + $0x8] sm:$0xff]
    %v316 = vld [vmem:[#allocation2 + $0x10] sm:$0xff]
    %v317 = vld [vmem:[#allocation2 + $0x18] sm:$0xff]
    %v318 = vld [vmem:[#allocation2 + $0x20] sm:$0xff]
    %v319 = vld [vmem:[#allocation2 + $0x28] sm:$0xff]
    %v320 = vld [vmem:[#allocation2 + $0x30] sm:$0xff]
    %v321 = vld [vmem:[#allocation2 + $0x38] sm:$0xff]
    %v322 = vld [vmem:[#allocation2 + $0x40] sm:$0xff]
    %v323 = vld [vmem:[#allocation2 + $0x48] sm:$0xff]
    %v324 = vld [vmem:[#allocation2 + $0x50] sm:$0xff]
    %v325 = vld [vmem:[#allocation2 + $0x58] sm:$0xff]
    %v326 = vld [vmem:[#allocation2 + $0x60] sm:$0xff]
    %v327 = vld [vmem:[#allocation2 + $0x68] sm:$0xff]
    %v328 = vld [vmem:[#allocation2 + $0x70] sm:$0xff]
    %v329 = vld [vmem:[#allocation2 + $0x78] sm:$0xff]
    %v330 = vld [vmem:[%s2] sm:$0x1]
    %v332 = vlaneseq
    %v333 = vshrl.u32 %v332, 7
    %v334 = vsub.s32 0, %v333
    %v335 = vrot.slane %v330, %v334
    %v337 = vmul.f32 %v314, %v335
    %v338 = vmul.f32 %v315, %v335
    %v339 = vmul.f32 %v316, %v335
    %v340 = vmul.f32 %v317, %v335
    %v341 = vmul.f32 %v318, %v335
    %v342 = vmul.f32 %v319, %v335
    %v343 = vmul.f32 %v320, %v335
    %v344 = vmul.f32 %v321, %v335
    %v345 = vmul.f32 %v322, %v335
    %v346 = vmul.f32 %v323, %v335
    %v347 = vmul.f32 %v324, %v335
    %v348 = vmul.f32 %v325, %v335
    %v349 = vmul.f32 %v326, %v335
    %v350 = vmul.f32 %v327, %v335
    %v351 = vmul.f32 %v328, %v335
    %v352 = vmul.f32 %v329, %v335
    %v353 = vld [vmem:[%s3] sm:$0x1]
    %v355 = vlaneseq
    %v356 = vshrl.u32 %v355, 7
    %v357 = vsub.s32 0, %v356
    %v358 = vrot.slane %v353, %v357
    %v360 = vadd.f32 %v337, %v358
    %v361 = vadd.f32 %v338, %v358
    %v362 = vadd.f32 %v339, %v358
    %v363 = vadd.f32 %v340, %v358
    %v364 = vadd.f32 %v341, %v358
    %v365 = vadd.f32 %v342, %v358
    %v366 = vadd.f32 %v343, %v358
    %v367 = vadd.f32 %v344, %v358
    %v368 = vadd.f32 %v345, %v358
    %v369 = vadd.f32 %v346, %v358
    %v370 = vadd.f32 %v347, %v358
    %v371 = vadd.f32 %v348, %v358
    %v372 = vadd.f32 %v349, %v358
    %v373 = vadd.f32 %v350, %v358
    %v374 = vadd.f32 %v351, %v358
    %v375 = vadd.f32 %v352, %v358
    %376 = vst [vmem:[%s4] sm:$0xff] %v360
    %377 = vst [vmem:[%s4 + $0x8] sm:$0xff] %v361
    %378 = vst [vmem:[%s4 + $0x10] sm:$0xff] %v362
    %379 = vst [vmem:[%s4 + $0x18] sm:$0xff] %v363
    %380 = vst [vmem:[%s4 + $0x20] sm:$0xff] %v364
    %381 = vst [vmem:[%s4 + $0x28] sm:$0xff] %v365
    %382 = vst [vmem:[%s4 + $0x30] sm:$0xff] %v366
    %383 = vst [vmem:[%s4 + $0x38] sm:$0xff] %v367
    %384 = vst [vmem:[%s4 + $0x40] sm:$0xff] %v368
    %385 = vst [vmem:[%s4 + $0x48] sm:$0xff] %v369
    %386 = vst [vmem:[%s4 + $0x50] sm:$0xff] %v370
    %387 = vst [vmem:[%s4 + $0x58] sm:$0xff] %v371
    %388 = vst [vmem:[%s4 + $0x60] sm:$0xff] %v372
    %389 = vst [vmem:[%s4 + $0x68] sm:$0xff] %v373
    %390 = vst [vmem:[%s4 + $0x70] sm:$0xff] %v374
    %391 = vst [vmem:[%s4 + $0x78] sm:$0xff] %v375
  $region25: #{haframe_wrn_forward.13} parent=0 // pred_fallthru
    _
  // Predicated region
  $region26: #{haframe_wrn_forward.13} parent=0 // pred_check
    _
  $region27: #{haframe_wrn_forward.13} parent=0 // pred_check_branch
    %393 = sbr.rel (0) target = $region29
  $region28: #{haframe_wrn_forward.13} parent=0 // pred_region
    _
  $region29: #{haframe_wrn_forward.13} parent=0 // pred_fallthru
    _
  // Predicated region
  $region30: #{haframe_wrn_forward.13} parent=0 // pred_check
    _
  $region31: #{haframe_wrn_forward.13} parent=0 // pred_check_branch
    %395 = sbr.rel (0) target = $region33
  $region32: #{haframe_wrn_forward.13} parent=0 // pred_region
    _
  $region33: #{haframe_wrn_forward.13} parent=0 // pred_fallthru
    _

// kernel: haframe_wrn_forward.15
$region0: #{haframe_wrn_forward.15}
  #allocation0 [shape = 'u32[]', space=smem, size = 0x4, offset = 0x4, fixed_abs, tag = 'smem constant byte address 0x4 - core index']
  #allocation1 [shape = 'u32[144,128]{1,0:T(1,128)}', space=vmem, size = 0x12000, scoped, tag = 'internal scratch']
  #allocation2 [shape = 'f32[128,128]{1,0:T(8,128)}', space=vmem, size = 0x10000, scoped, tag = 'scratch operand']
  %s0 = inlined_call_operand.vmem [shape: bf16[128,384], index: 0, kind: input, shape index: {}]
  %s1 = inlined_call_operand.vmem [shape: bf16[384,128], index: 1, kind: input, shape index: {}]
  %s2 = inlined_call_operand.vmem [shape: f32[1,128], index: 2, kind: input, shape index: {}]
  %s3 = inlined_call_operand.vmem [shape: f32[1,128], index: 3, kind: input, shape index: {}]
  %s4 = inlined_call_operand.vmem [shape: f32[128,128], index: 4, kind: input, shape index: {}]
  %s5 = inlined_call_operand.vmem [shape: bf16[128,128], index: 5, kind: output, shape index: {}]
  %s6 = sld [smem:[#allocation0]]
  $region38: #{haframe_wrn_forward.15} parent=0
    _
  %s8 = ssub.s32 1, %s6
  %s9 = scalar_select 0, %s8, %s6
  // Predicated region
  $region2: #{haframe_wrn_forward.15} parent=0 // pred_check
    _
  $region3: #{haframe_wrn_forward.15} parent=0 // pred_check_branch
    %11 = sbr.rel (0) target = $region5
  $region4: #{haframe_wrn_forward.15} parent=0 // pred_region
    _
  $region5: #{haframe_wrn_forward.15} parent=0 // pred_fallthru
    _
  // Predicated region
  $region6: #{haframe_wrn_forward.15} parent=0 // pred_check
    _
  $region7: #{haframe_wrn_forward.15} parent=0 // pred_check_branch
    %13 = sbr.rel (0) target = $region9
  $region8: #{haframe_wrn_forward.15} parent=0 // pred_region
    _
  $region9: #{haframe_wrn_forward.15} parent=0 // pred_fallthru
    _
  // Predicated region
  $region10: #{haframe_wrn_forward.15} parent=0 // pred_check
    _
  $region11: #{haframe_wrn_forward.15} parent=0 // pred_check_branch
    %15 = sbr.rel (0) target = $region13
  $region12: #{haframe_wrn_forward.15} parent=0 // pred_region
    _
  $region13: #{haframe_wrn_forward.15} parent=0 // pred_fallthru
    _
  // Predicated region
  $region14: #{haframe_wrn_forward.15} parent=0 // pred_check
    _
  $region15: #{haframe_wrn_forward.15} parent=0 // pred_check_branch
    %17 = sbr.rel (0) target = $region17
  $region16: #{haframe_wrn_forward.15} parent=0 // pred_region
    _
  $region17: #{haframe_wrn_forward.15} parent=0 // pred_fallthru
    _
  // Predicated region
  $region18: #{haframe_wrn_forward.15} parent=0 // pred_check
    _
  $region19: #{haframe_wrn_forward.15} parent=0 // pred_check_branch
    %19 = sbr.rel (0) target = $region21
  $region20: #{haframe_wrn_forward.15} parent=0 // pred_region
    _
  $region21: #{haframe_wrn_forward.15} parent=0 // pred_fallthru
    _
  %p21 = scmp.eq.s32.totalorder 0, 0
  // Predicated region
  $region22: #{haframe_wrn_forward.15} parent=0 // pred_check
    %p22 = pneg %p21
  $region23: #{haframe_wrn_forward.15} parent=0 // pred_check_branch
    %24 = sbr.rel (%p22) target = $region25
  $region24: #{haframe_wrn_forward.15} parent=0 // pred_region
    %25 = vst [vmem:[#allocation2] sm:$0xff] 0.0
    %26 = vst [vmem:[#allocation2 + $0x8] sm:$0xff] 0.0
    %27 = vst [vmem:[#allocation2 + $0x10] sm:$0xff] 0.0
    %28 = vst [vmem:[#allocation2 + $0x18] sm:$0xff] 0.0
    %29 = vst [vmem:[#allocation2 + $0x20] sm:$0xff] 0.0
    %30 = vst [vmem:[#allocation2 + $0x28] sm:$0xff] 0.0
    %31 = vst [vmem:[#allocation2 + $0x30] sm:$0xff] 0.0
    %32 = vst [vmem:[#allocation2 + $0x38] sm:$0xff] 0.0
    %33 = vst [vmem:[#allocation2 + $0x40] sm:$0xff] 0.0
    %34 = vst [vmem:[#allocation2 + $0x48] sm:$0xff] 0.0
    %35 = vst [vmem:[#allocation2 + $0x50] sm:$0xff] 0.0
    %36 = vst [vmem:[#allocation2 + $0x58] sm:$0xff] 0.0
    %37 = vst [vmem:[#allocation2 + $0x60] sm:$0xff] 0.0
    %38 = vst [vmem:[#allocation2 + $0x68] sm:$0xff] 0.0
    %39 = vst [vmem:[#allocation2 + $0x70] sm:$0xff] 0.0
    %40 = vst [vmem:[#allocation2 + $0x78] sm:$0xff] 0.0
  $region25: #{haframe_wrn_forward.15} parent=0 // pred_fallthru
    _
  %v41 = vld [vmem:[#allocation2] sm:$0xff]
  %v42 = vld [vmem:[#allocation2 + $0x8] sm:$0xff]
  %v43 = vld [vmem:[#allocation2 + $0x10] sm:$0xff]
  %v44 = vld [vmem:[#allocation2 + $0x18] sm:$0xff]
  %v45 = vld [vmem:[#allocation2 + $0x20] sm:$0xff]
  %v46 = vld [vmem:[#allocation2 + $0x28] sm:$0xff]
  %v47 = vld [vmem:[#allocation2 + $0x30] sm:$0xff]
  %v48 = vld [vmem:[#allocation2 + $0x38] sm:$0xff]
  %v49 = vld [vmem:[#allocation2 + $0x40] sm:$0xff]
  %v50 = vld [vmem:[#allocation2 + $0x48] sm:$0xff]
  %v51 = vld [vmem:[#allocation2 + $0x50] sm:$0xff]
  %v52 = vld [vmem:[#allocation2 + $0x58] sm:$0xff]
  %v53 = vld [vmem:[#allocation2 + $0x60] sm:$0xff]
  %v54 = vld [vmem:[#allocation2 + $0x68] sm:$0xff]
  %v55 = vld [vmem:[#allocation2 + $0x70] sm:$0xff]
  %v56 = vld [vmem:[#allocation2 + $0x78] sm:$0xff]
  %v57 = vld [vmem:[%s0] sm:$0xff]
  %v58 = vld [vmem:[%s0 + $0x8] sm:$0xf]
  %v59 = vld [vmem:[%s0 + $0xc] sm:$0xff]
  %v60 = vld [vmem:[%s0 + $0x14] sm:$0xf]
  %v61 = vld [vmem:[%s0 + $0x18] sm:$0xff]
  %v62 = vld [vmem:[%s0 + $0x20] sm:$0xf]
  %v63 = vld [vmem:[%s0 + $0x24] sm:$0xff]
  %v64 = vld [vmem:[%s0 + $0x2c] sm:$0xf]
  %v65 = vld [vmem:[%s0 + $0x30] sm:$0xff]
  %v66 = vld [vmem:[%s0 + $0x38] sm:$0xf]
  %v67 = vld [vmem:[%s0 + $0x3c] sm:$0xff]
  %v68 = vld [vmem:[%s0 + $0x44] sm:$0xf]
  %v69 = vld [vmem:[%s0 + $0x48] sm:$0xff]
  %v70 = vld [vmem:[%s0 + $0x50] sm:$0xf]
  %v71 = vld [vmem:[%s0 + $0x54] sm:$0xff]
  %v72 = vld [vmem:[%s0 + $0x5c] sm:$0xf]
  %v73 = vld [vmem:[%s0 + $0x60] sm:$0xff]
  %v74 = vld [vmem:[%s0 + $0x68] sm:$0xf]
  %v75 = vld [vmem:[%s0 + $0x6c] sm:$0xff]
  %v76 = vld [vmem:[%s0 + $0x74] sm:$0xf]
  %v77 = vld [vmem:[%s0 + $0x78] sm:$0xff]
  %v78 = vld [vmem:[%s0 + $0x80] sm:$0xf]
  %v79 = vld [vmem:[%s0 + $0x84] sm:$0xff]
  %v80 = vld [vmem:[%s0 + $0x8c] sm:$0xf]
  %v81 = vld [vmem:[%s0 + $0x90] sm:$0xff]
  %v82 = vld [vmem:[%s0 + $0x98] sm:$0xf]
  %v83 = vld [vmem:[%s0 + $0x9c] sm:$0xff]
  %v84 = vld [vmem:[%s0 + $0xa4] sm:$0xf]
  %v85 = vld [vmem:[%s0 + $0xa8] sm:$0xff]
  %v86 = vld [vmem:[%s0 + $0xb0] sm:$0xf]
  %v87 = vld [vmem:[%s0 + $0xb4] sm:$0xff]
  %v88 = vld [vmem:[%s0 + $0xbc] sm:$0xf]
  %v89 = vld [vmem:[%s1] sm:$0xf]
  %v90 = vld [vmem:[%s1 + $0x4] sm:$0xf]
  %v91 = vld [vmem:[%s1 + $0x8] sm:$0xf]
  %v92 = vld [vmem:[%s1 + $0xc] sm:$0xf]
  %v93 = vld [vmem:[%s1 + $0x10] sm:$0xf]
  %v94 = vld [vmem:[%s1 + $0x14] sm:$0xf]
  %v95 = vld [vmem:[%s1 + $0x18] sm:$0xf]
  %v96 = vld [vmem:[%s1 + $0x1c] sm:$0xf]
  %v97 = vld [vmem:[%s1 + $0x20] sm:$0xf]
  %v98 = vld [vmem:[%s1 + $0x24] sm:$0xf]
  %v99 = vld [vmem:[%s1 + $0x28] sm:$0xf]
  %v100 = vld [vmem:[%s1 + $0x2c] sm:$0xf]
  %v101 = vld [vmem:[%s1 + $0x30] sm:$0xf]
  %v102 = vld [vmem:[%s1 + $0x34] sm:$0xf]
  %v103 = vld [vmem:[%s1 + $0x38] sm:$0xf]
  %v104 = vld [vmem:[%s1 + $0x3c] sm:$0xf]
  %v105 = vld [vmem:[%s1 + $0x40] sm:$0xf]
  %v106 = vld [vmem:[%s1 + $0x44] sm:$0xf]
  %v107 = vld [vmem:[%s1 + $0x48] sm:$0xf]
  %v108 = vld [vmem:[%s1 + $0x4c] sm:$0xf]
  %v109 = vld [vmem:[%s1 + $0x50] sm:$0xf]
  %v110 = vld [vmem:[%s1 + $0x54] sm:$0xf]
  %v111 = vld [vmem:[%s1 + $0x58] sm:$0xf]
  %v112 = vld [vmem:[%s1 + $0x5c] sm:$0xf]
  %v113 = vld [vmem:[%s1 + $0x60] sm:$0xf]
  %v114 = vld [vmem:[%s1 + $0x64] sm:$0xf]
  %v115 = vld [vmem:[%s1 + $0x68] sm:$0xf]
  %v116 = vld [vmem:[%s1 + $0x6c] sm:$0xf]
  %v117 = vld [vmem:[%s1 + $0x70] sm:$0xf]
  %v118 = vld [vmem:[%s1 + $0x74] sm:$0xf]
  %v119 = vld [vmem:[%s1 + $0x78] sm:$0xf]
  %v120 = vld [vmem:[%s1 + $0x7c] sm:$0xf]
  %v121 = vld [vmem:[%s1 + $0x80] sm:$0xf]
  %v122 = vld [vmem:[%s1 + $0x84] sm:$0xf]
  %v123 = vld [vmem:[%s1 + $0x88] sm:$0xf]
  %v124 = vld [vmem:[%s1 + $0x8c] sm:$0xf]
  %v125 = vld [vmem:[%s1 + $0x90] sm:$0xf]
  %v126 = vld [vmem:[%s1 + $0x94] sm:$0xf]
  %v127 = vld [vmem:[%s1 + $0x98] sm:$0xf]
  %v128 = vld [vmem:[%s1 + $0x9c] sm:$0xf]
  %v129 = vld [vmem:[%s1 + $0xa0] sm:$0xf]
  %v130 = vld [vmem:[%s1 + $0xa4] sm:$0xf]
  %v131 = vld [vmem:[%s1 + $0xa8] sm:$0xf]
  %v132 = vld [vmem:[%s1 + $0xac] sm:$0xf]
  %v133 = vld [vmem:[%s1 + $0xb0] sm:$0xf]
  %v134 = vld [vmem:[%s1 + $0xb4] sm:$0xf]
  %v135 = vld [vmem:[%s1 + $0xb8] sm:$0xf]
  %v136 = vld [vmem:[%s1 + $0xbc] sm:$0xf]
  %v169 = vunpack.c.l.b16 %v57
  %v170 = vunpack.c.h.b16 %v57
  %v171 = vunpack.c.l.b16 %v58
  %v172 = vunpack.c.l.b16 %v59
  %v173 = vunpack.c.h.b16 %v59
  %v174 = vunpack.c.l.b16 %v60
  %v175 = vunpack.c.l.b16 %v61
  %v176 = vunpack.c.h.b16 %v61
  %v177 = vunpack.c.l.b16 %v62
  %v178 = vunpack.c.l.b16 %v63
  %v179 = vunpack.c.h.b16 %v63
  %v180 = vunpack.c.l.b16 %v64
  %v181 = vunpack.c.l.b16 %v65
  %v182 = vunpack.c.h.b16 %v65
  %v183 = vunpack.c.l.b16 %v66
  %v184 = vunpack.c.l.b16 %v67
  %v185 = vunpack.c.h.b16 %v67
  %v186 = vunpack.c.l.b16 %v68
  %v187 = vunpack.c.l.b16 %v69
  %v188 = vunpack.c.h.b16 %v69
  %v189 = vunpack.c.l.b16 %v70
  %v190 = vunpack.c.l.b16 %v71
  %v191 = vunpack.c.h.b16 %v71
  %v192 = vunpack.c.l.b16 %v72
  %v193 = vunpack.c.l.b16 %v73
  %v194 = vunpack.c.h.b16 %v73
  %v195 = vunpack.c.l.b16 %v74
  %v196 = vunpack.c.l.b16 %v75
  %v197 = vunpack.c.h.b16 %v75
  %v198 = vunpack.c.l.b16 %v76
  %v199 = vunpack.c.l.b16 %v77
  %v200 = vunpack.c.h.b16 %v77
  %v201 = vunpack.c.l.b16 %v78
  %v202 = vunpack.c.l.b16 %v79
  %v203 = vunpack.c.h.b16 %v79
  %v204 = vunpack.c.l.b16 %v80
  %v205 = vunpack.c.l.b16 %v81
  %v206 = vunpack.c.h.b16 %v81
  %v207 = vunpack.c.l.b16 %v82
  %v208 = vunpack.c.l.b16 %v83
  %v209 = vunpack.c.h.b16 %v83
  %v210 = vunpack.c.l.b16 %v84
  %v211 = vunpack.c.l.b16 %v85
  %v212 = vunpack.c.h.b16 %v85
  %v213 = vunpack.c.l.b16 %v86
  %v214 = vunpack.c.l.b16 %v87
  %v215 = vunpack.c.h.b16 %v87
  %v216 = vunpack.c.l.b16 %v88
  %v217 = vpack.c.b16 %v172, %v169
  %v218 = vpack.c.b16 %v173, %v170
  %v219 = vpack.c.b16 %v174, %v171
  %v220 = vpack.c.b16 %v178, %v175
  %v221 = vpack.c.b16 %v179, %v176
  %v222 = vpack.c.b16 %v180, %v177
  %v223 = vpack.c.b16 %v184, %v181
  %v224 = vpack.c.b16 %v185, %v182
  %v225 = vpack.c.b16 %v186, %v183
  %v226 = vpack.c.b16 %v190, %v187
  %v227 = vpack.c.b16 %v191, %v188
  %v228 = vpack.c.b16 %v192, %v189
  %v229 = vpack.c.b16 %v196, %v193
  %v230 = vpack.c.b16 %v197, %v194
  %v231 = vpack.c.b16 %v198, %v195
  %v232 = vpack.c.b16 %v202, %v199
  %v233 = vpack.c.b16 %v203, %v200
  %v234 = vpack.c.b16 %v204, %v201
  %v235 = vpack.c.b16 %v208, %v205
  %v236 = vpack.c.b16 %v209, %v206
  %v237 = vpack.c.b16 %v210, %v207
  %v238 = vpack.c.b16 %v214, %v211
  %v239 = vpack.c.b16 %v215, %v212
  %v240 = vpack.c.b16 %v216, %v213
  %v313 = vunpack.c.l.b16 %v89
  %v314 = vunpack.c.l.b16 %v90
  %v315 = vunpack.c.l.b16 %v91
  %v316 = vunpack.c.l.b16 %v92
  %v317 = vunpack.c.l.b16 %v93
  %v318 = vunpack.c.l.b16 %v94
  %v319 = vunpack.c.l.b16 %v95
  %v320 = vunpack.c.l.b16 %v96
  %v321 = vunpack.c.l.b16 %v97
  %v322 = vunpack.c.l.b16 %v98
  %v323 = vunpack.c.l.b16 %v99
  %v324 = vunpack.c.l.b16 %v100
  %v325 = vunpack.c.l.b16 %v101
  %v326 = vunpack.c.l.b16 %v102
  %v327 = vunpack.c.l.b16 %v103
  %v328 = vunpack.c.l.b16 %v104
  %v329 = vunpack.c.l.b16 %v105
  %v330 = vunpack.c.l.b16 %v106
  %v331 = vunpack.c.l.b16 %v107
  %v332 = vunpack.c.l.b16 %v108
  %v333 = vunpack.c.l.b16 %v109
  %v334 = vunpack.c.l.b16 %v110
  %v335 = vunpack.c.l.b16 %v111
  %v336 = vunpack.c.l.b16 %v112
  %v337 = vunpack.c.l.b16 %v113
  %v338 = vunpack.c.l.b16 %v114
  %v339 = vunpack.c.l.b16 %v115
  %v340 = vunpack.c.l.b16 %v116
  %v341 = vunpack.c.l.b16 %v117
  %v342 = vunpack.c.l.b16 %v118
  %v343 = vunpack.c.l.b16 %v119
  %v344 = vunpack.c.l.b16 %v120
  %v345 = vunpack.c.l.b16 %v121
  %v346 = vunpack.c.l.b16 %v122
  %v347 = vunpack.c.l.b16 %v123
  %v348 = vunpack.c.l.b16 %v124
  %v349 = vunpack.c.l.b16 %v125
  %v350 = vunpack.c.l.b16 %v126
  %v351 = vunpack.c.l.b16 %v127
  %v352 = vunpack.c.l.b16 %v128
  %v353 = vunpack.c.l.b16 %v129
  %v354 = vunpack.c.l.b16 %v130
  %v355 = vunpack.c.l.b16 %v131
  %v356 = vunpack.c.l.b16 %v132
  %v357 = vunpack.c.l.b16 %v133
  %v358 = vunpack.c.l.b16 %v134
  %v359 = vunpack.c.l.b16 %v135
  %v360 = vunpack.c.l.b16 %v136
  %v361 = vpack.c.b16 %v314, %v313
  %v362 = vpack.c.b16 %v316, %v315
  %v363 = vpack.c.b16 %v318, %v317
  %v364 = vpack.c.b16 %v320, %v319
  %v365 = vpack.c.b16 %v322, %v321
  %v366 = vpack.c.b16 %v324, %v323
  %v367 = vpack.c.b16 %v326, %v325
  %v368 = vpack.c.b16 %v328, %v327
  %v369 = vpack.c.b16 %v330, %v329
  %v370 = vpack.c.b16 %v332, %v331
  %v371 = vpack.c.b16 %v334, %v333
  %v372 = vpack.c.b16 %v336, %v335
  %v373 = vpack.c.b16 %v338, %v337
  %v374 = vpack.c.b16 %v340, %v339
  %v375 = vpack.c.b16 %v342, %v341
  %v376 = vpack.c.b16 %v344, %v343
  %v377 = vpack.c.b16 %v346, %v345
  %v378 = vpack.c.b16 %v348, %v347
  %v379 = vpack.c.b16 %v350, %v349
  %v380 = vpack.c.b16 %v352, %v351
  %v381 = vpack.c.b16 %v354, %v353
  %v382 = vpack.c.b16 %v356, %v355
  %v383 = vpack.c.b16 %v358, %v357
  %v384 = vpack.c.b16 %v360, %v359
  %409 = vmatprep.subr.bf16.mxu0 0
  %410 = vmatpush1.bf16.msra.mxu0 %v361
  %411 = vmatprep.subr.bf16.mxu0 0
  %412 = vmatpush1.bf16.msra.mxu0 %v362
  %413 = vmatprep.subr.bf16.mxu0 0
  %414 = vmatpush1.bf16.msra.mxu0 %v363
  %415 = vmatprep.subr.bf16.mxu0 0
  %416 = vmatpush1.bf16.msra.mxu0 %v364
  %417 = vmatprep.subr.bf16.mxu0 0
  %418 = vmatpush1.bf16.msra.mxu0 %v365
  %419 = vmatprep.subr.bf16.mxu0 0
  %420 = vmatpush1.bf16.msra.mxu0 %v366
  %421 = vmatprep.subr.bf16.mxu0 0
  %422 = vmatpush1.bf16.msra.mxu0 %v367
  %423 = vmatprep.subr.bf16.mxu0 0
  %424 = vmatpush1.bf16.msra.mxu0 %v368
  %425 = vmatprep.subr.bf16.mxu0 0
  %426 = vmatpush1.bf16.msra.mxu0 %v369
  %427 = vmatprep.subr.bf16.mxu0 0
  %428 = vmatpush1.bf16.msra.mxu0 %v370
  %429 = vmatprep.subr.bf16.mxu0 0
  %430 = vmatpush1.bf16.msra.mxu0 %v371
  %431 = vmatprep.subr.bf16.mxu0 0
  %432 = vmatpush1.bf16.msra.mxu0 %v372
  %433 = vmatprep.subr.bf16.mxu0 0
  %434 = vmatpush1.bf16.msra.mxu0 %v373
  %435 = vmatprep.subr.bf16.mxu0 0
  %436 = vmatpush1.bf16.msra.mxu0 %v374
  %437 = vmatprep.subr.bf16.mxu0 0
  %438 = vmatpush1.bf16.msra.mxu0 %v375
  %439 = vmatprep.subr.bf16.mxu0 0
  %440 = vmatpush1.bf16.msra.mxu0 %v376
  %441 = vmatprep.mubr.bf16.mxu0 %v218
  %442 = vmatmul.mubr.bf16.gmra.mrb[0].mxu0 %v217
  %v443 = vpop.f32.mrb[0].mxu0
  %v444 = vadd.f32 0.0, %v443
  %v445 = vpop.f32.mrb[0].mxu0
  %v446 = vpop.f32.mrb[0].mxu0
  %v447 = vadd.f32 0.0, %v446
  %v448 = vpop.f32.mrb[0].mxu0
  %449 = vmatprep.mubr.bf16.mxu0 %v221
  %450 = vmatmul.mubr.bf16.gmra.mrb[0].mxu0 %v220
  %v451 = vpop.f32.mrb[0].mxu0
  %v452 = vadd.f32 0.0, %v451
  %v453 = vpop.f32.mrb[0].mxu0
  %v454 = vpop.f32.mrb[0].mxu0
  %v455 = vadd.f32 0.0, %v454
  %v456 = vpop.f32.mrb[0].mxu0
  %457 = vmatprep.mubr.bf16.mxu0 %v224
  %458 = vmatmul.mubr.bf16.gmra.mrb[0].mxu0 %v223
  %v459 = vpop.f32.mrb[0].mxu0
  %v460 = vadd.f32 0.0, %v459
  %v461 = vpop.f32.mrb[0].mxu0
  %v462 = vpop.f32.mrb[0].mxu0
  %v463 = vadd.f32 0.0, %v462
  %v464 = vpop.f32.mrb[0].mxu0
  %465 = vmatprep.mubr.bf16.mxu0 %v227
  %466 = vmatmul.mubr.bf16.gmra.mrb[0].mxu0 %v226
  %v467 = vpop.f32.mrb[0].mxu0
  %v468 = vadd.f32 0.0, %v467
  %v469 = vpop.f32.mrb[0].mxu0
  %v470 = vpop.f32.mrb[0].mxu0
  %v471 = vadd.f32 0.0, %v470
  %v472 = vpop.f32.mrb[0].mxu0
  %473 = vmatprep.mubr.bf16.mxu0 %v230
  %474 = vmatmul.mubr.bf16.gmra.mrb[0].mxu0 %v229
  %v475 = vpop.f32.mrb[0].mxu0
  %v476 = vadd.f32 0.0, %v475
  %v477 = vpop.f32.mrb[0].mxu0
  %v478 = vpop.f32.mrb[0].mxu0
  %v479 = vadd.f32 0.0, %v478
  %v480 = vpop.f32.mrb[0].mxu0
  %481 = vmatprep.mubr.bf16.mxu0 %v233
  %482 = vmatmul.mubr.bf16.gmra.mrb[0].mxu0 %v232
  %v483 = vpop.f32.mrb[0].mxu0
  %v484 = vadd.f32 0.0, %v483
  %v485 = vpop.f32.mrb[0].mxu0
  %v486 = vpop.f32.mrb[0].mxu0
  %v487 = vadd.f32 0.0, %v486
  %v488 = vpop.f32.mrb[0].mxu0
  %489 = vmatprep.mubr.bf16.mxu0 %v236
  %490 = vmatmul.mubr.bf16.gmra.mrb[0].mxu0 %v235
  %v491 = vpop.f32.mrb[0].mxu0
  %v492 = vadd.f32 0.0, %v491
  %v493 = vpop.f32.mrb[0].mxu0
  %v494 = vpop.f32.mrb[0].mxu0
  %v495 = vadd.f32 0.0, %v494
  %v496 = vpop.f32.mrb[0].mxu0
  %497 = vmatprep.mubr.bf16.mxu0 %v239
  %498 = vmatmul.mubr.bf16.gmra.mrb[0].mxu0 %v238
  %v499 = vpop.f32.mrb[0].mxu0
  %v500 = vadd.f32 0.0, %v499
  %v501 = vpop.f32.mrb[0].mxu0
  %v502 = vpop.f32.mrb[0].mxu0
  %v503 = vadd.f32 0.0, %v502
  %v504 = vpop.f32.mrb[0].mxu0
  %505 = vdwg.mxu0
  %506 = vmatprep.subr.bf16.mxu0 0
  %507 = vmatpush1.bf16.msra.mxu0 %v377
  %508 = vmatprep.subr.bf16.mxu0 0
  %509 = vmatpush1.bf16.msra.mxu0 %v378
  %510 = vmatprep.subr.bf16.mxu0 0
  %511 = vmatpush1.bf16.msra.mxu0 %v379
  %512 = vmatprep.subr.bf16.mxu0 0
  %513 = vmatpush1.bf16.msra.mxu0 %v380
  %514 = vmatprep.subr.bf16.mxu0 0
  %515 = vmatpush1.bf16.msra.mxu0 %v381
  %516 = vmatprep.subr.bf16.mxu0 0
  %517 = vmatpush1.bf16.msra.mxu0 %v382
  %518 = vmatprep.subr.bf16.mxu0 0
  %519 = vmatpush1.bf16.msra.mxu0 %v383
  %520 = vmatprep.subr.bf16.mxu0 0
  %521 = vmatpush1.bf16.msra.mxu0 %v384
  %522 = vmatprep.subr.bf16.mxu0 0
  %523 = vmatpush1.bf16.msra.mxu0 0
  %524 = vmatprep.subr.bf16.mxu0 0
  %525 = vmatpush1.bf16.msra.mxu0 0
  %526 = vmatprep.subr.bf16.mxu0 0
  %527 = vmatpush1.bf16.msra.mxu0 0
  %528 = vmatprep.subr.bf16.mxu0 0
  %529 = vmatpush1.bf16.msra.mxu0 0
  %530 = vmatprep.subr.bf16.mxu0 0
  %531 = vmatpush1.bf16.msra.mxu0 0
  %532 = vmatprep.subr.bf16.mxu0 0
  %533 = vmatpush1.bf16.msra.mxu0 0
  %534 = vmatprep.subr.bf16.mxu0 0
  %535 = vmatpush1.bf16.msra.mxu0 0
  %536 = vmatprep.subr.bf16.mxu0 0
  %537 = vmatpush1.bf16.msra.mxu0 0
  %538 = vmatprep.mubr.bf16.mxu0 0
  %539 = vmatmul.mubr.bf16.gmra.mrb[0].mxu0 %v219
  %v540 = vpop.f32.mrb[0].mxu0
  %v541 = vadd.f32 %v444, %v540
  %v542 = vpop.f32.mrb[0].mxu0
  %v543 = vpop.f32.mrb[0].mxu0
  %v544 = vadd.f32 %v447, %v543
  %v545 = vpop.f32.mrb[0].mxu0
  %546 = vmatprep.mubr.bf16.mxu0 0
  %547 = vmatmul.mubr.bf16.gmra.mrb[0].mxu0 %v222
  %v548 = vpop.f32.mrb[0].mxu0
  %v549 = vadd.f32 %v452, %v548
  %v550 = vpop.f32.mrb[0].mxu0
  %v551 = vpop.f32.mrb[0].mxu0
  %v552 = vadd.f32 %v455, %v551
  %v553 = vpop.f32.mrb[0].mxu0
  %554 = vmatprep.mubr.bf16.mxu0 0
  %555 = vmatmul.mubr.bf16.gmra.mrb[0].mxu0 %v225
  %v556 = vpop.f32.mrb[0].mxu0
  %v557 = vadd.f32 %v460, %v556
  %v558 = vpop.f32.mrb[0].mxu0
  %v559 = vpop.f32.mrb[0].mxu0
  %v560 = vadd.f32 %v463, %v559
  %v561 = vpop.f32.mrb[0].mxu0
  %562 = vmatprep.mubr.bf16.mxu0 0
  %563 = vmatmul.mubr.bf16.gmra.mrb[0].mxu0 %v228
  %v564 = vpop.f32.mrb[0].mxu0
  %v565 = vadd.f32 %v468, %v564
  %v566 = vpop.f32.mrb[0].mxu0
  %v567 = vpop.f32.mrb[0].mxu0
  %v568 = vadd.f32 %v471, %v567
  %v569 = vpop.f32.mrb[0].mxu0
  %570 = vmatprep.mubr.bf16.mxu0 0
  %571 = vmatmul.mubr.bf16.gmra.mrb[0].mxu0 %v231
  %v572 = vpop.f32.mrb[0].mxu0
  %v573 = vadd.f32 %v476, %v572
  %v574 = vpop.f32.mrb[0].mxu0
  %v575 = vpop.f32.mrb[0].mxu0
  %v576 = vadd.f32 %v479, %v575
  %v577 = vpop.f32.mrb[0].mxu0
  %578 = vmatprep.mubr.bf16.mxu0 0
  %579 = vmatmul.mubr.bf16.gmra.mrb[0].mxu0 %v234
  %v580 = vpop.f32.mrb[0].mxu0
  %v581 = vadd.f32 %v484, %v580
  %v582 = vpop.f32.mrb[0].mxu0
  %v583 = vpop.f32.mrb[0].mxu0
  %v584 = vadd.f32 %v487, %v583
  %v585 = vpop.f32.mrb[0].mxu0
  %586 = vmatprep.mubr.bf16.mxu0 0
  %587 = vmatmul.mubr.bf16.gmra.mrb[0].mxu0 %v237
  %v588 = vpop.f32.mrb[0].mxu0
  %v589 = vadd.f32 %v492, %v588
  %v590 = vpop.f32.mrb[0].mxu0
  %v591 = vpop.f32.mrb[0].mxu0
  %v592 = vadd.f32 %v495, %v591
  %v593 = vpop.f32.mrb[0].mxu0
  %594 = vmatprep.mubr.bf16.mxu0 0
  %595 = vmatmul.mubr.bf16.gmra.mrb[0].mxu0 %v240
  %v596 = vpop.f32.mrb[0].mxu0
  %v597 = vadd.f32 %v500, %v596
  %v598 = vpop.f32.mrb[0].mxu0
  %v599 = vpop.f32.mrb[0].mxu0
  %v600 = vadd.f32 %v503, %v599
  %v601 = vpop.f32.mrb[0].mxu0
  %602 = vdwg.mxu0
  %v603 = vadd.f32 %v41, %v541
  %v604 = vadd.f32 %v42, %v544
  %v605 = vadd.f32 %v43, %v549
  %v606 = vadd.f32 %v44, %v552
  %v607 = vadd.f32 %v45, %v557
  %v608 = vadd.f32 %v46, %v560
  %v609 = vadd.f32 %v47, %v565
  %v610 = vadd.f32 %v48, %v568
  %v611 = vadd.f32 %v49, %v573
  %v612 = vadd.f32 %v50, %v576
  %v613 = vadd.f32 %v51, %v581
  %v614 = vadd.f32 %v52, %v584
  %v615 = vadd.f32 %v53, %v589
  %v616 = vadd.f32 %v54, %v592
  %v617 = vadd.f32 %v55, %v597
  %v618 = vadd.f32 %v56, %v600
  %619 = vst [vmem:[#allocation2] sm:$0xff] %v603
  %620 = vst [vmem:[#allocation2 + $0x8] sm:$0xff] %v604
  %621 = vst [vmem:[#allocation2 + $0x10] sm:$0xff] %v605
  %622 = vst [vmem:[#allocation2 + $0x18] sm:$0xff] %v606
  %623 = vst [vmem:[#allocation2 + $0x20] sm:$0xff] %v607
  %624 = vst [vmem:[#allocation2 + $0x28] sm:$0xff] %v608
  %625 = vst [vmem:[#allocation2 + $0x30] sm:$0xff] %v609
  %626 = vst [vmem:[#allocation2 + $0x38] sm:$0xff] %v610
  %627 = vst [vmem:[#allocation2 + $0x40] sm:$0xff] %v611
  %628 = vst [vmem:[#allocation2 + $0x48] sm:$0xff] %v612
  %629 = vst [vmem:[#allocation2 + $0x50] sm:$0xff] %v613
  %630 = vst [vmem:[#allocation2 + $0x58] sm:$0xff] %v614
  %631 = vst [vmem:[#allocation2 + $0x60] sm:$0xff] %v615
  %632 = vst [vmem:[#allocation2 + $0x68] sm:$0xff] %v616
  %633 = vst [vmem:[#allocation2 + $0x70] sm:$0xff] %v617
  %634 = vst [vmem:[#allocation2 + $0x78] sm:$0xff] %v618
  // Predicated region
  $region26: #{haframe_wrn_forward.15} parent=0 // pred_check
    %p635 = pneg %p21
  $region27: #{haframe_wrn_forward.15} parent=0 // pred_check_branch
    %637 = sbr.rel (%p635) target = $region29
  $region28: #{haframe_wrn_forward.15} parent=0 // pred_region
    %v638 = vld [vmem:[#allocation2] sm:$0xff]
    %v639 = vld [vmem:[#allocation2 + $0x8] sm:$0xff]
    %v640 = vld [vmem:[#allocation2 + $0x10] sm:$0xff]
    %v641 = vld [vmem:[#allocation2 + $0x18] sm:$0xff]
    %v642 = vld [vmem:[#allocation2 + $0x20] sm:$0xff]
    %v643 = vld [vmem:[#allocation2 + $0x28] sm:$0xff]
    %v644 = vld [vmem:[#allocation2 + $0x30] sm:$0xff]
    %v645 = vld [vmem:[#allocation2 + $0x38] sm:$0xff]
    %v646 = vld [vmem:[#allocation2 + $0x40] sm:$0xff]
    %v647 = vld [vmem:[#allocation2 + $0x48] sm:$0xff]
    %v648 = vld [vmem:[#allocation2 + $0x50] sm:$0xff]
    %v649 = vld [vmem:[#allocation2 + $0x58] sm:$0xff]
    %v650 = vld [vmem:[#allocation2 + $0x60] sm:$0xff]
    %v651 = vld [vmem:[#allocation2 + $0x68] sm:$0xff]
    %v652 = vld [vmem:[#allocation2 + $0x70] sm:$0xff]
    %v653 = vld [vmem:[#allocation2 + $0x78] sm:$0xff]
    %v654 = vld [vmem:[%s4] sm:$0xff]
    %v655 = vld [vmem:[%s4 + $0x8] sm:$0xff]
    %v656 = vld [vmem:[%s4 + $0x10] sm:$0xff]
    %v657 = vld [vmem:[%s4 + $0x18] sm:$0xff]
    %v658 = vld [vmem:[%s4 + $0x20] sm:$0xff]
    %v659 = vld [vmem:[%s4 + $0x28] sm:$0xff]
    %v660 = vld [vmem:[%s4 + $0x30] sm:$0xff]
    %v661 = vld [vmem:[%s4 + $0x38] sm:$0xff]
    %v662 = vld [vmem:[%s4 + $0x40] sm:$0xff]
    %v663 = vld [vmem:[%s4 + $0x48] sm:$0xff]
    %v664 = vld [vmem:[%s4 + $0x50] sm:$0xff]
    %v665 = vld [vmem:[%s4 + $0x58] sm:$0xff]
    %v666 = vld [vmem:[%s4 + $0x60] sm:$0xff]
    %v667 = vld [vmem:[%s4 + $0x68] sm:$0xff]
    %v668 = vld [vmem:[%s4 + $0x70] sm:$0xff]
    %v669 = vld [vmem:[%s4 + $0x78] sm:$0xff]
    %v670 = vadd.f32 %v638, %v654
    %v671 = vadd.f32 %v639, %v655
    %v672 = vadd.f32 %v640, %v656
    %v673 = vadd.f32 %v641, %v657
    %v674 = vadd.f32 %v642, %v658
    %v675 = vadd.f32 %v643, %v659
    %v676 = vadd.f32 %v644, %v660
    %v677 = vadd.f32 %v645, %v661
    %v678 = vadd.f32 %v646, %v662
    %v679 = vadd.f32 %v647, %v663
    %v680 = vadd.f32 %v648, %v664
    %v681 = vadd.f32 %v649, %v665
    %v682 = vadd.f32 %v650, %v666
    %v683 = vadd.f32 %v651, %v667
    %v684 = vadd.f32 %v652, %v668
    %v685 = vadd.f32 %v653, %v669
    %v686 = vld [vmem:[%s2] sm:$0x1]
    %v688 = vlaneseq
    %v689 = vshrl.u32 %v688, 7
    %v690 = vsub.s32 0, %v689
    %v691 = vrot.slane %v686, %v690
    %v693 = vmul.f32 %v670, %v691
    %v694 = vmul.f32 %v671, %v691
    %v695 = vmul.f32 %v672, %v691
    %v696 = vmul.f32 %v673, %v691
    %v697 = vmul.f32 %v674, %v691
    %v698 = vmul.f32 %v675, %v691
    %v699 = vmul.f32 %v676, %v691
    %v700 = vmul.f32 %v677, %v691
    %v701 = vmul.f32 %v678, %v691
    %v702 = vmul.f32 %v679, %v691
    %v703 = vmul.f32 %v680, %v691
    %v704 = vmul.f32 %v681, %v691
    %v705 = vmul.f32 %v682, %v691
    %v706 = vmul.f32 %v683, %v691
    %v707 = vmul.f32 %v684, %v691
    %v708 = vmul.f32 %v685, %v691
    %v709 = vld [vmem:[%s3] sm:$0x1]
    %v711 = vlaneseq
    %v712 = vshrl.u32 %v711, 7
    %v713 = vsub.s32 0, %v712
    %v714 = vrot.slane %v709, %v713
    %v716 = vadd.f32 %v693, %v714
    %v717 = vadd.f32 %v694, %v714
    %v718 = vadd.f32 %v695, %v714
    %v719 = vadd.f32 %v696, %v714
    %v720 = vadd.f32 %v697, %v714
    %v721 = vadd.f32 %v698, %v714
    %v722 = vadd.f32 %v699, %v714
    %v723 = vadd.f32 %v700, %v714
    %v724 = vadd.f32 %v701, %v714
    %v725 = vadd.f32 %v702, %v714
    %v726 = vadd.f32 %v703, %v714
    %v727 = vadd.f32 %v704, %v714
    %v728 = vadd.f32 %v705, %v714
    %v729 = vadd.f32 %v706, %v714
    %v730 = vadd.f32 %v707, %v714
    %v731 = vadd.f32 %v708, %v714
    %v732 = vmax.f32 %v716, 0.0
    %v733 = vmax.f32 %v717, 0.0
    %v734 = vmax.f32 %v718, 0.0
    %v735 = vmax.f32 %v719, 0.0
    %v736 = vmax.f32 %v720, 0.0
    %v737 = vmax.f32 %v721, 0.0
    %v738 = vmax.f32 %v722, 0.0
    %v739 = vmax.f32 %v723, 0.0
    %v740 = vmax.f32 %v724, 0.0
    %v741 = vmax.f32 %v725, 0.0
    %v742 = vmax.f32 %v726, 0.0
    %v743 = vmax.f32 %v727, 0.0
    %v744 = vmax.f32 %v728, 0.0
    %v745 = vmax.f32 %v729, 0.0
    %v746 = vmax.f32 %v730, 0.0
    %v747 = vmax.f32 %v731, 0.0
    %v748 = vpack.c.bf16 %v733, %v732
    %v749 = vpack.c.bf16 %v735, %v734
    %v750 = vpack.c.bf16 %v737, %v736
    %v751 = vpack.c.bf16 %v739, %v738
    %v752 = vpack.c.bf16 %v741, %v740
    %v753 = vpack.c.bf16 %v743, %v742
    %v754 = vpack.c.bf16 %v745, %v744
    %v755 = vpack.c.bf16 %v747, %v746
    %v764 = vunpack.c.l.b16 %v748
    %v765 = vunpack.c.h.b16 %v748
    %v766 = vunpack.c.l.b16 %v749
    %v767 = vunpack.c.h.b16 %v749
    %v768 = vunpack.c.l.b16 %v750
    %v769 = vunpack.c.h.b16 %v750
    %v770 = vunpack.c.l.b16 %v751
    %v771 = vunpack.c.h.b16 %v751
    %v772 = vunpack.c.l.b16 %v752
    %v773 = vunpack.c.h.b16 %v752
    %v774 = vunpack.c.l.b16 %v753
    %v775 = vunpack.c.h.b16 %v753
    %v776 = vunpack.c.l.b16 %v754
    %v777 = vunpack.c.h.b16 %v754
    %v778 = vunpack.c.l.b16 %v755
    %v779 = vunpack.c.h.b16 %v755
    %v780 = vpack.c.b16 %v764, %v764
    %v781 = vpack.c.b16 %v765, %v765
    %v782 = vpack.c.b16 %v766, %v766
    %v783 = vpack.c.b16 %v767, %v767
    %v784 = vpack.c.b16 %v768, %v768
    %v785 = vpack.c.b16 %v769, %v769
    %v786 = vpack.c.b16 %v770, %v770
    %v787 = vpack.c.b16 %v771, %v771
    %v788 = vpack.c.b16 %v772, %v772
    %v789 = vpack.c.b16 %v773, %v773
    %v790 = vpack.c.b16 %v774, %v774
    %v791 = vpack.c.b16 %v775, %v775
    %v792 = vpack.c.b16 %v776, %v776
    %v793 = vpack.c.b16 %v777, %v777
    %v794 = vpack.c.b16 %v778, %v778
    %v795 = vpack.c.b16 %v779, %v779
    %812 = vst [vmem:[%s5] sm:$0xf] %v780
    %813 = vst [vmem:[%s5 + $0x4] sm:$0xf] %v781
    %814 = vst [vmem:[%s5 + $0x8] sm:$0xf] %v782
    %815 = vst [vmem:[%s5 + $0xc] sm:$0xf] %v783
    %816 = vst [vmem:[%s5 + $0x10] sm:$0xf] %v784
    %817 = vst [vmem:[%s5 + $0x14] sm:$0xf] %v785
    %818 = vst [vmem:[%s5 + $0x18] sm:$0xf] %v786
    %819 = vst [vmem:[%s5 + $0x1c] sm:$0xf] %v787
    %820 = vst [vmem:[%s5 + $0x20] sm:$0xf] %v788
    %821 = vst [vmem:[%s5 + $0x24] sm:$0xf] %v789
    %822 = vst [vmem:[%s5 + $0x28] sm:$0xf] %v790
    %823 = vst [vmem:[%s5 + $0x2c] sm:$0xf] %v791
    %824 = vst [vmem:[%s5 + $0x30] sm:$0xf] %v792
    %825 = vst [vmem:[%s5 + $0x34] sm:$0xf] %v793
    %826 = vst [vmem:[%s5 + $0x38] sm:$0xf] %v794
    %827 = vst [vmem:[%s5 + $0x3c] sm:$0xf] %v795
  $region29: #{haframe_wrn_forward.15} parent=0 // pred_fallthru
    _
  // Predicated region
  $region30: #{haframe_wrn_forward.15} parent=0 // pred_check
    _
  $region31: #{haframe_wrn_forward.15} parent=0 // pred_check_branch
    %829 = sbr.rel (0) target = $region33
  $region32: #{haframe_wrn_forward.15} parent=0 // pred_region
    _
  $region33: #{haframe_wrn_forward.15} parent=0 // pred_fallthru
    _
  // Predicated region
  $region34: #{haframe_wrn_forward.15} parent=0 // pred_check
    _
  $region35: #{haframe_wrn_forward.15} parent=0 // pred_check_branch
    %831 = sbr.rel (0) target = $region37
  $region36: #{haframe_wrn_forward.15} parent=0 // pred_region
    _
  $region37: #{haframe_wrn_forward.15} parent=0 // pred_fallthru
    _

// kernel: haframe_wrn_forward.17
$region0: #{haframe_wrn_forward.17}
  #allocation0 [shape = 'u32[]', space=smem, size = 0x4, offset = 0x4, fixed_abs, tag = 'smem constant byte address 0x4 - core index']
  #allocation1 [shape = 'u32[144,128]{1,0:T(1,128)}', space=vmem, size = 0x12000, scoped, tag = 'internal scratch']
  #allocation2 [shape = 'f32[32,128]{1,0:T(8,128)}', space=vmem, size = 0x4000, scoped, tag = 'scratch operand']
  %s0 = inlined_call_operand.vmem [shape: bf16[32,384], index: 0, kind: input, shape index: {}]
  %s1 = inlined_call_operand.vmem [shape: bf16[384,128], index: 1, kind: input, shape index: {}]
  %s2 = inlined_call_operand.vmem [shape: f32[1,128], index: 2, kind: input, shape index: {}]
  %s3 = inlined_call_operand.vmem [shape: f32[1,128], index: 3, kind: input, shape index: {}]
  %s4 = inlined_call_operand.vmem [shape: bf16[32,128], index: 4, kind: output, shape index: {}]
  %s5 = sld [smem:[#allocation0]]
  $region34: #{haframe_wrn_forward.17} parent=0
    _
  %s7 = ssub.s32 1, %s5
  %s8 = scalar_select 0, %s7, %s5
  // Predicated region
  $region2: #{haframe_wrn_forward.17} parent=0 // pred_check
    _
  $region3: #{haframe_wrn_forward.17} parent=0 // pred_check_branch
    %10 = sbr.rel (0) target = $region5
  $region4: #{haframe_wrn_forward.17} parent=0 // pred_region
    _
  $region5: #{haframe_wrn_forward.17} parent=0 // pred_fallthru
    _
  // Predicated region
  $region6: #{haframe_wrn_forward.17} parent=0 // pred_check
    _
  $region7: #{haframe_wrn_forward.17} parent=0 // pred_check_branch
    %12 = sbr.rel (0) target = $region9
  $region8: #{haframe_wrn_forward.17} parent=0 // pred_region
    _
  $region9: #{haframe_wrn_forward.17} parent=0 // pred_fallthru
    _
  // Predicated region
  $region10: #{haframe_wrn_forward.17} parent=0 // pred_check
    _
  $region11: #{haframe_wrn_forward.17} parent=0 // pred_check_branch
    %14 = sbr.rel (0) target = $region13
  $region12: #{haframe_wrn_forward.17} parent=0 // pred_region
    _
  $region13: #{haframe_wrn_forward.17} parent=0 // pred_fallthru
    _
  // Predicated region
  $region14: #{haframe_wrn_forward.17} parent=0 // pred_check
    _
  $region15: #{haframe_wrn_forward.17} parent=0 // pred_check_branch
    %16 = sbr.rel (0) target = $region17
  $region16: #{haframe_wrn_forward.17} parent=0 // pred_region
    _
  $region17: #{haframe_wrn_forward.17} parent=0 // pred_fallthru
    _
  %p18 = scmp.eq.s32.totalorder 0, 0
  // Predicated region
  $region18: #{haframe_wrn_forward.17} parent=0 // pred_check
    %p19 = pneg %p18
  $region19: #{haframe_wrn_forward.17} parent=0 // pred_check_branch
    %21 = sbr.rel (%p19) target = $region21
  $region20: #{haframe_wrn_forward.17} parent=0 // pred_region
    %22 = vst [vmem:[#allocation2] sm:$0xff] 0.0
    %23 = vst [vmem:[#allocation2 + $0x8] sm:$0xff] 0.0
    %24 = vst [vmem:[#allocation2 + $0x10] sm:$0xff] 0.0
    %25 = vst [vmem:[#allocation2 + $0x18] sm:$0xff] 0.0
  $region21: #{haframe_wrn_forward.17} parent=0 // pred_fallthru
    _
  %v26 = vld [vmem:[#allocation2] sm:$0xff]
  %v27 = vld [vmem:[#allocation2 + $0x8] sm:$0xff]
  %v28 = vld [vmem:[#allocation2 + $0x10] sm:$0xff]
  %v29 = vld [vmem:[#allocation2 + $0x18] sm:$0xff]
  %v30 = vld [vmem:[%s0] sm:$0xff]
  %v31 = vld [vmem:[%s0 + $0x8] sm:$0xf]
  %v32 = vld [vmem:[%s0 + $0xc] sm:$0xff]
  %v33 = vld [vmem:[%s0 + $0x14] sm:$0xf]
  %v34 = vld [vmem:[%s0 + $0x18] sm:$0xff]
  %v35 = vld [vmem:[%s0 + $0x20] sm:$0xf]
  %v36 = vld [vmem:[%s0 + $0x24] sm:$0xff]
  %v37 = vld [vmem:[%s0 + $0x2c] sm:$0xf]
  %v38 = vld [vmem:[%s1] sm:$0xf]
  %v39 = vld [vmem:[%s1 + $0x4] sm:$0xf]
  %v40 = vld [vmem:[%s1 + $0x8] sm:$0xf]
  %v41 = vld [vmem:[%s1 + $0xc] sm:$0xf]
  %v42 = vld [vmem:[%s1 + $0x10] sm:$0xf]
  %v43 = vld [vmem:[%s1 + $0x14] sm:$0xf]
  %v44 = vld [vmem:[%s1 + $0x18] sm:$0xf]
  %v45 = vld [vmem:[%s1 + $0x1c] sm:$0xf]
  %v46 = vld [vmem:[%s1 + $0x20] sm:$0xf]
  %v47 = vld [vmem:[%s1 + $0x24] sm:$0xf]
  %v48 = vld [vmem:[%s1 + $0x28] sm:$0xf]
  %v49 = vld [vmem:[%s1 + $0x2c] sm:$0xf]
  %v50 = vld [vmem:[%s1 + $0x30] sm:$0xf]
  %v51 = vld [vmem:[%s1 + $0x34] sm:$0xf]
  %v52 = vld [vmem:[%s1 + $0x38] sm:$0xf]
  %v53 = vld [vmem:[%s1 + $0x3c] sm:$0xf]
  %v54 = vld [vmem:[%s1 + $0x40] sm:$0xf]
  %v55 = vld [vmem:[%s1 + $0x44] sm:$0xf]
  %v56 = vld [vmem:[%s1 + $0x48] sm:$0xf]
  %v57 = vld [vmem:[%s1 + $0x4c] sm:$0xf]
  %v58 = vld [vmem:[%s1 + $0x50] sm:$0xf]
  %v59 = vld [vmem:[%s1 + $0x54] sm:$0xf]
  %v60 = vld [vmem:[%s1 + $0x58] sm:$0xf]
  %v61 = vld [vmem:[%s1 + $0x5c] sm:$0xf]
  %v62 = vld [vmem:[%s1 + $0x60] sm:$0xf]
  %v63 = vld [vmem:[%s1 + $0x64] sm:$0xf]
  %v64 = vld [vmem:[%s1 + $0x68] sm:$0xf]
  %v65 = vld [vmem:[%s1 + $0x6c] sm:$0xf]
  %v66 = vld [vmem:[%s1 + $0x70] sm:$0xf]
  %v67 = vld [vmem:[%s1 + $0x74] sm:$0xf]
  %v68 = vld [vmem:[%s1 + $0x78] sm:$0xf]
  %v69 = vld [vmem:[%s1 + $0x7c] sm:$0xf]
  %v70 = vld [vmem:[%s1 + $0x80] sm:$0xf]
  %v71 = vld [vmem:[%s1 + $0x84] sm:$0xf]
  %v72 = vld [vmem:[%s1 + $0x88] sm:$0xf]
  %v73 = vld [vmem:[%s1 + $0x8c] sm:$0xf]
  %v74 = vld [vmem:[%s1 + $0x90] sm:$0xf]
  %v75 = vld [vmem:[%s1 + $0x94] sm:$0xf]
  %v76 = vld [vmem:[%s1 + $0x98] sm:$0xf]
  %v77 = vld [vmem:[%s1 + $0x9c] sm:$0xf]
  %v78 = vld [vmem:[%s1 + $0xa0] sm:$0xf]
  %v79 = vld [vmem:[%s1 + $0xa4] sm:$0xf]
  %v80 = vld [vmem:[%s1 + $0xa8] sm:$0xf]
  %v81 = vld [vmem:[%s1 + $0xac] sm:$0xf]
  %v82 = vld [vmem:[%s1 + $0xb0] sm:$0xf]
  %v83 = vld [vmem:[%s1 + $0xb4] sm:$0xf]
  %v84 = vld [vmem:[%s1 + $0xb8] sm:$0xf]
  %v85 = vld [vmem:[%s1 + $0xbc] sm:$0xf]
  %v94 = vunpack.c.l.b16 %v30
  %v95 = vunpack.c.h.b16 %v30
  %v96 = vunpack.c.l.b16 %v31
  %v97 = vunpack.c.l.b16 %v32
  %v98 = vunpack.c.h.b16 %v32
  %v99 = vunpack.c.l.b16 %v33
  %v100 = vunpack.c.l.b16 %v34
  %v101 = vunpack.c.h.b16 %v34
  %v102 = vunpack.c.l.b16 %v35
  %v103 = vunpack.c.l.b16 %v36
  %v104 = vunpack.c.h.b16 %v36
  %v105 = vunpack.c.l.b16 %v37
  %v106 = vpack.c.b16 %v97, %v94
  %v107 = vpack.c.b16 %v98, %v95
  %v108 = vpack.c.b16 %v99, %v96
  %v109 = vpack.c.b16 %v103, %v100
  %v110 = vpack.c.b16 %v104, %v101
  %v111 = vpack.c.b16 %v105, %v102
  %v166 = vunpack.c.l.b16 %v38
  %v167 = vunpack.c.l.b16 %v39
  %v168 = vunpack.c.l.b16 %v40
  %v169 = vunpack.c.l.b16 %v41
  %v170 = vunpack.c.l.b16 %v42
  %v171 = vunpack.c.l.b16 %v43
  %v172 = vunpack.c.l.b16 %v44
  %v173 = vunpack.c.l.b16 %v45
  %v174 = vunpack.c.l.b16 %v46
  %v175 = vunpack.c.l.b16 %v47
  %v176 = vunpack.c.l.b16 %v48
  %v177 = vunpack.c.l.b16 %v49
  %v178 = vunpack.c.l.b16 %v50
  %v179 = vunpack.c.l.b16 %v51
  %v180 = vunpack.c.l.b16 %v52
  %v181 = vunpack.c.l.b16 %v53
  %v182 = vunpack.c.l.b16 %v54
  %v183 = vunpack.c.l.b16 %v55
  %v184 = vunpack.c.l.b16 %v56
  %v185 = vunpack.c.l.b16 %v57
  %v186 = vunpack.c.l.b16 %v58
  %v187 = vunpack.c.l.b16 %v59
  %v188 = vunpack.c.l.b16 %v60
  %v189 = vunpack.c.l.b16 %v61
  %v190 = vunpack.c.l.b16 %v62
  %v191 = vunpack.c.l.b16 %v63
  %v192 = vunpack.c.l.b16 %v64
  %v193 = vunpack.c.l.b16 %v65
  %v194 = vunpack.c.l.b16 %v66
  %v195 = vunpack.c.l.b16 %v67
  %v196 = vunpack.c.l.b16 %v68
  %v197 = vunpack.c.l.b16 %v69
  %v198 = vunpack.c.l.b16 %v70
  %v199 = vunpack.c.l.b16 %v71
  %v200 = vunpack.c.l.b16 %v72
  %v201 = vunpack.c.l.b16 %v73
  %v202 = vunpack.c.l.b16 %v74
  %v203 = vunpack.c.l.b16 %v75
  %v204 = vunpack.c.l.b16 %v76
  %v205 = vunpack.c.l.b16 %v77
  %v206 = vunpack.c.l.b16 %v78
  %v207 = vunpack.c.l.b16 %v79
  %v208 = vunpack.c.l.b16 %v80
  %v209 = vunpack.c.l.b16 %v81
  %v210 = vunpack.c.l.b16 %v82
  %v211 = vunpack.c.l.b16 %v83
  %v212 = vunpack.c.l.b16 %v84
  %v213 = vunpack.c.l.b16 %v85
  %v214 = vpack.c.b16 %v167, %v166
  %v215 = vpack.c.b16 %v169, %v168
  %v216 = vpack.c.b16 %v171, %v170
  %v217 = vpack.c.b16 %v173, %v172
  %v218 = vpack.c.b16 %v175, %v174
  %v219 = vpack.c.b16 %v177, %v176
  %v220 = vpack.c.b16 %v179, %v178
  %v221 = vpack.c.b16 %v181, %v180
  %v222 = vpack.c.b16 %v183, %v182
  %v223 = vpack.c.b16 %v185, %v184
  %v224 = vpack.c.b16 %v187, %v186
  %v225 = vpack.c.b16 %v189, %v188
  %v226 = vpack.c.b16 %v191, %v190
  %v227 = vpack.c.b16 %v193, %v192
  %v228 = vpack.c.b16 %v195, %v194
  %v229 = vpack.c.b16 %v197, %v196
  %v230 = vpack.c.b16 %v199, %v198
  %v231 = vpack.c.b16 %v201, %v200
  %v232 = vpack.c.b16 %v203, %v202
  %v233 = vpack.c.b16 %v205, %v204
  %v234 = vpack.c.b16 %v207, %v206
  %v235 = vpack.c.b16 %v209, %v208
  %v236 = vpack.c.b16 %v211, %v210
  %v237 = vpack.c.b16 %v213, %v212
  %262 = vmatprep.subr.bf16.mxu0 0
  %263 = vmatpush1.bf16.msra.mxu0 %v214
  %264 = vmatprep.subr.bf16.mxu0 0
  %265 = vmatpush1.bf16.msra.mxu0 %v215
  %266 = vmatprep.subr.bf16.mxu0 0
  %267 = vmatpush1.bf16.msra.mxu0 %v216
  %268 = vmatprep.subr.bf16.mxu0 0
  %269 = vmatpush1.bf16.msra.mxu0 %v217
  %270 = vmatprep.subr.bf16.mxu0 0
  %271 = vmatpush1.bf16.msra.mxu0 %v218
  %272 = vmatprep.subr.bf16.mxu0 0
  %273 = vmatpush1.bf16.msra.mxu0 %v219
  %274 = vmatprep.subr.bf16.mxu0 0
  %275 = vmatpush1.bf16.msra.mxu0 %v220
  %276 = vmatprep.subr.bf16.mxu0 0
  %277 = vmatpush1.bf16.msra.mxu0 %v221
  %278 = vmatprep.subr.bf16.mxu0 0
  %279 = vmatpush1.bf16.msra.mxu0 %v222
  %280 = vmatprep.subr.bf16.mxu0 0
  %281 = vmatpush1.bf16.msra.mxu0 %v223
  %282 = vmatprep.subr.bf16.mxu0 0
  %283 = vmatpush1.bf16.msra.mxu0 %v224
  %284 = vmatprep.subr.bf16.mxu0 0
  %285 = vmatpush1.bf16.msra.mxu0 %v225
  %286 = vmatprep.subr.bf16.mxu0 0
  %287 = vmatpush1.bf16.msra.mxu0 %v226
  %288 = vmatprep.subr.bf16.mxu0 0
  %289 = vmatpush1.bf16.msra.mxu0 %v227
  %290 = vmatprep.subr.bf16.mxu0 0
  %291 = vmatpush1.bf16.msra.mxu0 %v228
  %292 = vmatprep.subr.bf16.mxu0 0
  %293 = vmatpush1.bf16.msra.mxu0 %v229
  %294 = vmatprep.mubr.bf16.mxu0 %v107
  %295 = vmatmul.mubr.bf16.gmra.mrb[0].mxu0 %v106
  %v296 = vpop.f32.mrb[0].mxu0
  %v297 = vadd.f32 0.0, %v296
  %v298 = vpop.f32.mrb[0].mxu0
  %v299 = vpop.f32.mrb[0].mxu0
  %v300 = vadd.f32 0.0, %v299
  %v301 = vpop.f32.mrb[0].mxu0
  %302 = vmatprep.mubr.bf16.mxu0 %v110
  %303 = vmatmul.mubr.bf16.gmra.mrb[0].mxu0 %v109
  %v304 = vpop.f32.mrb[0].mxu0
  %v305 = vadd.f32 0.0, %v304
  %v306 = vpop.f32.mrb[0].mxu0
  %v307 = vpop.f32.mrb[0].mxu0
  %v308 = vadd.f32 0.0, %v307
  %v309 = vpop.f32.mrb[0].mxu0
  %310 = vdwg.mxu0
  %311 = vmatprep.subr.bf16.mxu0 0
  %312 = vmatpush1.bf16.msra.mxu0 %v230
  %313 = vmatprep.subr.bf16.mxu0 0
  %314 = vmatpush1.bf16.msra.mxu0 %v231
  %315 = vmatprep.subr.bf16.mxu0 0
  %316 = vmatpush1.bf16.msra.mxu0 %v232
  %317 = vmatprep.subr.bf16.mxu0 0
  %318 = vmatpush1.bf16.msra.mxu0 %v233
  %319 = vmatprep.subr.bf16.mxu0 0
  %320 = vmatpush1.bf16.msra.mxu0 %v234
  %321 = vmatprep.subr.bf16.mxu0 0
  %322 = vmatpush1.bf16.msra.mxu0 %v235
  %323 = vmatprep.subr.bf16.mxu0 0
  %324 = vmatpush1.bf16.msra.mxu0 %v236
  %325 = vmatprep.subr.bf16.mxu0 0
  %326 = vmatpush1.bf16.msra.mxu0 %v237
  %327 = vmatprep.subr.bf16.mxu0 0
  %328 = vmatpush1.bf16.msra.mxu0 0
  %329 = vmatprep.subr.bf16.mxu0 0
  %330 = vmatpush1.bf16.msra.mxu0 0
  %331 = vmatprep.subr.bf16.mxu0 0
  %332 = vmatpush1.bf16.msra.mxu0 0
  %333 = vmatprep.subr.bf16.mxu0 0
  %334 = vmatpush1.bf16.msra.mxu0 0
  %335 = vmatprep.subr.bf16.mxu0 0
  %336 = vmatpush1.bf16.msra.mxu0 0
  %337 = vmatprep.subr.bf16.mxu0 0
  %338 = vmatpush1.bf16.msra.mxu0 0
  %339 = vmatprep.subr.bf16.mxu0 0
  %340 = vmatpush1.bf16.msra.mxu0 0
  %341 = vmatprep.subr.bf16.mxu0 0
  %342 = vmatpush1.bf16.msra.mxu0 0
  %343 = vmatprep.mubr.bf16.mxu0 0
  %344 = vmatmul.mubr.bf16.gmra.mrb[0].mxu0 %v108
  %v345 = vpop.f32.mrb[0].mxu0
  %v346 = vadd.f32 %v297, %v345
  %v347 = vpop.f32.mrb[0].mxu0
  %v348 = vpop.f32.mrb[0].mxu0
  %v349 = vadd.f32 %v300, %v348
  %v350 = vpop.f32.mrb[0].mxu0
  %351 = vmatprep.mubr.bf16.mxu0 0
  %352 = vmatmul.mubr.bf16.gmra.mrb[0].mxu0 %v111
  %v353 = vpop.f32.mrb[0].mxu0
  %v354 = vadd.f32 %v305, %v353
  %v355 = vpop.f32.mrb[0].mxu0
  %v356 = vpop.f32.mrb[0].mxu0
  %v357 = vadd.f32 %v308, %v356
  %v358 = vpop.f32.mrb[0].mxu0
  %359 = vdwg.mxu0
  %v360 = vadd.f32 %v26, %v346
  %v361 = vadd.f32 %v27, %v349
  %v362 = vadd.f32 %v28, %v354
  %v363 = vadd.f32 %v29, %v357
  %364 = vst [vmem:[#allocation2] sm:$0xff] %v360
  %365 = vst [vmem:[#allocation2 + $0x8] sm:$0xff] %v361
  %366 = vst [vmem:[#allocation2 + $0x10] sm:$0xff] %v362
  %367 = vst [vmem:[#allocation2 + $0x18] sm:$0xff] %v363
  // Predicated region
  $region22: #{haframe_wrn_forward.17} parent=0 // pred_check
    %p368 = pneg %p18
  $region23: #{haframe_wrn_forward.17} parent=0 // pred_check_branch
    %370 = sbr.rel (%p368) target = $region25
  $region24: #{haframe_wrn_forward.17} parent=0 // pred_region
    %v371 = vld [vmem:[#allocation2] sm:$0xff]
    %v372 = vld [vmem:[#allocation2 + $0x8] sm:$0xff]
    %v373 = vld [vmem:[#allocation2 + $0x10] sm:$0xff]
    %v374 = vld [vmem:[#allocation2 + $0x18] sm:$0xff]
    %v375 = vld [vmem:[%s2] sm:$0x1]
    %v377 = vlaneseq
    %v378 = vshrl.u32 %v377, 7
    %v379 = vsub.s32 0, %v378
    %v380 = vrot.slane %v375, %v379
    %v382 = vmul.f32 %v371, %v380
    %v383 = vmul.f32 %v372, %v380
    %v384 = vmul.f32 %v373, %v380
    %v385 = vmul.f32 %v374, %v380
    %v386 = vld [vmem:[%s3] sm:$0x1]
    %v388 = vlaneseq
    %v389 = vshrl.u32 %v388, 7
    %v390 = vsub.s32 0, %v389
    %v391 = vrot.slane %v386, %v390
    %v393 = vadd.f32 %v382, %v391
    %v394 = vadd.f32 %v383, %v391
    %v395 = vadd.f32 %v384, %v391
    %v396 = vadd.f32 %v385, %v391
    %v397 = vmax.f32 %v393, 0.0
    %v398 = vmax.f32 %v394, 0.0
    %v399 = vmax.f32 %v395, 0.0
    %v400 = vmax.f32 %v396, 0.0
    %v401 = vpack.c.bf16 %v398, %v397
    %v402 = vpack.c.bf16 %v400, %v399
    %v405 = vunpack.c.l.b16 %v401
    %v406 = vunpack.c.h.b16 %v401
    %v407 = vunpack.c.l.b16 %v402
    %v408 = vunpack.c.h.b16 %v402
    %v409 = vpack.c.b16 %v405, %v405
    %v410 = vpack.c.b16 %v406, %v406
    %v411 = vpack.c.b16 %v407, %v407
    %v412 = vpack.c.b16 %v408, %v408
    %417 = vst [vmem:[%s4] sm:$0xf] %v409
    %418 = vst [vmem:[%s4 + $0x4] sm:$0xf] %v410
    %419 = vst [vmem:[%s4 + $0x8] sm:$0xf] %v411
    %420 = vst [vmem:[%s4 + $0xc] sm:$0xf] %v412
  $region25: #{haframe_wrn_forward.17} parent=0 // pred_fallthru
    _
  // Predicated region
  $region26: #{haframe_wrn_forward.17} parent=0 // pred_check
    _
  $region27: #{haframe_wrn_forward.17} parent=0 // pred_check_branch
    %422 = sbr.rel (0) target = $region29
  $region28: #{haframe_wrn_forward.17} parent=0 // pred_region
    _
  $region29: #{haframe_wrn_forward.17} parent=0 // pred_fallthru
    _
  // Predicated region
  $region30: #{haframe_wrn_forward.17} parent=0 // pred_check
    _
  $region31: #{haframe_wrn_forward.17} parent=0 // pred_check_branch
    %424 = sbr.rel (0) target = $region33
  $region32: #{haframe_wrn_forward.17} parent=0 // pred_region
    _
  $region33: #{haframe_wrn_forward.17} parent=0 // pred_fallthru
    _

// kernel: haframe_wrn_forward.16
$region0: #{haframe_wrn_forward.16}
  #allocation0 [shape = 'u32[]', space=smem, size = 0x4, offset = 0x4, fixed_abs, tag = 'smem constant byte address 0x4 - core index']
  #allocation1 [shape = 'u32[144,128]{1,0:T(1,128)}', space=vmem, size = 0x12000, scoped, tag = 'internal scratch']
  #allocation2 [shape = 'f32[32,128]{1,0:T(8,128)}', space=vmem, size = 0x4000, scoped, tag = 'scratch operand']
  %s0 = inlined_call_operand.vmem [shape: bf16[32,128], index: 0, kind: input, shape index: {}]
  %s1 = inlined_call_operand.vmem [shape: bf16[128,128], index: 1, kind: input, shape index: {}]
  %s2 = inlined_call_operand.vmem [shape: f32[1,128], index: 2, kind: input, shape index: {}]
  %s3 = inlined_call_operand.vmem [shape: f32[1,128], index: 3, kind: input, shape index: {}]
  %s4 = inlined_call_operand.vmem [shape: f32[32,128], index: 4, kind: output, shape index: {}]
  %s5 = sld [smem:[#allocation0]]
  $region34: #{haframe_wrn_forward.16} parent=0
    _
  %s7 = ssub.s32 1, %s5
  %s8 = scalar_select 0, %s7, %s5
  // Predicated region
  $region2: #{haframe_wrn_forward.16} parent=0 // pred_check
    _
  $region3: #{haframe_wrn_forward.16} parent=0 // pred_check_branch
    %10 = sbr.rel (0) target = $region5
  $region4: #{haframe_wrn_forward.16} parent=0 // pred_region
    _
  $region5: #{haframe_wrn_forward.16} parent=0 // pred_fallthru
    _
  // Predicated region
  $region6: #{haframe_wrn_forward.16} parent=0 // pred_check
    _
  $region7: #{haframe_wrn_forward.16} parent=0 // pred_check_branch
    %12 = sbr.rel (0) target = $region9
  $region8: #{haframe_wrn_forward.16} parent=0 // pred_region
    _
  $region9: #{haframe_wrn_forward.16} parent=0 // pred_fallthru
    _
  // Predicated region
  $region10: #{haframe_wrn_forward.16} parent=0 // pred_check
    _
  $region11: #{haframe_wrn_forward.16} parent=0 // pred_check_branch
    %14 = sbr.rel (0) target = $region13
  $region12: #{haframe_wrn_forward.16} parent=0 // pred_region
    _
  $region13: #{haframe_wrn_forward.16} parent=0 // pred_fallthru
    _
  // Predicated region
  $region14: #{haframe_wrn_forward.16} parent=0 // pred_check
    _
  $region15: #{haframe_wrn_forward.16} parent=0 // pred_check_branch
    %16 = sbr.rel (0) target = $region17
  $region16: #{haframe_wrn_forward.16} parent=0 // pred_region
    _
  $region17: #{haframe_wrn_forward.16} parent=0 // pred_fallthru
    _
  %p18 = scmp.eq.s32.totalorder 0, 0
  // Predicated region
  $region18: #{haframe_wrn_forward.16} parent=0 // pred_check
    %p19 = pneg %p18
  $region19: #{haframe_wrn_forward.16} parent=0 // pred_check_branch
    %21 = sbr.rel (%p19) target = $region21
  $region20: #{haframe_wrn_forward.16} parent=0 // pred_region
    %22 = vst [vmem:[#allocation2] sm:$0xff] 0.0
    %23 = vst [vmem:[#allocation2 + $0x8] sm:$0xff] 0.0
    %24 = vst [vmem:[#allocation2 + $0x10] sm:$0xff] 0.0
    %25 = vst [vmem:[#allocation2 + $0x18] sm:$0xff] 0.0
  $region21: #{haframe_wrn_forward.16} parent=0 // pred_fallthru
    _
  %v26 = vld [vmem:[#allocation2] sm:$0xff]
  %v27 = vld [vmem:[#allocation2 + $0x8] sm:$0xff]
  %v28 = vld [vmem:[#allocation2 + $0x10] sm:$0xff]
  %v29 = vld [vmem:[#allocation2 + $0x18] sm:$0xff]
  %v30 = vld [vmem:[%s0] sm:$0xf]
  %v31 = vld [vmem:[%s0 + $0x4] sm:$0xf]
  %v32 = vld [vmem:[%s0 + $0x8] sm:$0xf]
  %v33 = vld [vmem:[%s0 + $0xc] sm:$0xf]
  %v34 = vld [vmem:[%s1] sm:$0xf]
  %v35 = vld [vmem:[%s1 + $0x4] sm:$0xf]
  %v36 = vld [vmem:[%s1 + $0x8] sm:$0xf]
  %v37 = vld [vmem:[%s1 + $0xc] sm:$0xf]
  %v38 = vld [vmem:[%s1 + $0x10] sm:$0xf]
  %v39 = vld [vmem:[%s1 + $0x14] sm:$0xf]
  %v40 = vld [vmem:[%s1 + $0x18] sm:$0xf]
  %v41 = vld [vmem:[%s1 + $0x1c] sm:$0xf]
  %v42 = vld [vmem:[%s1 + $0x20] sm:$0xf]
  %v43 = vld [vmem:[%s1 + $0x24] sm:$0xf]
  %v44 = vld [vmem:[%s1 + $0x28] sm:$0xf]
  %v45 = vld [vmem:[%s1 + $0x2c] sm:$0xf]
  %v46 = vld [vmem:[%s1 + $0x30] sm:$0xf]
  %v47 = vld [vmem:[%s1 + $0x34] sm:$0xf]
  %v48 = vld [vmem:[%s1 + $0x38] sm:$0xf]
  %v49 = vld [vmem:[%s1 + $0x3c] sm:$0xf]
  %v54 = vunpack.c.l.b16 %v30
  %v55 = vunpack.c.l.b16 %v31
  %v56 = vunpack.c.l.b16 %v32
  %v57 = vunpack.c.l.b16 %v33
  %v58 = vpack.c.b16 %v55, %v54
  %v59 = vpack.c.b16 %v57, %v56
  %v78 = vunpack.c.l.b16 %v34
  %v79 = vunpack.c.l.b16 %v35
  %v80 = vunpack.c.l.b16 %v36
  %v81 = vunpack.c.l.b16 %v37
  %v82 = vunpack.c.l.b16 %v38
  %v83 = vunpack.c.l.b16 %v39
  %v84 = vunpack.c.l.b16 %v40
  %v85 = vunpack.c.l.b16 %v41
  %v86 = vunpack.c.l.b16 %v42
  %v87 = vunpack.c.l.b16 %v43
  %v88 = vunpack.c.l.b16 %v44
  %v89 = vunpack.c.l.b16 %v45
  %v90 = vunpack.c.l.b16 %v46
  %v91 = vunpack.c.l.b16 %v47
  %v92 = vunpack.c.l.b16 %v48
  %v93 = vunpack.c.l.b16 %v49
  %v94 = vpack.c.b16 %v79, %v78
  %v95 = vpack.c.b16 %v81, %v80
  %v96 = vpack.c.b16 %v83, %v82
  %v97 = vpack.c.b16 %v85, %v84
  %v98 = vpack.c.b16 %v87, %v86
  %v99 = vpack.c.b16 %v89, %v88
  %v100 = vpack.c.b16 %v91, %v90
  %v101 = vpack.c.b16 %v93, %v92
  %110 = vmatprep.subr.bf16.mxu0 0
  %111 = vmatpush1.bf16.msra.mxu0 %v94
  %112 = vmatprep.subr.bf16.mxu0 0
  %113 = vmatpush1.bf16.msra.mxu0 %v95
  %114 = vmatprep.subr.bf16.mxu0 0
  %115 = vmatpush1.bf16.msra.mxu0 %v96
  %116 = vmatprep.subr.bf16.mxu0 0
  %117 = vmatpush1.bf16.msra.mxu0 %v97
  %118 = vmatprep.subr.bf16.mxu0 0
  %119 = vmatpush1.bf16.msra.mxu0 %v98
  %120 = vmatprep.subr.bf16.mxu0 0
  %121 = vmatpush1.bf16.msra.mxu0 %v99
  %122 = vmatprep.subr.bf16.mxu0 0
  %123 = vmatpush1.bf16.msra.mxu0 %v100
  %124 = vmatprep.subr.bf16.mxu0 0
  %125 = vmatpush1.bf16.msra.mxu0 %v101
  %126 = vmatprep.subr.bf16.mxu0 0
  %127 = vmatpush1.bf16.msra.mxu0 0
  %128 = vmatprep.subr.bf16.mxu0 0
  %129 = vmatpush1.bf16.msra.mxu0 0
  %130 = vmatprep.subr.bf16.mxu0 0
  %131 = vmatpush1.bf16.msra.mxu0 0
  %132 = vmatprep.subr.bf16.mxu0 0
  %133 = vmatpush1.bf16.msra.mxu0 0
  %134 = vmatprep.subr.bf16.mxu0 0
  %135 = vmatpush1.bf16.msra.mxu0 0
  %136 = vmatprep.subr.bf16.mxu0 0
  %137 = vmatpush1.bf16.msra.mxu0 0
  %138 = vmatprep.subr.bf16.mxu0 0
  %139 = vmatpush1.bf16.msra.mxu0 0
  %140 = vmatprep.subr.bf16.mxu0 0
  %141 = vmatpush1.bf16.msra.mxu0 0
  %142 = vmatprep.mubr.bf16.mxu0 0
  %143 = vmatmul.mubr.bf16.gmra.mrb[0].mxu0 %v58
  %v144 = vpop.f32.mrb[0].mxu0
  %v145 = vadd.f32 0.0, %v144
  %v146 = vpop.f32.mrb[0].mxu0
  %v147 = vpop.f32.mrb[0].mxu0
  %v148 = vadd.f32 0.0, %v147
  %v149 = vpop.f32.mrb[0].mxu0
  %150 = vmatprep.mubr.bf16.mxu0 0
  %151 = vmatmul.mubr.bf16.gmra.mrb[0].mxu0 %v59
  %v152 = vpop.f32.mrb[0].mxu0
  %v153 = vadd.f32 0.0, %v152
  %v154 = vpop.f32.mrb[0].mxu0
  %v155 = vpop.f32.mrb[0].mxu0
  %v156 = vadd.f32 0.0, %v155
  %v157 = vpop.f32.mrb[0].mxu0
  %158 = vdwg.mxu0
  %v159 = vadd.f32 %v26, %v145
  %v160 = vadd.f32 %v27, %v148
  %v161 = vadd.f32 %v28, %v153
  %v162 = vadd.f32 %v29, %v156
  %163 = vst [vmem:[#allocation2] sm:$0xff] %v159
  %164 = vst [vmem:[#allocation2 + $0x8] sm:$0xff] %v160
  %165 = vst [vmem:[#allocation2 + $0x10] sm:$0xff] %v161
  %166 = vst [vmem:[#allocation2 + $0x18] sm:$0xff] %v162
  // Predicated region
  $region22: #{haframe_wrn_forward.16} parent=0 // pred_check
    %p167 = pneg %p18
  $region23: #{haframe_wrn_forward.16} parent=0 // pred_check_branch
    %169 = sbr.rel (%p167) target = $region25
  $region24: #{haframe_wrn_forward.16} parent=0 // pred_region
    %v170 = vld [vmem:[#allocation2] sm:$0xff]
    %v171 = vld [vmem:[#allocation2 + $0x8] sm:$0xff]
    %v172 = vld [vmem:[#allocation2 + $0x10] sm:$0xff]
    %v173 = vld [vmem:[#allocation2 + $0x18] sm:$0xff]
    %v174 = vld [vmem:[%s2] sm:$0x1]
    %v176 = vlaneseq
    %v177 = vshrl.u32 %v176, 7
    %v178 = vsub.s32 0, %v177
    %v179 = vrot.slane %v174, %v178
    %v181 = vmul.f32 %v170, %v179
    %v182 = vmul.f32 %v171, %v179
    %v183 = vmul.f32 %v172, %v179
    %v184 = vmul.f32 %v173, %v179
    %v185 = vld [vmem:[%s3] sm:$0x1]
    %v187 = vlaneseq
    %v188 = vshrl.u32 %v187, 7
    %v189 = vsub.s32 0, %v188
    %v190 = vrot.slane %v185, %v189
    %v192 = vadd.f32 %v181, %v190
    %v193 = vadd.f32 %v182, %v190
    %v194 = vadd.f32 %v183, %v190
    %v195 = vadd.f32 %v184, %v190
    %196 = vst [vmem:[%s4] sm:$0xff] %v192
    %197 = vst [vmem:[%s4 + $0x8] sm:$0xff] %v193
    %198 = vst [vmem:[%s4 + $0x10] sm:$0xff] %v194
    %199 = vst [vmem:[%s4 + $0x18] sm:$0xff] %v195
  $region25: #{haframe_wrn_forward.16} parent=0 // pred_fallthru
    _
  // Predicated region
  $region26: #{haframe_wrn_forward.16} parent=0 // pred_check
    _
  $region27: #{haframe_wrn_forward.16} parent=0 // pred_check_branch
    %201 = sbr.rel (0) target = $region29
  $region28: #{haframe_wrn_forward.16} parent=0 // pred_region
    _
  $region29: #{haframe_wrn_forward.16} parent=0 // pred_fallthru
    _
  // Predicated region
  $region30: #{haframe_wrn_forward.16} parent=0 // pred_check
    _
  $region31: #{haframe_wrn_forward.16} parent=0 // pred_check_branch
    %203 = sbr.rel (0) target = $region33
  $region32: #{haframe_wrn_forward.16} parent=0 // pred_region
    _
  $region33: #{haframe_wrn_forward.16} parent=0 // pred_fallthru
    _

// kernel: haframe_wrn_forward.19
$region0: #{haframe_wrn_forward.19}
  #allocation0 [shape = 'u32[]', space=smem, size = 0x4, offset = 0x4, fixed_abs, tag = 'smem constant byte address 0x4 - core index']
  #allocation1 [shape = 'u32[144,128]{1,0:T(1,128)}', space=vmem, size = 0x12000, scoped, tag = 'internal scratch']
  %s0 = inlined_call_operand.vmem [shape: bf16[2,16,128], index: 0, kind: input, shape index: {}]
  %s1 = inlined_call_operand.vmem [shape: f32[128,128], index: 1, kind: input, shape index: {}]
  %s2 = inlined_call_operand.vmem [shape: f32[1,128], index: 2, kind: input, shape index: {}]
  %s3 = inlined_call_operand.vmem [shape: f32[128,128], index: 3, kind: input, shape index: {}]
  %s4 = inlined_call_operand.vmem [shape: f32[1,128], index: 4, kind: input, shape index: {}]
  %s5 = inlined_call_operand.hbm [shape: f32[2,128], index: 5, kind: output, shape index: {}]
  %s6 = sld [smem:[#allocation0]]
  $region30: #{haframe_wrn_forward.19} parent=0
    _
  %s8 = ssub.s32 1, %s6
  %s9 = scalar_select 0, %s8, %s6
  $region1: #{haframe_wrn_forward.19} parent=0
    #allocation2 [shape = 'u8[1024]{0}', space=vmem, size = 0x400, scoped, tag = 'output window, operand 0, single buffered']
    #allocation3 [shape = 's32[1]{0}', space=sflag, size = 0x4, scoped, tag = 'scoped memory for haframe_wrn_forward.19']
    %10 = vsyncpa [#allocation3], 0
    // Predicated region
    $region2: #{haframe_wrn_forward.19} parent=1 // pred_check
      _
    $region3: #{haframe_wrn_forward.19} parent=1 // pred_check_branch
      %12 = sbr.rel (0) target = $region5
    $region4: #{haframe_wrn_forward.19} parent=1 // pred_region
      _
    $region5: #{haframe_wrn_forward.19} parent=1 // pred_fallthru
      _
    // Predicated region
    $region6: #{haframe_wrn_forward.19} parent=1 // pred_check
      _
    $region7: #{haframe_wrn_forward.19} parent=1 // pred_check_branch
      %14 = sbr.rel (0) target = $region9
    $region8: #{haframe_wrn_forward.19} parent=1 // pred_region
      _
    $region9: #{haframe_wrn_forward.19} parent=1 // pred_fallthru
      _
    // Predicated region
    $region10: #{haframe_wrn_forward.19} parent=1 // pred_check
      _
    $region11: #{haframe_wrn_forward.19} parent=1 // pred_check_branch
      %16 = sbr.rel (0) target = $region13
    $region12: #{haframe_wrn_forward.19} parent=1 // pred_region
      _
    $region13: #{haframe_wrn_forward.19} parent=1 // pred_fallthru
      _
    // Predicated region
    $region14: #{haframe_wrn_forward.19} parent=1 // pred_check
      _
    $region15: #{haframe_wrn_forward.19} parent=1 // pred_check_branch
      %18 = sbr.rel (0) target = $region17
    $region16: #{haframe_wrn_forward.19} parent=1 // pred_region
      _
    $region17: #{haframe_wrn_forward.19} parent=1 // pred_fallthru
      _
    // Predicated region
    $region18: #{haframe_wrn_forward.19} parent=1 // pred_check
      _
    $region19: #{haframe_wrn_forward.19} parent=1 // pred_check_branch
      %20 = sbr.rel (0) target = $region21
    $region20: #{haframe_wrn_forward.19} parent=1 // pred_region
      _
    $region21: #{haframe_wrn_forward.19} parent=1 // pred_fallthru
      _
    %v21 = vld [vmem:[%s0] sm:$0xf]
    %v22 = vld [vmem:[%s0 + $0x4] sm:$0xf]
    %v23 = vld [vmem:[%s0 + $0x8] sm:$0xf]
    %v24 = vld [vmem:[%s0 + $0xc] sm:$0xf]
    %v25 = vunpack.c.l.bf16 %v21
    %v26 = vunpack.c.l.bf16 %v22
    %v27 = vunpack.c.l.bf16 %v23
    %v28 = vunpack.c.l.bf16 %v24
    %v29 = vadd.f32 %v25, %v26
    %v30 = vrot.slane %v29, 4
    %v31 = vadd.f32 %v29, %v30
    %v32 = vrot.slane %v31, 2
    %v33 = vadd.f32 %v31, %v32
    %v34 = vrot.slane %v33, 1
    %v35 = vadd.f32 %v33, %v34
    %v36 = vadd.f32 %v27, %v28
    %v37 = vrot.slane %v36, 4
    %v38 = vadd.f32 %v36, %v37
    %v39 = vrot.slane %v38, 2
    %v40 = vadd.f32 %v38, %v39
    %v41 = vrot.slane %v40, 1
    %v42 = vadd.f32 %v40, %v41
    %v43 = vmul.f32 %v35, 0.0625
    %v44 = vmul.f32 %v42, 0.0625
    %v45 = vld [vmem:[%s1] sm:$0xff]
    %v46 = vld [vmem:[%s1 + $0x8] sm:$0xff]
    %v47 = vld [vmem:[%s1 + $0x10] sm:$0xff]
    %v48 = vld [vmem:[%s1 + $0x18] sm:$0xff]
    %v49 = vld [vmem:[%s1 + $0x20] sm:$0xff]
    %v50 = vld [vmem:[%s1 + $0x28] sm:$0xff]
    %v51 = vld [vmem:[%s1 + $0x30] sm:$0xff]
    %v52 = vld [vmem:[%s1 + $0x38] sm:$0xff]
    %v53 = vld [vmem:[%s1 + $0x40] sm:$0xff]
    %v54 = vld [vmem:[%s1 + $0x48] sm:$0xff]
    %v55 = vld [vmem:[%s1 + $0x50] sm:$0xff]
    %v56 = vld [vmem:[%s1 + $0x58] sm:$0xff]
    %v57 = vld [vmem:[%s1 + $0x60] sm:$0xff]
    %v58 = vld [vmem:[%s1 + $0x68] sm:$0xff]
    %v59 = vld [vmem:[%s1 + $0x70] sm:$0xff]
    %v60 = vld [vmem:[%s1 + $0x78] sm:$0xff]
    %v61 = vld [vmem:[%s2] sm:$0x1]
    %v63 = vlaneseq
    %v64 = vshrl.u32 %v63, 7
    %v65 = vsub.s32 0, %v64
    %v66 = vrot.slane %v61, %v65
    %vm70 = vcmask 1041409
    %v71 = vsel %vm70, %v44, %v43
    %73 = vmatprep.subr.mxu0 0.0
    %74 = vmatpush1.msra.mxu0 %v45
    %75 = vmatprep.subr.mxu0 0.0
    %76 = vmatpush1.msra.mxu0 %v46
    %77 = vmatprep.subr.mxu0 0.0
    %78 = vmatpush1.msra.mxu0 %v47
    %79 = vmatprep.subr.mxu0 0.0
    %80 = vmatpush1.msra.mxu0 %v48
    %81 = vmatprep.subr.mxu0 0.0
    %82 = vmatpush1.msra.mxu0 %v49
    %83 = vmatprep.subr.mxu0 0.0
    %84 = vmatpush1.msra.mxu0 %v50
    %85 = vmatprep.subr.mxu0 0.0
    %86 = vmatpush1.msra.mxu0 %v51
    %87 = vmatprep.subr.mxu0 0.0
    %88 = vmatpush1.msra.mxu0 %v52
    %89 = vmatprep.subr.mxu0 0.0
    %90 = vmatpush1.msra.mxu0 %v53
    %91 = vmatprep.subr.mxu0 0.0
    %92 = vmatpush1.msra.mxu0 %v54
    %93 = vmatprep.subr.mxu0 0.0
    %94 = vmatpush1.msra.mxu0 %v55
    %95 = vmatprep.subr.mxu0 0.0
    %96 = vmatpush1.msra.mxu0 %v56
    %97 = vmatprep.subr.mxu0 0.0
    %98 = vmatpush1.msra.mxu0 %v57
    %99 = vmatprep.subr.mxu0 0.0
    %100 = vmatpush1.msra.mxu0 %v58
    %101 = vmatprep.subr.mxu0 0.0
    %102 = vmatpush1.msra.mxu0 %v59
    %103 = vmatprep.subr.mxu0 0.0
    %104 = vmatpush1.msra.mxu0 %v60
    %105 = vmatprep.subr.mxu0 0.0
    %106 = vmatpush1.msra.mxu0 0.0
    %107 = vmatprep.subr.mxu0 0.0
    %108 = vmatpush1.msra.mxu0 0.0
    %109 = vmatprep.subr.mxu0 0.0
    %110 = vmatpush1.msra.mxu0 0.0
    %111 = vmatprep.subr.mxu0 0.0
    %112 = vmatpush1.msra.mxu0 0.0
    %113 = vmatprep.subr.mxu0 0.0
    %114 = vmatpush1.msra.mxu0 0.0
    %115 = vmatprep.subr.mxu0 0.0
    %116 = vmatpush1.msra.mxu0 0.0
    %117 = vmatprep.subr.mxu0 0.0
    %118 = vmatpush1.msra.mxu0 0.0
    %119 = vmatprep.subr.mxu0 0.0
    %120 = vmatpush1.msra.mxu0 0.0
    %121 = vmatprep.subr.mxu0 0.0
    %122 = vmatpush1.msra.mxu0 0.0
    %123 = vmatprep.subr.mxu0 0.0
    %124 = vmatpush1.msra.mxu0 0.0
    %125 = vmatprep.subr.mxu0 0.0
    %126 = vmatpush1.msra.mxu0 0.0
    %127 = vmatprep.subr.mxu0 0.0
    %128 = vmatpush1.msra.mxu0 0.0
    %129 = vmatprep.subr.mxu0 0.0
    %130 = vmatpush1.msra.mxu0 0.0
    %131 = vmatprep.subr.mxu0 0.0
    %132 = vmatpush1.msra.mxu0 0.0
    %133 = vmatprep.subr.mxu0 0.0
    %134 = vmatpush1.msra.mxu0 0.0
    %135 = vmatprep.subr.mxu0 0.0
    %136 = vmatpush1.msra.mxu0 0.0
    %137 = vmatprep.mubr.f32.mxu0 0.0
    %138 = vmatmul.mubr.f32.gmra.mrb[0].mxu0 %v71
    %v139 = vpop.f32.mrb[0].mxu0
    %v140 = vadd.f32 %v66, %v139
    %v141 = vpop.f32.mrb[0].mxu0
    %142 = vdwg.mxu0
    %v143 = vld [vmem:[%s3] sm:$0xff]
    %v144 = vld [vmem:[%s3 + $0x8] sm:$0xff]
    %v145 = vld [vmem:[%s3 + $0x10] sm:$0xff]
    %v146 = vld [vmem:[%s3 + $0x18] sm:$0xff]
    %v147 = vld [vmem:[%s3 + $0x20] sm:$0xff]
    %v148 = vld [vmem:[%s3 + $0x28] sm:$0xff]
    %v149 = vld [vmem:[%s3 + $0x30] sm:$0xff]
    %v150 = vld [vmem:[%s3 + $0x38] sm:$0xff]
    %v151 = vld [vmem:[%s3 + $0x40] sm:$0xff]
    %v152 = vld [vmem:[%s3 + $0x48] sm:$0xff]
    %v153 = vld [vmem:[%s3 + $0x50] sm:$0xff]
    %v154 = vld [vmem:[%s3 + $0x58] sm:$0xff]
    %v155 = vld [vmem:[%s3 + $0x60] sm:$0xff]
    %v156 = vld [vmem:[%s3 + $0x68] sm:$0xff]
    %v157 = vld [vmem:[%s3 + $0x70] sm:$0xff]
    %v158 = vld [vmem:[%s3 + $0x78] sm:$0xff]
    %v159 = vld [vmem:[%s4] sm:$0x1]
    %v161 = vlaneseq
    %v162 = vshrl.u32 %v161, 7
    %v163 = vsub.s32 0, %v162
    %v164 = vrot.slane %v159, %v163
    %166 = vmatprep.subr.mxu0 0.0
    %167 = vmatpush1.msra.mxu0 %v143
    %168 = vmatprep.subr.mxu0 0.0
    %169 = vmatpush1.msra.mxu0 %v144
    %170 = vmatprep.subr.mxu0 0.0
    %171 = vmatpush1.msra.mxu0 %v145
    %172 = vmatprep.subr.mxu0 0.0
    %173 = vmatpush1.msra.mxu0 %v146
    %174 = vmatprep.subr.mxu0 0.0
    %175 = vmatpush1.msra.mxu0 %v147
    %176 = vmatprep.subr.mxu0 0.0
    %177 = vmatpush1.msra.mxu0 %v148
    %178 = vmatprep.subr.mxu0 0.0
    %179 = vmatpush1.msra.mxu0 %v149
    %180 = vmatprep.subr.mxu0 0.0
    %181 = vmatpush1.msra.mxu0 %v150
    %182 = vmatprep.subr.mxu0 0.0
    %183 = vmatpush1.msra.mxu0 %v151
    %184 = vmatprep.subr.mxu0 0.0
    %185 = vmatpush1.msra.mxu0 %v152
    %186 = vmatprep.subr.mxu0 0.0
    %187 = vmatpush1.msra.mxu0 %v153
    %188 = vmatprep.subr.mxu0 0.0
    %189 = vmatpush1.msra.mxu0 %v154
    %190 = vmatprep.subr.mxu0 0.0
    %191 = vmatpush1.msra.mxu0 %v155
    %192 = vmatprep.subr.mxu0 0.0
    %193 = vmatpush1.msra.mxu0 %v156
    %194 = vmatprep.subr.mxu0 0.0
    %195 = vmatpush1.msra.mxu0 %v157
    %196 = vmatprep.subr.mxu0 0.0
    %197 = vmatpush1.msra.mxu0 %v158
    %198 = vmatprep.subr.mxu0 0.0
    %199 = vmatpush1.msra.mxu0 0.0
    %200 = vmatprep.subr.mxu0 0.0
    %201 = vmatpush1.msra.mxu0 0.0
    %202 = vmatprep.subr.mxu0 0.0
    %203 = vmatpush1.msra.mxu0 0.0
    %204 = vmatprep.subr.mxu0 0.0
    %205 = vmatpush1.msra.mxu0 0.0
    %206 = vmatprep.subr.mxu0 0.0
    %207 = vmatpush1.msra.mxu0 0.0
    %208 = vmatprep.subr.mxu0 0.0
    %209 = vmatpush1.msra.mxu0 0.0
    %210 = vmatprep.subr.mxu0 0.0
    %211 = vmatpush1.msra.mxu0 0.0
    %212 = vmatprep.subr.mxu0 0.0
    %213 = vmatpush1.msra.mxu0 0.0
    %214 = vmatprep.subr.mxu0 0.0
    %215 = vmatpush1.msra.mxu0 0.0
    %216 = vmatprep.subr.mxu0 0.0
    %217 = vmatpush1.msra.mxu0 0.0
    %218 = vmatprep.subr.mxu0 0.0
    %219 = vmatpush1.msra.mxu0 0.0
    %220 = vmatprep.subr.mxu0 0.0
    %221 = vmatpush1.msra.mxu0 0.0
    %222 = vmatprep.subr.mxu0 0.0
    %223 = vmatpush1.msra.mxu0 0.0
    %224 = vmatprep.subr.mxu0 0.0
    %225 = vmatpush1.msra.mxu0 0.0
    %226 = vmatprep.subr.mxu0 0.0
    %227 = vmatpush1.msra.mxu0 0.0
    %228 = vmatprep.subr.mxu0 0.0
    %229 = vmatpush1.msra.mxu0 0.0
    %230 = vmatprep.mubr.f32.mxu0 0.0
    %231 = vmatmul.mubr.f32.gmra.mrb[0].mxu0 %v140
    %v232 = vpop.f32.mrb[0].mxu0
    %v233 = vadd.f32 %v164, %v232
    %v234 = vpop.f32.mrb[0].mxu0
    %235 = vdwg.mxu0
    %236 = vst [vmem:[#allocation2] sm:$0x3] %v233
    // Predicated region
    $region22: #{haframe_wrn_forward.19} parent=1 // pred_check
      _
    $region23: #{haframe_wrn_forward.19} parent=1 // pred_check_branch
      %238 = sbr.rel (0) target = $region25
    $region24: #{haframe_wrn_forward.19} parent=1 // pred_region
      %s240 = ssub.s32 32, 32
      %241 = vsyncadd [#allocation3], %s240
      %s243 = sshll.u32 [#allocation2], 4
      %s244 = int_to_ptr.vmem [resolvable:$true] %s243
      %246 = dma.vmem_to_hbm [thread:$0]  %s244, 32, %s5, [#allocation3]
    $region25: #{haframe_wrn_forward.19} parent=1 // pred_fallthru
      _
    // Predicated region
    $region26: #{haframe_wrn_forward.19} parent=1 // pred_check
      _
    $region27: #{haframe_wrn_forward.19} parent=1 // pred_check_branch
      %248 = sbr.rel (0) target = $region29
    $region28: #{haframe_wrn_forward.19} parent=1 // pred_region
      %249 = dma.done [#allocation3], 32
    $region29: #{haframe_wrn_forward.19} parent=1 // pred_fallthru
      _
    %250 = vsyncpa [#allocation3], 1

// kernel: haframe_wrn_forward.18
$region0: #{haframe_wrn_forward.18}
  #allocation0 [shape = 'u32[]', space=smem, size = 0x4, offset = 0x4, fixed_abs, tag = 'smem constant byte address 0x4 - core index']
  #allocation1 [shape = 'u32[144,128]{1,0:T(1,128)}', space=vmem, size = 0x12000, scoped, tag = 'internal scratch']
  #allocation2 [shape = 'f32[32,128]{1,0:T(8,128)}', space=vmem, size = 0x4000, scoped, tag = 'scratch operand']
  %s0 = inlined_call_operand.vmem [shape: bf16[32,640], index: 0, kind: input, shape index: {}]
  %s1 = inlined_call_operand.vmem [shape: bf16[640,128], index: 1, kind: input, shape index: {}]
  %s2 = inlined_call_operand.vmem [shape: f32[1,128], index: 2, kind: input, shape index: {}]
  %s3 = inlined_call_operand.vmem [shape: f32[1,128], index: 3, kind: input, shape index: {}]
  %s4 = inlined_call_operand.vmem [shape: f32[32,128], index: 4, kind: input, shape index: {}]
  %s5 = inlined_call_operand.vmem [shape: bf16[32,128], index: 5, kind: output, shape index: {}]
  %s6 = sld [smem:[#allocation0]]
  $region38: #{haframe_wrn_forward.18} parent=0
    _
  %s8 = ssub.s32 1, %s6
  %s9 = scalar_select 0, %s8, %s6
  // Predicated region
  $region2: #{haframe_wrn_forward.18} parent=0 // pred_check
    _
  $region3: #{haframe_wrn_forward.18} parent=0 // pred_check_branch
    %11 = sbr.rel (0) target = $region5
  $region4: #{haframe_wrn_forward.18} parent=0 // pred_region
    _
  $region5: #{haframe_wrn_forward.18} parent=0 // pred_fallthru
    _
  // Predicated region
  $region6: #{haframe_wrn_forward.18} parent=0 // pred_check
    _
  $region7: #{haframe_wrn_forward.18} parent=0 // pred_check_branch
    %13 = sbr.rel (0) target = $region9
  $region8: #{haframe_wrn_forward.18} parent=0 // pred_region
    _
  $region9: #{haframe_wrn_forward.18} parent=0 // pred_fallthru
    _
  // Predicated region
  $region10: #{haframe_wrn_forward.18} parent=0 // pred_check
    _
  $region11: #{haframe_wrn_forward.18} parent=0 // pred_check_branch
    %15 = sbr.rel (0) target = $region13
  $region12: #{haframe_wrn_forward.18} parent=0 // pred_region
    _
  $region13: #{haframe_wrn_forward.18} parent=0 // pred_fallthru
    _
  // Predicated region
  $region14: #{haframe_wrn_forward.18} parent=0 // pred_check
    _
  $region15: #{haframe_wrn_forward.18} parent=0 // pred_check_branch
    %17 = sbr.rel (0) target = $region17
  $region16: #{haframe_wrn_forward.18} parent=0 // pred_region
    _
  $region17: #{haframe_wrn_forward.18} parent=0 // pred_fallthru
    _
  // Predicated region
  $region18: #{haframe_wrn_forward.18} parent=0 // pred_check
    _
  $region19: #{haframe_wrn_forward.18} parent=0 // pred_check_branch
    %19 = sbr.rel (0) target = $region21
  $region20: #{haframe_wrn_forward.18} parent=0 // pred_region
    _
  $region21: #{haframe_wrn_forward.18} parent=0 // pred_fallthru
    _
  %p21 = scmp.eq.s32.totalorder 0, 0
  // Predicated region
  $region22: #{haframe_wrn_forward.18} parent=0 // pred_check
    %p22 = pneg %p21
  $region23: #{haframe_wrn_forward.18} parent=0 // pred_check_branch
    %24 = sbr.rel (%p22) target = $region25
  $region24: #{haframe_wrn_forward.18} parent=0 // pred_region
    %25 = vst [vmem:[#allocation2] sm:$0xff] 0.0
    %26 = vst [vmem:[#allocation2 + $0x8] sm:$0xff] 0.0
    %27 = vst [vmem:[#allocation2 + $0x10] sm:$0xff] 0.0
    %28 = vst [vmem:[#allocation2 + $0x18] sm:$0xff] 0.0
  $region25: #{haframe_wrn_forward.18} parent=0 // pred_fallthru
    _
  %v29 = vld [vmem:[#allocation2] sm:$0xff]
  %v30 = vld [vmem:[#allocation2 + $0x8] sm:$0xff]
  %v31 = vld [vmem:[#allocation2 + $0x10] sm:$0xff]
  %v32 = vld [vmem:[#allocation2 + $0x18] sm:$0xff]
  %v33 = vld [vmem:[%s0] sm:$0xff]
  %v34 = vld [vmem:[%s0 + $0x8] sm:$0xff]
  %v35 = vld [vmem:[%s0 + $0x10] sm:$0xf]
  %v36 = vld [vmem:[%s0 + $0x14] sm:$0xff]
  %v37 = vld [vmem:[%s0 + $0x1c] sm:$0xff]
  %v38 = vld [vmem:[%s0 + $0x24] sm:$0xf]
  %v39 = vld [vmem:[%s0 + $0x28] sm:$0xff]
  %v40 = vld [vmem:[%s0 + $0x30] sm:$0xff]
  %v41 = vld [vmem:[%s0 + $0x38] sm:$0xf]
  %v42 = vld [vmem:[%s0 + $0x3c] sm:$0xff]
  %v43 = vld [vmem:[%s0 + $0x44] sm:$0xff]
  %v44 = vld [vmem:[%s0 + $0x4c] sm:$0xf]
  %v45 = vld [vmem:[%s1] sm:$0xf]
  %v46 = vld [vmem:[%s1 + $0x4] sm:$0xf]
  %v47 = vld [vmem:[%s1 + $0x8] sm:$0xf]
  %v48 = vld [vmem:[%s1 + $0xc] sm:$0xf]
  %v49 = vld [vmem:[%s1 + $0x10] sm:$0xf]
  %v50 = vld [vmem:[%s1 + $0x14] sm:$0xf]
  %v51 = vld [vmem:[%s1 + $0x18] sm:$0xf]
  %v52 = vld [vmem:[%s1 + $0x1c] sm:$0xf]
  %v53 = vld [vmem:[%s1 + $0x20] sm:$0xf]
  %v54 = vld [vmem:[%s1 + $0x24] sm:$0xf]
  %v55 = vld [vmem:[%s1 + $0x28] sm:$0xf]
  %v56 = vld [vmem:[%s1 + $0x2c] sm:$0xf]
  %v57 = vld [vmem:[%s1 + $0x30] sm:$0xf]
  %v58 = vld [vmem:[%s1 + $0x34] sm:$0xf]
  %v59 = vld [vmem:[%s1 + $0x38] sm:$0xf]
  %v60 = vld [vmem:[%s1 + $0x3c] sm:$0xf]
  %v61 = vld [vmem:[%s1 + $0x40] sm:$0xf]
  %v62 = vld [vmem:[%s1 + $0x44] sm:$0xf]
  %v63 = vld [vmem:[%s1 + $0x48] sm:$0xf]
  %v64 = vld [vmem:[%s1 + $0x4c] sm:$0xf]
  %v65 = vld [vmem:[%s1 + $0x50] sm:$0xf]
  %v66 = vld [vmem:[%s1 + $0x54] sm:$0xf]
  %v67 = vld [vmem:[%s1 + $0x58] sm:$0xf]
  %v68 = vld [vmem:[%s1 + $0x5c] sm:$0xf]
  %v69 = vld [vmem:[%s1 + $0x60] sm:$0xf]
  %v70 = vld [vmem:[%s1 + $0x64] sm:$0xf]
  %v71 = vld [vmem:[%s1 + $0x68] sm:$0xf]
  %v72 = vld [vmem:[%s1 + $0x6c] sm:$0xf]
  %v73 = vld [vmem:[%s1 + $0x70] sm:$0xf]
  %v74 = vld [vmem:[%s1 + $0x74] sm:$0xf]
  %v75 = vld [vmem:[%s1 + $0x78] sm:$0xf]
  %v76 = vld [vmem:[%s1 + $0x7c] sm:$0xf]
  %v77 = vld [vmem:[%s1 + $0x80] sm:$0xf]
  %v78 = vld [vmem:[%s1 + $0x84] sm:$0xf]
  %v79 = vld [vmem:[%s1 + $0x88] sm:$0xf]
  %v80 = vld [vmem:[%s1 + $0x8c] sm:$0xf]
  %v81 = vld [vmem:[%s1 + $0x90] sm:$0xf]
  %v82 = vld [vmem:[%s1 + $0x94] sm:$0xf]
  %v83 = vld [vmem:[%s1 + $0x98] sm:$0xf]
  %v84 = vld [vmem:[%s1 + $0x9c] sm:$0xf]
  %v85 = vld [vmem:[%s1 + $0xa0] sm:$0xf]
  %v86 = vld [vmem:[%s1 + $0xa4] sm:$0xf]
  %v87 = vld [vmem:[%s1 + $0xa8] sm:$0xf]
  %v88 = vld [vmem:[%s1 + $0xac] sm:$0xf]
  %v89 = vld [vmem:[%s1 + $0xb0] sm:$0xf]
  %v90 = vld [vmem:[%s1 + $0xb4] sm:$0xf]
  %v91 = vld [vmem:[%s1 + $0xb8] sm:$0xf]
  %v92 = vld [vmem:[%s1 + $0xbc] sm:$0xf]
  %v93 = vld [vmem:[%s1 + $0xc0] sm:$0xf]
  %v94 = vld [vmem:[%s1 + $0xc4] sm:$0xf]
  %v95 = vld [vmem:[%s1 + $0xc8] sm:$0xf]
  %v96 = vld [vmem:[%s1 + $0xcc] sm:$0xf]
  %v97 = vld [vmem:[%s1 + $0xd0] sm:$0xf]
  %v98 = vld [vmem:[%s1 + $0xd4] sm:$0xf]
  %v99 = vld [vmem:[%s1 + $0xd8] sm:$0xf]
  %v100 = vld [vmem:[%s1 + $0xdc] sm:$0xf]
  %v101 = vld [vmem:[%s1 + $0xe0] sm:$0xf]
  %v102 = vld [vmem:[%s1 + $0xe4] sm:$0xf]
  %v103 = vld [vmem:[%s1 + $0xe8] sm:$0xf]
  %v104 = vld [vmem:[%s1 + $0xec] sm:$0xf]
  %v105 = vld [vmem:[%s1 + $0xf0] sm:$0xf]
  %v106 = vld [vmem:[%s1 + $0xf4] sm:$0xf]
  %v107 = vld [vmem:[%s1 + $0xf8] sm:$0xf]
  %v108 = vld [vmem:[%s1 + $0xfc] sm:$0xf]
  %v109 = vld [vmem:[%s1 + $0x100] sm:$0xf]
  %v110 = vld [vmem:[%s1 + $0x104] sm:$0xf]
  %v111 = vld [vmem:[%s1 + $0x108] sm:$0xf]
  %v112 = vld [vmem:[%s1 + $0x10c] sm:$0xf]
  %v113 = vld [vmem:[%s1 + $0x110] sm:$0xf]
  %v114 = vld [vmem:[%s1 + $0x114] sm:$0xf]
  %v115 = vld [vmem:[%s1 + $0x118] sm:$0xf]
  %v116 = vld [vmem:[%s1 + $0x11c] sm:$0xf]
  %v117 = vld [vmem:[%s1 + $0x120] sm:$0xf]
  %v118 = vld [vmem:[%s1 + $0x124] sm:$0xf]
  %v119 = vld [vmem:[%s1 + $0x128] sm:$0xf]
  %v120 = vld [vmem:[%s1 + $0x12c] sm:$0xf]
  %v121 = vld [vmem:[%s1 + $0x130] sm:$0xf]
  %v122 = vld [vmem:[%s1 + $0x134] sm:$0xf]
  %v123 = vld [vmem:[%s1 + $0x138] sm:$0xf]
  %v124 = vld [vmem:[%s1 + $0x13c] sm:$0xf]
  %v137 = vunpack.c.l.b16 %v33
  %v138 = vunpack.c.h.b16 %v33
  %v139 = vunpack.c.l.b16 %v34
  %v140 = vunpack.c.h.b16 %v34
  %v141 = vunpack.c.l.b16 %v35
  %v142 = vunpack.c.l.b16 %v36
  %v143 = vunpack.c.h.b16 %v36
  %v144 = vunpack.c.l.b16 %v37
  %v145 = vunpack.c.h.b16 %v37
  %v146 = vunpack.c.l.b16 %v38
  %v147 = vunpack.c.l.b16 %v39
  %v148 = vunpack.c.h.b16 %v39
  %v149 = vunpack.c.l.b16 %v40
  %v150 = vunpack.c.h.b16 %v40
  %v151 = vunpack.c.l.b16 %v41
  %v152 = vunpack.c.l.b16 %v42
  %v153 = vunpack.c.h.b16 %v42
  %v154 = vunpack.c.l.b16 %v43
  %v155 = vunpack.c.h.b16 %v43
  %v156 = vunpack.c.l.b16 %v44
  %v157 = vpack.c.b16 %v142, %v137
  %v158 = vpack.c.b16 %v143, %v138
  %v159 = vpack.c.b16 %v144, %v139
  %v160 = vpack.c.b16 %v145, %v140
  %v161 = vpack.c.b16 %v146, %v141
  %v162 = vpack.c.b16 %v152, %v147
  %v163 = vpack.c.b16 %v153, %v148
  %v164 = vpack.c.b16 %v154, %v149
  %v165 = vpack.c.b16 %v155, %v150
  %v166 = vpack.c.b16 %v156, %v151
  %v257 = vunpack.c.l.b16 %v45
  %v258 = vunpack.c.l.b16 %v46
  %v259 = vunpack.c.l.b16 %v47
  %v260 = vunpack.c.l.b16 %v48
  %v261 = vunpack.c.l.b16 %v49
  %v262 = vunpack.c.l.b16 %v50
  %v263 = vunpack.c.l.b16 %v51
  %v264 = vunpack.c.l.b16 %v52
  %v265 = vunpack.c.l.b16 %v53
  %v266 = vunpack.c.l.b16 %v54
  %v267 = vunpack.c.l.b16 %v55
  %v268 = vunpack.c.l.b16 %v56
  %v269 = vunpack.c.l.b16 %v57
  %v270 = vunpack.c.l.b16 %v58
  %v271 = vunpack.c.l.b16 %v59
  %v272 = vunpack.c.l.b16 %v60
  %v273 = vunpack.c.l.b16 %v61
  %v274 = vunpack.c.l.b16 %v62
  %v275 = vunpack.c.l.b16 %v63
  %v276 = vunpack.c.l.b16 %v64
  %v277 = vunpack.c.l.b16 %v65
  %v278 = vunpack.c.l.b16 %v66
  %v279 = vunpack.c.l.b16 %v67
  %v280 = vunpack.c.l.b16 %v68
  %v281 = vunpack.c.l.b16 %v69
  %v282 = vunpack.c.l.b16 %v70
  %v283 = vunpack.c.l.b16 %v71
  %v284 = vunpack.c.l.b16 %v72
  %v285 = vunpack.c.l.b16 %v73
  %v286 = vunpack.c.l.b16 %v74
  %v287 = vunpack.c.l.b16 %v75
  %v288 = vunpack.c.l.b16 %v76
  %v289 = vunpack.c.l.b16 %v77
  %v290 = vunpack.c.l.b16 %v78
  %v291 = vunpack.c.l.b16 %v79
  %v292 = vunpack.c.l.b16 %v80
  %v293 = vunpack.c.l.b16 %v81
  %v294 = vunpack.c.l.b16 %v82
  %v295 = vunpack.c.l.b16 %v83
  %v296 = vunpack.c.l.b16 %v84
  %v297 = vunpack.c.l.b16 %v85
  %v298 = vunpack.c.l.b16 %v86
  %v299 = vunpack.c.l.b16 %v87
  %v300 = vunpack.c.l.b16 %v88
  %v301 = vunpack.c.l.b16 %v89
  %v302 = vunpack.c.l.b16 %v90
  %v303 = vunpack.c.l.b16 %v91
  %v304 = vunpack.c.l.b16 %v92
  %v305 = vunpack.c.l.b16 %v93
  %v306 = vunpack.c.l.b16 %v94
  %v307 = vunpack.c.l.b16 %v95
  %v308 = vunpack.c.l.b16 %v96
  %v309 = vunpack.c.l.b16 %v97
  %v310 = vunpack.c.l.b16 %v98
  %v311 = vunpack.c.l.b16 %v99
  %v312 = vunpack.c.l.b16 %v100
  %v313 = vunpack.c.l.b16 %v101
  %v314 = vunpack.c.l.b16 %v102
  %v315 = vunpack.c.l.b16 %v103
  %v316 = vunpack.c.l.b16 %v104
  %v317 = vunpack.c.l.b16 %v105
  %v318 = vunpack.c.l.b16 %v106
  %v319 = vunpack.c.l.b16 %v107
  %v320 = vunpack.c.l.b16 %v108
  %v321 = vunpack.c.l.b16 %v109
  %v322 = vunpack.c.l.b16 %v110
  %v323 = vunpack.c.l.b16 %v111
  %v324 = vunpack.c.l.b16 %v112
  %v325 = vunpack.c.l.b16 %v113
  %v326 = vunpack.c.l.b16 %v114
  %v327 = vunpack.c.l.b16 %v115
  %v328 = vunpack.c.l.b16 %v116
  %v329 = vunpack.c.l.b16 %v117
  %v330 = vunpack.c.l.b16 %v118
  %v331 = vunpack.c.l.b16 %v119
  %v332 = vunpack.c.l.b16 %v120
  %v333 = vunpack.c.l.b16 %v121
  %v334 = vunpack.c.l.b16 %v122
  %v335 = vunpack.c.l.b16 %v123
  %v336 = vunpack.c.l.b16 %v124
  %v337 = vpack.c.b16 %v258, %v257
  %v338 = vpack.c.b16 %v260, %v259
  %v339 = vpack.c.b16 %v262, %v261
  %v340 = vpack.c.b16 %v264, %v263
  %v341 = vpack.c.b16 %v266, %v265
  %v342 = vpack.c.b16 %v268, %v267
  %v343 = vpack.c.b16 %v270, %v269
  %v344 = vpack.c.b16 %v272, %v271
  %v345 = vpack.c.b16 %v274, %v273
  %v346 = vpack.c.b16 %v276, %v275
  %v347 = vpack.c.b16 %v278, %v277
  %v348 = vpack.c.b16 %v280, %v279
  %v349 = vpack.c.b16 %v282, %v281
  %v350 = vpack.c.b16 %v284, %v283
  %v351 = vpack.c.b16 %v286, %v285
  %v352 = vpack.c.b16 %v288, %v287
  %v353 = vpack.c.b16 %v290, %v289
  %v354 = vpack.c.b16 %v292, %v291
  %v355 = vpack.c.b16 %v294, %v293
  %v356 = vpack.c.b16 %v296, %v295
  %v357 = vpack.c.b16 %v298, %v297
  %v358 = vpack.c.b16 %v300, %v299
  %v359 = vpack.c.b16 %v302, %v301
  %v360 = vpack.c.b16 %v304, %v303
  %v361 = vpack.c.b16 %v306, %v305
  %v362 = vpack.c.b16 %v308, %v307
  %v363 = vpack.c.b16 %v310, %v309
  %v364 = vpack.c.b16 %v312, %v311
  %v365 = vpack.c.b16 %v314, %v313
  %v366 = vpack.c.b16 %v316, %v315
  %v367 = vpack.c.b16 %v318, %v317
  %v368 = vpack.c.b16 %v320, %v319
  %v369 = vpack.c.b16 %v322, %v321
  %v370 = vpack.c.b16 %v324, %v323
  %v371 = vpack.c.b16 %v326, %v325
  %v372 = vpack.c.b16 %v328, %v327
  %v373 = vpack.c.b16 %v330, %v329
  %v374 = vpack.c.b16 %v332, %v331
  %v375 = vpack.c.b16 %v334, %v333
  %v376 = vpack.c.b16 %v336, %v335
  %417 = vmatprep.subr.bf16.mxu0 0
  %418 = vmatpush1.bf16.msra.mxu0 %v337
  %419 = vmatprep.subr.bf16.mxu0 0
  %420 = vmatpush1.bf16.msra.mxu0 %v338
  %421 = vmatprep.subr.bf16.mxu0 0
  %422 = vmatpush1.bf16.msra.mxu0 %v339
  %423 = vmatprep.subr.bf16.mxu0 0
  %424 = vmatpush1.bf16.msra.mxu0 %v340
  %425 = vmatprep.subr.bf16.mxu0 0
  %426 = vmatpush1.bf16.msra.mxu0 %v341
  %427 = vmatprep.subr.bf16.mxu0 0
  %428 = vmatpush1.bf16.msra.mxu0 %v342
  %429 = vmatprep.subr.bf16.mxu0 0
  %430 = vmatpush1.bf16.msra.mxu0 %v343
  %431 = vmatprep.subr.bf16.mxu0 0
  %432 = vmatpush1.bf16.msra.mxu0 %v344
  %433 = vmatprep.subr.bf16.mxu0 0
  %434 = vmatpush1.bf16.msra.mxu0 %v345
  %435 = vmatprep.subr.bf16.mxu0 0
  %436 = vmatpush1.bf16.msra.mxu0 %v346
  %437 = vmatprep.subr.bf16.mxu0 0
  %438 = vmatpush1.bf16.msra.mxu0 %v347
  %439 = vmatprep.subr.bf16.mxu0 0
  %440 = vmatpush1.bf16.msra.mxu0 %v348
  %441 = vmatprep.subr.bf16.mxu0 0
  %442 = vmatpush1.bf16.msra.mxu0 %v349
  %443 = vmatprep.subr.bf16.mxu0 0
  %444 = vmatpush1.bf16.msra.mxu0 %v350
  %445 = vmatprep.subr.bf16.mxu0 0
  %446 = vmatpush1.bf16.msra.mxu0 %v351
  %447 = vmatprep.subr.bf16.mxu0 0
  %448 = vmatpush1.bf16.msra.mxu0 %v352
  %449 = vmatprep.mubr.bf16.mxu0 %v158
  %450 = vmatmul.mubr.bf16.gmra.mrb[0].mxu0 %v157
  %v451 = vpop.f32.mrb[0].mxu0
  %v452 = vadd.f32 0.0, %v451
  %v453 = vpop.f32.mrb[0].mxu0
  %v454 = vpop.f32.mrb[0].mxu0
  %v455 = vadd.f32 0.0, %v454
  %v456 = vpop.f32.mrb[0].mxu0
  %457 = vmatprep.mubr.bf16.mxu0 %v163
  %458 = vmatmul.mubr.bf16.gmra.mrb[0].mxu0 %v162
  %v459 = vpop.f32.mrb[0].mxu0
  %v460 = vadd.f32 0.0, %v459
  %v461 = vpop.f32.mrb[0].mxu0
  %v462 = vpop.f32.mrb[0].mxu0
  %v463 = vadd.f32 0.0, %v462
  %v464 = vpop.f32.mrb[0].mxu0
  %465 = vdwg.mxu0
  %466 = vmatprep.subr.bf16.mxu0 0
  %467 = vmatpush1.bf16.msra.mxu0 %v353
  %468 = vmatprep.subr.bf16.mxu0 0
  %469 = vmatpush1.bf16.msra.mxu0 %v354
  %470 = vmatprep.subr.bf16.mxu0 0
  %471 = vmatpush1.bf16.msra.mxu0 %v355
  %472 = vmatprep.subr.bf16.mxu0 0
  %473 = vmatpush1.bf16.msra.mxu0 %v356
  %474 = vmatprep.subr.bf16.mxu0 0
  %475 = vmatpush1.bf16.msra.mxu0 %v357
  %476 = vmatprep.subr.bf16.mxu0 0
  %477 = vmatpush1.bf16.msra.mxu0 %v358
  %478 = vmatprep.subr.bf16.mxu0 0
  %479 = vmatpush1.bf16.msra.mxu0 %v359
  %480 = vmatprep.subr.bf16.mxu0 0
  %481 = vmatpush1.bf16.msra.mxu0 %v360
  %482 = vmatprep.subr.bf16.mxu0 0
  %483 = vmatpush1.bf16.msra.mxu0 %v361
  %484 = vmatprep.subr.bf16.mxu0 0
  %485 = vmatpush1.bf16.msra.mxu0 %v362
  %486 = vmatprep.subr.bf16.mxu0 0
  %487 = vmatpush1.bf16.msra.mxu0 %v363
  %488 = vmatprep.subr.bf16.mxu0 0
  %489 = vmatpush1.bf16.msra.mxu0 %v364
  %490 = vmatprep.subr.bf16.mxu0 0
  %491 = vmatpush1.bf16.msra.mxu0 %v365
  %492 = vmatprep.subr.bf16.mxu0 0
  %493 = vmatpush1.bf16.msra.mxu0 %v366
  %494 = vmatprep.subr.bf16.mxu0 0
  %495 = vmatpush1.bf16.msra.mxu0 %v367
  %496 = vmatprep.subr.bf16.mxu0 0
  %497 = vmatpush1.bf16.msra.mxu0 %v368
  %498 = vmatprep.mubr.bf16.mxu0 %v160
  %499 = vmatmul.mubr.bf16.gmra.mrb[0].mxu0 %v159
  %v500 = vpop.f32.mrb[0].mxu0
  %v501 = vadd.f32 %v452, %v500
  %v502 = vpop.f32.mrb[0].mxu0
  %v503 = vpop.f32.mrb[0].mxu0
  %v504 = vadd.f32 %v455, %v503
  %v505 = vpop.f32.mrb[0].mxu0
  %506 = vmatprep.mubr.bf16.mxu0 %v165
  %507 = vmatmul.mubr.bf16.gmra.mrb[0].mxu0 %v164
  %v508 = vpop.f32.mrb[0].mxu0
  %v509 = vadd.f32 %v460, %v508
  %v510 = vpop.f32.mrb[0].mxu0
  %v511 = vpop.f32.mrb[0].mxu0
  %v512 = vadd.f32 %v463, %v511
  %v513 = vpop.f32.mrb[0].mxu0
  %514 = vdwg.mxu0
  %515 = vmatprep.subr.bf16.mxu0 0
  %516 = vmatpush1.bf16.msra.mxu0 %v369
  %517 = vmatprep.subr.bf16.mxu0 0
  %518 = vmatpush1.bf16.msra.mxu0 %v370
  %519 = vmatprep.subr.bf16.mxu0 0
  %520 = vmatpush1.bf16.msra.mxu0 %v371
  %521 = vmatprep.subr.bf16.mxu0 0
  %522 = vmatpush1.bf16.msra.mxu0 %v372
  %523 = vmatprep.subr.bf16.mxu0 0
  %524 = vmatpush1.bf16.msra.mxu0 %v373
  %525 = vmatprep.subr.bf16.mxu0 0
  %526 = vmatpush1.bf16.msra.mxu0 %v374
  %527 = vmatprep.subr.bf16.mxu0 0
  %528 = vmatpush1.bf16.msra.mxu0 %v375
  %529 = vmatprep.subr.bf16.mxu0 0
  %530 = vmatpush1.bf16.msra.mxu0 %v376
  %531 = vmatprep.subr.bf16.mxu0 0
  %532 = vmatpush1.bf16.msra.mxu0 0
  %533 = vmatprep.subr.bf16.mxu0 0
  %534 = vmatpush1.bf16.msra.mxu0 0
  %535 = vmatprep.subr.bf16.mxu0 0
  %536 = vmatpush1.bf16.msra.mxu0 0
  %537 = vmatprep.subr.bf16.mxu0 0
  %538 = vmatpush1.bf16.msra.mxu0 0
  %539 = vmatprep.subr.bf16.mxu0 0
  %540 = vmatpush1.bf16.msra.mxu0 0
  %541 = vmatprep.subr.bf16.mxu0 0
  %542 = vmatpush1.bf16.msra.mxu0 0
  %543 = vmatprep.subr.bf16.mxu0 0
  %544 = vmatpush1.bf16.msra.mxu0 0
  %545 = vmatprep.subr.bf16.mxu0 0
  %546 = vmatpush1.bf16.msra.mxu0 0
  %547 = vmatprep.mubr.bf16.mxu0 0
  %548 = vmatmul.mubr.bf16.gmra.mrb[0].mxu0 %v161
  %v549 = vpop.f32.mrb[0].mxu0
  %v550 = vadd.f32 %v501, %v549
  %v551 = vpop.f32.mrb[0].mxu0
  %v552 = vpop.f32.mrb[0].mxu0
  %v553 = vadd.f32 %v504, %v552
  %v554 = vpop.f32.mrb[0].mxu0
  %555 = vmatprep.mubr.bf16.mxu0 0
  %556 = vmatmul.mubr.bf16.gmra.mrb[0].mxu0 %v166
  %v557 = vpop.f32.mrb[0].mxu0
  %v558 = vadd.f32 %v509, %v557
  %v559 = vpop.f32.mrb[0].mxu0
  %v560 = vpop.f32.mrb[0].mxu0
  %v561 = vadd.f32 %v512, %v560
  %v562 = vpop.f32.mrb[0].mxu0
  %563 = vdwg.mxu0
  %v564 = vadd.f32 %v29, %v550
  %v565 = vadd.f32 %v30, %v553
  %v566 = vadd.f32 %v31, %v558
  %v567 = vadd.f32 %v32, %v561
  %568 = vst [vmem:[#allocation2] sm:$0xff] %v564
  %569 = vst [vmem:[#allocation2 + $0x8] sm:$0xff] %v565
  %570 = vst [vmem:[#allocation2 + $0x10] sm:$0xff] %v566
  %571 = vst [vmem:[#allocation2 + $0x18] sm:$0xff] %v567
  // Predicated region
  $region26: #{haframe_wrn_forward.18} parent=0 // pred_check
    %p572 = pneg %p21
  $region27: #{haframe_wrn_forward.18} parent=0 // pred_check_branch
    %574 = sbr.rel (%p572) target = $region29
  $region28: #{haframe_wrn_forward.18} parent=0 // pred_region
    %v575 = vld [vmem:[#allocation2] sm:$0xff]
    %v576 = vld [vmem:[#allocation2 + $0x8] sm:$0xff]
    %v577 = vld [vmem:[#allocation2 + $0x10] sm:$0xff]
    %v578 = vld [vmem:[#allocation2 + $0x18] sm:$0xff]
    %v579 = vld [vmem:[%s4] sm:$0xff]
    %v580 = vld [vmem:[%s4 + $0x8] sm:$0xff]
    %v581 = vld [vmem:[%s4 + $0x10] sm:$0xff]
    %v582 = vld [vmem:[%s4 + $0x18] sm:$0xff]
    %v583 = vadd.f32 %v575, %v579
    %v584 = vadd.f32 %v576, %v580
    %v585 = vadd.f32 %v577, %v581
    %v586 = vadd.f32 %v578, %v582
    %v587 = vld [vmem:[%s2] sm:$0x1]
    %v589 = vlaneseq
    %v590 = vshrl.u32 %v589, 7
    %v591 = vsub.s32 0, %v590
    %v592 = vrot.slane %v587, %v591
    %v594 = vmul.f32 %v583, %v592
    %v595 = vmul.f32 %v584, %v592
    %v596 = vmul.f32 %v585, %v592
    %v597 = vmul.f32 %v586, %v592
    %v598 = vld [vmem:[%s3] sm:$0x1]
    %v600 = vlaneseq
    %v601 = vshrl.u32 %v600, 7
    %v602 = vsub.s32 0, %v601
    %v603 = vrot.slane %v598, %v602
    %v605 = vadd.f32 %v594, %v603
    %v606 = vadd.f32 %v595, %v603
    %v607 = vadd.f32 %v596, %v603
    %v608 = vadd.f32 %v597, %v603
    %v609 = vmax.f32 %v605, 0.0
    %v610 = vmax.f32 %v606, 0.0
    %v611 = vmax.f32 %v607, 0.0
    %v612 = vmax.f32 %v608, 0.0
    %v613 = vpack.c.bf16 %v610, %v609
    %v614 = vpack.c.bf16 %v612, %v611
    %v617 = vunpack.c.l.b16 %v613
    %v618 = vunpack.c.h.b16 %v613
    %v619 = vunpack.c.l.b16 %v614
    %v620 = vunpack.c.h.b16 %v614
    %v621 = vpack.c.b16 %v617, %v617
    %v622 = vpack.c.b16 %v618, %v618
    %v623 = vpack.c.b16 %v619, %v619
    %v624 = vpack.c.b16 %v620, %v620
    %629 = vst [vmem:[%s5] sm:$0xf] %v621
    %630 = vst [vmem:[%s5 + $0x4] sm:$0xf] %v622
    %631 = vst [vmem:[%s5 + $0x8] sm:$0xf] %v623
    %632 = vst [vmem:[%s5 + $0xc] sm:$0xf] %v624
  $region29: #{haframe_wrn_forward.18} parent=0 // pred_fallthru
    _
  // Predicated region
  $region30: #{haframe_wrn_forward.18} parent=0 // pred_check
    _
  $region31: #{haframe_wrn_forward.18} parent=0 // pred_check_branch
    %634 = sbr.rel (0) target = $region33
  $region32: #{haframe_wrn_forward.18} parent=0 // pred_region
    _
  $region33: #{haframe_wrn_forward.18} parent=0 // pred_fallthru
    _
  // Predicated region
  $region34: #{haframe_wrn_forward.18} parent=0 // pred_check
    _
  $region35: #{haframe_wrn_forward.18} parent=0 // pred_check_branch
    %636 = sbr.rel (0) target = $region37
  $region36: #{haframe_wrn_forward.18} parent=0 // pred_region
    _
  $region37: #{haframe_wrn_forward.18} parent=0 // pred_fallthru
    _

</llo_original>
